<compile_context>
chip_gen: v7x
topology: tpu7x:2x2x1
jax: 0.10.0
libtpu: 0.0.40
codegen_flags: <defaults>
</compile_context>

<pallas_src>
import functools

import jax
import jax.numpy as jnp
from jax import lax
from jax.experimental import pallas as pl
from jax.experimental.pallas import tpu as pltpu

BN_EPS = 1e-5
LANE = 128


def _round_up(v, m):
    return ((v + m - 1) // m) * m


def _vmem_limit_bytes():
    # v5e/v6e: 128 MiB physical VMEM; v7x: 64 MiB per TensorCore.  Request ~3/4
    # of physical so the compiler keeps headroom for its internal scratch and
    # double buffers (asking for the full v7x capacity risks compile failure or
    # pipeline serialization; capping v6e at 64 MiB wastes capacity).
    cap = 128 * 1024 * 1024
    try:
        info = pltpu.get_tpu_info()
        cap = getattr(info, "vmem_capacity_bytes", cap) or cap
    except Exception:
        pass
    return min(int(cap * 3 // 4), 100 * 1024 * 1024)


def _compiler_params():
    return pltpu.CompilerParams(
        dimension_semantics=("parallel",),
        vmem_limit_bytes=_vmem_limit_bytes(),
    )


# ---------------------------------------------------------------------------
# Shared 3x3-conv body: 9 taps as 5 MXU matmuls (pairwise K-grouping)
# ---------------------------------------------------------------------------
def _nine_tap_matmul(tap, w_ref, cpad):
    """`tap(t)` -> bf16 (m2, cpad) activation slice of tap t.
    `w_ref` holds the 9 taps stacked along K: (9*cpad, cpad) bf16.
    Pairs of taps are concatenated along K (K=2*cpad >= 256) so the 256-wide
    MXUs of v6e/v7x run at full K, and only 4 accumulator adds remain."""
    acc = None
    for p in range(4):                                   # taps (0,1)(2,3)(4,5)(6,7)
        a = jnp.concatenate([tap(2 * p), tap(2 * p + 1)], axis=-1)
        d = jnp.dot(a, w_ref[2 * p * cpad:(2 * p + 2) * cpad, :],
                    preferred_element_type=jnp.float32)
        acc = d if acc is None else acc + d
    return acc + jnp.dot(tap(8), w_ref[8 * cpad:9 * cpad, :],     # leftover tap, K=cpad
                         preferred_element_type=jnp.float32)


# ---------------------------------------------------------------------------
# Kernel 1: conv1 (bf16 MXU) + per-image BN partial stats
# ---------------------------------------------------------------------------
def _conv_stats_kernel(x_ref, w_ref, mask_ref, y_ref, stats_ref, *, shifts, m2):
    cpad = w_ref.shape[-1]

    def tap(t):
        s = shifts[t]
        return x_ref[0, s:s + m2, :]

    acc = _nine_tap_matmul(tap, w_ref, cpad)
    y_ref[0] = acc.astype(y_ref.dtype)
    # single-pass batch statistics over valid pixels only
    # (E[x^2]-mean^2 in f32; guarded with max(...,0) in the reduction below)
    av = acc * mask_ref[...]
    stats_ref[0, 0:1, :] = jnp.sum(av, axis=0, keepdims=True)
    stats_ref[0, 1:2, :] = jnp.sum(av * acc, axis=0, keepdims=True)


# ---------------------------------------------------------------------------
# Kernel 2: bn1 + relu (into a bf16 VMEM scratch) + conv2 + BN stats.
#           The intermediate activation h1 never touches HBM.
# ---------------------------------------------------------------------------
def _bn_relu_conv_stats_kernel(y1_ref, scale_ref, shift_ref, w_ref, mask_ref,
                               y2_ref, stats_ref, h_ref, *, shifts, m2, store_off):
    cpad = w_ref.shape[-1]
    lh = h_ref.shape[0]
    mask = mask_ref[...]

    # Zero the spatial-padding rows every iteration (see NOTE at top of file on
    # why a pl.when(program_id==0) guard would be unsafe under megacore).
    h_ref[0:store_off, :] = jnp.zeros((store_off, cpad), h_ref.dtype)
    h_ref[store_off + m2:lh, :] = jnp.zeros((lh - store_off - m2, cpad), h_ref.dtype)

    # bn1 + relu in f32; masking the pad columns makes them conv2's zero padding
    z = jnp.maximum(y1_ref[0].astype(jnp.float32) * scale_ref[...]
                    + shift_ref[...], 0.0) * mask
    h_ref[store_off:store_off + m2, :] = z.astype(h_ref.dtype)   # 16-row aligned store

    def tap(t):
        s = shifts[t]
        return h_ref[s:s + m2, :]

    acc = _nine_tap_matmul(tap, w_ref, cpad)
    y2_ref[0] = acc.astype(y2_ref.dtype)
    av = acc * mask
    stats_ref[0, 0:1, :] = jnp.sum(av, axis=0, keepdims=True)
    stats_ref[0, 1:2, :] = jnp.sum(av * acc, axis=0, keepdims=True)


# ---------------------------------------------------------------------------
# Kernel 3: bn2 + identity residual (read straight from xL) + relu
# ---------------------------------------------------------------------------
def _bn_res_relu_kernel(y_ref, scale_ref, shift_ref, x_ref, o_ref, *, top, m2):
    res = x_ref[0, top:top + m2, :].astype(jnp.float32)
    z = y_ref[0].astype(jnp.float32) * scale_ref[...] + shift_ref[...] + res
    o_ref[0] = jnp.maximum(z, 0.0)


# ---------------------------------------------------------------------------
# pallas_call wrappers
# ---------------------------------------------------------------------------
def _conv_stats(xL, w_stack, mask, *, m2, shifts):
    n, lfull, cpad = xL.shape
    kernel = functools.partial(_conv_stats_kernel, shifts=shifts, m2=m2)
    # TODO(synk): for cpad >= 256 give the weight spec pipeline_mode=pl.Buffered(1)
    # (index-invariant operand) to save a redundant pipeline buffer on v7x.
    return pl.pallas_call(
        kernel,
        grid=(n,),
        in_specs=[
            pl.BlockSpec((1, lfull, cpad), lambda i: (i, 0, 0)),
            pl.BlockSpec((9 * cpad, cpad), lambda i: (0, 0)),
            pl.BlockSpec((m2, 1), lambda i: (0, 0)),
        ],
        out_specs=[
            pl.BlockSpec((1, m2, cpad), lambda i: (i, 0, 0)),
            pl.BlockSpec((1, 2, cpad), lambda i: (i, 0, 0)),
        ],
        out_shape=[
            jax.ShapeDtypeStruct((n, m2, cpad), jnp.bfloat16),
            jax.ShapeDtypeStruct((n, 2, cpad), jnp.float32),
        ],
        compiler_params=_compiler_params(),
    )(xL, w_stack, mask)


def _bn_relu_conv_stats(y1, scale, shift, w_stack, mask, *, h_rows, shifts, store_off):
    n, m2, cpad = y1.shape
    kernel = functools.partial(_bn_relu_conv_stats_kernel,
                               shifts=shifts, m2=m2, store_off=store_off)
    return pl.pallas_call(
        kernel,
        grid=(n,),
        in_specs=[
            pl.BlockSpec((1, m2, cpad), lambda i: (i, 0, 0)),
            pl.BlockSpec((1, cpad), lambda i: (0, 0)),
            pl.BlockSpec((1, cpad), lambda i: (0, 0)),
            pl.BlockSpec((9 * cpad, cpad), lambda i: (0, 0)),
            pl.BlockSpec((m2, 1), lambda i: (0, 0)),
        ],
        out_specs=[
            pl.BlockSpec((1, m2, cpad), lambda i: (i, 0, 0)),
            pl.BlockSpec((1, 2, cpad), lambda i: (i, 0, 0)),
        ],
        out_shape=[
            jax.ShapeDtypeStruct((n, m2, cpad), jnp.bfloat16),
            jax.ShapeDtypeStruct((n, 2, cpad), jnp.float32),
        ],
        scratch_shapes=[pltpu.VMEM((h_rows, cpad), jnp.bfloat16)],
        compiler_params=_compiler_params(),
    )(y1, scale, shift, w_stack, mask)


def _bn_res_relu(y2, scale, shift, xL, *, top):
    n, m2, cpad = y2.shape
    lfull = xL.shape[1]
    kernel = functools.partial(_bn_res_relu_kernel, top=top, m2=m2)
    return pl.pallas_call(
        kernel,
        grid=(n,),
        in_specs=[
            pl.BlockSpec((1, m2, cpad), lambda i: (i, 0, 0)),
            pl.BlockSpec((1, cpad), lambda i: (0, 0)),
            pl.BlockSpec((1, cpad), lambda i: (0, 0)),
            pl.BlockSpec((1, lfull, cpad), lambda i: (i, 0, 0)),
        ],
        out_specs=pl.BlockSpec((1, m2, cpad), lambda i: (i, 0, 0)),
        out_shape=jax.ShapeDtypeStruct((n, m2, cpad), jnp.float32),
        compiler_params=_compiler_params(),
    )(y2, scale, shift, xL)


def _bn_affine(stats, gamma, beta, count):
    """Global (over all N*H*W pixels) training-mode BN -> per-channel scale/shift."""
    s1 = jnp.sum(stats[:, 0, :], axis=0)
    s2 = jnp.sum(stats[:, 1, :], axis=0)
    mean = s1 / count
    var = jnp.maximum(s2 / count - mean * mean, 0.0)
    scale = gamma * lax.rsqrt(var + BN_EPS)
    shift = beta - mean * scale
    return scale[None, :], shift[None, :]


# ---------------------------------------------------------------------------
# baseBlock forward (stride=1, dim_change=None)
# ---------------------------------------------------------------------------
def base_block_forward(x_nchw, params):
    n, c, h, w = x_nchw.shape
    planes = params["w1"].shape[-1]
    if params["w1"].shape[2] != c or planes != c:
        raise ValueError("dim_change=None path requires input_planes == planes")
    # TODO(synk): stride != 1 and the dim_change (projection shortcut) branch of
    # baseBlock are not implemented; the module's default forward path is covered.

    cpad = _round_up(planes, LANE)       # lane-dense channels (zero-padded weights)
    wp = w + 2                           # row stride of the flat padded layout
    lfull = (h + 3) * wp                 # 1 top / 2 bottom pad rows, 1+1 pad cols
    m2 = h * wp                          # conv-output rows computed per image
    top = wp + 1                         # flat offset of pixel (0, 0)
    shifts = tuple(dy * wp + dx for dy in range(3) for dx in range(3))
    count = float(n * h * w)

    # ----- layout plumbing (plain XLA): bf16 zero-padded flat layout, lane-padded C
    x_nhwc = jnp.transpose(x_nchw, (0, 2, 3, 1))
    x_pad = jnp.pad(x_nhwc, ((0, 0), (1, 2), (1, 1), (0, cpad - c)))
    xL = x_pad.reshape(n, lfull, cpad).astype(jnp.bfloat16)   # conv1 input + residual
    # NOTE: the identity residual is read back from this bf16 array in pass 3
    # (bf16-rounded residual; well inside the bf16-level tolerance used below).

    # valid-pixel mask: the 2 padding columns of each flat row contribute neither
    # to the BN statistics nor to the next conv's input.
    col = jnp.arange(m2, dtype=jnp.int32) % wp
    vmask = (col < w).astype(jnp.float32)[:, None]             # (m2, 1)

    # h-scratch geometry: small leading pad so the bf16 intermediate store is
    # 16-row (sublane) aligned.
    lead = (-top) % 16
    h_rows = lead + lfull
    shifts2 = tuple(lead + s for s in shifts)
    store_off = lead + top

    def pack_w(wt):                      # HWIO -> (9*cpad, cpad) bf16, taps stacked on K
        ci, co = wt.shape[2], wt.shape[3]
        wt = jnp.pad(wt, ((0, 0), (0, 0), (0, cpad - ci), (0, cpad - co)))
        return wt.reshape(9 * cpad, cpad).astype(jnp.bfloat16)

    w1 = pack_w(params["w1"])
    w2 = pack_w(params["w2"])
    g1 = jnp.pad(params["g1"].reshape(-1), (0, cpad - planes))
    be1 = jnp.pad(params["beta1"].reshape(-1), (0, cpad - planes))
    g2 = jnp.pad(params["g2"].reshape(-1), (0, cpad - planes))
    be2 = jnp.pad(params["beta2"].reshape(-1), (0, cpad - planes))
    # NOTE: conv biases (params["b1"]/["b2"]) are cancelled exactly by the
    # training-mode BN mean subtraction, so the kernels skip them.

    # ----- pass 1: conv1 + per-image BN partial stats
    y1, st1 = _conv_stats(xL, w1, vmask, m2=m2, shifts=shifts)
    scale1, shift1 = _bn_affine(st1, g1, be1, count)

    # ----- pass 2: bn1 + relu fused with conv2 (+ stats); h1 never leaves VMEM
    y2, st2 = _bn_relu_conv_stats(y1, scale1, shift1, w2, vmask,
                                  h_rows=h_rows, shifts=shifts2, store_off=store_off)
    scale2, shift2 = _bn_affine(st2, g2, be2, count)

    # ----- pass 3: bn2 + identity residual (sliced from xL in-kernel) + relu
    out_flat = _bn_res_relu(y2, scale2, shift2, xL, top=top)

    # TODO(synk): for very large H*W add an intra-image row-strip grid axis
    # (1-row halo, marked "parallel") so a single image tile plus the h scratch
    # stays comfortably inside v7x's 64 MiB VMEM.
    out = out_flat.reshape(n, h, wp, cpad)[:, :, :w, :planes]
    return jnp.transpose(out, (0, 3, 1, 2))          # back to NCHW


# ---------------------------------------------------------------------------
# Pure-JAX f32 reference (mirrors the PyTorch module, incl. conv bias)
# ---------------------------------------------------------------------------
def base_block_reference(x_nchw, params):
    x = jnp.transpose(x_nchw, (0, 2, 3, 1)).astype(jnp.float32)

    def conv(inp, wt, b):
        y = lax.conv_general_dilated(
            inp, wt, window_strides=(1, 1), padding="SAME",
            dimension_numbers=("NHWC", "HWIO", "NHWC"))
        return y + b.reshape(1, 1, 1, -1)

    def bn(y, g, beta):
        mean = jnp.mean(y, axis=(0, 1, 2), keepdims=True)
        var = jnp.mean((y - mean) ** 2, axis=(0, 1, 2), keepdims=True)
        return ((y - mean) * lax.rsqrt(var + BN_EPS)
                * g.reshape(1, 1, 1, -1) + beta.reshape(1, 1, 1, -1))

    h1 = jax.nn.relu(bn(conv(x, params["w1"], params["b1"]),
                        params["g1"], params["beta1"]))
    o = bn(conv(h1, params["w2"], params["b2"]), params["g2"], params["beta2"])
    o = jax.nn.relu(o + x)
    return jnp.transpose(o, (0, 3, 1, 2))


def make_params(key, input_planes, planes):
    ks = jax.random.split(key, 8)
    return {
        "w1": 0.2 * jax.random.normal(ks[0], (3, 3, input_planes, planes), jnp.float32),
        "b1": 0.05 * jax.random.normal(ks[1], (planes,), jnp.float32),
        "g1": 1.0 + 0.1 * jax.random.normal(ks[2], (planes,), jnp.float32),
        "beta1": 0.1 * jax.random.normal(ks[3], (planes,), jnp.float32),
        "w2": 0.2 * jax.random.normal(ks[4], (3, 3, planes, planes), jnp.float32),
        "b2": 0.05 * jax.random.normal(ks[5], (planes,), jnp.float32),
        "g2": 1.0 + 0.1 * jax.random.normal(ks[6], (planes,), jnp.float32),
        "beta2": 0.1 * jax.random.normal(ks[7], (planes,), jnp.float32),
    }


if __name__ == "__main__":
    key = jax.random.PRNGKey(0)
    k_x, k_p = jax.random.split(key)

    N, C, H, W = 2, 4, 16, 16            # input_planes == planes (dim_change=None)
    x = jax.random.normal(k_x, (N, C, H, W), jnp.float32)
    params = make_params(k_p, input_planes=C, planes=C)

    out = jax.block_until_ready(jax.jit(base_block_forward)(x, params))
    ref = jax.block_until_ready(base_block_reference(x, params))

    assert out.shape == (N, C, H, W)
    max_err = float(jnp.max(jnp.abs(out - ref)))
    # bf16 activations / MXU operands vs. the all-f32 reference -> bf16 tolerance
    assert jnp.allclose(out, ref, atol=5e-2, rtol=5e-2), (
        f"mismatch vs reference (max abs err = {max_err})")
    print("KERNEL_OK")
</pallas_src>

<mosaic_0001>
module attributes {stable_mosaic.version = 11 : i64} {
  func.func @_conv_stats_kernel(%arg0: i32, %arg1: memref<1x342x128xbf16, #tpu.memory_space<vmem>>, %arg2: memref<1152x128xbf16, #tpu.memory_space<vmem>>, %arg3: memref<288x1xf32, #tpu.memory_space<vmem>>, %arg4: memref<1x288x128xbf16, #tpu.memory_space<vmem>>, %arg5: memref<1x2x128xf32, #tpu.memory_space<vmem>>) attributes {dimension_semantics = [#tpu.dimension_semantics<parallel>], iteration_bounds = array<i64: 2>, scalar_prefetch = 0 : i64, scratch_operands = 0 : i64, tpu.core_type = #tpu.core_type<tc>, window_params = [{transform_indices = @transform_0, window_bounds = array<i64: 1, 342, 128>}, {pipeline_mode = #tpu.pipeline_mode<synchronous>, transform_indices = @transform_1, window_bounds = array<i64: 1152, 128>}, {pipeline_mode = #tpu.pipeline_mode<synchronous>, transform_indices = @transform_2, window_bounds = array<i64: 288, 1>}, {transform_indices = @transform_3, window_bounds = array<i64: 1, 288, 128>}, {transform_indices = @transform_4, window_bounds = array<i64: 1, 2, 128>}]} {
    %c0 = arith.constant 0 : index
    %c0_0 = arith.constant 0 : index
    %c0_1 = arith.constant 0 : index
    %0 = vector.load %arg1[%c0, %c0_0, %c0_1] : memref<1x342x128xbf16, #tpu.memory_space<vmem>>, vector<1x288x128xbf16>
    %1 = vector.shape_cast %0 : vector<1x288x128xbf16> to vector<288x128xbf16>
    %c0_2 = arith.constant 0 : index
    %c1 = arith.constant 1 : index
    %c0_3 = arith.constant 0 : index
    %2 = vector.load %arg1[%c0_2, %c1, %c0_3] : memref<1x342x128xbf16, #tpu.memory_space<vmem>>, vector<1x288x128xbf16>
    %3 = vector.shape_cast %2 : vector<1x288x128xbf16> to vector<288x128xbf16>
    %4 = tpu.concatenate %1, %3 in 1 : vector<288x128xbf16>, vector<288x128xbf16> -> vector<288x256xbf16>
    %c0_4 = arith.constant 0 : index
    %c0_5 = arith.constant 0 : index
    %5 = vector.load %arg2[%c0_4, %c0_5] : memref<1152x128xbf16, #tpu.memory_space<vmem>>, vector<256x128xbf16>
    %cst = arith.constant dense<0.000000e+00> : vector<288x128xf32>
    %6 = tpu.matmul %4, %5, %cst {dimension_numbers = #tpu.dot_dimension_numbers<[1], [0], [0], [1], [0, 0, 1, 1], [], []>} : vector<288x256xbf16>, vector<256x128xbf16>, vector<288x128xf32> -> vector<288x128xf32>
    %c0_6 = arith.constant 0 : index
    %c2 = arith.constant 2 : index
    %c0_7 = arith.constant 0 : index
    %7 = vector.load %arg1[%c0_6, %c2, %c0_7] : memref<1x342x128xbf16, #tpu.memory_space<vmem>>, vector<1x288x128xbf16>
    %8 = vector.shape_cast %7 : vector<1x288x128xbf16> to vector<288x128xbf16>
    %c0_8 = arith.constant 0 : index
    %c18 = arith.constant 18 : index
    %c0_9 = arith.constant 0 : index
    %9 = vector.load %arg1[%c0_8, %c18, %c0_9] : memref<1x342x128xbf16, #tpu.memory_space<vmem>>, vector<1x288x128xbf16>
    %10 = vector.shape_cast %9 : vector<1x288x128xbf16> to vector<288x128xbf16>
    %11 = tpu.concatenate %8, %10 in 1 : vector<288x128xbf16>, vector<288x128xbf16> -> vector<288x256xbf16>
    %c256 = arith.constant 256 : index
    %c0_10 = arith.constant 0 : index
    %12 = vector.load %arg2[%c256, %c0_10] : memref<1152x128xbf16, #tpu.memory_space<vmem>>, vector<256x128xbf16>
    %cst_11 = arith.constant dense<0.000000e+00> : vector<288x128xf32>
    %13 = tpu.matmul %11, %12, %cst_11 {dimension_numbers = #tpu.dot_dimension_numbers<[1], [0], [0], [1], [0, 0, 1, 1], [], []>} : vector<288x256xbf16>, vector<256x128xbf16>, vector<288x128xf32> -> vector<288x128xf32>
    %14 = arith.addf %6, %13 : vector<288x128xf32>
    %c0_12 = arith.constant 0 : index
    %c19 = arith.constant 19 : index
    %c0_13 = arith.constant 0 : index
    %15 = vector.load %arg1[%c0_12, %c19, %c0_13] : memref<1x342x128xbf16, #tpu.memory_space<vmem>>, vector<1x288x128xbf16>
    %16 = vector.shape_cast %15 : vector<1x288x128xbf16> to vector<288x128xbf16>
    %c0_14 = arith.constant 0 : index
    %c20 = arith.constant 20 : index
    %c0_15 = arith.constant 0 : index
    %17 = vector.load %arg1[%c0_14, %c20, %c0_15] : memref<1x342x128xbf16, #tpu.memory_space<vmem>>, vector<1x288x128xbf16>
    %18 = vector.shape_cast %17 : vector<1x288x128xbf16> to vector<288x128xbf16>
    %19 = tpu.concatenate %16, %18 in 1 : vector<288x128xbf16>, vector<288x128xbf16> -> vector<288x256xbf16>
    %c512 = arith.constant 512 : index
    %c0_16 = arith.constant 0 : index
    %20 = vector.load %arg2[%c512, %c0_16] : memref<1152x128xbf16, #tpu.memory_space<vmem>>, vector<256x128xbf16>
    %cst_17 = arith.constant dense<0.000000e+00> : vector<288x128xf32>
    %21 = tpu.matmul %19, %20, %cst_17 {dimension_numbers = #tpu.dot_dimension_numbers<[1], [0], [0], [1], [0, 0, 1, 1], [], []>} : vector<288x256xbf16>, vector<256x128xbf16>, vector<288x128xf32> -> vector<288x128xf32>
    %22 = arith.addf %14, %21 : vector<288x128xf32>
    %c0_18 = arith.constant 0 : index
    %c36 = arith.constant 36 : index
    %c0_19 = arith.constant 0 : index
    %23 = vector.load %arg1[%c0_18, %c36, %c0_19] : memref<1x342x128xbf16, #tpu.memory_space<vmem>>, vector<1x288x128xbf16>
    %24 = vector.shape_cast %23 : vector<1x288x128xbf16> to vector<288x128xbf16>
    %c0_20 = arith.constant 0 : index
    %c37 = arith.constant 37 : index
    %c0_21 = arith.constant 0 : index
    %25 = vector.load %arg1[%c0_20, %c37, %c0_21] : memref<1x342x128xbf16, #tpu.memory_space<vmem>>, vector<1x288x128xbf16>
    %26 = vector.shape_cast %25 : vector<1x288x128xbf16> to vector<288x128xbf16>
    %27 = tpu.concatenate %24, %26 in 1 : vector<288x128xbf16>, vector<288x128xbf16> -> vector<288x256xbf16>
    %c768 = arith.constant 768 : index
    %c0_22 = arith.constant 0 : index
    %28 = vector.load %arg2[%c768, %c0_22] : memref<1152x128xbf16, #tpu.memory_space<vmem>>, vector<256x128xbf16>
    %cst_23 = arith.constant dense<0.000000e+00> : vector<288x128xf32>
    %29 = tpu.matmul %27, %28, %cst_23 {dimension_numbers = #tpu.dot_dimension_numbers<[1], [0], [0], [1], [0, 0, 1, 1], [], []>} : vector<288x256xbf16>, vector<256x128xbf16>, vector<288x128xf32> -> vector<288x128xf32>
    %30 = arith.addf %22, %29 : vector<288x128xf32>
    %c0_24 = arith.constant 0 : index
    %c38 = arith.constant 38 : index
    %c0_25 = arith.constant 0 : index
    %31 = vector.load %arg1[%c0_24, %c38, %c0_25] : memref<1x342x128xbf16, #tpu.memory_space<vmem>>, vector<1x288x128xbf16>
    %32 = vector.shape_cast %31 : vector<1x288x128xbf16> to vector<288x128xbf16>
    %c1024 = arith.constant 1024 : index
    %c0_26 = arith.constant 0 : index
    %33 = vector.load %arg2[%c1024, %c0_26] : memref<1152x128xbf16, #tpu.memory_space<vmem>>, vector<128x128xbf16>
    %cst_27 = arith.constant dense<0.000000e+00> : vector<288x128xf32>
    %34 = tpu.matmul %32, %33, %cst_27 {dimension_numbers = #tpu.dot_dimension_numbers<[1], [0], [0], [1], [0, 0, 1, 1], [], []>} : vector<288x128xbf16>, vector<128x128xbf16>, vector<288x128xf32> -> vector<288x128xf32>
    %35 = arith.addf %30, %34 : vector<288x128xf32>
    %36 = arith.truncf %35 : vector<288x128xf32> to vector<288x128xbf16>
    %c0_28 = arith.constant 0 : index
    %c0_29 = arith.constant 0 : index
    %c0_30 = arith.constant 0 : index
    %37 = vector.load %arg4[%c0_28, %c0_29, %c0_30] : memref<1x288x128xbf16, #tpu.memory_space<vmem>>, vector<1x288x128xbf16>
    %38 = vector.shape_cast %37 : vector<1x288x128xbf16> to vector<288x128xbf16>
    %39 = vector.shape_cast %36 : vector<288x128xbf16> to vector<1x288x128xbf16>
    tpu.vector_store %arg4[%c0_28, %c0_29, %c0_30], %39 {strides = array<i32>} : memref<1x288x128xbf16, #tpu.memory_space<vmem>>, vector<1x288x128xbf16>,
    %c0_31 = arith.constant 0 : index
    %c0_32 = arith.constant 0 : index
    %40 = vector.load %arg3[%c0_31, %c0_32] : memref<288x1xf32, #tpu.memory_space<vmem>>, vector<288x1xf32>
    %41 = vector.broadcast %40 : vector<288x1xf32> to vector<288x128xf32>
    %42 = arith.mulf %35, %41 : vector<288x128xf32>
    %cst_33 = arith.constant dense<0.000000e+00> : vector<128xf32>
    %43 = vector.multi_reduction <add>, %42, %cst_33 [0] : vector<288x128xf32> to vector<128xf32>
    %44 = vector.shape_cast %43 : vector<128xf32> to vector<1x128xf32>
    %c0_34 = arith.constant 0 : index
    %c0_35 = arith.constant 0 : index
    %c0_36 = arith.constant 0 : index
    %45 = vector.load %arg5[%c0_34, %c0_35, %c0_36] : memref<1x2x128xf32, #tpu.memory_space<vmem>>, vector<1x1x128xf32>
    %46 = vector.shape_cast %45 : vector<1x1x128xf32> to vector<1x128xf32>
    %47 = vector.shape_cast %44 : vector<1x128xf32> to vector<1x1x128xf32>
    tpu.vector_store %arg5[%c0_34, %c0_35, %c0_36], %47 {strides = array<i32>} : memref<1x2x128xf32, #tpu.memory_space<vmem>>, vector<1x1x128xf32>,
    %48 = arith.mulf %42, %35 : vector<288x128xf32>
    %cst_37 = arith.constant dense<0.000000e+00> : vector<128xf32>
    %49 = vector.multi_reduction <add>, %48, %cst_37 [0] : vector<288x128xf32> to vector<128xf32>
    %50 = vector.shape_cast %49 : vector<128xf32> to vector<1x128xf32>
    %c0_38 = arith.constant 0 : index
    %c1_39 = arith.constant 1 : index
    %c0_40 = arith.constant 0 : index
    %51 = vector.load %arg5[%c0_38, %c1_39, %c0_40] : memref<1x2x128xf32, #tpu.memory_space<vmem>>, vector<1x1x128xf32>
    %52 = vector.shape_cast %51 : vector<1x1x128xf32> to vector<1x128xf32>
    %53 = vector.shape_cast %50 : vector<1x128xf32> to vector<1x1x128xf32>
    tpu.vector_store %arg5[%c0_38, %c1_39, %c0_40], %53 {strides = array<i32>} : memref<1x2x128xf32, #tpu.memory_space<vmem>>, vector<1x1x128xf32>,
    return
  }
  func.func @transform_0(%arg0: i32) -> (i32, i32, i32) {
    %c0_i32 = arith.constant 0 : i32
    %c0_i32_0 = arith.constant 0 : i32
    %c0_i32_1 = arith.constant 0 : i32
    return %arg0, %c0_i32, %c0_i32_0 : i32, i32, i32
  }
  func.func @transform_1(%arg0: i32) -> (i32, i32) {
    %c0_i32 = arith.constant 0 : i32
    %c0_i32_0 = arith.constant 0 : i32
    %c0_i32_1 = arith.constant 0 : i32
    return %c0_i32, %c0_i32_0 : i32, i32
  }
  func.func @transform_2(%arg0: i32) -> (i32, i32) {
    %c0_i32 = arith.constant 0 : i32
    %c0_i32_0 = arith.constant 0 : i32
    %c0_i32_1 = arith.constant 0 : i32
    return %c0_i32, %c0_i32_0 : i32, i32
  }
  func.func @transform_3(%arg0: i32) -> (i32, i32, i32) {
    %c0_i32 = arith.constant 0 : i32
    %c0_i32_0 = arith.constant 0 : i32
    %c0_i32_1 = arith.constant 0 : i32
    return %arg0, %c0_i32, %c0_i32_0 : i32, i32, i32
  }
  func.func @transform_4(%arg0: i32) -> (i32, i32, i32) {
    %c0_i32 = arith.constant 0 : i32
    %c0_i32_0 = arith.constant 0 : i32
    %c0_i32_1 = arith.constant 0 : i32
    return %arg0, %c0_i32, %c0_i32_0 : i32, i32, i32
  }
}

module attributes {stable_mosaic.version = 11 : i64} {
  func.func @_bn_relu_conv_stats_kernel(%arg0: i32, %arg1: memref<1x288x128xbf16, #tpu.memory_space<vmem>>, %arg2: memref<1x128xf32, #tpu.memory_space<vmem>>, %arg3: memref<1x128xf32, #tpu.memory_space<vmem>>, %arg4: memref<1152x128xbf16, #tpu.memory_space<vmem>>, %arg5: memref<288x1xf32, #tpu.memory_space<vmem>>, %arg6: memref<1x288x128xbf16, #tpu.memory_space<vmem>>, %arg7: memref<1x2x128xf32, #tpu.memory_space<vmem>>, %arg8: memref<355x128xbf16, #tpu.memory_space<vmem>>) attributes {dimension_semantics = [#tpu.dimension_semantics<parallel>], iteration_bounds = array<i64: 2>, scalar_prefetch = 0 : i64, scratch_operands = 1 : i64, tpu.core_type = #tpu.core_type<tc>, window_params = [{transform_indices = @transform_0, window_bounds = array<i64: 1, 288, 128>}, {pipeline_mode = #tpu.pipeline_mode<synchronous>, transform_indices = @transform_1, window_bounds = array<i64: 1, 128>}, {pipeline_mode = #tpu.pipeline_mode<synchronous>, transform_indices = @transform_2, window_bounds = array<i64: 1, 128>}, {pipeline_mode = #tpu.pipeline_mode<synchronous>, transform_indices = @transform_3, window_bounds = array<i64: 1152, 128>}, {pipeline_mode = #tpu.pipeline_mode<synchronous>, transform_indices = @transform_4, window_bounds = array<i64: 288, 1>}, {transform_indices = @transform_5, window_bounds = array<i64: 1, 288, 128>}, {transform_indices = @transform_6, window_bounds = array<i64: 1, 2, 128>}]} {
    %c0 = arith.constant 0 : index
    %c0_0 = arith.constant 0 : index
    %0 = vector.load %arg5[%c0, %c0_0] : memref<288x1xf32, #tpu.memory_space<vmem>>, vector<288x1xf32>
    %cst = arith.constant 0.000000e+00 : bf16
    %1 = vector.broadcast %cst : bf16 to vector<32x128xbf16>
    %c0_1 = arith.constant 0 : index
    %c0_2 = arith.constant 0 : index
    %2 = vector.load %arg8[%c0_1, %c0_2] : memref<355x128xbf16, #tpu.memory_space<vmem>>, vector<32x128xbf16>
    tpu.vector_store %arg8[%c0_1, %c0_2], %1 {strides = array<i32>} : memref<355x128xbf16, #tpu.memory_space<vmem>>, vector<32x128xbf16>,
    %cst_3 = arith.constant 0.000000e+00 : bf16
    %3 = vector.broadcast %cst_3 : bf16 to vector<35x128xbf16>
    %c320 = arith.constant 320 : index
    %c0_4 = arith.constant 0 : index
    %4 = vector.load %arg8[%c320, %c0_4] : memref<355x128xbf16, #tpu.memory_space<vmem>>, vector<35x128xbf16>
    tpu.vector_store %arg8[%c320, %c0_4], %3 {strides = array<i32>} : memref<355x128xbf16, #tpu.memory_space<vmem>>, vector<35x128xbf16>,
    %c0_5 = arith.constant 0 : index
    %c0_6 = arith.constant 0 : index
    %c0_7 = arith.constant 0 : index
    %5 = vector.load %arg1[%c0_5, %c0_6, %c0_7] : memref<1x288x128xbf16, #tpu.memory_space<vmem>>, vector<1x288x128xbf16>
    %6 = vector.shape_cast %5 : vector<1x288x128xbf16> to vector<288x128xbf16>
    %7 = arith.extf %6 : vector<288x128xbf16> to vector<288x128xf32>
    %c0_8 = arith.constant 0 : index
    %c0_9 = arith.constant 0 : index
    %8 = vector.load %arg2[%c0_8, %c0_9] : memref<1x128xf32, #tpu.memory_space<vmem>>, vector<1x128xf32>
    %9 = vector.broadcast %8 : vector<1x128xf32> to vector<288x128xf32>
    %10 = arith.mulf %7, %9 : vector<288x128xf32>
    %c0_10 = arith.constant 0 : index
    %c0_11 = arith.constant 0 : index
    %11 = vector.load %arg3[%c0_10, %c0_11] : memref<1x128xf32, #tpu.memory_space<vmem>>, vector<1x128xf32>
    %12 = vector.broadcast %11 : vector<1x128xf32> to vector<288x128xf32>
    %13 = arith.addf %10, %12 : vector<288x128xf32>
    %cst_12 = arith.constant 0.000000e+00 : f32
    %14 = vector.broadcast %cst_12 : f32 to vector<288x128xf32>
    %15 = arith.maximumf %13, %14 : vector<288x128xf32>
    %16 = vector.broadcast %0 : vector<288x1xf32> to vector<288x128xf32>
    %17 = arith.mulf %15, %16 : vector<288x128xf32>
    %18 = arith.truncf %17 : vector<288x128xf32> to vector<288x128xbf16>
    %c32 = arith.constant 32 : index
    %c0_13 = arith.constant 0 : index
    %19 = vector.load %arg8[%c32, %c0_13] : memref<355x128xbf16, #tpu.memory_space<vmem>>, vector<288x128xbf16>
    tpu.vector_store %arg8[%c32, %c0_13], %18 {strides = array<i32>} : memref<355x128xbf16, #tpu.memory_space<vmem>>, vector<288x128xbf16>,
    %c13 = arith.constant 13 : index
    %c0_14 = arith.constant 0 : index
    %20 = vector.load %arg8[%c13, %c0_14] : memref<355x128xbf16, #tpu.memory_space<vmem>>, vector<288x128xbf16>
    %c14 = arith.constant 14 : index
    %c0_15 = arith.constant 0 : index
    %21 = vector.load %arg8[%c14, %c0_15] : memref<355x128xbf16, #tpu.memory_space<vmem>>, vector<288x128xbf16>
    %22 = tpu.concatenate %20, %21 in 1 : vector<288x128xbf16>, vector<288x128xbf16> -> vector<288x256xbf16>
    %c0_16 = arith.constant 0 : index
    %c0_17 = arith.constant 0 : index
    %23 = vector.load %arg4[%c0_16, %c0_17] : memref<1152x128xbf16, #tpu.memory_space<vmem>>, vector<256x128xbf16>
    %cst_18 = arith.constant dense<0.000000e+00> : vector<288x128xf32>
    %24 = tpu.matmul %22, %23, %cst_18 {dimension_numbers = #tpu.dot_dimension_numbers<[1], [0], [0], [1], [0, 0, 1, 1], [], []>} : vector<288x256xbf16>, vector<256x128xbf16>, vector<288x128xf32> -> vector<288x128xf32>
    %c15 = arith.constant 15 : index
    %c0_19 = arith.constant 0 : index
    %25 = vector.load %arg8[%c15, %c0_19] : memref<355x128xbf16, #tpu.memory_space<vmem>>, vector<288x128xbf16>
    %c31 = arith.constant 31 : index
    %c0_20 = arith.constant 0 : index
    %26 = vector.load %arg8[%c31, %c0_20] : memref<355x128xbf16, #tpu.memory_space<vmem>>, vector<288x128xbf16>
    %27 = tpu.concatenate %25, %26 in 1 : vector<288x128xbf16>, vector<288x128xbf16> -> vector<288x256xbf16>
    %c256 = arith.constant 256 : index
    %c0_21 = arith.constant 0 : index
    %28 = vector.load %arg4[%c256, %c0_21] : memref<1152x128xbf16, #tpu.memory_space<vmem>>, vector<256x128xbf16>
    %cst_22 = arith.constant dense<0.000000e+00> : vector<288x128xf32>
    %29 = tpu.matmul %27, %28, %cst_22 {dimension_numbers = #tpu.dot_dimension_numbers<[1], [0], [0], [1], [0, 0, 1, 1], [], []>} : vector<288x256xbf16>, vector<256x128xbf16>, vector<288x128xf32> -> vector<288x128xf32>
    %30 = arith.addf %24, %29 : vector<288x128xf32>
    %c32_23 = arith.constant 32 : index
    %c0_24 = arith.constant 0 : index
    %31 = vector.load %arg8[%c32_23, %c0_24] : memref<355x128xbf16, #tpu.memory_space<vmem>>, vector<288x128xbf16>
    %c33 = arith.constant 33 : index
    %c0_25 = arith.constant 0 : index
    %32 = vector.load %arg8[%c33, %c0_25] : memref<355x128xbf16, #tpu.memory_space<vmem>>, vector<288x128xbf16>
    %33 = tpu.concatenate %31, %32 in 1 : vector<288x128xbf16>, vector<288x128xbf16> -> vector<288x256xbf16>
    %c512 = arith.constant 512 : index
    %c0_26 = arith.constant 0 : index
    %34 = vector.load %arg4[%c512, %c0_26] : memref<1152x128xbf16, #tpu.memory_space<vmem>>, vector<256x128xbf16>
    %cst_27 = arith.constant dense<0.000000e+00> : vector<288x128xf32>
    %35 = tpu.matmul %33, %34, %cst_27 {dimension_numbers = #tpu.dot_dimension_numbers<[1], [0], [0], [1], [0, 0, 1, 1], [], []>} : vector<288x256xbf16>, vector<256x128xbf16>, vector<288x128xf32> -> vector<288x128xf32>
    %36 = arith.addf %30, %35 : vector<288x128xf32>
    %c49 = arith.constant 49 : index
    %c0_28 = arith.constant 0 : index
    %37 = vector.load %arg8[%c49, %c0_28] : memref<355x128xbf16, #tpu.memory_space<vmem>>, vector<288x128xbf16>
    %c50 = arith.constant 50 : index
    %c0_29 = arith.constant 0 : index
    %38 = vector.load %arg8[%c50, %c0_29] : memref<355x128xbf16, #tpu.memory_space<vmem>>, vector<288x128xbf16>
    %39 = tpu.concatenate %37, %38 in 1 : vector<288x128xbf16>, vector<288x128xbf16> -> vector<288x256xbf16>
    %c768 = arith.constant 768 : index
    %c0_30 = arith.constant 0 : index
    %40 = vector.load %arg4[%c768, %c0_30] : memref<1152x128xbf16, #tpu.memory_space<vmem>>, vector<256x128xbf16>
    %cst_31 = arith.constant dense<0.000000e+00> : vector<288x128xf32>
    %41 = tpu.matmul %39, %40, %cst_31 {dimension_numbers = #tpu.dot_dimension_numbers<[1], [0], [0], [1], [0, 0, 1, 1], [], []>} : vector<288x256xbf16>, vector<256x128xbf16>, vector<288x128xf32> -> vector<288x128xf32>
    %42 = arith.addf %36, %41 : vector<288x128xf32>
    %c51 = arith.constant 51 : index
    %c0_32 = arith.constant 0 : index
    %43 = vector.load %arg8[%c51, %c0_32] : memref<355x128xbf16, #tpu.memory_space<vmem>>, vector<288x128xbf16>
    %c1024 = arith.constant 1024 : index
    %c0_33 = arith.constant 0 : index
    %44 = vector.load %arg4[%c1024, %c0_33] : memref<1152x128xbf16, #tpu.memory_space<vmem>>, vector<128x128xbf16>
    %cst_34 = arith.constant dense<0.000000e+00> : vector<288x128xf32>
    %45 = tpu.matmul %43, %44, %cst_34 {dimension_numbers = #tpu.dot_dimension_numbers<[1], [0], [0], [1], [0, 0, 1, 1], [], []>} : vector<288x128xbf16>, vector<128x128xbf16>, vector<288x128xf32> -> vector<288x128xf32>
    %46 = arith.addf %42, %45 : vector<288x128xf32>
    %47 = arith.truncf %46 : vector<288x128xf32> to vector<288x128xbf16>
    %c0_35 = arith.constant 0 : index
    %c0_36 = arith.constant 0 : index
    %c0_37 = arith.constant 0 : index
    %48 = vector.load %arg6[%c0_35, %c0_36, %c0_37] : memref<1x288x128xbf16, #tpu.memory_space<vmem>>, vector<1x288x128xbf16>
    %49 = vector.shape_cast %48 : vector<1x288x128xbf16> to vector<288x128xbf16>
    %50 = vector.shape_cast %47 : vector<288x128xbf16> to vector<1x288x128xbf16>
    tpu.vector_store %arg6[%c0_35, %c0_36, %c0_37], %50 {strides = array<i32>} : memref<1x288x128xbf16, #tpu.memory_space<vmem>>, vector<1x288x128xbf16>,
    %51 = vector.broadcast %0 : vector<288x1xf32> to vector<288x128xf32>
    %52 = arith.mulf %46, %51 : vector<288x128xf32>
    %cst_38 = arith.constant dense<0.000000e+00> : vector<128xf32>
    %53 = vector.multi_reduction <add>, %52, %cst_38 [0] : vector<288x128xf32> to vector<128xf32>
    %54 = vector.shape_cast %53 : vector<128xf32> to vector<1x128xf32>
    %c0_39 = arith.constant 0 : index
    %c0_40 = arith.constant 0 : index
    %c0_41 = arith.constant 0 : index
    %55 = vector.load %arg7[%c0_39, %c0_40, %c0_41] : memref<1x2x128xf32, #tpu.memory_space<vmem>>, vector<1x1x128xf32>
    %56 = vector.shape_cast %55 : vector<1x1x128xf32> to vector<1x128xf32>
    %57 = vector.shape_cast %54 : vector<1x128xf32> to vector<1x1x128xf32>
    tpu.vector_store %arg7[%c0_39, %c0_40, %c0_41], %57 {strides = array<i32>} : memref<1x2x128xf32, #tpu.memory_space<vmem>>, vector<1x1x128xf32>,
    %58 = arith.mulf %52, %46 : vector<288x128xf32>
    %cst_42 = arith.constant dense<0.000000e+00> : vector<128xf32>
    %59 = vector.multi_reduction <add>, %58, %cst_42 [0] : vector<288x128xf32> to vector<128xf32>
    %60 = vector.shape_cast %59 : vector<128xf32> to vector<1x128xf32>
    %c0_43 = arith.constant 0 : index
    %c1 = arith.constant 1 : index
    %c0_44 = arith.constant 0 : index
    %61 = vector.load %arg7[%c0_43, %c1, %c0_44] : memref<1x2x128xf32, #tpu.memory_space<vmem>>, vector<1x1x128xf32>
    %62 = vector.shape_cast %61 : vector<1x1x128xf32> to vector<1x128xf32>
    %63 = vector.shape_cast %60 : vector<1x128xf32> to vector<1x1x128xf32>
    tpu.vector_store %arg7[%c0_43, %c1, %c0_44], %63 {strides = array<i32>} : memref<1x2x128xf32, #tpu.memory_space<vmem>>, vector<1x1x128xf32>,
    return
  }
  func.func @transform_0(%arg0: i32) -> (i32, i32, i32) {
    %c0_i32 = arith.constant 0 : i32
    %c0_i32_0 = arith.constant 0 : i32
    %c0_i32_1 = arith.constant 0 : i32
    return %arg0, %c0_i32, %c0_i32_0 : i32, i32, i32
  }
  func.func @transform_1(%arg0: i32) -> (i32, i32) {
    %c0_i32 = arith.constant 0 : i32
    %c0_i32_0 = arith.constant 0 : i32
    %c0_i32_1 = arith.constant 0 : i32
    return %c0_i32, %c0_i32_0 : i32, i32
  }
  func.func @transform_2(%arg0: i32) -> (i32, i32) {
    %c0_i32 = arith.constant 0 : i32
    %c0_i32_0 = arith.constant 0 : i32
    %c0_i32_1 = arith.constant 0 : i32
    return %c0_i32, %c0_i32_0 : i32, i32
  }
  func.func @transform_3(%arg0: i32) -> (i32, i32) {
    %c0_i32 = arith.constant 0 : i32
    %c0_i32_0 = arith.constant 0 : i32
    %c0_i32_1 = arith.constant 0 : i32
    return %c0_i32, %c0_i32_0 : i32, i32
  }
  func.func @transform_4(%arg0: i32) -> (i32, i32) {
    %c0_i32 = arith.constant 0 : i32
    %c0_i32_0 = arith.constant 0 : i32
    %c0_i32_1 = arith.constant 0 : i32
    return %c0_i32, %c0_i32_0 : i32, i32
  }
  func.func @transform_5(%arg0: i32) -> (i32, i32, i32) {
    %c0_i32 = arith.constant 0 : i32
    %c0_i32_0 = arith.constant 0 : i32
    %c0_i32_1 = arith.constant 0 : i32
    return %arg0, %c0_i32, %c0_i32_0 : i32, i32, i32
  }
  func.func @transform_6(%arg0: i32) -> (i32, i32, i32) {
    %c0_i32 = arith.constant 0 : i32
    %c0_i32_0 = arith.constant 0 : i32
    %c0_i32_1 = arith.constant 0 : i32
    return %arg0, %c0_i32, %c0_i32_0 : i32, i32, i32
  }
}

module attributes {stable_mosaic.version = 11 : i64} {
  func.func @_bn_res_relu_kernel(%arg0: i32, %arg1: memref<1x288x128xbf16, #tpu.memory_space<vmem>>, %arg2: memref<1x128xf32, #tpu.memory_space<vmem>>, %arg3: memref<1x128xf32, #tpu.memory_space<vmem>>, %arg4: memref<1x342x128xbf16, #tpu.memory_space<vmem>>, %arg5: memref<1x288x128xf32, #tpu.memory_space<vmem>>) attributes {dimension_semantics = [#tpu.dimension_semantics<parallel>], iteration_bounds = array<i64: 2>, scalar_prefetch = 0 : i64, scratch_operands = 0 : i64, tpu.core_type = #tpu.core_type<tc>, window_params = [{transform_indices = @transform_0, window_bounds = array<i64: 1, 288, 128>}, {pipeline_mode = #tpu.pipeline_mode<synchronous>, transform_indices = @transform_1, window_bounds = array<i64: 1, 128>}, {pipeline_mode = #tpu.pipeline_mode<synchronous>, transform_indices = @transform_2, window_bounds = array<i64: 1, 128>}, {transform_indices = @transform_3, window_bounds = array<i64: 1, 342, 128>}, {transform_indices = @transform_4, window_bounds = array<i64: 1, 288, 128>}]} {
    %c0 = arith.constant 0 : index
    %c19 = arith.constant 19 : index
    %c0_0 = arith.constant 0 : index
    %0 = vector.load %arg4[%c0, %c19, %c0_0] : memref<1x342x128xbf16, #tpu.memory_space<vmem>>, vector<1x288x128xbf16>
    %1 = vector.shape_cast %0 : vector<1x288x128xbf16> to vector<288x128xbf16>
    %2 = arith.extf %1 : vector<288x128xbf16> to vector<288x128xf32>
    %c0_1 = arith.constant 0 : index
    %c0_2 = arith.constant 0 : index
    %c0_3 = arith.constant 0 : index
    %3 = vector.load %arg1[%c0_1, %c0_2, %c0_3] : memref<1x288x128xbf16, #tpu.memory_space<vmem>>, vector<1x288x128xbf16>
    %4 = vector.shape_cast %3 : vector<1x288x128xbf16> to vector<288x128xbf16>
    %5 = arith.extf %4 : vector<288x128xbf16> to vector<288x128xf32>
    %c0_4 = arith.constant 0 : index
    %c0_5 = arith.constant 0 : index
    %6 = vector.load %arg2[%c0_4, %c0_5] : memref<1x128xf32, #tpu.memory_space<vmem>>, vector<1x128xf32>
    %7 = vector.broadcast %6 : vector<1x128xf32> to vector<288x128xf32>
    %8 = arith.mulf %5, %7 : vector<288x128xf32>
    %c0_6 = arith.constant 0 : index
    %c0_7 = arith.constant 0 : index
    %9 = vector.load %arg3[%c0_6, %c0_7] : memref<1x128xf32, #tpu.memory_space<vmem>>, vector<1x128xf32>
    %10 = vector.broadcast %9 : vector<1x128xf32> to vector<288x128xf32>
    %11 = arith.addf %8, %10 : vector<288x128xf32>
    %12 = arith.addf %11, %2 : vector<288x128xf32>
    %cst = arith.constant 0.000000e+00 : f32
    %13 = vector.broadcast %cst : f32 to vector<288x128xf32>
    %14 = arith.maximumf %12, %13 : vector<288x128xf32>
    %c0_8 = arith.constant 0 : index
    %c0_9 = arith.constant 0 : index
    %c0_10 = arith.constant 0 : index
    %15 = vector.load %arg5[%c0_8, %c0_9, %c0_10] : memref<1x288x128xf32, #tpu.memory_space<vmem>>, vector<1x288x128xf32>
    %16 = vector.shape_cast %15 : vector<1x288x128xf32> to vector<288x128xf32>
    %17 = vector.shape_cast %14 : vector<288x128xf32> to vector<1x288x128xf32>
    tpu.vector_store %arg5[%c0_8, %c0_9, %c0_10], %17 {strides = array<i32>} : memref<1x288x128xf32, #tpu.memory_space<vmem>>, vector<1x288x128xf32>,
    return
  }
  func.func @transform_0(%arg0: i32) -> (i32, i32, i32) {
    %c0_i32 = arith.constant 0 : i32
    %c0_i32_0 = arith.constant 0 : i32
    %c0_i32_1 = arith.constant 0 : i32
    return %arg0, %c0_i32, %c0_i32_0 : i32, i32, i32
  }
  func.func @transform_1(%arg0: i32) -> (i32, i32) {
    %c0_i32 = arith.constant 0 : i32
    %c0_i32_0 = arith.constant 0 : i32
    %c0_i32_1 = arith.constant 0 : i32
    return %c0_i32, %c0_i32_0 : i32, i32
  }
  func.func @transform_2(%arg0: i32) -> (i32, i32) {
    %c0_i32 = arith.constant 0 : i32
    %c0_i32_0 = arith.constant 0 : i32
    %c0_i32_1 = arith.constant 0 : i32
    return %c0_i32, %c0_i32_0 : i32, i32
  }
  func.func @transform_3(%arg0: i32) -> (i32, i32, i32) {
    %c0_i32 = arith.constant 0 : i32
    %c0_i32_0 = arith.constant 0 : i32
    %c0_i32_1 = arith.constant 0 : i32
    return %arg0, %c0_i32, %c0_i32_0 : i32, i32, i32
  }
  func.func @transform_4(%arg0: i32) -> (i32, i32, i32) {
    %c0_i32 = arith.constant 0 : i32
    %c0_i32_0 = arith.constant 0 : i32
    %c0_i32_1 = arith.constant 0 : i32
    return %arg0, %c0_i32, %c0_i32_0 : i32, i32, i32
  }
}

</mosaic_0001>

<llo_original>
// kernel: base_block_forward.5
$region0: #{base_block_forward.5}
  #allocation0 [shape = 'u32[]', space=smem, size = 0x4, offset = 0x4, fixed_abs, tag = 'smem constant byte address 0x4 - core index']
  #allocation1 [shape = 'u32[144,128]{1,0:T(1,128)}', space=vmem, size = 0x12000, scoped, tag = 'internal scratch']
  %s0 = inlined_call_operand.hbm [shape: bf16[2,288,128], index: 0, kind: input, shape index: {}]
  %s1 = inlined_call_operand.hbm [shape: f32[1,128], index: 1, kind: input, shape index: {}]
  %s2 = inlined_call_operand.hbm [shape: f32[1,128], index: 2, kind: input, shape index: {}]
  %s3 = inlined_call_operand.hbm [shape: bf16[2,342,128], index: 3, kind: input, shape index: {}]
  %s4 = inlined_call_operand.hbm [shape: f32[2,288,128], index: 4, kind: output, shape index: {}]
  %s5 = sld [smem:[#allocation0]]
  $region65: #{base_block_forward.5} parent=0
    _
  %s7 = ssub.s32 1, %s5
  %s8 = scalar_select 0, %s7, %s5
  $region1: #{base_block_forward.5} parent=0
    #allocation2 [shape = 'u8[147456]{0}', space=vmem, size = 0x24000, scoped, tag = 'input window, operand 0']
    #allocation3 [shape = 's32[2]{0}', space=sflag, size = 0x8, scoped, tag = 'scoped memory for base_block_forward.5']
    #allocation4 [shape = 's32[2]{0}', space=sflag, size = 0x8, scoped, tag = 'scoped memory for base_block_forward.5']
    #allocation5 [shape = 'u8[512]{0}', space=vmem, size = 0x400, scoped, tag = 'input window, operand 1, single buffered']
    #allocation6 [shape = 's32[1]{0}', space=sflag, size = 0x4, scoped, tag = 'scoped memory for base_block_forward.5']
    #allocation7 [shape = 'u8[512]{0}', space=vmem, size = 0x400, scoped, tag = 'input window, operand 2, single buffered']
    #allocation8 [shape = 'u8[176128]{0}', space=vmem, size = 0x2b000, scoped, tag = 'input window, operand 3']
    #allocation9 [shape = 's32[2]{0}', space=sflag, size = 0x8, scoped, tag = 'scoped memory for base_block_forward.5']
    #allocation10 [shape = 'u8[294912]{0}', space=vmem, size = 0x48000, scoped, tag = 'output window, operand 0']
    %9 = vsyncpa [#allocation3], 0
    %s10 = scalar_lea.sflag [#allocation3], 1
    %11 = vsyncpa %s10, 0
    %12 = vsyncpa [#allocation6], 0
    %13 = vsyncpa [#allocation9], 0
    %s14 = scalar_lea.sflag [#allocation9], 1
    %15 = vsyncpa %s14, 0
    %16 = vsyncpa [#allocation4], 0
    %s17 = scalar_lea.sflag [#allocation4], 1
    %18 = vsyncpa %s17, 0
    loop: start=0, step=1, limit=4
    $region2: #{base_block_forward.5} parent=1 // loop_pre_header
      _
    $region3: #{base_block_forward.5} parent=1 // loop_header
      %s20 = sphi 0, %s24
      %p21 = scmp.ge.s32.totalorder %s20, 4
      %s30 = sphi 0, %s32
      %s33 = sphi 0, %s30
      %s34 = sphi 0, %s33
      %s50 = sphi 0, %s34
      %s54 = sphi 0, %s54
      %s56 = sphi 0, %s54
      %s57 = sphi 0, %s56
      %s71 = sphi 0, %s57
      %s75 = sphi 0, %s75
      %s77 = sphi 0, %s75
      %s78 = sphi 0, %s77
      %s92 = sphi 0, %s78
      %s98 = sphi 0, %s100
      %s101 = sphi 0, %s98
      %s102 = sphi 0, %s101
      %s118 = sphi 0, %s102
      %s124 = sphi 0, %s126
      %s127 = sphi 0, %s124
      %s128 = sphi 0, %s127
      %s144 = sphi 0, %s128
    $region4: #{base_block_forward.5} parent=1 // loop_header_branch
      %23 = sbr.rel (%p21) target = $region8
    $region5: #{base_block_forward.5} parent=1 // loop_body
      %s25 = ssub.s32 %s20, 1
      %s26 = ssub.s32 %s20, 2
      %s27 = sadd.s32 %s20, 1
      %s28 = ssub.s32 %s20, %s27
      %p29 = scmp.eq.s32.totalorder %s28, 0
      %s31 = sadd.s32 %s30, 1
      %s32 = scalar_select %p29, %s30, %s31
      %p35 = pneg %p29
      %p36 = scmp.eq.s32.totalorder %s20, 1
      %p37 = por %p35, %p36
      %p38 = scmp.ne.s32.totalorder %s30, %s33
      %p39 = scmp.eq.s32.totalorder %s20, 0
      %p40 = por %p38, %p39
      %p41 = scmp.ne.s32.totalorder %s30, %s33
      %p42 = scmp.eq.s32.totalorder %s25, 1
      %p43 = por %p41, %p42
      %p44 = scmp.ne.s32.totalorder %s33, %s34
      %p45 = scmp.eq.s32.totalorder %s25, 0
      %p46 = por %p44, %p45
      %p47 = scmp.ne.s32.totalorder %s33, %s34
      %p48 = scmp.eq.s32.totalorder %s26, 1
      %p49 = por %p47, %p48
      %p51 = scmp.ne.s32.totalorder %s34, %s50
      %p52 = scmp.eq.s32.totalorder %s26, 0
      %p53 = por %p51, %p52
      %s55 = sadd.s32 %s54, 1
      %p58 = scmp.eq.s32.totalorder %s20, 1
      %p59 = scmp.ne.s32.totalorder %s54, %s56
      %p60 = scmp.eq.s32.totalorder %s20, 0
      %p61 = por %p59, %p60
      %p62 = scmp.ne.s32.totalorder %s54, %s56
      %p63 = scmp.eq.s32.totalorder %s25, 1
      %p64 = por %p62, %p63
      %p65 = scmp.ne.s32.totalorder %s56, %s57
      %p66 = scmp.eq.s32.totalorder %s25, 0
      %p67 = por %p65, %p66
      %p68 = scmp.ne.s32.totalorder %s56, %s57
      %p69 = scmp.eq.s32.totalorder %s26, 1
      %p70 = por %p68, %p69
      %p72 = scmp.ne.s32.totalorder %s57, %s71
      %p73 = scmp.eq.s32.totalorder %s26, 0
      %p74 = por %p72, %p73
      %s76 = sadd.s32 %s75, 1
      %p79 = scmp.eq.s32.totalorder %s20, 1
      %p80 = scmp.ne.s32.totalorder %s75, %s77
      %p81 = scmp.eq.s32.totalorder %s20, 0
      %p82 = por %p80, %p81
      %p83 = scmp.ne.s32.totalorder %s75, %s77
      %p84 = scmp.eq.s32.totalorder %s25, 1
      %p85 = por %p83, %p84
      %p86 = scmp.ne.s32.totalorder %s77, %s78
      %p87 = scmp.eq.s32.totalorder %s25, 0
      %p88 = por %p86, %p87
      %p89 = scmp.ne.s32.totalorder %s77, %s78
      %p90 = scmp.eq.s32.totalorder %s26, 1
      %p91 = por %p89, %p90
      %p93 = scmp.ne.s32.totalorder %s78, %s92
      %p94 = scmp.eq.s32.totalorder %s26, 0
      %p95 = por %p93, %p94
      %s96 = ssub.s32 %s20, %s27
      %p97 = scmp.eq.s32.totalorder %s96, 0
      %s99 = sadd.s32 %s98, 1
      %s100 = scalar_select %p97, %s98, %s99
      %p103 = pneg %p97
      %p104 = scmp.eq.s32.totalorder %s20, 1
      %p105 = por %p103, %p104
      %p106 = scmp.ne.s32.totalorder %s98, %s101
      %p107 = scmp.eq.s32.totalorder %s20, 0
      %p108 = por %p106, %p107
      %p109 = scmp.ne.s32.totalorder %s98, %s101
      %p110 = scmp.eq.s32.totalorder %s25, 1
      %p111 = por %p109, %p110
      %p112 = scmp.ne.s32.totalorder %s101, %s102
      %p113 = scmp.eq.s32.totalorder %s25, 0
      %p114 = por %p112, %p113
      %p115 = scmp.ne.s32.totalorder %s101, %s102
      %p116 = scmp.eq.s32.totalorder %s26, 1
      %p117 = por %p115, %p116
      %p119 = scmp.ne.s32.totalorder %s102, %s118
      %p120 = scmp.eq.s32.totalorder %s26, 0
      %p121 = por %p119, %p120
      %s122 = ssub.s32 %s20, %s27
      %p123 = scmp.eq.s32.totalorder %s122, 0
      %s125 = sadd.s32 %s124, 1
      %s126 = scalar_select %p123, %s124, %s125
      %p129 = pneg %p123
      %p130 = scmp.eq.s32.totalorder %s20, 1
      %p131 = por %p129, %p130
      %p132 = scmp.ne.s32.totalorder %s124, %s127
      %p133 = scmp.eq.s32.totalorder %s20, 0
      %p134 = por %p132, %p133
      %p135 = scmp.ne.s32.totalorder %s124, %s127
      %p136 = scmp.eq.s32.totalorder %s25, 1
      %p137 = por %p135, %p136
      %p138 = scmp.ne.s32.totalorder %s127, %s128
      %p139 = scmp.eq.s32.totalorder %s25, 0
      %p140 = por %p138, %p139
      %p141 = scmp.ne.s32.totalorder %s127, %s128
      %p142 = scmp.eq.s32.totalorder %s26, 1
      %p143 = por %p141, %p142
      %p145 = scmp.ne.s32.totalorder %s128, %s144
      %p146 = scmp.eq.s32.totalorder %s26, 0
      %p147 = por %p145, %p146
      %p148 = scmp.le.s32.totalorder 1, %s20
      %p149 = scmp.lt.s32.totalorder %s20, 3
      %p150 = pnand %p148, %p149
      %p151 = pneg %p150
      // Predicated region
      $region9: #{base_block_forward.5} parent=5 // pred_check
        _
      $region10: #{base_block_forward.5} parent=5 // pred_check_branch
        %153 = sbr.rel (%p150) target = $region12
      $region11: #{base_block_forward.5} parent=5 // pred_region
        %s154 = ssub.s32 %s20, 1
        // Predicated region
        $region13: #{base_block_forward.5} parent=11 // pred_check
          %p155 = pneg %p67
        $region14: #{base_block_forward.5} parent=11 // pred_check_branch
          %157 = sbr.rel (%p155) target = $region16
        $region15: #{base_block_forward.5} parent=11 // pred_region
          %s159 = ssub.s32 16, 16
          %160 = vsyncadd [#allocation6], %s159
          %s162 = sshll.u32 [#allocation5], 4
          %s163 = int_to_ptr.vmem [resolvable:$true] %s162
          %165 = dma.hbm_to_vmem [thread:$0]  %s1, 16, %s163, [#allocation6]
        $region16: #{base_block_forward.5} parent=11 // pred_fallthru
          _
        // Predicated region
        $region17: #{base_block_forward.5} parent=11 // pred_check
          %p166 = pneg %p88
        $region18: #{base_block_forward.5} parent=11 // pred_check_branch
          %168 = sbr.rel (%p166) target = $region20
        $region19: #{base_block_forward.5} parent=11 // pred_region
          %s170 = ssub.s32 16, 16
          %171 = vsyncadd [#allocation6], %s170
          %s173 = sshll.u32 [#allocation7], 4
          %s174 = int_to_ptr.vmem [resolvable:$true] %s173
          %176 = dma.hbm_to_vmem [thread:$0]  %s2, 16, %s174, [#allocation6]
        $region20: #{base_block_forward.5} parent=11 // pred_fallthru
          _
      $region12: #{base_block_forward.5} parent=5 // pred_fallthru
        _
      %p177 = scmp.lt.s32.totalorder %s20, 2
      // Predicated region
      $region21: #{base_block_forward.5} parent=5 // pred_check
        %p178 = pneg %p177
      $region22: #{base_block_forward.5} parent=5 // pred_check_branch
        %180 = sbr.rel (%p178) target = $region24
      $region23: #{base_block_forward.5} parent=5 // pred_region
        // Predicated region
        $region25: #{base_block_forward.5} parent=23 // pred_check
          %p181 = pneg %p40
        $region26: #{base_block_forward.5} parent=23 // pred_check_branch
          %183 = sbr.rel (%p181) target = $region28
        $region27: #{base_block_forward.5} parent=23 // pred_region
          %s184 = sand.u32 %s30, 1
          %s185 = scalar_lea.sflag [#allocation3], %s184
          %s186 = sand.u32 %s30, 1
          %s187 = smul.addr %s186, 144
          %s188 = scalar_lea.vmem [#allocation2], %s187
          %s190 = ssub.s32 2304, 2304
          %191 = vsyncadd %s185, %s190
          %s192 = smul.addr %s20, 36
          %s193 = smul.addr %s192, 64
          %s194 = scalar_lea.hbm %s0, %s193
          %s195 = sshll.u32 %s188, 4
          %s196 = int_to_ptr.vmem [resolvable:$true] %s195
          %201 = dma.hbm_to_vmem [thread:$0]  %s194, 2304, %s196, %s185, 64, 64, 4
        $region28: #{base_block_forward.5} parent=23 // pred_fallthru
          _
        // Predicated region
        $region29: #{base_block_forward.5} parent=23 // pred_check
          %p202 = pneg %p108
        $region30: #{base_block_forward.5} parent=23 // pred_check_branch
          %204 = sbr.rel (%p202) target = $region32
        $region31: #{base_block_forward.5} parent=23 // pred_region
          %s205 = sand.u32 %s98, 1
          %s206 = scalar_lea.sflag [#allocation9], %s205
          %s207 = sand.u32 %s98, 1
          %s208 = smul.addr %s207, 172
          %s209 = scalar_lea.vmem [#allocation8], %s208
          %s211 = ssub.s32 2752, 2752
          %212 = vsyncadd %s206, %s211
          %s213 = smul.addr %s20, 43
          %s214 = smul.addr %s213, 64
          %s215 = scalar_lea.hbm %s3, %s214
          %s216 = sshll.u32 %s209, 4
          %s217 = int_to_ptr.vmem [resolvable:$true] %s216
          %222 = dma.hbm_to_vmem [thread:$0]  %s215, 2752, %s217, %s206, 64, 64, 4
        $region32: #{base_block_forward.5} parent=23 // pred_fallthru
          _
      $region24: #{base_block_forward.5} parent=5 // pred_fallthru
        _
      %p223 = scmp.le.s32.totalorder 1, %s20
      %p224 = scmp.lt.s32.totalorder %s20, 3
      %p225 = pnand %p223, %p224
      %p226 = pneg %p225
      // Predicated region
      $region33: #{base_block_forward.5} parent=5 // pred_check
        _
      $region34: #{base_block_forward.5} parent=5 // pred_check_branch
        %228 = sbr.rel (%p225) target = $region36
      $region35: #{base_block_forward.5} parent=5 // pred_region
        %s229 = ssub.s32 %s20, 1
        %s230 = sand.u32 %s33, 1
        %s231 = scalar_lea.sflag [#allocation3], %s230
        %s232 = sand.u32 %s33, 1
        %s233 = smul.addr %s232, 144
        %s234 = scalar_lea.vmem [#allocation2], %s233
        // Predicated region
        $region37: #{base_block_forward.5} parent=35 // pred_check
          %p235 = pneg %p46
        $region38: #{base_block_forward.5} parent=35 // pred_check_branch
          %237 = sbr.rel (%p235) target = $region40
        $region39: #{base_block_forward.5} parent=35 // pred_region
          %238 = dma.done %s231, 2304
        $region40: #{base_block_forward.5} parent=35 // pred_fallthru
          _
        // Predicated region
        $region41: #{base_block_forward.5} parent=35 // pred_check
          %p239 = pneg %p67
        $region42: #{base_block_forward.5} parent=35 // pred_check_branch
          %241 = sbr.rel (%p239) target = $region44
        $region43: #{base_block_forward.5} parent=35 // pred_region
          %242 = dma.done [#allocation6], 16
        $region44: #{base_block_forward.5} parent=35 // pred_fallthru
          _
        // Predicated region
        $region45: #{base_block_forward.5} parent=35 // pred_check
          %p243 = pneg %p88
        $region46: #{base_block_forward.5} parent=35 // pred_check_branch
          %245 = sbr.rel (%p243) target = $region48
        $region47: #{base_block_forward.5} parent=35 // pred_region
          %246 = dma.done [#allocation6], 16
        $region48: #{base_block_forward.5} parent=35 // pred_fallthru
          _
        %s247 = sand.u32 %s101, 1
        %s248 = scalar_lea.sflag [#allocation9], %s247
        %s249 = sand.u32 %s101, 1
        %s250 = smul.addr %s249, 172
        %s251 = scalar_lea.vmem [#allocation8], %s250
        // Predicated region
        $region49: #{base_block_forward.5} parent=35 // pred_check
          %p252 = pneg %p114
        $region50: #{base_block_forward.5} parent=35 // pred_check_branch
          %254 = sbr.rel (%p252) target = $region52
        $region51: #{base_block_forward.5} parent=35 // pred_region
          %255 = dma.done %s248, 2752
        $region52: #{base_block_forward.5} parent=35 // pred_fallthru
          _
        %s256 = sand.u32 %s33, 1
        %s257 = scalar_lea.sflag [#allocation3], %s256
        %s258 = sand.u32 %s33, 1
        %s259 = smul.addr %s258, 144
        %s260 = scalar_lea.vmem [#allocation2], %s259
        %p261 = pneg %p46
        %p262 = pneg %p43
        %p263 = pneg %p67
        %p264 = pneg %p64
        %p265 = pneg %p88
        %p266 = pneg %p85
        %s267 = sand.u32 %s101, 1
        %s268 = scalar_lea.sflag [#allocation9], %s267
        %s269 = sand.u32 %s101, 1
        %s270 = smul.addr %s269, 172
        %s271 = scalar_lea.vmem [#allocation8], %s270
        %p272 = pneg %p114
        %p273 = pneg %p111
        %p274 = pneg %p140
        %p275 = pneg %p137
        %s276 = sand.u32 %s127, 1
        %s277 = scalar_lea.sflag [#allocation4], %s276
        %s278 = sand.u32 %s127, 1
        %s279 = smul.addr %s278, 288
        %s280 = scalar_lea.vmem [#allocation10], %s279
        %v281 = vld [vmem:[%s251 + $0x8] sm:$0xe]
        %v282 = vld [vmem:[%s251 + $0xc] sm:$0xf]
        %v283 = vld [vmem:[%s251 + $0x10] sm:$0xf]
        %v284 = vld [vmem:[%s251 + $0x14] sm:$0xf]
        %v285 = vld [vmem:[%s251 + $0x18] sm:$0xf]
        %v286 = vld [vmem:[%s251 + $0x1c] sm:$0xf]
        %v287 = vld [vmem:[%s251 + $0x20] sm:$0xf]
        %v288 = vld [vmem:[%s251 + $0x24] sm:$0xf]
        %v289 = vld [vmem:[%s251 + $0x28] sm:$0xf]
        %v290 = vld [vmem:[%s251 + $0x2c] sm:$0xf]
        %v291 = vld [vmem:[%s251 + $0x30] sm:$0xf]
        %v292 = vld [vmem:[%s251 + $0x34] sm:$0xf]
        %v293 = vld [vmem:[%s251 + $0x38] sm:$0xf]
        %v294 = vld [vmem:[%s251 + $0x3c] sm:$0xf]
        %v295 = vld [vmem:[%s251 + $0x40] sm:$0xf]
        %v296 = vld [vmem:[%s251 + $0x44] sm:$0xf]
        %v297 = vld [vmem:[%s251 + $0x48] sm:$0xf]
        %v298 = vld [vmem:[%s251 + $0x4c] sm:$0xf]
        %v299 = vld [vmem:[%s251 + $0x50] sm:$0xf]
        %v300 = vld [vmem:[%s251 + $0x54] sm:$0xf]
        %v301 = vld [vmem:[%s251 + $0x58] sm:$0xf]
        %v302 = vld [vmem:[%s251 + $0x5c] sm:$0xf]
        %v303 = vld [vmem:[%s251 + $0x60] sm:$0xf]
        %v304 = vld [vmem:[%s251 + $0x64] sm:$0xf]
        %v305 = vld [vmem:[%s251 + $0x68] sm:$0xf]
        %v306 = vld [vmem:[%s251 + $0x6c] sm:$0xf]
        %v307 = vld [vmem:[%s251 + $0x70] sm:$0xf]
        %v308 = vld [vmem:[%s251 + $0x74] sm:$0xf]
        %v309 = vld [vmem:[%s251 + $0x78] sm:$0xf]
        %v310 = vld [vmem:[%s251 + $0x7c] sm:$0xf]
        %v311 = vld [vmem:[%s251 + $0x80] sm:$0xf]
        %v312 = vld [vmem:[%s251 + $0x84] sm:$0xf]
        %v313 = vld [vmem:[%s251 + $0x88] sm:$0xf]
        %v314 = vld [vmem:[%s251 + $0x8c] sm:$0xf]
        %v315 = vld [vmem:[%s251 + $0x90] sm:$0xf]
        %v316 = vld [vmem:[%s251 + $0x94] sm:$0xf]
        %v317 = vld [vmem:[%s251 + $0x98] sm:$0x3]
        %v318 = vunpack.c.l.bf16 %v281
        %v319 = vunpack.c.l.bf16 %v282
        %v320 = vunpack.c.l.bf16 %v283
        %v321 = vunpack.c.l.bf16 %v284
        %v322 = vunpack.c.l.bf16 %v285
        %v323 = vunpack.c.l.bf16 %v286
        %v324 = vunpack.c.l.bf16 %v287
        %v325 = vunpack.c.l.bf16 %v288
        %v326 = vunpack.c.l.bf16 %v289
        %v327 = vunpack.c.l.bf16 %v290
        %v328 = vunpack.c.l.bf16 %v291
        %v329 = vunpack.c.l.bf16 %v292
        %v330 = vunpack.c.l.bf16 %v293
        %v331 = vunpack.c.l.bf16 %v294
        %v332 = vunpack.c.l.bf16 %v295
        %v333 = vunpack.c.l.bf16 %v296
        %v334 = vunpack.c.l.bf16 %v297
        %v335 = vunpack.c.l.bf16 %v298
        %v336 = vunpack.c.l.bf16 %v299
        %v337 = vunpack.c.l.bf16 %v300
        %v338 = vunpack.c.l.bf16 %v301
        %v339 = vunpack.c.l.bf16 %v302
        %v340 = vunpack.c.l.bf16 %v303
        %v341 = vunpack.c.l.bf16 %v304
        %v342 = vunpack.c.l.bf16 %v305
        %v343 = vunpack.c.l.bf16 %v306
        %v344 = vunpack.c.l.bf16 %v307
        %v345 = vunpack.c.l.bf16 %v308
        %v346 = vunpack.c.l.bf16 %v309
        %v347 = vunpack.c.l.bf16 %v310
        %v348 = vunpack.c.l.bf16 %v311
        %v349 = vunpack.c.l.bf16 %v312
        %v350 = vunpack.c.l.bf16 %v313
        %v351 = vunpack.c.l.bf16 %v314
        %v352 = vunpack.c.l.bf16 %v315
        %v353 = vunpack.c.l.bf16 %v316
        %v354 = vunpack.c.l.bf16 %v317
        %v355 = vld [vmem:[%s234] sm:$0xf]
        %v356 = vld [vmem:[%s234 + $0x4] sm:$0xf]
        %v357 = vld [vmem:[%s234 + $0x8] sm:$0xf]
        %v358 = vld [vmem:[%s234 + $0xc] sm:$0xf]
        %v359 = vld [vmem:[%s234 + $0x10] sm:$0xf]
        %v360 = vld [vmem:[%s234 + $0x14] sm:$0xf]
        %v361 = vld [vmem:[%s234 + $0x18] sm:$0xf]
        %v362 = vld [vmem:[%s234 + $0x1c] sm:$0xf]
        %v363 = vld [vmem:[%s234 + $0x20] sm:$0xf]
        %v364 = vld [vmem:[%s234 + $0x24] sm:$0xf]
        %v365 = vld [vmem:[%s234 + $0x28] sm:$0xf]
        %v366 = vld [vmem:[%s234 + $0x2c] sm:$0xf]
        %v367 = vld [vmem:[%s234 + $0x30] sm:$0xf]
        %v368 = vld [vmem:[%s234 + $0x34] sm:$0xf]
        %v369 = vld [vmem:[%s234 + $0x38] sm:$0xf]
        %v370 = vld [vmem:[%s234 + $0x3c] sm:$0xf]
        %v371 = vld [vmem:[%s234 + $0x40] sm:$0xf]
        %v372 = vld [vmem:[%s234 + $0x44] sm:$0xf]
        %v373 = vld [vmem:[%s234 + $0x48] sm:$0xf]
        %v374 = vld [vmem:[%s234 + $0x4c] sm:$0xf]
        %v375 = vld [vmem:[%s234 + $0x50] sm:$0xf]
        %v376 = vld [vmem:[%s234 + $0x54] sm:$0xf]
        %v377 = vld [vmem:[%s234 + $0x58] sm:$0xf]
        %v378 = vld [vmem:[%s234 + $0x5c] sm:$0xf]
        %v379 = vld [vmem:[%s234 + $0x60] sm:$0xf]
        %v380 = vld [vmem:[%s234 + $0x64] sm:$0xf]
        %v381 = vld [vmem:[%s234 + $0x68] sm:$0xf]
        %v382 = vld [vmem:[%s234 + $0x6c] sm:$0xf]
        %v383 = vld [vmem:[%s234 + $0x70] sm:$0xf]
        %v384 = vld [vmem:[%s234 + $0x74] sm:$0xf]
        %v385 = vld [vmem:[%s234 + $0x78] sm:$0xf]
        %v386 = vld [vmem:[%s234 + $0x7c] sm:$0xf]
        %v387 = vld [vmem:[%s234 + $0x80] sm:$0xf]
        %v388 = vld [vmem:[%s234 + $0x84] sm:$0xf]
        %v389 = vld [vmem:[%s234 + $0x88] sm:$0xf]
        %v390 = vld [vmem:[%s234 + $0x8c] sm:$0xf]
        %v391 = vunpack.c.l.bf16 %v355
        %v392 = vunpack.c.l.bf16 %v356
        %v393 = vunpack.c.l.bf16 %v357
        %v394 = vunpack.c.l.bf16 %v358
        %v395 = vunpack.c.l.bf16 %v359
        %v396 = vunpack.c.l.bf16 %v360
        %v397 = vunpack.c.l.bf16 %v361
        %v398 = vunpack.c.l.bf16 %v362
        %v399 = vunpack.c.l.bf16 %v363
        %v400 = vunpack.c.l.bf16 %v364
        %v401 = vunpack.c.l.bf16 %v365
        %v402 = vunpack.c.l.bf16 %v366
        %v403 = vunpack.c.l.bf16 %v367
        %v404 = vunpack.c.l.bf16 %v368
        %v405 = vunpack.c.l.bf16 %v369
        %v406 = vunpack.c.l.bf16 %v370
        %v407 = vunpack.c.l.bf16 %v371
        %v408 = vunpack.c.l.bf16 %v372
        %v409 = vunpack.c.l.bf16 %v373
        %v410 = vunpack.c.l.bf16 %v374
        %v411 = vunpack.c.l.bf16 %v375
        %v412 = vunpack.c.l.bf16 %v376
        %v413 = vunpack.c.l.bf16 %v377
        %v414 = vunpack.c.l.bf16 %v378
        %v415 = vunpack.c.l.bf16 %v379
        %v416 = vunpack.c.l.bf16 %v380
        %v417 = vunpack.c.l.bf16 %v381
        %v418 = vunpack.c.l.bf16 %v382
        %v419 = vunpack.c.l.bf16 %v383
        %v420 = vunpack.c.l.bf16 %v384
        %v421 = vunpack.c.l.bf16 %v385
        %v422 = vunpack.c.l.bf16 %v386
        %v423 = vunpack.c.l.bf16 %v387
        %v424 = vunpack.c.l.bf16 %v388
        %v425 = vunpack.c.l.bf16 %v389
        %v426 = vunpack.c.l.bf16 %v390
        %v427 = vld [vmem:[#allocation5] sm:$0x1]
        %v429 = vlaneseq
        %v430 = vshrl.u32 %v429, 7
        %v431 = vsub.s32 0, %v430
        %v432 = vrot.slane %v427, %v431
        %v434 = vmul.f32 %v391, %v432
        %v435 = vmul.f32 %v392, %v432
        %v436 = vmul.f32 %v393, %v432
        %v437 = vmul.f32 %v394, %v432
        %v438 = vmul.f32 %v395, %v432
        %v439 = vmul.f32 %v396, %v432
        %v440 = vmul.f32 %v397, %v432
        %v441 = vmul.f32 %v398, %v432
        %v442 = vmul.f32 %v399, %v432
        %v443 = vmul.f32 %v400, %v432
        %v444 = vmul.f32 %v401, %v432
        %v445 = vmul.f32 %v402, %v432
        %v446 = vmul.f32 %v403, %v432
        %v447 = vmul.f32 %v404, %v432
        %v448 = vmul.f32 %v405, %v432
        %v449 = vmul.f32 %v406, %v432
        %v450 = vmul.f32 %v407, %v432
        %v451 = vmul.f32 %v408, %v432
        %v452 = vmul.f32 %v409, %v432
        %v453 = vmul.f32 %v410, %v432
        %v454 = vmul.f32 %v411, %v432
        %v455 = vmul.f32 %v412, %v432
        %v456 = vmul.f32 %v413, %v432
        %v457 = vmul.f32 %v414, %v432
        %v458 = vmul.f32 %v415, %v432
        %v459 = vmul.f32 %v416, %v432
        %v460 = vmul.f32 %v417, %v432
        %v461 = vmul.f32 %v418, %v432
        %v462 = vmul.f32 %v419, %v432
        %v463 = vmul.f32 %v420, %v432
        %v464 = vmul.f32 %v421, %v432
        %v465 = vmul.f32 %v422, %v432
        %v466 = vmul.f32 %v423, %v432
        %v467 = vmul.f32 %v424, %v432
        %v468 = vmul.f32 %v425, %v432
        %v469 = vmul.f32 %v426, %v432
        %v470 = vld [vmem:[#allocation7] sm:$0x1]
        %v472 = vlaneseq
        %v473 = vshrl.u32 %v472, 7
        %v474 = vsub.s32 0, %v473
        %v475 = vrot.slane %v470, %v474
        %v477 = vadd.f32 %v434, %v475
        %v478 = vadd.f32 %v435, %v475
        %v479 = vadd.f32 %v436, %v475
        %v480 = vadd.f32 %v437, %v475
        %v481 = vadd.f32 %v438, %v475
        %v482 = vadd.f32 %v439, %v475
        %v483 = vadd.f32 %v440, %v475
        %v484 = vadd.f32 %v441, %v475
        %v485 = vadd.f32 %v442, %v475
        %v486 = vadd.f32 %v443, %v475
        %v487 = vadd.f32 %v444, %v475
        %v488 = vadd.f32 %v445, %v475
        %v489 = vadd.f32 %v446, %v475
        %v490 = vadd.f32 %v447, %v475
        %v491 = vadd.f32 %v448, %v475
        %v492 = vadd.f32 %v449, %v475
        %v493 = vadd.f32 %v450, %v475
        %v494 = vadd.f32 %v451, %v475
        %v495 = vadd.f32 %v452, %v475
        %v496 = vadd.f32 %v453, %v475
        %v497 = vadd.f32 %v454, %v475
        %v498 = vadd.f32 %v455, %v475
        %v499 = vadd.f32 %v456, %v475
        %v500 = vadd.f32 %v457, %v475
        %v501 = vadd.f32 %v458, %v475
        %v502 = vadd.f32 %v459, %v475
        %v503 = vadd.f32 %v460, %v475
        %v504 = vadd.f32 %v461, %v475
        %v505 = vadd.f32 %v462, %v475
        %v506 = vadd.f32 %v463, %v475
        %v507 = vadd.f32 %v464, %v475
        %v508 = vadd.f32 %v465, %v475
        %v509 = vadd.f32 %v466, %v475
        %v510 = vadd.f32 %v467, %v475
        %v511 = vadd.f32 %v468, %v475
        %v512 = vadd.f32 %v469, %v475
        %vm550 = vcmask 1044480
        %v551 = vrot.slane %v318, 3
        %v552 = vrot.slane %v319, 3
        %v553 = vsel %vm550, %v551, %v552
        %v554 = vrot.slane %v320, 3
        %v555 = vsel %vm550, %v552, %v554
        %v556 = vrot.slane %v321, 3
        %v557 = vsel %vm550, %v554, %v556
        %v558 = vrot.slane %v322, 3
        %v559 = vsel %vm550, %v556, %v558
        %v560 = vrot.slane %v323, 3
        %v561 = vsel %vm550, %v558, %v560
        %v562 = vrot.slane %v324, 3
        %v563 = vsel %vm550, %v560, %v562
        %v564 = vrot.slane %v325, 3
        %v565 = vsel %vm550, %v562, %v564
        %v566 = vrot.slane %v326, 3
        %v567 = vsel %vm550, %v564, %v566
        %v568 = vrot.slane %v327, 3
        %v569 = vsel %vm550, %v566, %v568
        %v570 = vrot.slane %v328, 3
        %v571 = vsel %vm550, %v568, %v570
        %v572 = vrot.slane %v329, 3
        %v573 = vsel %vm550, %v570, %v572
        %v574 = vrot.slane %v330, 3
        %v575 = vsel %vm550, %v572, %v574
        %v576 = vrot.slane %v331, 3
        %v577 = vsel %vm550, %v574, %v576
        %v578 = vrot.slane %v332, 3
        %v579 = vsel %vm550, %v576, %v578
        %v580 = vrot.slane %v333, 3
        %v581 = vsel %vm550, %v578, %v580
        %v582 = vrot.slane %v334, 3
        %v583 = vsel %vm550, %v580, %v582
        %v584 = vrot.slane %v335, 3
        %v585 = vsel %vm550, %v582, %v584
        %v586 = vrot.slane %v336, 3
        %v587 = vsel %vm550, %v584, %v586
        %v588 = vrot.slane %v337, 3
        %v589 = vsel %vm550, %v586, %v588
        %v590 = vrot.slane %v338, 3
        %v591 = vsel %vm550, %v588, %v590
        %v592 = vrot.slane %v339, 3
        %v593 = vsel %vm550, %v590, %v592
        %v594 = vrot.slane %v340, 3
        %v595 = vsel %vm550, %v592, %v594
        %v596 = vrot.slane %v341, 3
        %v597 = vsel %vm550, %v594, %v596
        %v598 = vrot.slane %v342, 3
        %v599 = vsel %vm550, %v596, %v598
        %v600 = vrot.slane %v343, 3
        %v601 = vsel %vm550, %v598, %v600
        %v602 = vrot.slane %v344, 3
        %v603 = vsel %vm550, %v600, %v602
        %v604 = vrot.slane %v345, 3
        %v605 = vsel %vm550, %v602, %v604
        %v606 = vrot.slane %v346, 3
        %v607 = vsel %vm550, %v604, %v606
        %v608 = vrot.slane %v347, 3
        %v609 = vsel %vm550, %v606, %v608
        %v610 = vrot.slane %v348, 3
        %v611 = vsel %vm550, %v608, %v610
        %v612 = vrot.slane %v349, 3
        %v613 = vsel %vm550, %v610, %v612
        %v614 = vrot.slane %v350, 3
        %v615 = vsel %vm550, %v612, %v614
        %v616 = vrot.slane %v351, 3
        %v617 = vsel %vm550, %v614, %v616
        %v618 = vrot.slane %v352, 3
        %v619 = vsel %vm550, %v616, %v618
        %v620 = vrot.slane %v353, 3
        %v621 = vsel %vm550, %v618, %v620
        %v622 = vrot.slane %v354, 3
        %v623 = vsel %vm550, %v620, %v622
        %v660 = vadd.f32 %v477, %v553
        %v661 = vadd.f32 %v478, %v555
        %v662 = vadd.f32 %v479, %v557
        %v663 = vadd.f32 %v480, %v559
        %v664 = vadd.f32 %v481, %v561
        %v665 = vadd.f32 %v482, %v563
        %v666 = vadd.f32 %v483, %v565
        %v667 = vadd.f32 %v484, %v567
        %v668 = vadd.f32 %v485, %v569
        %v669 = vadd.f32 %v486, %v571
        %v670 = vadd.f32 %v487, %v573
        %v671 = vadd.f32 %v488, %v575
        %v672 = vadd.f32 %v489, %v577
        %v673 = vadd.f32 %v490, %v579
        %v674 = vadd.f32 %v491, %v581
        %v675 = vadd.f32 %v492, %v583
        %v676 = vadd.f32 %v493, %v585
        %v677 = vadd.f32 %v494, %v587
        %v678 = vadd.f32 %v495, %v589
        %v679 = vadd.f32 %v496, %v591
        %v680 = vadd.f32 %v497, %v593
        %v681 = vadd.f32 %v498, %v595
        %v682 = vadd.f32 %v499, %v597
        %v683 = vadd.f32 %v500, %v599
        %v684 = vadd.f32 %v501, %v601
        %v685 = vadd.f32 %v502, %v603
        %v686 = vadd.f32 %v503, %v605
        %v687 = vadd.f32 %v504, %v607
        %v688 = vadd.f32 %v505, %v609
        %v689 = vadd.f32 %v506, %v611
        %v690 = vadd.f32 %v507, %v613
        %v691 = vadd.f32 %v508, %v615
        %v692 = vadd.f32 %v509, %v617
        %v693 = vadd.f32 %v510, %v619
        %v694 = vadd.f32 %v511, %v621
        %v695 = vadd.f32 %v512, %v623
        %v696 = vmax.f32 %v660, 0.0
        %v697 = vmax.f32 %v661, 0.0
        %v698 = vmax.f32 %v662, 0.0
        %v699 = vmax.f32 %v663, 0.0
        %v700 = vmax.f32 %v664, 0.0
        %v701 = vmax.f32 %v665, 0.0
        %v702 = vmax.f32 %v666, 0.0
        %v703 = vmax.f32 %v667, 0.0
        %v704 = vmax.f32 %v668, 0.0
        %v705 = vmax.f32 %v669, 0.0
        %v706 = vmax.f32 %v670, 0.0
        %v707 = vmax.f32 %v671, 0.0
        %v708 = vmax.f32 %v672, 0.0
        %v709 = vmax.f32 %v673, 0.0
        %v710 = vmax.f32 %v674, 0.0
        %v711 = vmax.f32 %v675, 0.0
        %v712 = vmax.f32 %v676, 0.0
        %v713 = vmax.f32 %v677, 0.0
        %v714 = vmax.f32 %v678, 0.0
        %v715 = vmax.f32 %v679, 0.0
        %v716 = vmax.f32 %v680, 0.0
        %v717 = vmax.f32 %v681, 0.0
        %v718 = vmax.f32 %v682, 0.0
        %v719 = vmax.f32 %v683, 0.0
        %v720 = vmax.f32 %v684, 0.0
        %v721 = vmax.f32 %v685, 0.0
        %v722 = vmax.f32 %v686, 0.0
        %v723 = vmax.f32 %v687, 0.0
        %v724 = vmax.f32 %v688, 0.0
        %v725 = vmax.f32 %v689, 0.0
        %v726 = vmax.f32 %v690, 0.0
        %v727 = vmax.f32 %v691, 0.0
        %v728 = vmax.f32 %v692, 0.0
        %v729 = vmax.f32 %v693, 0.0
        %v730 = vmax.f32 %v694, 0.0
        %v731 = vmax.f32 %v695, 0.0
        %732 = vst [vmem:[%s280] sm:$0xff] %v696
        %733 = vst [vmem:[%s280 + $0x8] sm:$0xff] %v697
        %734 = vst [vmem:[%s280 + $0x10] sm:$0xff] %v698
        %735 = vst [vmem:[%s280 + $0x18] sm:$0xff] %v699
        %736 = vst [vmem:[%s280 + $0x20] sm:$0xff] %v700
        %737 = vst [vmem:[%s280 + $0x28] sm:$0xff] %v701
        %738 = vst [vmem:[%s280 + $0x30] sm:$0xff] %v702
        %739 = vst [vmem:[%s280 + $0x38] sm:$0xff] %v703
        %740 = vst [vmem:[%s280 + $0x40] sm:$0xff] %v704
        %741 = vst [vmem:[%s280 + $0x48] sm:$0xff] %v705
        %742 = vst [vmem:[%s280 + $0x50] sm:$0xff] %v706
        %743 = vst [vmem:[%s280 + $0x58] sm:$0xff] %v707
        %744 = vst [vmem:[%s280 + $0x60] sm:$0xff] %v708
        %745 = vst [vmem:[%s280 + $0x68] sm:$0xff] %v709
        %746 = vst [vmem:[%s280 + $0x70] sm:$0xff] %v710
        %747 = vst [vmem:[%s280 + $0x78] sm:$0xff] %v711
        %748 = vst [vmem:[%s280 + $0x80] sm:$0xff] %v712
        %749 = vst [vmem:[%s280 + $0x88] sm:$0xff] %v713
        %750 = vst [vmem:[%s280 + $0x90] sm:$0xff] %v714
        %751 = vst [vmem:[%s280 + $0x98] sm:$0xff] %v715
        %752 = vst [vmem:[%s280 + $0xa0] sm:$0xff] %v716
        %753 = vst [vmem:[%s280 + $0xa8] sm:$0xff] %v717
        %754 = vst [vmem:[%s280 + $0xb0] sm:$0xff] %v718
        %755 = vst [vmem:[%s280 + $0xb8] sm:$0xff] %v719
        %756 = vst [vmem:[%s280 + $0xc0] sm:$0xff] %v720
        %757 = vst [vmem:[%s280 + $0xc8] sm:$0xff] %v721
        %758 = vst [vmem:[%s280 + $0xd0] sm:$0xff] %v722
        %759 = vst [vmem:[%s280 + $0xd8] sm:$0xff] %v723
        %760 = vst [vmem:[%s280 + $0xe0] sm:$0xff] %v724
        %761 = vst [vmem:[%s280 + $0xe8] sm:$0xff] %v725
        %762 = vst [vmem:[%s280 + $0xf0] sm:$0xff] %v726
        %763 = vst [vmem:[%s280 + $0xf8] sm:$0xff] %v727
        %764 = vst [vmem:[%s280 + $0x100] sm:$0xff] %v728
        %765 = vst [vmem:[%s280 + $0x108] sm:$0xff] %v729
        %766 = vst [vmem:[%s280 + $0x110] sm:$0xff] %v730
        %767 = vst [vmem:[%s280 + $0x118] sm:$0xff] %v731
        %s768 = sand.u32 %s127, 1
        %s769 = scalar_lea.sflag [#allocation4], %s768
        %s770 = sand.u32 %s127, 1
        %s771 = smul.addr %s770, 288
        %s772 = scalar_lea.vmem [#allocation10], %s771
        // Predicated region
        $region53: #{base_block_forward.5} parent=35 // pred_check
          %p773 = pneg %p137
        $region54: #{base_block_forward.5} parent=35 // pred_check_branch
          %775 = sbr.rel (%p773) target = $region56
        $region55: #{base_block_forward.5} parent=35 // pred_region
          %s777 = ssub.s32 4608, 4608
          %778 = vsyncadd %s769, %s777
          %s779 = smul.addr %s25, 36
          %s780 = smul.addr %s779, 128
          %s781 = scalar_lea.hbm %s4, %s780
          %s782 = sshll.u32 %s772, 4
          %s783 = int_to_ptr.vmem [resolvable:$true] %s782
          %788 = dma.vmem_to_hbm [thread:$0]  %s783, 4608, %s781, %s769, 128, 128, 8
        $region56: #{base_block_forward.5} parent=35 // pred_fallthru
          _
      $region36: #{base_block_forward.5} parent=5 // pred_fallthru
        _
      %p789 = scmp.le.s32.totalorder 2, %s20
      // Predicated region
      $region57: #{base_block_forward.5} parent=5 // pred_check
        %p790 = pneg %p789
      $region58: #{base_block_forward.5} parent=5 // pred_check_branch
        %792 = sbr.rel (%p790) target = $region60
      $region59: #{base_block_forward.5} parent=5 // pred_region
        %s793 = ssub.s32 %s20, 2
        // Predicated region
        $region61: #{base_block_forward.5} parent=59 // pred_check
          %p794 = pneg %p143
        $region62: #{base_block_forward.5} parent=59 // pred_check_branch
          %796 = sbr.rel (%p794) target = $region64
        $region63: #{base_block_forward.5} parent=59 // pred_region
          %s797 = sand.u32 %s128, 1
          %s798 = scalar_lea.sflag [#allocation4], %s797
          %s799 = sand.u32 %s128, 1
          %s800 = smul.addr %s799, 288
          %s801 = scalar_lea.vmem [#allocation10], %s800
          %802 = dma.done %s798, 4608
        $region64: #{base_block_forward.5} parent=59 // pred_fallthru
          _
      $region60: #{base_block_forward.5} parent=5 // pred_fallthru
        _
    $region6: #{base_block_forward.5} parent=1 // loop_footer
      %s24 = sadd.s32 1, %s20
    $region7: #{base_block_forward.5} parent=1 // loop_footer_branch
      %19 = sbr.rel target = $region3
    $region8: #{base_block_forward.5} parent=1 // loop_exit
      _
    %803 = vsyncpa [#allocation3], 1
    %s804 = scalar_lea.sflag [#allocation3], 1
    %805 = vsyncpa %s804, 1
    %806 = vsyncpa [#allocation6], 1
    %807 = vsyncpa [#allocation9], 1
    %s808 = scalar_lea.sflag [#allocation9], 1
    %809 = vsyncpa %s808, 1
    %810 = vsyncpa [#allocation4], 1
    %s811 = scalar_lea.sflag [#allocation4], 1
    %812 = vsyncpa %s811, 1

// kernel: base_block_forward.3
$region0: #{base_block_forward.3}
  #allocation0 [shape = 'u32[]', space=smem, size = 0x4, offset = 0x4, fixed_abs, tag = 'smem constant byte address 0x4 - core index']
  #allocation1 [shape = 'u32[144,128]{1,0:T(1,128)}', space=vmem, size = 0x12000, scoped, tag = 'internal scratch']
  %s0 = inlined_call_operand.hbm [shape: bf16[2,342,128], index: 0, kind: input, shape index: {}]
  %s1 = inlined_call_operand.hbm [shape: bf16[1152,128], index: 1, kind: input, shape index: {}]
  %s2 = inlined_call_operand.hbm [shape: f32[288,1], index: 2, kind: input, shape index: {}]
  %s3 = inlined_call_operand.hbm [shape: bf16[2,288,128], index: 3, kind: output, shape index: {0}]
  %s4 = inlined_call_operand.hbm [shape: f32[2,2,128], index: 4, kind: output, shape index: {1}]
  %5 = xla_tuple %s3, %s4
  %s6 = sld [smem:[#allocation0]]
  $region65: #{base_block_forward.3} parent=0
    _
  %s8 = ssub.s32 1, %s6
  %s9 = scalar_select 0, %s8, %s6
  $region1: #{base_block_forward.3} parent=0
    #allocation2 [shape = 'u8[176128]{0}', space=vmem, size = 0x2b000, scoped, tag = 'input window, operand 0']
    #allocation3 [shape = 's32[2]{0}', space=sflag, size = 0x8, scoped, tag = 'scoped memory for base_block_forward.3']
    #allocation4 [shape = 's32[2]{0}', space=sflag, size = 0x8, scoped, tag = 'scoped memory for base_block_forward.3']
    #allocation5 [shape = 'u8[294912]{0}', space=vmem, size = 0x48000, scoped, tag = 'input window, operand 1, single buffered']
    #allocation6 [shape = 's32[1]{0}', space=sflag, size = 0x4, scoped, tag = 'scoped memory for base_block_forward.3']
    #allocation7 [shape = 'u8[147456]{0}', space=vmem, size = 0x24000, scoped, tag = 'input window, operand 2, single buffered']
    #allocation8 [shape = 'u8[147456]{0}', space=vmem, size = 0x24000, scoped, tag = 'output window, operand 0']
    #allocation9 [shape = 'u8[2048]{0}', space=vmem, size = 0x800, scoped, tag = 'output window, operand 1']
    #allocation10 [shape = 's32[2]{0}', space=sflag, size = 0x8, scoped, tag = 'scoped memory for base_block_forward.3']
    %10 = vsyncpa [#allocation3], 0
    %s11 = scalar_lea.sflag [#allocation3], 1
    %12 = vsyncpa %s11, 0
    %13 = vsyncpa [#allocation6], 0
    %14 = vsyncpa [#allocation4], 0
    %s15 = scalar_lea.sflag [#allocation4], 1
    %16 = vsyncpa %s15, 0
    %17 = vsyncpa [#allocation10], 0
    %s18 = scalar_lea.sflag [#allocation10], 1
    %19 = vsyncpa %s18, 0
    loop: start=0, step=1, limit=4
    $region2: #{base_block_forward.3} parent=1 // loop_pre_header
      _
    $region3: #{base_block_forward.3} parent=1 // loop_header
      %s21 = sphi 0, %s25
      %p22 = scmp.ge.s32.totalorder %s21, 4
      %s31 = sphi 0, %s33
      %s34 = sphi 0, %s31
      %s35 = sphi 0, %s34
      %s51 = sphi 0, %s35
      %s55 = sphi 0, %s55
      %s57 = sphi 0, %s55
      %s58 = sphi 0, %s57
      %s72 = sphi 0, %s58
      %s76 = sphi 0, %s76
      %s78 = sphi 0, %s76
      %s79 = sphi 0, %s78
      %s93 = sphi 0, %s79
      %s99 = sphi 0, %s101
      %s102 = sphi 0, %s99
      %s103 = sphi 0, %s102
      %s119 = sphi 0, %s103
      %s125 = sphi 0, %s127
      %s128 = sphi 0, %s125
      %s129 = sphi 0, %s128
      %s145 = sphi 0, %s129
    $region4: #{base_block_forward.3} parent=1 // loop_header_branch
      %24 = sbr.rel (%p22) target = $region8
    $region5: #{base_block_forward.3} parent=1 // loop_body
      %s26 = ssub.s32 %s21, 1
      %s27 = ssub.s32 %s21, 2
      %s28 = sadd.s32 %s21, 1
      %s29 = ssub.s32 %s21, %s28
      %p30 = scmp.eq.s32.totalorder %s29, 0
      %s32 = sadd.s32 %s31, 1
      %s33 = scalar_select %p30, %s31, %s32
      %p36 = pneg %p30
      %p37 = scmp.eq.s32.totalorder %s21, 1
      %p38 = por %p36, %p37
      %p39 = scmp.ne.s32.totalorder %s31, %s34
      %p40 = scmp.eq.s32.totalorder %s21, 0
      %p41 = por %p39, %p40
      %p42 = scmp.ne.s32.totalorder %s31, %s34
      %p43 = scmp.eq.s32.totalorder %s26, 1
      %p44 = por %p42, %p43
      %p45 = scmp.ne.s32.totalorder %s34, %s35
      %p46 = scmp.eq.s32.totalorder %s26, 0
      %p47 = por %p45, %p46
      %p48 = scmp.ne.s32.totalorder %s34, %s35
      %p49 = scmp.eq.s32.totalorder %s27, 1
      %p50 = por %p48, %p49
      %p52 = scmp.ne.s32.totalorder %s35, %s51
      %p53 = scmp.eq.s32.totalorder %s27, 0
      %p54 = por %p52, %p53
      %s56 = sadd.s32 %s55, 1
      %p59 = scmp.eq.s32.totalorder %s21, 1
      %p60 = scmp.ne.s32.totalorder %s55, %s57
      %p61 = scmp.eq.s32.totalorder %s21, 0
      %p62 = por %p60, %p61
      %p63 = scmp.ne.s32.totalorder %s55, %s57
      %p64 = scmp.eq.s32.totalorder %s26, 1
      %p65 = por %p63, %p64
      %p66 = scmp.ne.s32.totalorder %s57, %s58
      %p67 = scmp.eq.s32.totalorder %s26, 0
      %p68 = por %p66, %p67
      %p69 = scmp.ne.s32.totalorder %s57, %s58
      %p70 = scmp.eq.s32.totalorder %s27, 1
      %p71 = por %p69, %p70
      %p73 = scmp.ne.s32.totalorder %s58, %s72
      %p74 = scmp.eq.s32.totalorder %s27, 0
      %p75 = por %p73, %p74
      %s77 = sadd.s32 %s76, 1
      %p80 = scmp.eq.s32.totalorder %s21, 1
      %p81 = scmp.ne.s32.totalorder %s76, %s78
      %p82 = scmp.eq.s32.totalorder %s21, 0
      %p83 = por %p81, %p82
      %p84 = scmp.ne.s32.totalorder %s76, %s78
      %p85 = scmp.eq.s32.totalorder %s26, 1
      %p86 = por %p84, %p85
      %p87 = scmp.ne.s32.totalorder %s78, %s79
      %p88 = scmp.eq.s32.totalorder %s26, 0
      %p89 = por %p87, %p88
      %p90 = scmp.ne.s32.totalorder %s78, %s79
      %p91 = scmp.eq.s32.totalorder %s27, 1
      %p92 = por %p90, %p91
      %p94 = scmp.ne.s32.totalorder %s79, %s93
      %p95 = scmp.eq.s32.totalorder %s27, 0
      %p96 = por %p94, %p95
      %s97 = ssub.s32 %s21, %s28
      %p98 = scmp.eq.s32.totalorder %s97, 0
      %s100 = sadd.s32 %s99, 1
      %s101 = scalar_select %p98, %s99, %s100
      %p104 = pneg %p98
      %p105 = scmp.eq.s32.totalorder %s21, 1
      %p106 = por %p104, %p105
      %p107 = scmp.ne.s32.totalorder %s99, %s102
      %p108 = scmp.eq.s32.totalorder %s21, 0
      %p109 = por %p107, %p108
      %p110 = scmp.ne.s32.totalorder %s99, %s102
      %p111 = scmp.eq.s32.totalorder %s26, 1
      %p112 = por %p110, %p111
      %p113 = scmp.ne.s32.totalorder %s102, %s103
      %p114 = scmp.eq.s32.totalorder %s26, 0
      %p115 = por %p113, %p114
      %p116 = scmp.ne.s32.totalorder %s102, %s103
      %p117 = scmp.eq.s32.totalorder %s27, 1
      %p118 = por %p116, %p117
      %p120 = scmp.ne.s32.totalorder %s103, %s119
      %p121 = scmp.eq.s32.totalorder %s27, 0
      %p122 = por %p120, %p121
      %s123 = ssub.s32 %s21, %s28
      %p124 = scmp.eq.s32.totalorder %s123, 0
      %s126 = sadd.s32 %s125, 1
      %s127 = scalar_select %p124, %s125, %s126
      %p130 = pneg %p124
      %p131 = scmp.eq.s32.totalorder %s21, 1
      %p132 = por %p130, %p131
      %p133 = scmp.ne.s32.totalorder %s125, %s128
      %p134 = scmp.eq.s32.totalorder %s21, 0
      %p135 = por %p133, %p134
      %p136 = scmp.ne.s32.totalorder %s125, %s128
      %p137 = scmp.eq.s32.totalorder %s26, 1
      %p138 = por %p136, %p137
      %p139 = scmp.ne.s32.totalorder %s128, %s129
      %p140 = scmp.eq.s32.totalorder %s26, 0
      %p141 = por %p139, %p140
      %p142 = scmp.ne.s32.totalorder %s128, %s129
      %p143 = scmp.eq.s32.totalorder %s27, 1
      %p144 = por %p142, %p143
      %p146 = scmp.ne.s32.totalorder %s129, %s145
      %p147 = scmp.eq.s32.totalorder %s27, 0
      %p148 = por %p146, %p147
      %p149 = scmp.le.s32.totalorder 1, %s21
      %p150 = scmp.lt.s32.totalorder %s21, 3
      %p151 = pnand %p149, %p150
      %p152 = pneg %p151
      // Predicated region
      $region9: #{base_block_forward.3} parent=5 // pred_check
        _
      $region10: #{base_block_forward.3} parent=5 // pred_check_branch
        %154 = sbr.rel (%p151) target = $region12
      $region11: #{base_block_forward.3} parent=5 // pred_region
        %s155 = ssub.s32 %s21, 1
        // Predicated region
        $region13: #{base_block_forward.3} parent=11 // pred_check
          %p156 = pneg %p68
        $region14: #{base_block_forward.3} parent=11 // pred_check_branch
          %158 = sbr.rel (%p156) target = $region16
        $region15: #{base_block_forward.3} parent=11 // pred_region
          %s160 = ssub.s32 9216, 9216
          %161 = vsyncadd [#allocation6], %s160
          %s162 = sshll.u32 [#allocation5], 4
          %s163 = int_to_ptr.vmem [resolvable:$true] %s162
          %168 = dma.hbm_to_vmem [thread:$0]  %s1, 9216, %s163, [#allocation6], 64, 64, 4
        $region16: #{base_block_forward.3} parent=11 // pred_fallthru
          _
        // Predicated region
        $region17: #{base_block_forward.3} parent=11 // pred_check
          %p169 = pneg %p89
        $region18: #{base_block_forward.3} parent=11 // pred_check_branch
          %171 = sbr.rel (%p169) target = $region20
        $region19: #{base_block_forward.3} parent=11 // pred_region
          %s173 = ssub.s32 4608, 4608
          %174 = vsyncadd [#allocation6], %s173
          %s175 = sshll.u32 [#allocation7], 4
          %s176 = int_to_ptr.vmem [resolvable:$true] %s175
          %181 = dma.hbm_to_vmem [thread:$0]  %s2, 4608, %s176, [#allocation6], 128, 128, 8
        $region20: #{base_block_forward.3} parent=11 // pred_fallthru
          _
      $region12: #{base_block_forward.3} parent=5 // pred_fallthru
        _
      %p182 = scmp.lt.s32.totalorder %s21, 2
      // Predicated region
      $region21: #{base_block_forward.3} parent=5 // pred_check
        %p183 = pneg %p182
      $region22: #{base_block_forward.3} parent=5 // pred_check_branch
        %185 = sbr.rel (%p183) target = $region24
      $region23: #{base_block_forward.3} parent=5 // pred_region
        // Predicated region
        $region25: #{base_block_forward.3} parent=23 // pred_check
          %p186 = pneg %p41
        $region26: #{base_block_forward.3} parent=23 // pred_check_branch
          %188 = sbr.rel (%p186) target = $region28
        $region27: #{base_block_forward.3} parent=23 // pred_region
          %s189 = sand.u32 %s31, 1
          %s190 = scalar_lea.sflag [#allocation3], %s189
          %s191 = sand.u32 %s31, 1
          %s192 = smul.addr %s191, 172
          %s193 = scalar_lea.vmem [#allocation2], %s192
          %s195 = ssub.s32 2752, 2752
          %196 = vsyncadd %s190, %s195
          %s197 = smul.addr %s21, 43
          %s198 = smul.addr %s197, 64
          %s199 = scalar_lea.hbm %s0, %s198
          %s200 = sshll.u32 %s193, 4
          %s201 = int_to_ptr.vmem [resolvable:$true] %s200
          %206 = dma.hbm_to_vmem [thread:$0]  %s199, 2752, %s201, %s190, 64, 64, 4
        $region28: #{base_block_forward.3} parent=23 // pred_fallthru
          _
      $region24: #{base_block_forward.3} parent=5 // pred_fallthru
        _
      %p207 = scmp.le.s32.totalorder 1, %s21
      %p208 = scmp.lt.s32.totalorder %s21, 3
      %p209 = pnand %p207, %p208
      %p210 = pneg %p209
      // Predicated region
      $region29: #{base_block_forward.3} parent=5 // pred_check
        _
      $region30: #{base_block_forward.3} parent=5 // pred_check_branch
        %212 = sbr.rel (%p209) target = $region32
      $region31: #{base_block_forward.3} parent=5 // pred_region
        %s213 = ssub.s32 %s21, 1
        %s214 = sand.u32 %s34, 1
        %s215 = scalar_lea.sflag [#allocation3], %s214
        %s216 = sand.u32 %s34, 1
        %s217 = smul.addr %s216, 172
        %s218 = scalar_lea.vmem [#allocation2], %s217
        // Predicated region
        $region33: #{base_block_forward.3} parent=31 // pred_check
          %p219 = pneg %p47
        $region34: #{base_block_forward.3} parent=31 // pred_check_branch
          %221 = sbr.rel (%p219) target = $region36
        $region35: #{base_block_forward.3} parent=31 // pred_region
          %222 = dma.done %s215, 2752
        $region36: #{base_block_forward.3} parent=31 // pred_fallthru
          _
        // Predicated region
        $region37: #{base_block_forward.3} parent=31 // pred_check
          %p223 = pneg %p68
        $region38: #{base_block_forward.3} parent=31 // pred_check_branch
          %225 = sbr.rel (%p223) target = $region40
        $region39: #{base_block_forward.3} parent=31 // pred_region
          %226 = dma.done [#allocation6], 9216
        $region40: #{base_block_forward.3} parent=31 // pred_fallthru
          _
        // Predicated region
        $region41: #{base_block_forward.3} parent=31 // pred_check
          %p227 = pneg %p89
        $region42: #{base_block_forward.3} parent=31 // pred_check_branch
          %229 = sbr.rel (%p227) target = $region44
        $region43: #{base_block_forward.3} parent=31 // pred_region
          %230 = dma.done [#allocation6], 4608
        $region44: #{base_block_forward.3} parent=31 // pred_fallthru
          _
        %s231 = sand.u32 %s34, 1
        %s232 = scalar_lea.sflag [#allocation3], %s231
        %s233 = sand.u32 %s34, 1
        %s234 = smul.addr %s233, 172
        %s235 = scalar_lea.vmem [#allocation2], %s234
        %p236 = pneg %p47
        %p237 = pneg %p44
        %p238 = pneg %p68
        %p239 = pneg %p65
        %p240 = pneg %p89
        %p241 = pneg %p86
        %p242 = pneg %p115
        %p243 = pneg %p112
        %s244 = sand.u32 %s102, 1
        %s245 = scalar_lea.sflag [#allocation4], %s244
        %s246 = sand.u32 %s102, 1
        %s247 = smul.addr %s246, 144
        %s248 = scalar_lea.vmem [#allocation8], %s247
        %p249 = pneg %p141
        %p250 = pneg %p138
        %s251 = sand.u32 %s128, 1
        %s252 = scalar_lea.sflag [#allocation10], %s251
        %s253 = sand.u32 %s128, 1
        %s254 = smul.addr %s253, 2
        %s255 = scalar_lea.vmem [#allocation9], %s254
        %v257 = vld [vmem:[%s218] sm:$0xf]
        %v258 = vld [vmem:[%s218 + $0x4] sm:$0xf]
        %v259 = vld [vmem:[%s218 + $0x8] sm:$0xf]
        %v260 = vld [vmem:[%s218 + $0xc] sm:$0xf]
        %v261 = vld [vmem:[%s218 + $0x10] sm:$0xf]
        %v262 = vld [vmem:[%s218 + $0x14] sm:$0xf]
        %v263 = vld [vmem:[%s218 + $0x18] sm:$0xf]
        %v264 = vld [vmem:[%s218 + $0x1c] sm:$0xf]
        %v265 = vld [vmem:[%s218 + $0x20] sm:$0xf]
        %v266 = vld [vmem:[%s218 + $0x24] sm:$0xf]
        %v267 = vld [vmem:[%s218 + $0x28] sm:$0xf]
        %v268 = vld [vmem:[%s218 + $0x2c] sm:$0xf]
        %v269 = vld [vmem:[%s218 + $0x30] sm:$0xf]
        %v270 = vld [vmem:[%s218 + $0x34] sm:$0xf]
        %v271 = vld [vmem:[%s218 + $0x38] sm:$0xf]
        %v272 = vld [vmem:[%s218 + $0x3c] sm:$0xf]
        %v273 = vld [vmem:[%s218 + $0x40] sm:$0xf]
        %v274 = vld [vmem:[%s218 + $0x44] sm:$0xf]
        %v275 = vld [vmem:[%s218 + $0x48] sm:$0xf]
        %v276 = vld [vmem:[%s218 + $0x4c] sm:$0xf]
        %v277 = vld [vmem:[%s218 + $0x50] sm:$0xf]
        %v278 = vld [vmem:[%s218 + $0x54] sm:$0xf]
        %v279 = vld [vmem:[%s218 + $0x58] sm:$0xf]
        %v280 = vld [vmem:[%s218 + $0x5c] sm:$0xf]
        %v281 = vld [vmem:[%s218 + $0x60] sm:$0xf]
        %v282 = vld [vmem:[%s218 + $0x64] sm:$0xf]
        %v283 = vld [vmem:[%s218 + $0x68] sm:$0xf]
        %v284 = vld [vmem:[%s218 + $0x6c] sm:$0xf]
        %v285 = vld [vmem:[%s218 + $0x70] sm:$0xf]
        %v286 = vld [vmem:[%s218 + $0x74] sm:$0xf]
        %v287 = vld [vmem:[%s218 + $0x78] sm:$0xf]
        %v288 = vld [vmem:[%s218 + $0x7c] sm:$0xf]
        %v289 = vld [vmem:[%s218 + $0x80] sm:$0xf]
        %v290 = vld [vmem:[%s218 + $0x84] sm:$0xf]
        %v291 = vld [vmem:[%s218 + $0x88] sm:$0xf]
        %v292 = vld [vmem:[%s218 + $0x8c] sm:$0xf]
        %v293 = vld [vmem:[%s218 + $0x90] sm:$0x1]
        %v330 = vunpack.c.l.b16 %v257
        %v331 = vunpack.c.l.b16 %v258
        %v332 = vunpack.c.l.b16 %v259
        %v333 = vunpack.c.l.b16 %v260
        %v334 = vunpack.c.l.b16 %v261
        %v335 = vunpack.c.l.b16 %v262
        %v336 = vunpack.c.l.b16 %v263
        %v337 = vunpack.c.l.b16 %v264
        %v338 = vunpack.c.l.b16 %v265
        %v339 = vunpack.c.l.b16 %v266
        %v340 = vunpack.c.l.b16 %v267
        %v341 = vunpack.c.l.b16 %v268
        %v342 = vunpack.c.l.b16 %v269
        %v343 = vunpack.c.l.b16 %v270
        %v344 = vunpack.c.l.b16 %v271
        %v345 = vunpack.c.l.b16 %v272
        %v346 = vunpack.c.l.b16 %v273
        %v347 = vunpack.c.l.b16 %v274
        %v348 = vunpack.c.l.b16 %v275
        %v349 = vunpack.c.l.b16 %v276
        %v350 = vunpack.c.l.b16 %v277
        %v351 = vunpack.c.l.b16 %v278
        %v352 = vunpack.c.l.b16 %v279
        %v353 = vunpack.c.l.b16 %v280
        %v354 = vunpack.c.l.b16 %v281
        %v355 = vunpack.c.l.b16 %v282
        %v356 = vunpack.c.l.b16 %v283
        %v357 = vunpack.c.l.b16 %v284
        %v358 = vunpack.c.l.b16 %v285
        %v359 = vunpack.c.l.b16 %v286
        %v360 = vunpack.c.l.b16 %v287
        %v361 = vunpack.c.l.b16 %v288
        %v362 = vunpack.c.l.b16 %v289
        %v363 = vunpack.c.l.b16 %v290
        %v364 = vunpack.c.l.b16 %v291
        %v365 = vunpack.c.l.b16 %v292
        %v366 = vpack.c.b16 %v331, %v330
        %v367 = vpack.c.b16 %v333, %v332
        %v368 = vpack.c.b16 %v335, %v334
        %v369 = vpack.c.b16 %v337, %v336
        %v370 = vpack.c.b16 %v339, %v338
        %v371 = vpack.c.b16 %v341, %v340
        %v372 = vpack.c.b16 %v343, %v342
        %v373 = vpack.c.b16 %v345, %v344
        %v374 = vpack.c.b16 %v347, %v346
        %v375 = vpack.c.b16 %v349, %v348
        %v376 = vpack.c.b16 %v351, %v350
        %v377 = vpack.c.b16 %v353, %v352
        %v378 = vpack.c.b16 %v355, %v354
        %v379 = vpack.c.b16 %v357, %v356
        %v380 = vpack.c.b16 %v359, %v358
        %v381 = vpack.c.b16 %v361, %v360
        %v382 = vpack.c.b16 %v363, %v362
        %v383 = vpack.c.b16 %v365, %v364
        %v403 = vunpack.c.l.b16 %v293
        %v404 = vpack.c.b16 %v403, %v403
        %vm405 = vsmask.f32 7424
        %v407 = vshrl.u32 %v366, 16
        %v409 = vshll.u32 %v366, 16
        %v411 = vrot.slane %v409, 1
        %v412 = vor.u32 %v407, %v411
        %v414 = vshll.u32 %v367, 16
        %v416 = vrot.slane %v414, 1
        %v417 = vsel %vm405, %v412, %v416
        %v418 = vshrl.u32 %v367, 16
        %v420 = vor.u32 %v418, %v416
        %v422 = vshll.u32 %v368, 16
        %v424 = vrot.slane %v422, 1
        %v425 = vsel %vm405, %v420, %v424
        %v426 = vshrl.u32 %v368, 16
        %v428 = vor.u32 %v426, %v424
        %v430 = vshll.u32 %v369, 16
        %v432 = vrot.slane %v430, 1
        %v433 = vsel %vm405, %v428, %v432
        %v434 = vshrl.u32 %v369, 16
        %v436 = vor.u32 %v434, %v432
        %v438 = vshll.u32 %v370, 16
        %v440 = vrot.slane %v438, 1
        %v441 = vsel %vm405, %v436, %v440
        %v442 = vshrl.u32 %v370, 16
        %v444 = vor.u32 %v442, %v440
        %v446 = vshll.u32 %v371, 16
        %v448 = vrot.slane %v446, 1
        %v449 = vsel %vm405, %v444, %v448
        %v450 = vshrl.u32 %v371, 16
        %v452 = vor.u32 %v450, %v448
        %v454 = vshll.u32 %v372, 16
        %v456 = vrot.slane %v454, 1
        %v457 = vsel %vm405, %v452, %v456
        %v458 = vshrl.u32 %v372, 16
        %v460 = vor.u32 %v458, %v456
        %v462 = vshll.u32 %v373, 16
        %v464 = vrot.slane %v462, 1
        %v465 = vsel %vm405, %v460, %v464
        %v466 = vshrl.u32 %v373, 16
        %v468 = vor.u32 %v466, %v464
        %v470 = vshll.u32 %v374, 16
        %v472 = vrot.slane %v470, 1
        %v473 = vsel %vm405, %v468, %v472
        %v474 = vshrl.u32 %v374, 16
        %v476 = vor.u32 %v474, %v472
        %v478 = vshll.u32 %v375, 16
        %v480 = vrot.slane %v478, 1
        %v481 = vsel %vm405, %v476, %v480
        %v482 = vshrl.u32 %v375, 16
        %v484 = vor.u32 %v482, %v480
        %v486 = vshll.u32 %v376, 16
        %v488 = vrot.slane %v486, 1
        %v489 = vsel %vm405, %v484, %v488
        %v490 = vshrl.u32 %v376, 16
        %v492 = vor.u32 %v490, %v488
        %v494 = vshll.u32 %v377, 16
        %v496 = vrot.slane %v494, 1
        %v497 = vsel %vm405, %v492, %v496
        %v498 = vshrl.u32 %v377, 16
        %v500 = vor.u32 %v498, %v496
        %v502 = vshll.u32 %v378, 16
        %v504 = vrot.slane %v502, 1
        %v505 = vsel %vm405, %v500, %v504
        %v506 = vshrl.u32 %v378, 16
        %v508 = vor.u32 %v506, %v504
        %v510 = vshll.u32 %v379, 16
        %v512 = vrot.slane %v510, 1
        %v513 = vsel %vm405, %v508, %v512
        %v514 = vshrl.u32 %v379, 16
        %v516 = vor.u32 %v514, %v512
        %v518 = vshll.u32 %v380, 16
        %v520 = vrot.slane %v518, 1
        %v521 = vsel %vm405, %v516, %v520
        %v522 = vshrl.u32 %v380, 16
        %v524 = vor.u32 %v522, %v520
        %v526 = vshll.u32 %v381, 16
        %v528 = vrot.slane %v526, 1
        %v529 = vsel %vm405, %v524, %v528
        %v530 = vshrl.u32 %v381, 16
        %v532 = vor.u32 %v530, %v528
        %v534 = vshll.u32 %v382, 16
        %v536 = vrot.slane %v534, 1
        %v537 = vsel %vm405, %v532, %v536
        %v538 = vshrl.u32 %v382, 16
        %v540 = vor.u32 %v538, %v536
        %v542 = vshll.u32 %v383, 16
        %v544 = vrot.slane %v542, 1
        %v545 = vsel %vm405, %v540, %v544
        %v546 = vshrl.u32 %v383, 16
        %v548 = vor.u32 %v546, %v544
        %v550 = vshll.u32 %v404, 16
        %v552 = vrot.slane %v550, 1
        %v553 = vsel %vm405, %v548, %v552
        %v572 = vld [vmem:[#allocation5] sm:$0xf]
        %v573 = vld [vmem:[#allocation5 + $0x4] sm:$0xf]
        %v574 = vld [vmem:[#allocation5 + $0x8] sm:$0xf]
        %v575 = vld [vmem:[#allocation5 + $0xc] sm:$0xf]
        %v576 = vld [vmem:[#allocation5 + $0x10] sm:$0xf]
        %v577 = vld [vmem:[#allocation5 + $0x14] sm:$0xf]
        %v578 = vld [vmem:[#allocation5 + $0x18] sm:$0xf]
        %v579 = vld [vmem:[#allocation5 + $0x1c] sm:$0xf]
        %v580 = vld [vmem:[#allocation5 + $0x20] sm:$0xf]
        %v581 = vld [vmem:[#allocation5 + $0x24] sm:$0xf]
        %v582 = vld [vmem:[#allocation5 + $0x28] sm:$0xf]
        %v583 = vld [vmem:[#allocation5 + $0x2c] sm:$0xf]
        %v584 = vld [vmem:[#allocation5 + $0x30] sm:$0xf]
        %v585 = vld [vmem:[#allocation5 + $0x34] sm:$0xf]
        %v586 = vld [vmem:[#allocation5 + $0x38] sm:$0xf]
        %v587 = vld [vmem:[#allocation5 + $0x3c] sm:$0xf]
        %v588 = vld [vmem:[#allocation5 + $0x40] sm:$0xf]
        %v589 = vld [vmem:[#allocation5 + $0x44] sm:$0xf]
        %v590 = vld [vmem:[#allocation5 + $0x48] sm:$0xf]
        %v591 = vld [vmem:[#allocation5 + $0x4c] sm:$0xf]
        %v592 = vld [vmem:[#allocation5 + $0x50] sm:$0xf]
        %v593 = vld [vmem:[#allocation5 + $0x54] sm:$0xf]
        %v594 = vld [vmem:[#allocation5 + $0x58] sm:$0xf]
        %v595 = vld [vmem:[#allocation5 + $0x5c] sm:$0xf]
        %v596 = vld [vmem:[#allocation5 + $0x60] sm:$0xf]
        %v597 = vld [vmem:[#allocation5 + $0x64] sm:$0xf]
        %v598 = vld [vmem:[#allocation5 + $0x68] sm:$0xf]
        %v599 = vld [vmem:[#allocation5 + $0x6c] sm:$0xf]
        %v600 = vld [vmem:[#allocation5 + $0x70] sm:$0xf]
        %v601 = vld [vmem:[#allocation5 + $0x74] sm:$0xf]
        %v602 = vld [vmem:[#allocation5 + $0x78] sm:$0xf]
        %v603 = vld [vmem:[#allocation5 + $0x7c] sm:$0xf]
        %v604 = vld [vmem:[%s218] sm:$0xe]
        %v605 = vld [vmem:[%s218 + $0x8] sm:$0xe]
        %v606 = vld [vmem:[%s218 + $0x90] sm:$0xf]
        %v607 = vld [vmem:[%s218 + $0x94] sm:$0xf]
        %v608 = vld [vmem:[%s218 + $0x98] sm:$0x1]
        %v610 = vunpack.c.l.b16 %v604
        %v611 = vpack.c.b16 %v331, %v610
        %v616 = vunpack.c.l.b16 %v605
        %v617 = vunpack.c.l.b16 %v606
        %v618 = vunpack.c.l.b16 %v607
        %v619 = vunpack.c.l.b16 %v608
        %v620 = vpack.c.b16 %v333, %v616
        %v621 = vpack.c.b16 %v618, %v617
        %v622 = vpack.c.b16 %v619, %v619
        %v623 = vld [vmem:[#allocation5 + $0x80] sm:$0xf]
        %v624 = vld [vmem:[#allocation5 + $0x84] sm:$0xf]
        %v625 = vld [vmem:[#allocation5 + $0x88] sm:$0xf]
        %v626 = vld [vmem:[#allocation5 + $0x8c] sm:$0xf]
        %v627 = vld [vmem:[#allocation5 + $0x90] sm:$0xf]
        %v628 = vld [vmem:[#allocation5 + $0x94] sm:$0xf]
        %v629 = vld [vmem:[#allocation5 + $0x98] sm:$0xf]
        %v630 = vld [vmem:[#allocation5 + $0x9c] sm:$0xf]
        %v631 = vld [vmem:[#allocation5 + $0xa0] sm:$0xf]
        %v632 = vld [vmem:[#allocation5 + $0xa4] sm:$0xf]
        %v633 = vld [vmem:[#allocation5 + $0xa8] sm:$0xf]
        %v634 = vld [vmem:[#allocation5 + $0xac] sm:$0xf]
        %v635 = vld [vmem:[#allocation5 + $0xb0] sm:$0xf]
        %v636 = vld [vmem:[#allocation5 + $0xb4] sm:$0xf]
        %v637 = vld [vmem:[#allocation5 + $0xb8] sm:$0xf]
        %v638 = vld [vmem:[#allocation5 + $0xbc] sm:$0xf]
        %v639 = vld [vmem:[#allocation5 + $0xc0] sm:$0xf]
        %v640 = vld [vmem:[#allocation5 + $0xc4] sm:$0xf]
        %v641 = vld [vmem:[#allocation5 + $0xc8] sm:$0xf]
        %v642 = vld [vmem:[#allocation5 + $0xcc] sm:$0xf]
        %v643 = vld [vmem:[#allocation5 + $0xd0] sm:$0xf]
        %v644 = vld [vmem:[#allocation5 + $0xd4] sm:$0xf]
        %v645 = vld [vmem:[#allocation5 + $0xd8] sm:$0xf]
        %v646 = vld [vmem:[#allocation5 + $0xdc] sm:$0xf]
        %v647 = vld [vmem:[#allocation5 + $0xe0] sm:$0xf]
        %v648 = vld [vmem:[#allocation5 + $0xe4] sm:$0xf]
        %v649 = vld [vmem:[#allocation5 + $0xe8] sm:$0xf]
        %v650 = vld [vmem:[#allocation5 + $0xec] sm:$0xf]
        %v651 = vld [vmem:[#allocation5 + $0xf0] sm:$0xf]
        %v652 = vld [vmem:[#allocation5 + $0xf4] sm:$0xf]
        %v653 = vld [vmem:[#allocation5 + $0xf8] sm:$0xf]
        %v654 = vld [vmem:[#allocation5 + $0xfc] sm:$0xf]
        %vm655 = vcmask 1046528
        %v656 = vrot.slane %v611, 1
        %v657 = vrot.slane %v367, 1
        %v658 = vsel %vm655, %v656, %v657
        %v659 = vrot.slane %v620, 1
        %v660 = vrot.slane %v368, 1
        %v661 = vsel %vm655, %v659, %v660
        %v662 = vsel %vm655, %v657, %v660
        %v663 = vrot.slane %v369, 1
        %v664 = vsel %vm655, %v660, %v663
        %v665 = vrot.slane %v370, 1
        %v666 = vsel %vm655, %v663, %v665
        %v667 = vrot.slane %v371, 1
        %v668 = vsel %vm655, %v665, %v667
        %v669 = vrot.slane %v372, 1
        %v670 = vsel %vm655, %v667, %v669
        %v671 = vrot.slane %v373, 1
        %v672 = vsel %vm655, %v669, %v671
        %v673 = vrot.slane %v374, 1
        %v674 = vsel %vm655, %v671, %v673
        %v675 = vrot.slane %v375, 1
        %v676 = vsel %vm655, %v673, %v675
        %v677 = vrot.slane %v376, 1
        %v678 = vsel %vm655, %v675, %v677
        %v679 = vrot.slane %v377, 1
        %v680 = vsel %vm655, %v677, %v679
        %v681 = vrot.slane %v378, 1
        %v682 = vsel %vm655, %v679, %v681
        %v683 = vrot.slane %v379, 1
        %v684 = vsel %vm655, %v681, %v683
        %v685 = vrot.slane %v380, 1
        %v686 = vsel %vm655, %v683, %v685
        %v687 = vrot.slane %v381, 1
        %v688 = vsel %vm655, %v685, %v687
        %v689 = vrot.slane %v382, 1
        %v690 = vsel %vm655, %v687, %v689
        %v691 = vrot.slane %v383, 1
        %v692 = vsel %vm655, %v689, %v691
        %v693 = vrot.slane %v621, 1
        %v694 = vsel %vm655, %v691, %v693
        %v695 = vrot.slane %v404, 1
        %v696 = vsel %vm655, %v691, %v695
        %v697 = vrot.slane %v622, 1
        %v698 = vsel %vm655, %v693, %v697
        %v752 = vunpack.c.l.b16 %v623
        %v753 = vunpack.c.l.b16 %v624
        %v754 = vunpack.c.l.b16 %v625
        %v755 = vunpack.c.l.b16 %v626
        %v756 = vunpack.c.l.b16 %v627
        %v757 = vunpack.c.l.b16 %v628
        %v758 = vunpack.c.l.b16 %v629
        %v759 = vunpack.c.l.b16 %v630
        %v760 = vunpack.c.l.b16 %v631
        %v761 = vunpack.c.l.b16 %v632
        %v762 = vunpack.c.l.b16 %v633
        %v763 = vunpack.c.l.b16 %v634
        %v764 = vunpack.c.l.b16 %v635
        %v765 = vunpack.c.l.b16 %v636
        %v766 = vunpack.c.l.b16 %v637
        %v767 = vunpack.c.l.b16 %v638
        %v768 = vunpack.c.l.b16 %v639
        %v769 = vunpack.c.l.b16 %v640
        %v770 = vunpack.c.l.b16 %v641
        %v771 = vunpack.c.l.b16 %v642
        %v772 = vunpack.c.l.b16 %v643
        %v773 = vunpack.c.l.b16 %v644
        %v774 = vunpack.c.l.b16 %v645
        %v775 = vunpack.c.l.b16 %v646
        %v776 = vunpack.c.l.b16 %v647
        %v777 = vunpack.c.l.b16 %v648
        %v778 = vunpack.c.l.b16 %v649
        %v779 = vunpack.c.l.b16 %v650
        %v780 = vunpack.c.l.b16 %v651
        %v781 = vunpack.c.l.b16 %v652
        %v782 = vunpack.c.l.b16 %v653
        %v783 = vunpack.c.l.b16 %v654
        %v784 = vpack.c.b16 %v753, %v752
        %v785 = vpack.c.b16 %v755, %v754
        %v786 = vpack.c.b16 %v757, %v756
        %v787 = vpack.c.b16 %v759, %v758
        %v788 = vpack.c.b16 %v761, %v760
        %v789 = vpack.c.b16 %v763, %v762
        %v790 = vpack.c.b16 %v765, %v764
        %v791 = vpack.c.b16 %v767, %v766
        %v792 = vpack.c.b16 %v769, %v768
        %v793 = vpack.c.b16 %v771, %v770
        %v794 = vpack.c.b16 %v773, %v772
        %v795 = vpack.c.b16 %v775, %v774
        %v796 = vpack.c.b16 %v777, %v776
        %v797 = vpack.c.b16 %v779, %v778
        %v798 = vpack.c.b16 %v781, %v780
        %v799 = vpack.c.b16 %v783, %v782
        %816 = vmatprep.subr.bf16.mxu0 0
        %817 = vmatpush1.bf16.msra.mxu0 %v784
        %818 = vmatprep.subr.bf16.mxu0 0
        %819 = vmatpush1.bf16.msra.mxu0 %v785
        %820 = vmatprep.subr.bf16.mxu0 0
        %821 = vmatpush1.bf16.msra.mxu0 %v786
        %822 = vmatprep.subr.bf16.mxu0 0
        %823 = vmatpush1.bf16.msra.mxu0 %v787
        %824 = vmatprep.subr.bf16.mxu0 0
        %825 = vmatpush1.bf16.msra.mxu0 %v788
        %826 = vmatprep.subr.bf16.mxu0 0
        %827 = vmatpush1.bf16.msra.mxu0 %v789
        %828 = vmatprep.subr.bf16.mxu0 0
        %829 = vmatpush1.bf16.msra.mxu0 %v790
        %830 = vmatprep.subr.bf16.mxu0 0
        %831 = vmatpush1.bf16.msra.mxu0 %v791
        %832 = vmatprep.subr.bf16.mxu0 0
        %833 = vmatpush1.bf16.msra.mxu0 %v792
        %834 = vmatprep.subr.bf16.mxu0 0
        %835 = vmatpush1.bf16.msra.mxu0 %v793
        %836 = vmatprep.subr.bf16.mxu0 0
        %837 = vmatpush1.bf16.msra.mxu0 %v794
        %838 = vmatprep.subr.bf16.mxu0 0
        %839 = vmatpush1.bf16.msra.mxu0 %v795
        %840 = vmatprep.subr.bf16.mxu0 0
        %841 = vmatpush1.bf16.msra.mxu0 %v796
        %842 = vmatprep.subr.bf16.mxu0 0
        %843 = vmatpush1.bf16.msra.mxu0 %v797
        %844 = vmatprep.subr.bf16.mxu0 0
        %845 = vmatpush1.bf16.msra.mxu0 %v798
        %846 = vmatprep.subr.bf16.mxu0 0
        %847 = vmatpush1.bf16.msra.mxu0 %v799
        %848 = vmatprep.mubr.bf16.mxu0 %v661
        %849 = vmatmul.mubr.bf16.gmra.mrb[0].mxu0 %v658
        %v850 = vpop.f32.mrb[0].mxu0
        %v851 = vadd.f32 0.0, %v850
        %v852 = vpop.f32.mrb[0].mxu0
        %v853 = vpop.f32.mrb[0].mxu0
        %v854 = vadd.f32 0.0, %v853
        %v855 = vpop.f32.mrb[0].mxu0
        %856 = vmatprep.mubr.bf16.mxu0 %v664
        %857 = vmatmul.mubr.bf16.gmra.mrb[0].mxu0 %v662
        %v858 = vpop.f32.mrb[0].mxu0
        %v859 = vadd.f32 0.0, %v858
        %v860 = vpop.f32.mrb[0].mxu0
        %v861 = vpop.f32.mrb[0].mxu0
        %v862 = vadd.f32 0.0, %v861
        %v863 = vpop.f32.mrb[0].mxu0
        %864 = vmatprep.mubr.bf16.mxu0 %v666
        %865 = vmatmul.mubr.bf16.gmra.mrb[0].mxu0 %v664
        %v866 = vpop.f32.mrb[0].mxu0
        %v867 = vadd.f32 0.0, %v866
        %v868 = vpop.f32.mrb[0].mxu0
        %v869 = vpop.f32.mrb[0].mxu0
        %v870 = vadd.f32 0.0, %v869
        %v871 = vpop.f32.mrb[0].mxu0
        %872 = vmatprep.mubr.bf16.mxu0 %v668
        %873 = vmatmul.mubr.bf16.gmra.mrb[0].mxu0 %v666
        %v874 = vpop.f32.mrb[0].mxu0
        %v875 = vadd.f32 0.0, %v874
        %v876 = vpop.f32.mrb[0].mxu0
        %v877 = vpop.f32.mrb[0].mxu0
        %v878 = vadd.f32 0.0, %v877
        %v879 = vpop.f32.mrb[0].mxu0
        %880 = vmatprep.mubr.bf16.mxu0 %v670
        %881 = vmatmul.mubr.bf16.gmra.mrb[0].mxu0 %v668
        %v882 = vpop.f32.mrb[0].mxu0
        %v883 = vadd.f32 0.0, %v882
        %v884 = vpop.f32.mrb[0].mxu0
        %v885 = vpop.f32.mrb[0].mxu0
        %v886 = vadd.f32 0.0, %v885
        %v887 = vpop.f32.mrb[0].mxu0
        %888 = vmatprep.mubr.bf16.mxu0 %v672
        %889 = vmatmul.mubr.bf16.gmra.mrb[0].mxu0 %v670
        %v890 = vpop.f32.mrb[0].mxu0
        %v891 = vadd.f32 0.0, %v890
        %v892 = vpop.f32.mrb[0].mxu0
        %v893 = vpop.f32.mrb[0].mxu0
        %v894 = vadd.f32 0.0, %v893
        %v895 = vpop.f32.mrb[0].mxu0
        %896 = vmatprep.mubr.bf16.mxu0 %v674
        %897 = vmatmul.mubr.bf16.gmra.mrb[0].mxu0 %v672
        %v898 = vpop.f32.mrb[0].mxu0
        %v899 = vadd.f32 0.0, %v898
        %v900 = vpop.f32.mrb[0].mxu0
        %v901 = vpop.f32.mrb[0].mxu0
        %v902 = vadd.f32 0.0, %v901
        %v903 = vpop.f32.mrb[0].mxu0
        %904 = vmatprep.mubr.bf16.mxu0 %v676
        %905 = vmatmul.mubr.bf16.gmra.mrb[0].mxu0 %v674
        %v906 = vpop.f32.mrb[0].mxu0
        %v907 = vadd.f32 0.0, %v906
        %v908 = vpop.f32.mrb[0].mxu0
        %v909 = vpop.f32.mrb[0].mxu0
        %v910 = vadd.f32 0.0, %v909
        %v911 = vpop.f32.mrb[0].mxu0
        %912 = vmatprep.mubr.bf16.mxu0 %v678
        %913 = vmatmul.mubr.bf16.gmra.mrb[0].mxu0 %v676
        %v914 = vpop.f32.mrb[0].mxu0
        %v915 = vadd.f32 0.0, %v914
        %v916 = vpop.f32.mrb[0].mxu0
        %v917 = vpop.f32.mrb[0].mxu0
        %v918 = vadd.f32 0.0, %v917
        %v919 = vpop.f32.mrb[0].mxu0
        %920 = vmatprep.mubr.bf16.mxu0 %v680
        %921 = vmatmul.mubr.bf16.gmra.mrb[0].mxu0 %v678
        %v922 = vpop.f32.mrb[0].mxu0
        %v923 = vadd.f32 0.0, %v922
        %v924 = vpop.f32.mrb[0].mxu0
        %v925 = vpop.f32.mrb[0].mxu0
        %v926 = vadd.f32 0.0, %v925
        %v927 = vpop.f32.mrb[0].mxu0
        %928 = vmatprep.mubr.bf16.mxu0 %v682
        %929 = vmatmul.mubr.bf16.gmra.mrb[0].mxu0 %v680
        %v930 = vpop.f32.mrb[0].mxu0
        %v931 = vadd.f32 0.0, %v930
        %v932 = vpop.f32.mrb[0].mxu0
        %v933 = vpop.f32.mrb[0].mxu0
        %v934 = vadd.f32 0.0, %v933
        %v935 = vpop.f32.mrb[0].mxu0
        %936 = vmatprep.mubr.bf16.mxu0 %v684
        %937 = vmatmul.mubr.bf16.gmra.mrb[0].mxu0 %v682
        %v938 = vpop.f32.mrb[0].mxu0
        %v939 = vadd.f32 0.0, %v938
        %v940 = vpop.f32.mrb[0].mxu0
        %v941 = vpop.f32.mrb[0].mxu0
        %v942 = vadd.f32 0.0, %v941
        %v943 = vpop.f32.mrb[0].mxu0
        %944 = vmatprep.mubr.bf16.mxu0 %v686
        %945 = vmatmul.mubr.bf16.gmra.mrb[0].mxu0 %v684
        %v946 = vpop.f32.mrb[0].mxu0
        %v947 = vadd.f32 0.0, %v946
        %v948 = vpop.f32.mrb[0].mxu0
        %v949 = vpop.f32.mrb[0].mxu0
        %v950 = vadd.f32 0.0, %v949
        %v951 = vpop.f32.mrb[0].mxu0
        %952 = vmatprep.mubr.bf16.mxu0 %v688
        %953 = vmatmul.mubr.bf16.gmra.mrb[0].mxu0 %v686
        %v954 = vpop.f32.mrb[0].mxu0
        %v955 = vadd.f32 0.0, %v954
        %v956 = vpop.f32.mrb[0].mxu0
        %v957 = vpop.f32.mrb[0].mxu0
        %v958 = vadd.f32 0.0, %v957
        %v959 = vpop.f32.mrb[0].mxu0
        %960 = vmatprep.mubr.bf16.mxu0 %v690
        %961 = vmatmul.mubr.bf16.gmra.mrb[0].mxu0 %v688
        %v962 = vpop.f32.mrb[0].mxu0
        %v963 = vadd.f32 0.0, %v962
        %v964 = vpop.f32.mrb[0].mxu0
        %v965 = vpop.f32.mrb[0].mxu0
        %v966 = vadd.f32 0.0, %v965
        %v967 = vpop.f32.mrb[0].mxu0
        %968 = vmatprep.mubr.bf16.mxu0 %v692
        %969 = vmatmul.mubr.bf16.gmra.mrb[0].mxu0 %v690
        %v970 = vpop.f32.mrb[0].mxu0
        %v971 = vadd.f32 0.0, %v970
        %v972 = vpop.f32.mrb[0].mxu0
        %v973 = vpop.f32.mrb[0].mxu0
        %v974 = vadd.f32 0.0, %v973
        %v975 = vpop.f32.mrb[0].mxu0
        %976 = vmatprep.mubr.bf16.mxu0 %v694
        %977 = vmatmul.mubr.bf16.gmra.mrb[0].mxu0 %v692
        %v978 = vpop.f32.mrb[0].mxu0
        %v979 = vadd.f32 0.0, %v978
        %v980 = vpop.f32.mrb[0].mxu0
        %v981 = vpop.f32.mrb[0].mxu0
        %v982 = vadd.f32 0.0, %v981
        %v983 = vpop.f32.mrb[0].mxu0
        %984 = vmatprep.mubr.bf16.mxu0 %v698
        %985 = vmatmul.mubr.bf16.gmra.mrb[0].mxu0 %v696
        %v986 = vpop.f32.mrb[0].mxu0
        %v987 = vadd.f32 0.0, %v986
        %v988 = vpop.f32.mrb[0].mxu0
        %v989 = vpop.f32.mrb[0].mxu0
        %v990 = vadd.f32 0.0, %v989
        %v991 = vpop.f32.mrb[0].mxu0
        %992 = vdwg.mxu0
        %v1025 = vunpack.c.l.b16 %v572
        %v1026 = vunpack.c.l.b16 %v573
        %v1027 = vunpack.c.l.b16 %v574
        %v1028 = vunpack.c.l.b16 %v575
        %v1029 = vunpack.c.l.b16 %v576
        %v1030 = vunpack.c.l.b16 %v577
        %v1031 = vunpack.c.l.b16 %v578
        %v1032 = vunpack.c.l.b16 %v579
        %v1033 = vunpack.c.l.b16 %v580
        %v1034 = vunpack.c.l.b16 %v581
        %v1035 = vunpack.c.l.b16 %v582
        %v1036 = vunpack.c.l.b16 %v583
        %v1037 = vunpack.c.l.b16 %v584
        %v1038 = vunpack.c.l.b16 %v585
        %v1039 = vunpack.c.l.b16 %v586
        %v1040 = vunpack.c.l.b16 %v587
        %v1041 = vunpack.c.l.b16 %v588
        %v1042 = vunpack.c.l.b16 %v589
        %v1043 = vunpack.c.l.b16 %v590
        %v1044 = vunpack.c.l.b16 %v591
        %v1045 = vunpack.c.l.b16 %v592
        %v1046 = vunpack.c.l.b16 %v593
        %v1047 = vunpack.c.l.b16 %v594
        %v1048 = vunpack.c.l.b16 %v595
        %v1049 = vunpack.c.l.b16 %v596
        %v1050 = vunpack.c.l.b16 %v597
        %v1051 = vunpack.c.l.b16 %v598
        %v1052 = vunpack.c.l.b16 %v599
        %v1053 = vunpack.c.l.b16 %v600
        %v1054 = vunpack.c.l.b16 %v601
        %v1055 = vunpack.c.l.b16 %v602
        %v1056 = vunpack.c.l.b16 %v603
        %v1057 = vpack.c.b16 %v1026, %v1025
        %v1058 = vpack.c.b16 %v1028, %v1027
        %v1059 = vpack.c.b16 %v1030, %v1029
        %v1060 = vpack.c.b16 %v1032, %v1031
        %v1061 = vpack.c.b16 %v1034, %v1033
        %v1062 = vpack.c.b16 %v1036, %v1035
        %v1063 = vpack.c.b16 %v1038, %v1037
        %v1064 = vpack.c.b16 %v1040, %v1039
        %v1065 = vpack.c.b16 %v1042, %v1041
        %v1066 = vpack.c.b16 %v1044, %v1043
        %v1067 = vpack.c.b16 %v1046, %v1045
        %v1068 = vpack.c.b16 %v1048, %v1047
        %v1069 = vpack.c.b16 %v1050, %v1049
        %v1070 = vpack.c.b16 %v1052, %v1051
        %v1071 = vpack.c.b16 %v1054, %v1053
        %v1072 = vpack.c.b16 %v1056, %v1055
        %1089 = vmatprep.subr.bf16.mxu0 0
        %1090 = vmatpush1.bf16.msra.mxu0 %v1057
        %1091 = vmatprep.subr.bf16.mxu0 0
        %1092 = vmatpush1.bf16.msra.mxu0 %v1058
        %1093 = vmatprep.subr.bf16.mxu0 0
        %1094 = vmatpush1.bf16.msra.mxu0 %v1059
        %1095 = vmatprep.subr.bf16.mxu0 0
        %1096 = vmatpush1.bf16.msra.mxu0 %v1060
        %1097 = vmatprep.subr.bf16.mxu0 0
        %1098 = vmatpush1.bf16.msra.mxu0 %v1061
        %1099 = vmatprep.subr.bf16.mxu0 0
        %1100 = vmatpush1.bf16.msra.mxu0 %v1062
        %1101 = vmatprep.subr.bf16.mxu0 0
        %1102 = vmatpush1.bf16.msra.mxu0 %v1063
        %1103 = vmatprep.subr.bf16.mxu0 0
        %1104 = vmatpush1.bf16.msra.mxu0 %v1064
        %1105 = vmatprep.subr.bf16.mxu0 0
        %1106 = vmatpush1.bf16.msra.mxu0 %v1065
        %1107 = vmatprep.subr.bf16.mxu0 0
        %1108 = vmatpush1.bf16.msra.mxu0 %v1066
        %1109 = vmatprep.subr.bf16.mxu0 0
        %1110 = vmatpush1.bf16.msra.mxu0 %v1067
        %1111 = vmatprep.subr.bf16.mxu0 0
        %1112 = vmatpush1.bf16.msra.mxu0 %v1068
        %1113 = vmatprep.subr.bf16.mxu0 0
        %1114 = vmatpush1.bf16.msra.mxu0 %v1069
        %1115 = vmatprep.subr.bf16.mxu0 0
        %1116 = vmatpush1.bf16.msra.mxu0 %v1070
        %1117 = vmatprep.subr.bf16.mxu0 0
        %1118 = vmatpush1.bf16.msra.mxu0 %v1071
        %1119 = vmatprep.subr.bf16.mxu0 0
        %1120 = vmatpush1.bf16.msra.mxu0 %v1072
        %1121 = vmatprep.mubr.bf16.mxu0 %v417
        %1122 = vmatmul.mubr.bf16.gmra.mrb[0].mxu0 %v366
        %v1123 = vpop.f32.mrb[0].mxu0
        %v1124 = vadd.f32 %v851, %v1123
        %v1125 = vpop.f32.mrb[0].mxu0
        %v1126 = vpop.f32.mrb[0].mxu0
        %v1127 = vadd.f32 %v854, %v1126
        %v1128 = vpop.f32.mrb[0].mxu0
        %1129 = vmatprep.mubr.bf16.mxu0 %v425
        %1130 = vmatmul.mubr.bf16.gmra.mrb[0].mxu0 %v367
        %v1131 = vpop.f32.mrb[0].mxu0
        %v1132 = vadd.f32 %v859, %v1131
        %v1133 = vpop.f32.mrb[0].mxu0
        %v1134 = vpop.f32.mrb[0].mxu0
        %v1135 = vadd.f32 %v862, %v1134
        %v1136 = vpop.f32.mrb[0].mxu0
        %1137 = vmatprep.mubr.bf16.mxu0 %v433
        %1138 = vmatmul.mubr.bf16.gmra.mrb[0].mxu0 %v368
        %v1139 = vpop.f32.mrb[0].mxu0
        %v1140 = vadd.f32 %v867, %v1139
        %v1141 = vpop.f32.mrb[0].mxu0
        %v1142 = vpop.f32.mrb[0].mxu0
        %v1143 = vadd.f32 %v870, %v1142
        %v1144 = vpop.f32.mrb[0].mxu0
        %1145 = vmatprep.mubr.bf16.mxu0 %v441
        %1146 = vmatmul.mubr.bf16.gmra.mrb[0].mxu0 %v369
        %v1147 = vpop.f32.mrb[0].mxu0
        %v1148 = vadd.f32 %v875, %v1147
        %v1149 = vpop.f32.mrb[0].mxu0
        %v1150 = vpop.f32.mrb[0].mxu0
        %v1151 = vadd.f32 %v878, %v1150
        %v1152 = vpop.f32.mrb[0].mxu0
        %1153 = vmatprep.mubr.bf16.mxu0 %v449
        %1154 = vmatmul.mubr.bf16.gmra.mrb[0].mxu0 %v370
        %v1155 = vpop.f32.mrb[0].mxu0
        %v1156 = vadd.f32 %v883, %v1155
        %v1157 = vpop.f32.mrb[0].mxu0
        %v1158 = vpop.f32.mrb[0].mxu0
        %v1159 = vadd.f32 %v886, %v1158
        %v1160 = vpop.f32.mrb[0].mxu0
        %1161 = vmatprep.mubr.bf16.mxu0 %v457
        %1162 = vmatmul.mubr.bf16.gmra.mrb[0].mxu0 %v371
        %v1163 = vpop.f32.mrb[0].mxu0
        %v1164 = vadd.f32 %v891, %v1163
        %v1165 = vpop.f32.mrb[0].mxu0
        %v1166 = vpop.f32.mrb[0].mxu0
        %v1167 = vadd.f32 %v894, %v1166
        %v1168 = vpop.f32.mrb[0].mxu0
        %1169 = vmatprep.mubr.bf16.mxu0 %v465
        %1170 = vmatmul.mubr.bf16.gmra.mrb[0].mxu0 %v372
        %v1171 = vpop.f32.mrb[0].mxu0
        %v1172 = vadd.f32 %v899, %v1171
        %v1173 = vpop.f32.mrb[0].mxu0
        %v1174 = vpop.f32.mrb[0].mxu0
        %v1175 = vadd.f32 %v902, %v1174
        %v1176 = vpop.f32.mrb[0].mxu0
        %1177 = vmatprep.mubr.bf16.mxu0 %v473
        %1178 = vmatmul.mubr.bf16.gmra.mrb[0].mxu0 %v373
        %v1179 = vpop.f32.mrb[0].mxu0
        %v1180 = vadd.f32 %v907, %v1179
        %v1181 = vpop.f32.mrb[0].mxu0
        %v1182 = vpop.f32.mrb[0].mxu0
        %v1183 = vadd.f32 %v910, %v1182
        %v1184 = vpop.f32.mrb[0].mxu0
        %1185 = vmatprep.mubr.bf16.mxu0 %v481
        %1186 = vmatmul.mubr.bf16.gmra.mrb[0].mxu0 %v374
        %v1187 = vpop.f32.mrb[0].mxu0
        %v1188 = vadd.f32 %v915, %v1187
        %v1189 = vpop.f32.mrb[0].mxu0
        %v1190 = vpop.f32.mrb[0].mxu0
        %v1191 = vadd.f32 %v918, %v1190
        %v1192 = vpop.f32.mrb[0].mxu0
        %1193 = vmatprep.mubr.bf16.mxu0 %v489
        %1194 = vmatmul.mubr.bf16.gmra.mrb[0].mxu0 %v375
        %v1195 = vpop.f32.mrb[0].mxu0
        %v1196 = vadd.f32 %v923, %v1195
        %v1197 = vpop.f32.mrb[0].mxu0
        %v1198 = vpop.f32.mrb[0].mxu0
        %v1199 = vadd.f32 %v926, %v1198
        %v1200 = vpop.f32.mrb[0].mxu0
        %1201 = vmatprep.mubr.bf16.mxu0 %v497
        %1202 = vmatmul.mubr.bf16.gmra.mrb[0].mxu0 %v376
        %v1203 = vpop.f32.mrb[0].mxu0
        %v1204 = vadd.f32 %v931, %v1203
        %v1205 = vpop.f32.mrb[0].mxu0
        %v1206 = vpop.f32.mrb[0].mxu0
        %v1207 = vadd.f32 %v934, %v1206
        %v1208 = vpop.f32.mrb[0].mxu0
        %1209 = vmatprep.mubr.bf16.mxu0 %v505
        %1210 = vmatmul.mubr.bf16.gmra.mrb[0].mxu0 %v377
        %v1211 = vpop.f32.mrb[0].mxu0
        %v1212 = vadd.f32 %v939, %v1211
        %v1213 = vpop.f32.mrb[0].mxu0
        %v1214 = vpop.f32.mrb[0].mxu0
        %v1215 = vadd.f32 %v942, %v1214
        %v1216 = vpop.f32.mrb[0].mxu0
        %1217 = vmatprep.mubr.bf16.mxu0 %v513
        %1218 = vmatmul.mubr.bf16.gmra.mrb[0].mxu0 %v378
        %v1219 = vpop.f32.mrb[0].mxu0
        %v1220 = vadd.f32 %v947, %v1219
        %v1221 = vpop.f32.mrb[0].mxu0
        %v1222 = vpop.f32.mrb[0].mxu0
        %v1223 = vadd.f32 %v950, %v1222
        %v1224 = vpop.f32.mrb[0].mxu0
        %1225 = vmatprep.mubr.bf16.mxu0 %v521
        %1226 = vmatmul.mubr.bf16.gmra.mrb[0].mxu0 %v379
        %v1227 = vpop.f32.mrb[0].mxu0
        %v1228 = vadd.f32 %v955, %v1227
        %v1229 = vpop.f32.mrb[0].mxu0
        %v1230 = vpop.f32.mrb[0].mxu0
        %v1231 = vadd.f32 %v958, %v1230
        %v1232 = vpop.f32.mrb[0].mxu0
        %1233 = vmatprep.mubr.bf16.mxu0 %v529
        %1234 = vmatmul.mubr.bf16.gmra.mrb[0].mxu0 %v380
        %v1235 = vpop.f32.mrb[0].mxu0
        %v1236 = vadd.f32 %v963, %v1235
        %v1237 = vpop.f32.mrb[0].mxu0
        %v1238 = vpop.f32.mrb[0].mxu0
        %v1239 = vadd.f32 %v966, %v1238
        %v1240 = vpop.f32.mrb[0].mxu0
        %1241 = vmatprep.mubr.bf16.mxu0 %v537
        %1242 = vmatmul.mubr.bf16.gmra.mrb[0].mxu0 %v381
        %v1243 = vpop.f32.mrb[0].mxu0
        %v1244 = vadd.f32 %v971, %v1243
        %v1245 = vpop.f32.mrb[0].mxu0
        %v1246 = vpop.f32.mrb[0].mxu0
        %v1247 = vadd.f32 %v974, %v1246
        %v1248 = vpop.f32.mrb[0].mxu0
        %1249 = vmatprep.mubr.bf16.mxu0 %v545
        %1250 = vmatmul.mubr.bf16.gmra.mrb[0].mxu0 %v382
        %v1251 = vpop.f32.mrb[0].mxu0
        %v1252 = vadd.f32 %v979, %v1251
        %v1253 = vpop.f32.mrb[0].mxu0
        %v1254 = vpop.f32.mrb[0].mxu0
        %v1255 = vadd.f32 %v982, %v1254
        %v1256 = vpop.f32.mrb[0].mxu0
        %1257 = vmatprep.mubr.bf16.mxu0 %v553
        %1258 = vmatmul.mubr.bf16.gmra.mrb[0].mxu0 %v383
        %v1259 = vpop.f32.mrb[0].mxu0
        %v1260 = vadd.f32 %v987, %v1259
        %v1261 = vpop.f32.mrb[0].mxu0
        %v1262 = vpop.f32.mrb[0].mxu0
        %v1263 = vadd.f32 %v990, %v1262
        %v1264 = vpop.f32.mrb[0].mxu0
        %1265 = vdwg.mxu0
        %v1266 = vld [vmem:[%s218 + $0x98] sm:$0x3]
        %v1267 = vld [vmem:[%s218 + $0x8] sm:$0xc]
        %v1269 = vunpack.c.l.b16 %v1266
        %v1270 = vpack.c.b16 %v1269, %v1269
        %v1272 = vunpack.c.l.b16 %v1267
        %v1273 = vpack.c.b16 %v333, %v1272
        %v1275 = vshrl.u32 %v1273, 16
        %v1277 = vshll.u32 %v1273, 16
        %v1279 = vrot.slane %v1277, 1
        %v1280 = vor.u32 %v1275, %v1279
        %v1281 = vsel %vm405, %v1280, %v424
        %v1283 = vshll.u32 %v621, 16
        %v1285 = vrot.slane %v1283, 1
        %v1286 = vsel %vm405, %v548, %v1285
        %v1287 = vshrl.u32 %v621, 16
        %v1289 = vor.u32 %v1287, %v1285
        %v1291 = vshll.u32 %v1270, 16
        %v1293 = vrot.slane %v1291, 1
        %v1294 = vsel %vm405, %v1289, %v1293
        %v1295 = vshrl.u32 %v1270, 16
        %v1297 = vor.u32 %v1295, %v1293
        %v1298 = vld [vmem:[#allocation5 + $0x100] sm:$0xf]
        %v1299 = vld [vmem:[#allocation5 + $0x104] sm:$0xf]
        %v1300 = vld [vmem:[#allocation5 + $0x108] sm:$0xf]
        %v1301 = vld [vmem:[#allocation5 + $0x10c] sm:$0xf]
        %v1302 = vld [vmem:[#allocation5 + $0x110] sm:$0xf]
        %v1303 = vld [vmem:[#allocation5 + $0x114] sm:$0xf]
        %v1304 = vld [vmem:[#allocation5 + $0x118] sm:$0xf]
        %v1305 = vld [vmem:[#allocation5 + $0x11c] sm:$0xf]
        %v1306 = vld [vmem:[#allocation5 + $0x120] sm:$0xf]
        %v1307 = vld [vmem:[#allocation5 + $0x124] sm:$0xf]
        %v1308 = vld [vmem:[#allocation5 + $0x128] sm:$0xf]
        %v1309 = vld [vmem:[#allocation5 + $0x12c] sm:$0xf]
        %v1310 = vld [vmem:[#allocation5 + $0x130] sm:$0xf]
        %v1311 = vld [vmem:[#allocation5 + $0x134] sm:$0xf]
        %v1312 = vld [vmem:[#allocation5 + $0x138] sm:$0xf]
        %v1313 = vld [vmem:[#allocation5 + $0x13c] sm:$0xf]
        %v1314 = vld [vmem:[#allocation5 + $0x140] sm:$0xf]
        %v1315 = vld [vmem:[#allocation5 + $0x144] sm:$0xf]
        %v1316 = vld [vmem:[#allocation5 + $0x148] sm:$0xf]
        %v1317 = vld [vmem:[#allocation5 + $0x14c] sm:$0xf]
        %v1318 = vld [vmem:[#allocation5 + $0x150] sm:$0xf]
        %v1319 = vld [vmem:[#allocation5 + $0x154] sm:$0xf]
        %v1320 = vld [vmem:[#allocation5 + $0x158] sm:$0xf]
        %v1321 = vld [vmem:[#allocation5 + $0x15c] sm:$0xf]
        %v1322 = vld [vmem:[#allocation5 + $0x160] sm:$0xf]
        %v1323 = vld [vmem:[#allocation5 + $0x164] sm:$0xf]
        %v1324 = vld [vmem:[#allocation5 + $0x168] sm:$0xf]
        %v1325 = vld [vmem:[#allocation5 + $0x16c] sm:$0xf]
        %v1326 = vld [vmem:[#allocation5 + $0x170] sm:$0xf]
        %v1327 = vld [vmem:[#allocation5 + $0x174] sm:$0xf]
        %v1328 = vld [vmem:[#allocation5 + $0x178] sm:$0xf]
        %v1329 = vld [vmem:[#allocation5 + $0x17c] sm:$0xf]
        %vm1330 = vsmask.f32 6400
        %v1332 = vshrl.u32 %v620, 16
        %v1334 = vrot.slane %v1332, 1
        %v1335 = vshll.u32 %v620, 16
        %v1337 = vrot.slane %v1335, 2
        %v1338 = vor.u32 %v1334, %v1337
        %v1339 = vrot.slane %v426, 1
        %v1340 = vrot.slane %v422, 2
        %v1341 = vor.u32 %v1339, %v1340
        %v1342 = vsel %vm1330, %v1338, %v1341
        %v1344 = vshrl.u32 %v1281, 16
        %v1346 = vrot.slane %v1344, 1
        %v1347 = vshll.u32 %v1281, 16
        %v1349 = vrot.slane %v1347, 2
        %v1350 = vor.u32 %v1346, %v1349
        %v1352 = vshrl.u32 %v433, 16
        %v1354 = vrot.slane %v1352, 1
        %v1355 = vshll.u32 %v433, 16
        %v1357 = vrot.slane %v1355, 2
        %v1358 = vor.u32 %v1354, %v1357
        %v1359 = vsel %vm1330, %v1350, %v1358
        %v1360 = vrot.slane %v434, 1
        %v1361 = vrot.slane %v430, 2
        %v1362 = vor.u32 %v1360, %v1361
        %v1363 = vsel %vm1330, %v1341, %v1362
        %v1365 = vshrl.u32 %v441, 16
        %v1367 = vrot.slane %v1365, 1
        %v1368 = vshll.u32 %v441, 16
        %v1370 = vrot.slane %v1368, 2
        %v1371 = vor.u32 %v1367, %v1370
        %v1372 = vsel %vm1330, %v1358, %v1371
        %v1373 = vrot.slane %v442, 1
        %v1374 = vrot.slane %v438, 2
        %v1375 = vor.u32 %v1373, %v1374
        %v1376 = vsel %vm1330, %v1362, %v1375
        %v1378 = vshrl.u32 %v449, 16
        %v1380 = vrot.slane %v1378, 1
        %v1381 = vshll.u32 %v449, 16
        %v1383 = vrot.slane %v1381, 2
        %v1384 = vor.u32 %v1380, %v1383
        %v1385 = vsel %vm1330, %v1371, %v1384
        %v1386 = vrot.slane %v450, 1
        %v1387 = vrot.slane %v446, 2
        %v1388 = vor.u32 %v1386, %v1387
        %v1389 = vsel %vm1330, %v1375, %v1388
        %v1391 = vshrl.u32 %v457, 16
        %v1393 = vrot.slane %v1391, 1
        %v1394 = vshll.u32 %v457, 16
        %v1396 = vrot.slane %v1394, 2
        %v1397 = vor.u32 %v1393, %v1396
        %v1398 = vsel %vm1330, %v1384, %v1397
        %v1399 = vrot.slane %v458, 1
        %v1400 = vrot.slane %v454, 2
        %v1401 = vor.u32 %v1399, %v1400
        %v1402 = vsel %vm1330, %v1388, %v1401
        %v1404 = vshrl.u32 %v465, 16
        %v1406 = vrot.slane %v1404, 1
        %v1407 = vshll.u32 %v465, 16
        %v1409 = vrot.slane %v1407, 2
        %v1410 = vor.u32 %v1406, %v1409
        %v1411 = vsel %vm1330, %v1397, %v1410
        %v1412 = vrot.slane %v466, 1
        %v1413 = vrot.slane %v462, 2
        %v1414 = vor.u32 %v1412, %v1413
        %v1415 = vsel %vm1330, %v1401, %v1414
        %v1417 = vshrl.u32 %v473, 16
        %v1419 = vrot.slane %v1417, 1
        %v1420 = vshll.u32 %v473, 16
        %v1422 = vrot.slane %v1420, 2
        %v1423 = vor.u32 %v1419, %v1422
        %v1424 = vsel %vm1330, %v1410, %v1423
        %v1425 = vrot.slane %v474, 1
        %v1426 = vrot.slane %v470, 2
        %v1427 = vor.u32 %v1425, %v1426
        %v1428 = vsel %vm1330, %v1414, %v1427
        %v1430 = vshrl.u32 %v481, 16
        %v1432 = vrot.slane %v1430, 1
        %v1433 = vshll.u32 %v481, 16
        %v1435 = vrot.slane %v1433, 2
        %v1436 = vor.u32 %v1432, %v1435
        %v1437 = vsel %vm1330, %v1423, %v1436
        %v1438 = vrot.slane %v482, 1
        %v1439 = vrot.slane %v478, 2
        %v1440 = vor.u32 %v1438, %v1439
        %v1441 = vsel %vm1330, %v1427, %v1440
        %v1443 = vshrl.u32 %v489, 16
        %v1445 = vrot.slane %v1443, 1
        %v1446 = vshll.u32 %v489, 16
        %v1448 = vrot.slane %v1446, 2
        %v1449 = vor.u32 %v1445, %v1448
        %v1450 = vsel %vm1330, %v1436, %v1449
        %v1451 = vrot.slane %v490, 1
        %v1452 = vrot.slane %v486, 2
        %v1453 = vor.u32 %v1451, %v1452
        %v1454 = vsel %vm1330, %v1440, %v1453
        %v1456 = vshrl.u32 %v497, 16
        %v1458 = vrot.slane %v1456, 1
        %v1459 = vshll.u32 %v497, 16
        %v1461 = vrot.slane %v1459, 2
        %v1462 = vor.u32 %v1458, %v1461
        %v1463 = vsel %vm1330, %v1449, %v1462
        %v1464 = vrot.slane %v498, 1
        %v1465 = vrot.slane %v494, 2
        %v1466 = vor.u32 %v1464, %v1465
        %v1467 = vsel %vm1330, %v1453, %v1466
        %v1469 = vshrl.u32 %v505, 16
        %v1471 = vrot.slane %v1469, 1
        %v1472 = vshll.u32 %v505, 16
        %v1474 = vrot.slane %v1472, 2
        %v1475 = vor.u32 %v1471, %v1474
        %v1476 = vsel %vm1330, %v1462, %v1475
        %v1477 = vrot.slane %v506, 1
        %v1478 = vrot.slane %v502, 2
        %v1479 = vor.u32 %v1477, %v1478
        %v1480 = vsel %vm1330, %v1466, %v1479
        %v1482 = vshrl.u32 %v513, 16
        %v1484 = vrot.slane %v1482, 1
        %v1485 = vshll.u32 %v513, 16
        %v1487 = vrot.slane %v1485, 2
        %v1488 = vor.u32 %v1484, %v1487
        %v1489 = vsel %vm1330, %v1475, %v1488
        %v1490 = vrot.slane %v514, 1
        %v1491 = vrot.slane %v510, 2
        %v1492 = vor.u32 %v1490, %v1491
        %v1493 = vsel %vm1330, %v1479, %v1492
        %v1495 = vshrl.u32 %v521, 16
        %v1497 = vrot.slane %v1495, 1
        %v1498 = vshll.u32 %v521, 16
        %v1500 = vrot.slane %v1498, 2
        %v1501 = vor.u32 %v1497, %v1500
        %v1502 = vsel %vm1330, %v1488, %v1501
        %v1503 = vrot.slane %v522, 1
        %v1504 = vrot.slane %v518, 2
        %v1505 = vor.u32 %v1503, %v1504
        %v1506 = vsel %vm1330, %v1492, %v1505
        %v1508 = vshrl.u32 %v529, 16
        %v1510 = vrot.slane %v1508, 1
        %v1511 = vshll.u32 %v529, 16
        %v1513 = vrot.slane %v1511, 2
        %v1514 = vor.u32 %v1510, %v1513
        %v1515 = vsel %vm1330, %v1501, %v1514
        %v1516 = vrot.slane %v530, 1
        %v1517 = vrot.slane %v526, 2
        %v1518 = vor.u32 %v1516, %v1517
        %v1519 = vsel %vm1330, %v1505, %v1518
        %v1521 = vshrl.u32 %v537, 16
        %v1523 = vrot.slane %v1521, 1
        %v1524 = vshll.u32 %v537, 16
        %v1526 = vrot.slane %v1524, 2
        %v1527 = vor.u32 %v1523, %v1526
        %v1528 = vsel %vm1330, %v1514, %v1527
        %v1529 = vrot.slane %v538, 1
        %v1530 = vrot.slane %v534, 2
        %v1531 = vor.u32 %v1529, %v1530
        %v1532 = vsel %vm1330, %v1518, %v1531
        %v1534 = vshrl.u32 %v545, 16
        %v1536 = vrot.slane %v1534, 1
        %v1537 = vshll.u32 %v545, 16
        %v1539 = vrot.slane %v1537, 2
        %v1540 = vor.u32 %v1536, %v1539
        %v1541 = vsel %vm1330, %v1527, %v1540
        %v1542 = vrot.slane %v546, 1
        %v1543 = vrot.slane %v542, 2
        %v1544 = vor.u32 %v1542, %v1543
        %v1545 = vsel %vm1330, %v1531, %v1544
        %v1547 = vshrl.u32 %v1286, 16
        %v1549 = vrot.slane %v1547, 1
        %v1550 = vshll.u32 %v1286, 16
        %v1552 = vrot.slane %v1550, 2
        %v1553 = vor.u32 %v1549, %v1552
        %v1554 = vsel %vm1330, %v1540, %v1553
        %v1555 = vrot.slane %v1287, 1
        %v1556 = vrot.slane %v1283, 2
        %v1557 = vor.u32 %v1555, %v1556
        %v1558 = vsel %vm1330, %v1544, %v1557
        %v1560 = vshrl.u32 %v1294, 16
        %v1562 = vrot.slane %v1560, 1
        %v1563 = vshll.u32 %v1294, 16
        %v1565 = vrot.slane %v1563, 2
        %v1566 = vor.u32 %v1562, %v1565
        %v1567 = vsel %vm1330, %v1553, %v1566
        %v1568 = vrot.slane %v1295, 1
        %v1569 = vrot.slane %v1291, 2
        %v1570 = vor.u32 %v1568, %v1569
        %v1571 = vsel %vm1330, %v1557, %v1570
        %v1573 = vshrl.u32 %v1297, 16
        %v1575 = vrot.slane %v1573, 1
        %v1576 = vshll.u32 %v1297, 16
        %v1578 = vrot.slane %v1576, 2
        %v1579 = vor.u32 %v1575, %v1578
        %v1580 = vsel %vm1330, %v1566, %v1579
        %v1649 = vunpack.c.l.b16 %v1298
        %v1650 = vunpack.c.l.b16 %v1299
        %v1651 = vunpack.c.l.b16 %v1300
        %v1652 = vunpack.c.l.b16 %v1301
        %v1653 = vunpack.c.l.b16 %v1302
        %v1654 = vunpack.c.l.b16 %v1303
        %v1655 = vunpack.c.l.b16 %v1304
        %v1656 = vunpack.c.l.b16 %v1305
        %v1657 = vunpack.c.l.b16 %v1306
        %v1658 = vunpack.c.l.b16 %v1307
        %v1659 = vunpack.c.l.b16 %v1308
        %v1660 = vunpack.c.l.b16 %v1309
        %v1661 = vunpack.c.l.b16 %v1310
        %v1662 = vunpack.c.l.b16 %v1311
        %v1663 = vunpack.c.l.b16 %v1312
        %v1664 = vunpack.c.l.b16 %v1313
        %v1665 = vunpack.c.l.b16 %v1314
        %v1666 = vunpack.c.l.b16 %v1315
        %v1667 = vunpack.c.l.b16 %v1316
        %v1668 = vunpack.c.l.b16 %v1317
        %v1669 = vunpack.c.l.b16 %v1318
        %v1670 = vunpack.c.l.b16 %v1319
        %v1671 = vunpack.c.l.b16 %v1320
        %v1672 = vunpack.c.l.b16 %v1321
        %v1673 = vunpack.c.l.b16 %v1322
        %v1674 = vunpack.c.l.b16 %v1323
        %v1675 = vunpack.c.l.b16 %v1324
        %v1676 = vunpack.c.l.b16 %v1325
        %v1677 = vunpack.c.l.b16 %v1326
        %v1678 = vunpack.c.l.b16 %v1327
        %v1679 = vunpack.c.l.b16 %v1328
        %v1680 = vunpack.c.l.b16 %v1329
        %v1681 = vpack.c.b16 %v1650, %v1649
        %v1682 = vpack.c.b16 %v1652, %v1651
        %v1683 = vpack.c.b16 %v1654, %v1653
        %v1684 = vpack.c.b16 %v1656, %v1655
        %v1685 = vpack.c.b16 %v1658, %v1657
        %v1686 = vpack.c.b16 %v1660, %v1659
        %v1687 = vpack.c.b16 %v1662, %v1661
        %v1688 = vpack.c.b16 %v1664, %v1663
        %v1689 = vpack.c.b16 %v1666, %v1665
        %v1690 = vpack.c.b16 %v1668, %v1667
        %v1691 = vpack.c.b16 %v1670, %v1669
        %v1692 = vpack.c.b16 %v1672, %v1671
        %v1693 = vpack.c.b16 %v1674, %v1673
        %v1694 = vpack.c.b16 %v1676, %v1675
        %v1695 = vpack.c.b16 %v1678, %v1677
        %v1696 = vpack.c.b16 %v1680, %v1679
        %1713 = vmatprep.subr.bf16.mxu0 0
        %1714 = vmatpush1.bf16.msra.mxu0 %v1681
        %1715 = vmatprep.subr.bf16.mxu0 0
        %1716 = vmatpush1.bf16.msra.mxu0 %v1682
        %1717 = vmatprep.subr.bf16.mxu0 0
        %1718 = vmatpush1.bf16.msra.mxu0 %v1683
        %1719 = vmatprep.subr.bf16.mxu0 0
        %1720 = vmatpush1.bf16.msra.mxu0 %v1684
        %1721 = vmatprep.subr.bf16.mxu0 0
        %1722 = vmatpush1.bf16.msra.mxu0 %v1685
        %1723 = vmatprep.subr.bf16.mxu0 0
        %1724 = vmatpush1.bf16.msra.mxu0 %v1686
        %1725 = vmatprep.subr.bf16.mxu0 0
        %1726 = vmatpush1.bf16.msra.mxu0 %v1687
        %1727 = vmatprep.subr.bf16.mxu0 0
        %1728 = vmatpush1.bf16.msra.mxu0 %v1688
        %1729 = vmatprep.subr.bf16.mxu0 0
        %1730 = vmatpush1.bf16.msra.mxu0 %v1689
        %1731 = vmatprep.subr.bf16.mxu0 0
        %1732 = vmatpush1.bf16.msra.mxu0 %v1690
        %1733 = vmatprep.subr.bf16.mxu0 0
        %1734 = vmatpush1.bf16.msra.mxu0 %v1691
        %1735 = vmatprep.subr.bf16.mxu0 0
        %1736 = vmatpush1.bf16.msra.mxu0 %v1692
        %1737 = vmatprep.subr.bf16.mxu0 0
        %1738 = vmatpush1.bf16.msra.mxu0 %v1693
        %1739 = vmatprep.subr.bf16.mxu0 0
        %1740 = vmatpush1.bf16.msra.mxu0 %v1694
        %1741 = vmatprep.subr.bf16.mxu0 0
        %1742 = vmatpush1.bf16.msra.mxu0 %v1695
        %1743 = vmatprep.subr.bf16.mxu0 0
        %1744 = vmatpush1.bf16.msra.mxu0 %v1696
        %1745 = vmatprep.mubr.bf16.mxu0 %v1359
        %1746 = vmatmul.mubr.bf16.gmra.mrb[0].mxu0 %v1342
        %v1747 = vpop.f32.mrb[0].mxu0
        %v1748 = vadd.f32 0.0, %v1747
        %v1749 = vpop.f32.mrb[0].mxu0
        %v1750 = vpop.f32.mrb[0].mxu0
        %v1751 = vadd.f32 0.0, %v1750
        %v1752 = vpop.f32.mrb[0].mxu0
        %1753 = vmatprep.mubr.bf16.mxu0 %v1372
        %1754 = vmatmul.mubr.bf16.gmra.mrb[0].mxu0 %v1363
        %v1755 = vpop.f32.mrb[0].mxu0
        %v1756 = vadd.f32 0.0, %v1755
        %v1757 = vpop.f32.mrb[0].mxu0
        %v1758 = vpop.f32.mrb[0].mxu0
        %v1759 = vadd.f32 0.0, %v1758
        %v1760 = vpop.f32.mrb[0].mxu0
        %1761 = vmatprep.mubr.bf16.mxu0 %v1385
        %1762 = vmatmul.mubr.bf16.gmra.mrb[0].mxu0 %v1376
        %v1763 = vpop.f32.mrb[0].mxu0
        %v1764 = vadd.f32 0.0, %v1763
        %v1765 = vpop.f32.mrb[0].mxu0
        %v1766 = vpop.f32.mrb[0].mxu0
        %v1767 = vadd.f32 0.0, %v1766
        %v1768 = vpop.f32.mrb[0].mxu0
        %1769 = vmatprep.mubr.bf16.mxu0 %v1398
        %1770 = vmatmul.mubr.bf16.gmra.mrb[0].mxu0 %v1389
        %v1771 = vpop.f32.mrb[0].mxu0
        %v1772 = vadd.f32 0.0, %v1771
        %v1773 = vpop.f32.mrb[0].mxu0
        %v1774 = vpop.f32.mrb[0].mxu0
        %v1775 = vadd.f32 0.0, %v1774
        %v1776 = vpop.f32.mrb[0].mxu0
        %1777 = vmatprep.mubr.bf16.mxu0 %v1411
        %1778 = vmatmul.mubr.bf16.gmra.mrb[0].mxu0 %v1402
        %v1779 = vpop.f32.mrb[0].mxu0
        %v1780 = vadd.f32 0.0, %v1779
        %v1781 = vpop.f32.mrb[0].mxu0
        %v1782 = vpop.f32.mrb[0].mxu0
        %v1783 = vadd.f32 0.0, %v1782
        %v1784 = vpop.f32.mrb[0].mxu0
        %1785 = vmatprep.mubr.bf16.mxu0 %v1424
        %1786 = vmatmul.mubr.bf16.gmra.mrb[0].mxu0 %v1415
        %v1787 = vpop.f32.mrb[0].mxu0
        %v1788 = vadd.f32 0.0, %v1787
        %v1789 = vpop.f32.mrb[0].mxu0
        %v1790 = vpop.f32.mrb[0].mxu0
        %v1791 = vadd.f32 0.0, %v1790
        %v1792 = vpop.f32.mrb[0].mxu0
        %1793 = vmatprep.mubr.bf16.mxu0 %v1437
        %1794 = vmatmul.mubr.bf16.gmra.mrb[0].mxu0 %v1428
        %v1795 = vpop.f32.mrb[0].mxu0
        %v1796 = vadd.f32 0.0, %v1795
        %v1797 = vpop.f32.mrb[0].mxu0
        %v1798 = vpop.f32.mrb[0].mxu0
        %v1799 = vadd.f32 0.0, %v1798
        %v1800 = vpop.f32.mrb[0].mxu0
        %1801 = vmatprep.mubr.bf16.mxu0 %v1450
        %1802 = vmatmul.mubr.bf16.gmra.mrb[0].mxu0 %v1441
        %v1803 = vpop.f32.mrb[0].mxu0
        %v1804 = vadd.f32 0.0, %v1803
        %v1805 = vpop.f32.mrb[0].mxu0
        %v1806 = vpop.f32.mrb[0].mxu0
        %v1807 = vadd.f32 0.0, %v1806
        %v1808 = vpop.f32.mrb[0].mxu0
        %1809 = vmatprep.mubr.bf16.mxu0 %v1463
        %1810 = vmatmul.mubr.bf16.gmra.mrb[0].mxu0 %v1454
        %v1811 = vpop.f32.mrb[0].mxu0
        %v1812 = vadd.f32 0.0, %v1811
        %v1813 = vpop.f32.mrb[0].mxu0
        %v1814 = vpop.f32.mrb[0].mxu0
        %v1815 = vadd.f32 0.0, %v1814
        %v1816 = vpop.f32.mrb[0].mxu0
        %1817 = vmatprep.mubr.bf16.mxu0 %v1476
        %1818 = vmatmul.mubr.bf16.gmra.mrb[0].mxu0 %v1467
        %v1819 = vpop.f32.mrb[0].mxu0
        %v1820 = vadd.f32 0.0, %v1819
        %v1821 = vpop.f32.mrb[0].mxu0
        %v1822 = vpop.f32.mrb[0].mxu0
        %v1823 = vadd.f32 0.0, %v1822
        %v1824 = vpop.f32.mrb[0].mxu0
        %1825 = vmatprep.mubr.bf16.mxu0 %v1489
        %1826 = vmatmul.mubr.bf16.gmra.mrb[0].mxu0 %v1480
        %v1827 = vpop.f32.mrb[0].mxu0
        %v1828 = vadd.f32 0.0, %v1827
        %v1829 = vpop.f32.mrb[0].mxu0
        %v1830 = vpop.f32.mrb[0].mxu0
        %v1831 = vadd.f32 0.0, %v1830
        %v1832 = vpop.f32.mrb[0].mxu0
        %1833 = vmatprep.mubr.bf16.mxu0 %v1502
        %1834 = vmatmul.mubr.bf16.gmra.mrb[0].mxu0 %v1493
        %v1835 = vpop.f32.mrb[0].mxu0
        %v1836 = vadd.f32 0.0, %v1835
        %v1837 = vpop.f32.mrb[0].mxu0
        %v1838 = vpop.f32.mrb[0].mxu0
        %v1839 = vadd.f32 0.0, %v1838
        %v1840 = vpop.f32.mrb[0].mxu0
        %1841 = vmatprep.mubr.bf16.mxu0 %v1515
        %1842 = vmatmul.mubr.bf16.gmra.mrb[0].mxu0 %v1506
        %v1843 = vpop.f32.mrb[0].mxu0
        %v1844 = vadd.f32 0.0, %v1843
        %v1845 = vpop.f32.mrb[0].mxu0
        %v1846 = vpop.f32.mrb[0].mxu0
        %v1847 = vadd.f32 0.0, %v1846
        %v1848 = vpop.f32.mrb[0].mxu0
        %1849 = vmatprep.mubr.bf16.mxu0 %v1528
        %1850 = vmatmul.mubr.bf16.gmra.mrb[0].mxu0 %v1519
        %v1851 = vpop.f32.mrb[0].mxu0
        %v1852 = vadd.f32 0.0, %v1851
        %v1853 = vpop.f32.mrb[0].mxu0
        %v1854 = vpop.f32.mrb[0].mxu0
        %v1855 = vadd.f32 0.0, %v1854
        %v1856 = vpop.f32.mrb[0].mxu0
        %1857 = vmatprep.mubr.bf16.mxu0 %v1541
        %1858 = vmatmul.mubr.bf16.gmra.mrb[0].mxu0 %v1532
        %v1859 = vpop.f32.mrb[0].mxu0
        %v1860 = vadd.f32 0.0, %v1859
        %v1861 = vpop.f32.mrb[0].mxu0
        %v1862 = vpop.f32.mrb[0].mxu0
        %v1863 = vadd.f32 0.0, %v1862
        %v1864 = vpop.f32.mrb[0].mxu0
        %1865 = vmatprep.mubr.bf16.mxu0 %v1554
        %1866 = vmatmul.mubr.bf16.gmra.mrb[0].mxu0 %v1545
        %v1867 = vpop.f32.mrb[0].mxu0
        %v1868 = vadd.f32 0.0, %v1867
        %v1869 = vpop.f32.mrb[0].mxu0
        %v1870 = vpop.f32.mrb[0].mxu0
        %v1871 = vadd.f32 0.0, %v1870
        %v1872 = vpop.f32.mrb[0].mxu0
        %1873 = vmatprep.mubr.bf16.mxu0 %v1567
        %1874 = vmatmul.mubr.bf16.gmra.mrb[0].mxu0 %v1558
        %v1875 = vpop.f32.mrb[0].mxu0
        %v1876 = vadd.f32 0.0, %v1875
        %v1877 = vpop.f32.mrb[0].mxu0
        %v1878 = vpop.f32.mrb[0].mxu0
        %v1879 = vadd.f32 0.0, %v1878
        %v1880 = vpop.f32.mrb[0].mxu0
        %1881 = vmatprep.mubr.bf16.mxu0 %v1580
        %1882 = vmatmul.mubr.bf16.gmra.mrb[0].mxu0 %v1571
        %v1883 = vpop.f32.mrb[0].mxu0
        %v1884 = vadd.f32 0.0, %v1883
        %v1885 = vpop.f32.mrb[0].mxu0
        %v1886 = vpop.f32.mrb[0].mxu0
        %v1887 = vadd.f32 0.0, %v1886
        %v1888 = vpop.f32.mrb[0].mxu0
        %1889 = vdwg.mxu0
        %v1890 = vadd.f32 %v1124, %v1748
        %v1891 = vadd.f32 %v1127, %v1751
        %v1892 = vadd.f32 %v1132, %v1756
        %v1893 = vadd.f32 %v1135, %v1759
        %v1894 = vadd.f32 %v1140, %v1764
        %v1895 = vadd.f32 %v1143, %v1767
        %v1896 = vadd.f32 %v1148, %v1772
        %v1897 = vadd.f32 %v1151, %v1775
        %v1898 = vadd.f32 %v1156, %v1780
        %v1899 = vadd.f32 %v1159, %v1783
        %v1900 = vadd.f32 %v1164, %v1788
        %v1901 = vadd.f32 %v1167, %v1791
        %v1902 = vadd.f32 %v1172, %v1796
        %v1903 = vadd.f32 %v1175, %v1799
        %v1904 = vadd.f32 %v1180, %v1804
        %v1905 = vadd.f32 %v1183, %v1807
        %v1906 = vadd.f32 %v1188, %v1812
        %v1907 = vadd.f32 %v1191, %v1815
        %v1908 = vadd.f32 %v1196, %v1820
        %v1909 = vadd.f32 %v1199, %v1823
        %v1910 = vadd.f32 %v1204, %v1828
        %v1911 = vadd.f32 %v1207, %v1831
        %v1912 = vadd.f32 %v1212, %v1836
        %v1913 = vadd.f32 %v1215, %v1839
        %v1914 = vadd.f32 %v1220, %v1844
        %v1915 = vadd.f32 %v1223, %v1847
        %v1916 = vadd.f32 %v1228, %v1852
        %v1917 = vadd.f32 %v1231, %v1855
        %v1918 = vadd.f32 %v1236, %v1860
        %v1919 = vadd.f32 %v1239, %v1863
        %v1920 = vadd.f32 %v1244, %v1868
        %v1921 = vadd.f32 %v1247, %v1871
        %v1922 = vadd.f32 %v1252, %v1876
        %v1923 = vadd.f32 %v1255, %v1879
        %v1924 = vadd.f32 %v1260, %v1884
        %v1925 = vadd.f32 %v1263, %v1887
        %v1926 = vld [vmem:[%s218 + $0x10] sm:$0xc]
        %v1927 = vld [vmem:[%s218 + $0x14] sm:$0xf]
        %v1928 = vld [vmem:[%s218 + $0x18] sm:$0xf]
        %v1929 = vld [vmem:[%s218 + $0x1c] sm:$0xf]
        %v1930 = vld [vmem:[%s218 + $0x20] sm:$0xf]
        %v1931 = vld [vmem:[%s218 + $0x24] sm:$0xf]
        %v1932 = vld [vmem:[%s218 + $0x28] sm:$0xf]
        %v1933 = vld [vmem:[%s218 + $0x2c] sm:$0xf]
        %v1934 = vld [vmem:[%s218 + $0x30] sm:$0xf]
        %v1935 = vld [vmem:[%s218 + $0x34] sm:$0xf]
        %v1936 = vld [vmem:[%s218 + $0x38] sm:$0xf]
        %v1937 = vld [vmem:[%s218 + $0x3c] sm:$0xf]
        %v1938 = vld [vmem:[%s218 + $0x40] sm:$0xf]
        %v1939 = vld [vmem:[%s218 + $0x44] sm:$0xf]
        %v1940 = vld [vmem:[%s218 + $0x48] sm:$0xf]
        %v1941 = vld [vmem:[%s218 + $0x4c] sm:$0xf]
        %v1942 = vld [vmem:[%s218 + $0x50] sm:$0xf]
        %v1943 = vld [vmem:[%s218 + $0x54] sm:$0xf]
        %v1944 = vld [vmem:[%s218 + $0x58] sm:$0xf]
        %v1945 = vld [vmem:[%s218 + $0x5c] sm:$0xf]
        %v1946 = vld [vmem:[%s218 + $0x60] sm:$0xf]
        %v1947 = vld [vmem:[%s218 + $0x64] sm:$0xf]
        %v1948 = vld [vmem:[%s218 + $0x68] sm:$0xf]
        %v1949 = vld [vmem:[%s218 + $0x6c] sm:$0xf]
        %v1950 = vld [vmem:[%s218 + $0x70] sm:$0xf]
        %v1951 = vld [vmem:[%s218 + $0x74] sm:$0xf]
        %v1952 = vld [vmem:[%s218 + $0x78] sm:$0xf]
        %v1953 = vld [vmem:[%s218 + $0x7c] sm:$0xf]
        %v1954 = vld [vmem:[%s218 + $0x80] sm:$0xf]
        %v1955 = vld [vmem:[%s218 + $0x84] sm:$0xf]
        %v1956 = vld [vmem:[%s218 + $0x88] sm:$0xf]
        %v1957 = vld [vmem:[%s218 + $0x8c] sm:$0xf]
        %v1958 = vld [vmem:[%s218 + $0x90] sm:$0xf]
        %v1959 = vld [vmem:[%s218 + $0x94] sm:$0xf]
        %v1960 = vld [vmem:[%s218 + $0x98] sm:$0xf]
        %v1961 = vld [vmem:[%s218 + $0x9c] sm:$0xf]
        %v1962 = vld [vmem:[%s218 + $0xa0] sm:$0x3]
        %v1963 = vld [vmem:[%s218 + $0xa0] sm:$0x7]
        %v2001 = vunpack.c.l.b16 %v1926
        %v2002 = vunpack.c.l.b16 %v1927
        %v2003 = vunpack.c.l.b16 %v1928
        %v2004 = vunpack.c.l.b16 %v1929
        %v2005 = vunpack.c.l.b16 %v1930
        %v2006 = vunpack.c.l.b16 %v1931
        %v2007 = vunpack.c.l.b16 %v1932
        %v2008 = vunpack.c.l.b16 %v1933
        %v2009 = vunpack.c.l.b16 %v1934
        %v2010 = vunpack.c.l.b16 %v1935
        %v2011 = vunpack.c.l.b16 %v1936
        %v2012 = vunpack.c.l.b16 %v1937
        %v2013 = vunpack.c.l.b16 %v1938
        %v2014 = vunpack.c.l.b16 %v1939
        %v2015 = vunpack.c.l.b16 %v1940
        %v2016 = vunpack.c.l.b16 %v1941
        %v2017 = vunpack.c.l.b16 %v1942
        %v2018 = vunpack.c.l.b16 %v1943
        %v2019 = vunpack.c.l.b16 %v1944
        %v2020 = vunpack.c.l.b16 %v1945
        %v2021 = vunpack.c.l.b16 %v1946
        %v2022 = vunpack.c.l.b16 %v1947
        %v2023 = vunpack.c.l.b16 %v1948
        %v2024 = vunpack.c.l.b16 %v1949
        %v2025 = vunpack.c.l.b16 %v1950
        %v2026 = vunpack.c.l.b16 %v1951
        %v2027 = vunpack.c.l.b16 %v1952
        %v2028 = vunpack.c.l.b16 %v1953
        %v2029 = vunpack.c.l.b16 %v1954
        %v2030 = vunpack.c.l.b16 %v1955
        %v2031 = vunpack.c.l.b16 %v1956
        %v2032 = vunpack.c.l.b16 %v1957
        %v2033 = vunpack.c.l.b16 %v1958
        %v2034 = vunpack.c.l.b16 %v1959
        %v2035 = vunpack.c.l.b16 %v1960
        %v2036 = vunpack.c.l.b16 %v1961
        %v2037 = vunpack.c.l.b16 %v1962
        %v2038 = vpack.c.b16 %v2002, %v2001
        %v2039 = vpack.c.b16 %v2004, %v2003
        %v2040 = vpack.c.b16 %v2006, %v2005
        %v2041 = vpack.c.b16 %v2008, %v2007
        %v2042 = vpack.c.b16 %v2010, %v2009
        %v2043 = vpack.c.b16 %v2012, %v2011
        %v2044 = vpack.c.b16 %v2014, %v2013
        %v2045 = vpack.c.b16 %v2016, %v2015
        %v2046 = vpack.c.b16 %v2018, %v2017
        %v2047 = vpack.c.b16 %v2020, %v2019
        %v2048 = vpack.c.b16 %v2022, %v2021
        %v2049 = vpack.c.b16 %v2024, %v2023
        %v2050 = vpack.c.b16 %v2026, %v2025
        %v2051 = vpack.c.b16 %v2028, %v2027
        %v2052 = vpack.c.b16 %v2030, %v2029
        %v2053 = vpack.c.b16 %v2032, %v2031
        %v2054 = vpack.c.b16 %v2034, %v2033
        %v2055 = vpack.c.b16 %v2036, %v2035
        %v2056 = vpack.c.b16 %v2037, %v2037
        %v2058 = vunpack.c.l.b16 %v1963
        %v2059 = vpack.c.b16 %v2058, %v2058
        %v2061 = vshrl.u32 %v2038, 16
        %v2063 = vshll.u32 %v2038, 16
        %v2065 = vrot.slane %v2063, 1
        %v2066 = vor.u32 %v2061, %v2065
        %v2068 = vshll.u32 %v2039, 16
        %v2070 = vrot.slane %v2068, 1
        %v2071 = vsel %vm405, %v2066, %v2070
        %v2072 = vshrl.u32 %v2039, 16
        %v2074 = vor.u32 %v2072, %v2070
        %v2076 = vshll.u32 %v2040, 16
        %v2078 = vrot.slane %v2076, 1
        %v2079 = vsel %vm405, %v2074, %v2078
        %v2080 = vshrl.u32 %v2040, 16
        %v2082 = vor.u32 %v2080, %v2078
        %v2084 = vshll.u32 %v2041, 16
        %v2086 = vrot.slane %v2084, 1
        %v2087 = vsel %vm405, %v2082, %v2086
        %v2088 = vshrl.u32 %v2041, 16
        %v2090 = vor.u32 %v2088, %v2086
        %v2092 = vshll.u32 %v2042, 16
        %v2094 = vrot.slane %v2092, 1
        %v2095 = vsel %vm405, %v2090, %v2094
        %v2096 = vshrl.u32 %v2042, 16
        %v2098 = vor.u32 %v2096, %v2094
        %v2100 = vshll.u32 %v2043, 16
        %v2102 = vrot.slane %v2100, 1
        %v2103 = vsel %vm405, %v2098, %v2102
        %v2104 = vshrl.u32 %v2043, 16
        %v2106 = vor.u32 %v2104, %v2102
        %v2108 = vshll.u32 %v2044, 16
        %v2110 = vrot.slane %v2108, 1
        %v2111 = vsel %vm405, %v2106, %v2110
        %v2112 = vshrl.u32 %v2044, 16
        %v2114 = vor.u32 %v2112, %v2110
        %v2116 = vshll.u32 %v2045, 16
        %v2118 = vrot.slane %v2116, 1
        %v2119 = vsel %vm405, %v2114, %v2118
        %v2120 = vshrl.u32 %v2045, 16
        %v2122 = vor.u32 %v2120, %v2118
        %v2124 = vshll.u32 %v2046, 16
        %v2126 = vrot.slane %v2124, 1
        %v2127 = vsel %vm405, %v2122, %v2126
        %v2128 = vshrl.u32 %v2046, 16
        %v2130 = vor.u32 %v2128, %v2126
        %v2132 = vshll.u32 %v2047, 16
        %v2134 = vrot.slane %v2132, 1
        %v2135 = vsel %vm405, %v2130, %v2134
        %v2136 = vshrl.u32 %v2047, 16
        %v2138 = vor.u32 %v2136, %v2134
        %v2140 = vshll.u32 %v2048, 16
        %v2142 = vrot.slane %v2140, 1
        %v2143 = vsel %vm405, %v2138, %v2142
        %v2144 = vshrl.u32 %v2048, 16
        %v2146 = vor.u32 %v2144, %v2142
        %v2148 = vshll.u32 %v2049, 16
        %v2150 = vrot.slane %v2148, 1
        %v2151 = vsel %vm405, %v2146, %v2150
        %v2152 = vshrl.u32 %v2049, 16
        %v2154 = vor.u32 %v2152, %v2150
        %v2156 = vshll.u32 %v2050, 16
        %v2158 = vrot.slane %v2156, 1
        %v2159 = vsel %vm405, %v2154, %v2158
        %v2160 = vshrl.u32 %v2050, 16
        %v2162 = vor.u32 %v2160, %v2158
        %v2164 = vshll.u32 %v2051, 16
        %v2166 = vrot.slane %v2164, 1
        %v2167 = vsel %vm405, %v2162, %v2166
        %v2168 = vshrl.u32 %v2051, 16
        %v2170 = vor.u32 %v2168, %v2166
        %v2172 = vshll.u32 %v2052, 16
        %v2174 = vrot.slane %v2172, 1
        %v2175 = vsel %vm405, %v2170, %v2174
        %v2176 = vshrl.u32 %v2052, 16
        %v2178 = vor.u32 %v2176, %v2174
        %v2180 = vshll.u32 %v2053, 16
        %v2182 = vrot.slane %v2180, 1
        %v2183 = vsel %vm405, %v2178, %v2182
        %v2184 = vshrl.u32 %v2053, 16
        %v2186 = vor.u32 %v2184, %v2182
        %v2188 = vshll.u32 %v2054, 16
        %v2190 = vrot.slane %v2188, 1
        %v2191 = vsel %vm405, %v2186, %v2190
        %v2192 = vshrl.u32 %v2054, 16
        %v2194 = vor.u32 %v2192, %v2190
        %v2196 = vshll.u32 %v2055, 16
        %v2198 = vrot.slane %v2196, 1
        %v2199 = vsel %vm405, %v2194, %v2198
        %v2200 = vshrl.u32 %v2055, 16
        %v2202 = vor.u32 %v2200, %v2198
        %v2204 = vshll.u32 %v2059, 16
        %v2206 = vrot.slane %v2204, 1
        %v2207 = vsel %vm405, %v2202, %v2206
        %v2208 = vshrl.u32 %v2059, 16
        %v2210 = vor.u32 %v2208, %v2206
        %v2211 = vld [vmem:[#allocation5 + $0x180] sm:$0xf]
        %v2212 = vld [vmem:[#allocation5 + $0x184] sm:$0xf]
        %v2213 = vld [vmem:[#allocation5 + $0x188] sm:$0xf]
        %v2214 = vld [vmem:[#allocation5 + $0x18c] sm:$0xf]
        %v2215 = vld [vmem:[#allocation5 + $0x190] sm:$0xf]
        %v2216 = vld [vmem:[#allocation5 + $0x194] sm:$0xf]
        %v2217 = vld [vmem:[#allocation5 + $0x198] sm:$0xf]
        %v2218 = vld [vmem:[#allocation5 + $0x19c] sm:$0xf]
        %v2219 = vld [vmem:[#allocation5 + $0x1a0] sm:$0xf]
        %v2220 = vld [vmem:[#allocation5 + $0x1a4] sm:$0xf]
        %v2221 = vld [vmem:[#allocation5 + $0x1a8] sm:$0xf]
        %v2222 = vld [vmem:[#allocation5 + $0x1ac] sm:$0xf]
        %v2223 = vld [vmem:[#allocation5 + $0x1b0] sm:$0xf]
        %v2224 = vld [vmem:[#allocation5 + $0x1b4] sm:$0xf]
        %v2225 = vld [vmem:[#allocation5 + $0x1b8] sm:$0xf]
        %v2226 = vld [vmem:[#allocation5 + $0x1bc] sm:$0xf]
        %v2227 = vld [vmem:[#allocation5 + $0x1c0] sm:$0xf]
        %v2228 = vld [vmem:[#allocation5 + $0x1c4] sm:$0xf]
        %v2229 = vld [vmem:[#allocation5 + $0x1c8] sm:$0xf]
        %v2230 = vld [vmem:[#allocation5 + $0x1cc] sm:$0xf]
        %v2231 = vld [vmem:[#allocation5 + $0x1d0] sm:$0xf]
        %v2232 = vld [vmem:[#allocation5 + $0x1d4] sm:$0xf]
        %v2233 = vld [vmem:[#allocation5 + $0x1d8] sm:$0xf]
        %v2234 = vld [vmem:[#allocation5 + $0x1dc] sm:$0xf]
        %v2235 = vld [vmem:[#allocation5 + $0x1e0] sm:$0xf]
        %v2236 = vld [vmem:[#allocation5 + $0x1e4] sm:$0xf]
        %v2237 = vld [vmem:[#allocation5 + $0x1e8] sm:$0xf]
        %v2238 = vld [vmem:[#allocation5 + $0x1ec] sm:$0xf]
        %v2239 = vld [vmem:[#allocation5 + $0x1f0] sm:$0xf]
        %v2240 = vld [vmem:[#allocation5 + $0x1f4] sm:$0xf]
        %v2241 = vld [vmem:[#allocation5 + $0x1f8] sm:$0xf]
        %v2242 = vld [vmem:[#allocation5 + $0x1fc] sm:$0xf]
        %vm2243 = vcmask 1045504
        %v2244 = vrot.slane %v2038, 2
        %v2245 = vrot.slane %v2039, 2
        %v2246 = vsel %vm2243, %v2244, %v2245
        %v2247 = vrot.slane %v2071, 2
        %v2248 = vrot.slane %v2079, 2
        %v2249 = vsel %vm2243, %v2247, %v2248
        %v2250 = vrot.slane %v2040, 2
        %v2251 = vsel %vm2243, %v2245, %v2250
        %v2252 = vrot.slane %v2087, 2
        %v2253 = vsel %vm2243, %v2248, %v2252
        %v2254 = vrot.slane %v2041, 2
        %v2255 = vsel %vm2243, %v2250, %v2254
        %v2256 = vrot.slane %v2095, 2
        %v2257 = vsel %vm2243, %v2252, %v2256
        %v2258 = vrot.slane %v2042, 2
        %v2259 = vsel %vm2243, %v2254, %v2258
        %v2260 = vrot.slane %v2103, 2
        %v2261 = vsel %vm2243, %v2256, %v2260
        %v2262 = vrot.slane %v2043, 2
        %v2263 = vsel %vm2243, %v2258, %v2262
        %v2264 = vrot.slane %v2111, 2
        %v2265 = vsel %vm2243, %v2260, %v2264
        %v2266 = vrot.slane %v2044, 2
        %v2267 = vsel %vm2243, %v2262, %v2266
        %v2268 = vrot.slane %v2119, 2
        %v2269 = vsel %vm2243, %v2264, %v2268
        %v2270 = vrot.slane %v2045, 2
        %v2271 = vsel %vm2243, %v2266, %v2270
        %v2272 = vrot.slane %v2127, 2
        %v2273 = vsel %vm2243, %v2268, %v2272
        %v2274 = vrot.slane %v2046, 2
        %v2275 = vsel %vm2243, %v2270, %v2274
        %v2276 = vrot.slane %v2135, 2
        %v2277 = vsel %vm2243, %v2272, %v2276
        %v2278 = vrot.slane %v2047, 2
        %v2279 = vsel %vm2243, %v2274, %v2278
        %v2280 = vrot.slane %v2143, 2
        %v2281 = vsel %vm2243, %v2276, %v2280
        %v2282 = vrot.slane %v2048, 2
        %v2283 = vsel %vm2243, %v2278, %v2282
        %v2284 = vrot.slane %v2151, 2
        %v2285 = vsel %vm2243, %v2280, %v2284
        %v2286 = vrot.slane %v2049, 2
        %v2287 = vsel %vm2243, %v2282, %v2286
        %v2288 = vrot.slane %v2159, 2
        %v2289 = vsel %vm2243, %v2284, %v2288
        %v2290 = vrot.slane %v2050, 2
        %v2291 = vsel %vm2243, %v2286, %v2290
        %v2292 = vrot.slane %v2167, 2
        %v2293 = vsel %vm2243, %v2288, %v2292
        %v2294 = vrot.slane %v2051, 2
        %v2295 = vsel %vm2243, %v2290, %v2294
        %v2296 = vrot.slane %v2175, 2
        %v2297 = vsel %vm2243, %v2292, %v2296
        %v2298 = vrot.slane %v2052, 2
        %v2299 = vsel %vm2243, %v2294, %v2298
        %v2300 = vrot.slane %v2183, 2
        %v2301 = vsel %vm2243, %v2296, %v2300
        %v2302 = vrot.slane %v2053, 2
        %v2303 = vsel %vm2243, %v2298, %v2302
        %v2304 = vrot.slane %v2191, 2
        %v2305 = vsel %vm2243, %v2300, %v2304
        %v2306 = vrot.slane %v2054, 2
        %v2307 = vsel %vm2243, %v2302, %v2306
        %v2308 = vrot.slane %v2199, 2
        %v2309 = vsel %vm2243, %v2304, %v2308
        %v2310 = vrot.slane %v2055, 2
        %v2311 = vsel %vm2243, %v2306, %v2310
        %v2312 = vrot.slane %v2207, 2
        %v2313 = vsel %vm2243, %v2308, %v2312
        %v2314 = vrot.slane %v2056, 2
        %v2315 = vsel %vm2243, %v2310, %v2314
        %v2316 = vrot.slane %v2210, 2
        %v2317 = vsel %vm2243, %v2312, %v2316
        %v2386 = vunpack.c.l.b16 %v2211
        %v2387 = vunpack.c.l.b16 %v2212
        %v2388 = vunpack.c.l.b16 %v2213
        %v2389 = vunpack.c.l.b16 %v2214
        %v2390 = vunpack.c.l.b16 %v2215
        %v2391 = vunpack.c.l.b16 %v2216
        %v2392 = vunpack.c.l.b16 %v2217
        %v2393 = vunpack.c.l.b16 %v2218
        %v2394 = vunpack.c.l.b16 %v2219
        %v2395 = vunpack.c.l.b16 %v2220
        %v2396 = vunpack.c.l.b16 %v2221
        %v2397 = vunpack.c.l.b16 %v2222
        %v2398 = vunpack.c.l.b16 %v2223
        %v2399 = vunpack.c.l.b16 %v2224
        %v2400 = vunpack.c.l.b16 %v2225
        %v2401 = vunpack.c.l.b16 %v2226
        %v2402 = vunpack.c.l.b16 %v2227
        %v2403 = vunpack.c.l.b16 %v2228
        %v2404 = vunpack.c.l.b16 %v2229
        %v2405 = vunpack.c.l.b16 %v2230
        %v2406 = vunpack.c.l.b16 %v2231
        %v2407 = vunpack.c.l.b16 %v2232
        %v2408 = vunpack.c.l.b16 %v2233
        %v2409 = vunpack.c.l.b16 %v2234
        %v2410 = vunpack.c.l.b16 %v2235
        %v2411 = vunpack.c.l.b16 %v2236
        %v2412 = vunpack.c.l.b16 %v2237
        %v2413 = vunpack.c.l.b16 %v2238
        %v2414 = vunpack.c.l.b16 %v2239
        %v2415 = vunpack.c.l.b16 %v2240
        %v2416 = vunpack.c.l.b16 %v2241
        %v2417 = vunpack.c.l.b16 %v2242
        %v2418 = vpack.c.b16 %v2387, %v2386
        %v2419 = vpack.c.b16 %v2389, %v2388
        %v2420 = vpack.c.b16 %v2391, %v2390
        %v2421 = vpack.c.b16 %v2393, %v2392
        %v2422 = vpack.c.b16 %v2395, %v2394
        %v2423 = vpack.c.b16 %v2397, %v2396
        %v2424 = vpack.c.b16 %v2399, %v2398
        %v2425 = vpack.c.b16 %v2401, %v2400
        %v2426 = vpack.c.b16 %v2403, %v2402
        %v2427 = vpack.c.b16 %v2405, %v2404
        %v2428 = vpack.c.b16 %v2407, %v2406
        %v2429 = vpack.c.b16 %v2409, %v2408
        %v2430 = vpack.c.b16 %v2411, %v2410
        %v2431 = vpack.c.b16 %v2413, %v2412
        %v2432 = vpack.c.b16 %v2415, %v2414
        %v2433 = vpack.c.b16 %v2417, %v2416
        %2450 = vmatprep.subr.bf16.mxu0 0
        %2451 = vmatpush1.bf16.msra.mxu0 %v2418
        %2452 = vmatprep.subr.bf16.mxu0 0
        %2453 = vmatpush1.bf16.msra.mxu0 %v2419
        %2454 = vmatprep.subr.bf16.mxu0 0
        %2455 = vmatpush1.bf16.msra.mxu0 %v2420
        %2456 = vmatprep.subr.bf16.mxu0 0
        %2457 = vmatpush1.bf16.msra.mxu0 %v2421
        %2458 = vmatprep.subr.bf16.mxu0 0
        %2459 = vmatpush1.bf16.msra.mxu0 %v2422
        %2460 = vmatprep.subr.bf16.mxu0 0
        %2461 = vmatpush1.bf16.msra.mxu0 %v2423
        %2462 = vmatprep.subr.bf16.mxu0 0
        %2463 = vmatpush1.bf16.msra.mxu0 %v2424
        %2464 = vmatprep.subr.bf16.mxu0 0
        %2465 = vmatpush1.bf16.msra.mxu0 %v2425
        %2466 = vmatprep.subr.bf16.mxu0 0
        %2467 = vmatpush1.bf16.msra.mxu0 %v2426
        %2468 = vmatprep.subr.bf16.mxu0 0
        %2469 = vmatpush1.bf16.msra.mxu0 %v2427
        %2470 = vmatprep.subr.bf16.mxu0 0
        %2471 = vmatpush1.bf16.msra.mxu0 %v2428
        %2472 = vmatprep.subr.bf16.mxu0 0
        %2473 = vmatpush1.bf16.msra.mxu0 %v2429
        %2474 = vmatprep.subr.bf16.mxu0 0
        %2475 = vmatpush1.bf16.msra.mxu0 %v2430
        %2476 = vmatprep.subr.bf16.mxu0 0
        %2477 = vmatpush1.bf16.msra.mxu0 %v2431
        %2478 = vmatprep.subr.bf16.mxu0 0
        %2479 = vmatpush1.bf16.msra.mxu0 %v2432
        %2480 = vmatprep.subr.bf16.mxu0 0
        %2481 = vmatpush1.bf16.msra.mxu0 %v2433
        %2482 = vmatprep.mubr.bf16.mxu0 %v2249
        %2483 = vmatmul.mubr.bf16.gmra.mrb[0].mxu0 %v2246
        %v2484 = vpop.f32.mrb[0].mxu0
        %v2485 = vadd.f32 0.0, %v2484
        %v2486 = vpop.f32.mrb[0].mxu0
        %v2487 = vpop.f32.mrb[0].mxu0
        %v2488 = vadd.f32 0.0, %v2487
        %v2489 = vpop.f32.mrb[0].mxu0
        %2490 = vmatprep.mubr.bf16.mxu0 %v2253
        %2491 = vmatmul.mubr.bf16.gmra.mrb[0].mxu0 %v2251
        %v2492 = vpop.f32.mrb[0].mxu0
        %v2493 = vadd.f32 0.0, %v2492
        %v2494 = vpop.f32.mrb[0].mxu0
        %v2495 = vpop.f32.mrb[0].mxu0
        %v2496 = vadd.f32 0.0, %v2495
        %v2497 = vpop.f32.mrb[0].mxu0
        %2498 = vmatprep.mubr.bf16.mxu0 %v2257
        %2499 = vmatmul.mubr.bf16.gmra.mrb[0].mxu0 %v2255
        %v2500 = vpop.f32.mrb[0].mxu0
        %v2501 = vadd.f32 0.0, %v2500
        %v2502 = vpop.f32.mrb[0].mxu0
        %v2503 = vpop.f32.mrb[0].mxu0
        %v2504 = vadd.f32 0.0, %v2503
        %v2505 = vpop.f32.mrb[0].mxu0
        %2506 = vmatprep.mubr.bf16.mxu0 %v2261
        %2507 = vmatmul.mubr.bf16.gmra.mrb[0].mxu0 %v2259
        %v2508 = vpop.f32.mrb[0].mxu0
        %v2509 = vadd.f32 0.0, %v2508
        %v2510 = vpop.f32.mrb[0].mxu0
        %v2511 = vpop.f32.mrb[0].mxu0
        %v2512 = vadd.f32 0.0, %v2511
        %v2513 = vpop.f32.mrb[0].mxu0
        %2514 = vmatprep.mubr.bf16.mxu0 %v2265
        %2515 = vmatmul.mubr.bf16.gmra.mrb[0].mxu0 %v2263
        %v2516 = vpop.f32.mrb[0].mxu0
        %v2517 = vadd.f32 0.0, %v2516
        %v2518 = vpop.f32.mrb[0].mxu0
        %v2519 = vpop.f32.mrb[0].mxu0
        %v2520 = vadd.f32 0.0, %v2519
        %v2521 = vpop.f32.mrb[0].mxu0
        %2522 = vmatprep.mubr.bf16.mxu0 %v2269
        %2523 = vmatmul.mubr.bf16.gmra.mrb[0].mxu0 %v2267
        %v2524 = vpop.f32.mrb[0].mxu0
        %v2525 = vadd.f32 0.0, %v2524
        %v2526 = vpop.f32.mrb[0].mxu0
        %v2527 = vpop.f32.mrb[0].mxu0
        %v2528 = vadd.f32 0.0, %v2527
        %v2529 = vpop.f32.mrb[0].mxu0
        %2530 = vmatprep.mubr.bf16.mxu0 %v2273
        %2531 = vmatmul.mubr.bf16.gmra.mrb[0].mxu0 %v2271
        %v2532 = vpop.f32.mrb[0].mxu0
        %v2533 = vadd.f32 0.0, %v2532
        %v2534 = vpop.f32.mrb[0].mxu0
        %v2535 = vpop.f32.mrb[0].mxu0
        %v2536 = vadd.f32 0.0, %v2535
        %v2537 = vpop.f32.mrb[0].mxu0
        %2538 = vmatprep.mubr.bf16.mxu0 %v2277
        %2539 = vmatmul.mubr.bf16.gmra.mrb[0].mxu0 %v2275
        %v2540 = vpop.f32.mrb[0].mxu0
        %v2541 = vadd.f32 0.0, %v2540
        %v2542 = vpop.f32.mrb[0].mxu0
        %v2543 = vpop.f32.mrb[0].mxu0
        %v2544 = vadd.f32 0.0, %v2543
        %v2545 = vpop.f32.mrb[0].mxu0
        %2546 = vmatprep.mubr.bf16.mxu0 %v2281
        %2547 = vmatmul.mubr.bf16.gmra.mrb[0].mxu0 %v2279
        %v2548 = vpop.f32.mrb[0].mxu0
        %v2549 = vadd.f32 0.0, %v2548
        %v2550 = vpop.f32.mrb[0].mxu0
        %v2551 = vpop.f32.mrb[0].mxu0
        %v2552 = vadd.f32 0.0, %v2551
        %v2553 = vpop.f32.mrb[0].mxu0
        %2554 = vmatprep.mubr.bf16.mxu0 %v2285
        %2555 = vmatmul.mubr.bf16.gmra.mrb[0].mxu0 %v2283
        %v2556 = vpop.f32.mrb[0].mxu0
        %v2557 = vadd.f32 0.0, %v2556
        %v2558 = vpop.f32.mrb[0].mxu0
        %v2559 = vpop.f32.mrb[0].mxu0
        %v2560 = vadd.f32 0.0, %v2559
        %v2561 = vpop.f32.mrb[0].mxu0
        %2562 = vmatprep.mubr.bf16.mxu0 %v2289
        %2563 = vmatmul.mubr.bf16.gmra.mrb[0].mxu0 %v2287
        %v2564 = vpop.f32.mrb[0].mxu0
        %v2565 = vadd.f32 0.0, %v2564
        %v2566 = vpop.f32.mrb[0].mxu0
        %v2567 = vpop.f32.mrb[0].mxu0
        %v2568 = vadd.f32 0.0, %v2567
        %v2569 = vpop.f32.mrb[0].mxu0
        %2570 = vmatprep.mubr.bf16.mxu0 %v2293
        %2571 = vmatmul.mubr.bf16.gmra.mrb[0].mxu0 %v2291
        %v2572 = vpop.f32.mrb[0].mxu0
        %v2573 = vadd.f32 0.0, %v2572
        %v2574 = vpop.f32.mrb[0].mxu0
        %v2575 = vpop.f32.mrb[0].mxu0
        %v2576 = vadd.f32 0.0, %v2575
        %v2577 = vpop.f32.mrb[0].mxu0
        %2578 = vmatprep.mubr.bf16.mxu0 %v2297
        %2579 = vmatmul.mubr.bf16.gmra.mrb[0].mxu0 %v2295
        %v2580 = vpop.f32.mrb[0].mxu0
        %v2581 = vadd.f32 0.0, %v2580
        %v2582 = vpop.f32.mrb[0].mxu0
        %v2583 = vpop.f32.mrb[0].mxu0
        %v2584 = vadd.f32 0.0, %v2583
        %v2585 = vpop.f32.mrb[0].mxu0
        %2586 = vmatprep.mubr.bf16.mxu0 %v2301
        %2587 = vmatmul.mubr.bf16.gmra.mrb[0].mxu0 %v2299
        %v2588 = vpop.f32.mrb[0].mxu0
        %v2589 = vadd.f32 0.0, %v2588
        %v2590 = vpop.f32.mrb[0].mxu0
        %v2591 = vpop.f32.mrb[0].mxu0
        %v2592 = vadd.f32 0.0, %v2591
        %v2593 = vpop.f32.mrb[0].mxu0
        %2594 = vmatprep.mubr.bf16.mxu0 %v2305
        %2595 = vmatmul.mubr.bf16.gmra.mrb[0].mxu0 %v2303
        %v2596 = vpop.f32.mrb[0].mxu0
        %v2597 = vadd.f32 0.0, %v2596
        %v2598 = vpop.f32.mrb[0].mxu0
        %v2599 = vpop.f32.mrb[0].mxu0
        %v2600 = vadd.f32 0.0, %v2599
        %v2601 = vpop.f32.mrb[0].mxu0
        %2602 = vmatprep.mubr.bf16.mxu0 %v2309
        %2603 = vmatmul.mubr.bf16.gmra.mrb[0].mxu0 %v2307
        %v2604 = vpop.f32.mrb[0].mxu0
        %v2605 = vadd.f32 0.0, %v2604
        %v2606 = vpop.f32.mrb[0].mxu0
        %v2607 = vpop.f32.mrb[0].mxu0
        %v2608 = vadd.f32 0.0, %v2607
        %v2609 = vpop.f32.mrb[0].mxu0
        %2610 = vmatprep.mubr.bf16.mxu0 %v2313
        %2611 = vmatmul.mubr.bf16.gmra.mrb[0].mxu0 %v2311
        %v2612 = vpop.f32.mrb[0].mxu0
        %v2613 = vadd.f32 0.0, %v2612
        %v2614 = vpop.f32.mrb[0].mxu0
        %v2615 = vpop.f32.mrb[0].mxu0
        %v2616 = vadd.f32 0.0, %v2615
        %v2617 = vpop.f32.mrb[0].mxu0
        %2618 = vmatprep.mubr.bf16.mxu0 %v2317
        %2619 = vmatmul.mubr.bf16.gmra.mrb[0].mxu0 %v2315
        %v2620 = vpop.f32.mrb[0].mxu0
        %v2621 = vadd.f32 0.0, %v2620
        %v2622 = vpop.f32.mrb[0].mxu0
        %v2623 = vpop.f32.mrb[0].mxu0
        %v2624 = vadd.f32 0.0, %v2623
        %v2625 = vpop.f32.mrb[0].mxu0
        %2626 = vdwg.mxu0
        %v2627 = vadd.f32 %v1890, %v2485
        %v2628 = vadd.f32 %v1891, %v2488
        %v2629 = vadd.f32 %v1892, %v2493
        %v2630 = vadd.f32 %v1893, %v2496
        %v2631 = vadd.f32 %v1894, %v2501
        %v2632 = vadd.f32 %v1895, %v2504
        %v2633 = vadd.f32 %v1896, %v2509
        %v2634 = vadd.f32 %v1897, %v2512
        %v2635 = vadd.f32 %v1898, %v2517
        %v2636 = vadd.f32 %v1899, %v2520
        %v2637 = vadd.f32 %v1900, %v2525
        %v2638 = vadd.f32 %v1901, %v2528
        %v2639 = vadd.f32 %v1902, %v2533
        %v2640 = vadd.f32 %v1903, %v2536
        %v2641 = vadd.f32 %v1904, %v2541
        %v2642 = vadd.f32 %v1905, %v2544
        %v2643 = vadd.f32 %v1906, %v2549
        %v2644 = vadd.f32 %v1907, %v2552
        %v2645 = vadd.f32 %v1908, %v2557
        %v2646 = vadd.f32 %v1909, %v2560
        %v2647 = vadd.f32 %v1910, %v2565
        %v2648 = vadd.f32 %v1911, %v2568
        %v2649 = vadd.f32 %v1912, %v2573
        %v2650 = vadd.f32 %v1913, %v2576
        %v2651 = vadd.f32 %v1914, %v2581
        %v2652 = vadd.f32 %v1915, %v2584
        %v2653 = vadd.f32 %v1916, %v2589
        %v2654 = vadd.f32 %v1917, %v2592
        %v2655 = vadd.f32 %v1918, %v2597
        %v2656 = vadd.f32 %v1919, %v2600
        %v2657 = vadd.f32 %v1920, %v2605
        %v2658 = vadd.f32 %v1921, %v2608
        %v2659 = vadd.f32 %v1922, %v2613
        %v2660 = vadd.f32 %v1923, %v2616
        %v2661 = vadd.f32 %v1924, %v2621
        %v2662 = vadd.f32 %v1925, %v2624
        %v2663 = vld [vmem:[%s218 + $0x10] sm:$0x8]
        %v2664 = vld [vmem:[#allocation5 + $0x200] sm:$0xf]
        %v2665 = vld [vmem:[#allocation5 + $0x204] sm:$0xf]
        %v2666 = vld [vmem:[#allocation5 + $0x208] sm:$0xf]
        %v2667 = vld [vmem:[#allocation5 + $0x20c] sm:$0xf]
        %v2668 = vld [vmem:[#allocation5 + $0x210] sm:$0xf]
        %v2669 = vld [vmem:[#allocation5 + $0x214] sm:$0xf]
        %v2670 = vld [vmem:[#allocation5 + $0x218] sm:$0xf]
        %v2671 = vld [vmem:[#allocation5 + $0x21c] sm:$0xf]
        %v2672 = vld [vmem:[#allocation5 + $0x220] sm:$0xf]
        %v2673 = vld [vmem:[#allocation5 + $0x224] sm:$0xf]
        %v2674 = vld [vmem:[#allocation5 + $0x228] sm:$0xf]
        %v2675 = vld [vmem:[#allocation5 + $0x22c] sm:$0xf]
        %v2676 = vld [vmem:[#allocation5 + $0x230] sm:$0xf]
        %v2677 = vld [vmem:[#allocation5 + $0x234] sm:$0xf]
        %v2678 = vld [vmem:[#allocation5 + $0x238] sm:$0xf]
        %v2679 = vld [vmem:[#allocation5 + $0x23c] sm:$0xf]
        %v2681 = vunpack.c.l.b16 %v2663
        %v2682 = vpack.c.b16 %v2002, %v2681
        %vm2683 = vcmask 1044480
        %v2684 = vrot.slane %v2682, 3
        %v2685 = vrot.slane %v2039, 3
        %v2686 = vsel %vm2683, %v2684, %v2685
        %v2687 = vrot.slane %v2040, 3
        %v2688 = vsel %vm2683, %v2685, %v2687
        %v2689 = vrot.slane %v2041, 3
        %v2690 = vsel %vm2683, %v2687, %v2689
        %v2691 = vrot.slane %v2042, 3
        %v2692 = vsel %vm2683, %v2689, %v2691
        %v2693 = vrot.slane %v2043, 3
        %v2694 = vsel %vm2683, %v2691, %v2693
        %v2695 = vrot.slane %v2044, 3
        %v2696 = vsel %vm2683, %v2693, %v2695
        %v2697 = vrot.slane %v2045, 3
        %v2698 = vsel %vm2683, %v2695, %v2697
        %v2699 = vrot.slane %v2046, 3
        %v2700 = vsel %vm2683, %v2697, %v2699
        %v2701 = vrot.slane %v2047, 3
        %v2702 = vsel %vm2683, %v2699, %v2701
        %v2703 = vrot.slane %v2048, 3
        %v2704 = vsel %vm2683, %v2701, %v2703
        %v2705 = vrot.slane %v2049, 3
        %v2706 = vsel %vm2683, %v2703, %v2705
        %v2707 = vrot.slane %v2050, 3
        %v2708 = vsel %vm2683, %v2705, %v2707
        %v2709 = vrot.slane %v2051, 3
        %v2710 = vsel %vm2683, %v2707, %v2709
        %v2711 = vrot.slane %v2052, 3
        %v2712 = vsel %vm2683, %v2709, %v2711
        %v2713 = vrot.slane %v2053, 3
        %v2714 = vsel %vm2683, %v2711, %v2713
        %v2715 = vrot.slane %v2054, 3
        %v2716 = vsel %vm2683, %v2713, %v2715
        %v2717 = vrot.slane %v2055, 3
        %v2718 = vsel %vm2683, %v2715, %v2717
        %v2719 = vrot.slane %v2059, 3
        %v2720 = vsel %vm2683, %v2717, %v2719
        %v2755 = vunpack.c.l.b16 %v2664
        %v2756 = vunpack.c.l.b16 %v2665
        %v2757 = vunpack.c.l.b16 %v2666
        %v2758 = vunpack.c.l.b16 %v2667
        %v2759 = vunpack.c.l.b16 %v2668
        %v2760 = vunpack.c.l.b16 %v2669
        %v2761 = vunpack.c.l.b16 %v2670
        %v2762 = vunpack.c.l.b16 %v2671
        %v2763 = vunpack.c.l.b16 %v2672
        %v2764 = vunpack.c.l.b16 %v2673
        %v2765 = vunpack.c.l.b16 %v2674
        %v2766 = vunpack.c.l.b16 %v2675
        %v2767 = vunpack.c.l.b16 %v2676
        %v2768 = vunpack.c.l.b16 %v2677
        %v2769 = vunpack.c.l.b16 %v2678
        %v2770 = vunpack.c.l.b16 %v2679
        %v2771 = vpack.c.b16 %v2756, %v2755
        %v2772 = vpack.c.b16 %v2758, %v2757
        %v2773 = vpack.c.b16 %v2760, %v2759
        %v2774 = vpack.c.b16 %v2762, %v2761
        %v2775 = vpack.c.b16 %v2764, %v2763
        %v2776 = vpack.c.b16 %v2766, %v2765
        %v2777 = vpack.c.b16 %v2768, %v2767
        %v2778 = vpack.c.b16 %v2770, %v2769
        %2787 = vmatprep.subr.bf16.mxu0 0
        %2788 = vmatpush1.bf16.msra.mxu0 %v2771
        %2789 = vmatprep.subr.bf16.mxu0 0
        %2790 = vmatpush1.bf16.msra.mxu0 %v2772
        %2791 = vmatprep.subr.bf16.mxu0 0
        %2792 = vmatpush1.bf16.msra.mxu0 %v2773
        %2793 = vmatprep.subr.bf16.mxu0 0
        %2794 = vmatpush1.bf16.msra.mxu0 %v2774
        %2795 = vmatprep.subr.bf16.mxu0 0
        %2796 = vmatpush1.bf16.msra.mxu0 %v2775
        %2797 = vmatprep.subr.bf16.mxu0 0
        %2798 = vmatpush1.bf16.msra.mxu0 %v2776
        %2799 = vmatprep.subr.bf16.mxu0 0
        %2800 = vmatpush1.bf16.msra.mxu0 %v2777
        %2801 = vmatprep.subr.bf16.mxu0 0
        %2802 = vmatpush1.bf16.msra.mxu0 %v2778
        %2803 = vmatprep.subr.bf16.mxu0 0
        %2804 = vmatpush1.bf16.msra.mxu0 0
        %2805 = vmatprep.subr.bf16.mxu0 0
        %2806 = vmatpush1.bf16.msra.mxu0 0
        %2807 = vmatprep.subr.bf16.mxu0 0
        %2808 = vmatpush1.bf16.msra.mxu0 0
        %2809 = vmatprep.subr.bf16.mxu0 0
        %2810 = vmatpush1.bf16.msra.mxu0 0
        %2811 = vmatprep.subr.bf16.mxu0 0
        %2812 = vmatpush1.bf16.msra.mxu0 0
        %2813 = vmatprep.subr.bf16.mxu0 0
        %2814 = vmatpush1.bf16.msra.mxu0 0
        %2815 = vmatprep.subr.bf16.mxu0 0
        %2816 = vmatpush1.bf16.msra.mxu0 0
        %2817 = vmatprep.subr.bf16.mxu0 0
        %2818 = vmatpush1.bf16.msra.mxu0 0
        %2819 = vmatprep.mubr.bf16.mxu0 0
        %2820 = vmatmul.mubr.bf16.gmra.mrb[0].mxu0 %v2686
        %v2821 = vpop.f32.mrb[0].mxu0
        %v2822 = vadd.f32 0.0, %v2821
        %v2823 = vpop.f32.mrb[0].mxu0
        %v2824 = vpop.f32.mrb[0].mxu0
        %v2825 = vadd.f32 0.0, %v2824
        %v2826 = vpop.f32.mrb[0].mxu0
        %2827 = vmatprep.mubr.bf16.mxu0 0
        %2828 = vmatmul.mubr.bf16.gmra.mrb[0].mxu0 %v2688
        %v2829 = vpop.f32.mrb[0].mxu0
        %v2830 = vadd.f32 0.0, %v2829
        %v2831 = vpop.f32.mrb[0].mxu0
        %v2832 = vpop.f32.mrb[0].mxu0
        %v2833 = vadd.f32 0.0, %v2832
        %v2834 = vpop.f32.mrb[0].mxu0
        %2835 = vmatprep.mubr.bf16.mxu0 0
        %2836 = vmatmul.mubr.bf16.gmra.mrb[0].mxu0 %v2690
        %v2837 = vpop.f32.mrb[0].mxu0
        %v2838 = vadd.f32 0.0, %v2837
        %v2839 = vpop.f32.mrb[0].mxu0
        %v2840 = vpop.f32.mrb[0].mxu0
        %v2841 = vadd.f32 0.0, %v2840
        %v2842 = vpop.f32.mrb[0].mxu0
        %2843 = vmatprep.mubr.bf16.mxu0 0
        %2844 = vmatmul.mubr.bf16.gmra.mrb[0].mxu0 %v2692
        %v2845 = vpop.f32.mrb[0].mxu0
        %v2846 = vadd.f32 0.0, %v2845
        %v2847 = vpop.f32.mrb[0].mxu0
        %v2848 = vpop.f32.mrb[0].mxu0
        %v2849 = vadd.f32 0.0, %v2848
        %v2850 = vpop.f32.mrb[0].mxu0
        %2851 = vmatprep.mubr.bf16.mxu0 0
        %2852 = vmatmul.mubr.bf16.gmra.mrb[0].mxu0 %v2694
        %v2853 = vpop.f32.mrb[0].mxu0
        %v2854 = vadd.f32 0.0, %v2853
        %v2855 = vpop.f32.mrb[0].mxu0
        %v2856 = vpop.f32.mrb[0].mxu0
        %v2857 = vadd.f32 0.0, %v2856
        %v2858 = vpop.f32.mrb[0].mxu0
        %2859 = vmatprep.mubr.bf16.mxu0 0
        %2860 = vmatmul.mubr.bf16.gmra.mrb[0].mxu0 %v2696
        %v2861 = vpop.f32.mrb[0].mxu0
        %v2862 = vadd.f32 0.0, %v2861
        %v2863 = vpop.f32.mrb[0].mxu0
        %v2864 = vpop.f32.mrb[0].mxu0
        %v2865 = vadd.f32 0.0, %v2864
        %v2866 = vpop.f32.mrb[0].mxu0
        %2867 = vmatprep.mubr.bf16.mxu0 0
        %2868 = vmatmul.mubr.bf16.gmra.mrb[0].mxu0 %v2698
        %v2869 = vpop.f32.mrb[0].mxu0
        %v2870 = vadd.f32 0.0, %v2869
        %v2871 = vpop.f32.mrb[0].mxu0
        %v2872 = vpop.f32.mrb[0].mxu0
        %v2873 = vadd.f32 0.0, %v2872
        %v2874 = vpop.f32.mrb[0].mxu0
        %2875 = vmatprep.mubr.bf16.mxu0 0
        %2876 = vmatmul.mubr.bf16.gmra.mrb[0].mxu0 %v2700
        %v2877 = vpop.f32.mrb[0].mxu0
        %v2878 = vadd.f32 0.0, %v2877
        %v2879 = vpop.f32.mrb[0].mxu0
        %v2880 = vpop.f32.mrb[0].mxu0
        %v2881 = vadd.f32 0.0, %v2880
        %v2882 = vpop.f32.mrb[0].mxu0
        %2883 = vmatprep.mubr.bf16.mxu0 0
        %2884 = vmatmul.mubr.bf16.gmra.mrb[0].mxu0 %v2702
        %v2885 = vpop.f32.mrb[0].mxu0
        %v2886 = vadd.f32 0.0, %v2885
        %v2887 = vpop.f32.mrb[0].mxu0
        %v2888 = vpop.f32.mrb[0].mxu0
        %v2889 = vadd.f32 0.0, %v2888
        %v2890 = vpop.f32.mrb[0].mxu0
        %2891 = vmatprep.mubr.bf16.mxu0 0
        %2892 = vmatmul.mubr.bf16.gmra.mrb[0].mxu0 %v2704
        %v2893 = vpop.f32.mrb[0].mxu0
        %v2894 = vadd.f32 0.0, %v2893
        %v2895 = vpop.f32.mrb[0].mxu0
        %v2896 = vpop.f32.mrb[0].mxu0
        %v2897 = vadd.f32 0.0, %v2896
        %v2898 = vpop.f32.mrb[0].mxu0
        %2899 = vmatprep.mubr.bf16.mxu0 0
        %2900 = vmatmul.mubr.bf16.gmra.mrb[0].mxu0 %v2706
        %v2901 = vpop.f32.mrb[0].mxu0
        %v2902 = vadd.f32 0.0, %v2901
        %v2903 = vpop.f32.mrb[0].mxu0
        %v2904 = vpop.f32.mrb[0].mxu0
        %v2905 = vadd.f32 0.0, %v2904
        %v2906 = vpop.f32.mrb[0].mxu0
        %2907 = vmatprep.mubr.bf16.mxu0 0
        %2908 = vmatmul.mubr.bf16.gmra.mrb[0].mxu0 %v2708
        %v2909 = vpop.f32.mrb[0].mxu0
        %v2910 = vadd.f32 0.0, %v2909
        %v2911 = vpop.f32.mrb[0].mxu0
        %v2912 = vpop.f32.mrb[0].mxu0
        %v2913 = vadd.f32 0.0, %v2912
        %v2914 = vpop.f32.mrb[0].mxu0
        %2915 = vmatprep.mubr.bf16.mxu0 0
        %2916 = vmatmul.mubr.bf16.gmra.mrb[0].mxu0 %v2710
        %v2917 = vpop.f32.mrb[0].mxu0
        %v2918 = vadd.f32 0.0, %v2917
        %v2919 = vpop.f32.mrb[0].mxu0
        %v2920 = vpop.f32.mrb[0].mxu0
        %v2921 = vadd.f32 0.0, %v2920
        %v2922 = vpop.f32.mrb[0].mxu0
        %2923 = vmatprep.mubr.bf16.mxu0 0
        %2924 = vmatmul.mubr.bf16.gmra.mrb[0].mxu0 %v2712
        %v2925 = vpop.f32.mrb[0].mxu0
        %v2926 = vadd.f32 0.0, %v2925
        %v2927 = vpop.f32.mrb[0].mxu0
        %v2928 = vpop.f32.mrb[0].mxu0
        %v2929 = vadd.f32 0.0, %v2928
        %v2930 = vpop.f32.mrb[0].mxu0
        %2931 = vmatprep.mubr.bf16.mxu0 0
        %2932 = vmatmul.mubr.bf16.gmra.mrb[0].mxu0 %v2714
        %v2933 = vpop.f32.mrb[0].mxu0
        %v2934 = vadd.f32 0.0, %v2933
        %v2935 = vpop.f32.mrb[0].mxu0
        %v2936 = vpop.f32.mrb[0].mxu0
        %v2937 = vadd.f32 0.0, %v2936
        %v2938 = vpop.f32.mrb[0].mxu0
        %2939 = vmatprep.mubr.bf16.mxu0 0
        %2940 = vmatmul.mubr.bf16.gmra.mrb[0].mxu0 %v2716
        %v2941 = vpop.f32.mrb[0].mxu0
        %v2942 = vadd.f32 0.0, %v2941
        %v2943 = vpop.f32.mrb[0].mxu0
        %v2944 = vpop.f32.mrb[0].mxu0
        %v2945 = vadd.f32 0.0, %v2944
        %v2946 = vpop.f32.mrb[0].mxu0
        %2947 = vmatprep.mubr.bf16.mxu0 0
        %2948 = vmatmul.mubr.bf16.gmra.mrb[0].mxu0 %v2718
        %v2949 = vpop.f32.mrb[0].mxu0
        %v2950 = vadd.f32 0.0, %v2949
        %v2951 = vpop.f32.mrb[0].mxu0
        %v2952 = vpop.f32.mrb[0].mxu0
        %v2953 = vadd.f32 0.0, %v2952
        %v2954 = vpop.f32.mrb[0].mxu0
        %2955 = vmatprep.mubr.bf16.mxu0 0
        %2956 = vmatmul.mubr.bf16.gmra.mrb[0].mxu0 %v2720
        %v2957 = vpop.f32.mrb[0].mxu0
        %v2958 = vadd.f32 0.0, %v2957
        %v2959 = vpop.f32.mrb[0].mxu0
        %v2960 = vpop.f32.mrb[0].mxu0
        %v2961 = vadd.f32 0.0, %v2960
        %v2962 = vpop.f32.mrb[0].mxu0
        %2963 = vdwg.mxu0
        %v2964 = vadd.f32 %v2627, %v2822
        %v2965 = vadd.f32 %v2628, %v2825
        %v2966 = vadd.f32 %v2629, %v2830
        %v2967 = vadd.f32 %v2630, %v2833
        %v2968 = vadd.f32 %v2631, %v2838
        %v2969 = vadd.f32 %v2632, %v2841
        %v2970 = vadd.f32 %v2633, %v2846
        %v2971 = vadd.f32 %v2634, %v2849
        %v2972 = vadd.f32 %v2635, %v2854
        %v2973 = vadd.f32 %v2636, %v2857
        %v2974 = vadd.f32 %v2637, %v2862
        %v2975 = vadd.f32 %v2638, %v2865
        %v2976 = vadd.f32 %v2639, %v2870
        %v2977 = vadd.f32 %v2640, %v2873
        %v2978 = vadd.f32 %v2641, %v2878
        %v2979 = vadd.f32 %v2642, %v2881
        %v2980 = vadd.f32 %v2643, %v2886
        %v2981 = vadd.f32 %v2644, %v2889
        %v2982 = vadd.f32 %v2645, %v2894
        %v2983 = vadd.f32 %v2646, %v2897
        %v2984 = vadd.f32 %v2647, %v2902
        %v2985 = vadd.f32 %v2648, %v2905
        %v2986 = vadd.f32 %v2649, %v2910
        %v2987 = vadd.f32 %v2650, %v2913
        %v2988 = vadd.f32 %v2651, %v2918
        %v2989 = vadd.f32 %v2652, %v2921
        %v2990 = vadd.f32 %v2653, %v2926
        %v2991 = vadd.f32 %v2654, %v2929
        %v2992 = vadd.f32 %v2655, %v2934
        %v2993 = vadd.f32 %v2656, %v2937
        %v2994 = vadd.f32 %v2657, %v2942
        %v2995 = vadd.f32 %v2658, %v2945
        %v2996 = vadd.f32 %v2659, %v2950
        %v2997 = vadd.f32 %v2660, %v2953
        %v2998 = vadd.f32 %v2661, %v2958
        %v2999 = vadd.f32 %v2662, %v2961
        %v3000 = vpack.c.bf16 %v2965, %v2964
        %v3001 = vpack.c.bf16 %v2967, %v2966
        %v3002 = vpack.c.bf16 %v2969, %v2968
        %v3003 = vpack.c.bf16 %v2971, %v2970
        %v3004 = vpack.c.bf16 %v2973, %v2972
        %v3005 = vpack.c.bf16 %v2975, %v2974
        %v3006 = vpack.c.bf16 %v2977, %v2976
        %v3007 = vpack.c.bf16 %v2979, %v2978
        %v3008 = vpack.c.bf16 %v2981, %v2980
        %v3009 = vpack.c.bf16 %v2983, %v2982
        %v3010 = vpack.c.bf16 %v2985, %v2984
        %v3011 = vpack.c.bf16 %v2987, %v2986
        %v3012 = vpack.c.bf16 %v2989, %v2988
        %v3013 = vpack.c.bf16 %v2991, %v2990
        %v3014 = vpack.c.bf16 %v2993, %v2992
        %v3015 = vpack.c.bf16 %v2995, %v2994
        %v3016 = vpack.c.bf16 %v2997, %v2996
        %v3017 = vpack.c.bf16 %v2999, %v2998
        %v3036 = vunpack.c.l.b16 %v3000
        %v3037 = vunpack.c.h.b16 %v3000
        %v3038 = vunpack.c.l.b16 %v3001
        %v3039 = vunpack.c.h.b16 %v3001
        %v3040 = vunpack.c.l.b16 %v3002
        %v3041 = vunpack.c.h.b16 %v3002
        %v3042 = vunpack.c.l.b16 %v3003
        %v3043 = vunpack.c.h.b16 %v3003
        %v3044 = vunpack.c.l.b16 %v3004
        %v3045 = vunpack.c.h.b16 %v3004
        %v3046 = vunpack.c.l.b16 %v3005
        %v3047 = vunpack.c.h.b16 %v3005
        %v3048 = vunpack.c.l.b16 %v3006
        %v3049 = vunpack.c.h.b16 %v3006
        %v3050 = vunpack.c.l.b16 %v3007
        %v3051 = vunpack.c.h.b16 %v3007
        %v3052 = vunpack.c.l.b16 %v3008
        %v3053 = vunpack.c.h.b16 %v3008
        %v3054 = vunpack.c.l.b16 %v3009
        %v3055 = vunpack.c.h.b16 %v3009
        %v3056 = vunpack.c.l.b16 %v3010
        %v3057 = vunpack.c.h.b16 %v3010
        %v3058 = vunpack.c.l.b16 %v3011
        %v3059 = vunpack.c.h.b16 %v3011
        %v3060 = vunpack.c.l.b16 %v3012
        %v3061 = vunpack.c.h.b16 %v3012
        %v3062 = vunpack.c.l.b16 %v3013
        %v3063 = vunpack.c.h.b16 %v3013
        %v3064 = vunpack.c.l.b16 %v3014
        %v3065 = vunpack.c.h.b16 %v3014
        %v3066 = vunpack.c.l.b16 %v3015
        %v3067 = vunpack.c.h.b16 %v3015
        %v3068 = vunpack.c.l.b16 %v3016
        %v3069 = vunpack.c.h.b16 %v3016
        %v3070 = vunpack.c.l.b16 %v3017
        %v3071 = vunpack.c.h.b16 %v3017
        %v3072 = vpack.c.b16 %v3036, %v3036
        %v3073 = vpack.c.b16 %v3037, %v3037
        %v3074 = vpack.c.b16 %v3038, %v3038
        %v3075 = vpack.c.b16 %v3039, %v3039
        %v3076 = vpack.c.b16 %v3040, %v3040
        %v3077 = vpack.c.b16 %v3041, %v3041
        %v3078 = vpack.c.b16 %v3042, %v3042
        %v3079 = vpack.c.b16 %v3043, %v3043
        %v3080 = vpack.c.b16 %v3044, %v3044
        %v3081 = vpack.c.b16 %v3045, %v3045
        %v3082 = vpack.c.b16 %v3046, %v3046
        %v3083 = vpack.c.b16 %v3047, %v3047
        %v3084 = vpack.c.b16 %v3048, %v3048
        %v3085 = vpack.c.b16 %v3049, %v3049
        %v3086 = vpack.c.b16 %v3050, %v3050
        %v3087 = vpack.c.b16 %v3051, %v3051
        %v3088 = vpack.c.b16 %v3052, %v3052
        %v3089 = vpack.c.b16 %v3053, %v3053
        %v3090 = vpack.c.b16 %v3054, %v3054
        %v3091 = vpack.c.b16 %v3055, %v3055
        %v3092 = vpack.c.b16 %v3056, %v3056
        %v3093 = vpack.c.b16 %v3057, %v3057
        %v3094 = vpack.c.b16 %v3058, %v3058
        %v3095 = vpack.c.b16 %v3059, %v3059
        %v3096 = vpack.c.b16 %v3060, %v3060
        %v3097 = vpack.c.b16 %v3061, %v3061
        %v3098 = vpack.c.b16 %v3062, %v3062
        %v3099 = vpack.c.b16 %v3063, %v3063
        %v3100 = vpack.c.b16 %v3064, %v3064
        %v3101 = vpack.c.b16 %v3065, %v3065
        %v3102 = vpack.c.b16 %v3066, %v3066
        %v3103 = vpack.c.b16 %v3067, %v3067
        %v3104 = vpack.c.b16 %v3068, %v3068
        %v3105 = vpack.c.b16 %v3069, %v3069
        %v3106 = vpack.c.b16 %v3070, %v3070
        %v3107 = vpack.c.b16 %v3071, %v3071
        %3144 = vst [vmem:[%s248] sm:$0xf] %v3072
        %3145 = vst [vmem:[%s248 + $0x4] sm:$0xf] %v3073
        %3146 = vst [vmem:[%s248 + $0x8] sm:$0xf] %v3074
        %3147 = vst [vmem:[%s248 + $0xc] sm:$0xf] %v3075
        %3148 = vst [vmem:[%s248 + $0x10] sm:$0xf] %v3076
        %3149 = vst [vmem:[%s248 + $0x14] sm:$0xf] %v3077
        %3150 = vst [vmem:[%s248 + $0x18] sm:$0xf] %v3078
        %3151 = vst [vmem:[%s248 + $0x1c] sm:$0xf] %v3079
        %3152 = vst [vmem:[%s248 + $0x20] sm:$0xf] %v3080
        %3153 = vst [vmem:[%s248 + $0x24] sm:$0xf] %v3081
        %3154 = vst [vmem:[%s248 + $0x28] sm:$0xf] %v3082
        %3155 = vst [vmem:[%s248 + $0x2c] sm:$0xf] %v3083
        %3156 = vst [vmem:[%s248 + $0x30] sm:$0xf] %v3084
        %3157 = vst [vmem:[%s248 + $0x34] sm:$0xf] %v3085
        %3158 = vst [vmem:[%s248 + $0x38] sm:$0xf] %v3086
        %3159 = vst [vmem:[%s248 + $0x3c] sm:$0xf] %v3087
        %3160 = vst [vmem:[%s248 + $0x40] sm:$0xf] %v3088
        %3161 = vst [vmem:[%s248 + $0x44] sm:$0xf] %v3089
        %3162 = vst [vmem:[%s248 + $0x48] sm:$0xf] %v3090
        %3163 = vst [vmem:[%s248 + $0x4c] sm:$0xf] %v3091
        %3164 = vst [vmem:[%s248 + $0x50] sm:$0xf] %v3092
        %3165 = vst [vmem:[%s248 + $0x54] sm:$0xf] %v3093
        %3166 = vst [vmem:[%s248 + $0x58] sm:$0xf] %v3094
        %3167 = vst [vmem:[%s248 + $0x5c] sm:$0xf] %v3095
        %3168 = vst [vmem:[%s248 + $0x60] sm:$0xf] %v3096
        %3169 = vst [vmem:[%s248 + $0x64] sm:$0xf] %v3097
        %3170 = vst [vmem:[%s248 + $0x68] sm:$0xf] %v3098
        %3171 = vst [vmem:[%s248 + $0x6c] sm:$0xf] %v3099
        %3172 = vst [vmem:[%s248 + $0x70] sm:$0xf] %v3100
        %3173 = vst [vmem:[%s248 + $0x74] sm:$0xf] %v3101
        %3174 = vst [vmem:[%s248 + $0x78] sm:$0xf] %v3102
        %3175 = vst [vmem:[%s248 + $0x7c] sm:$0xf] %v3103
        %3176 = vst [vmem:[%s248 + $0x80] sm:$0xf] %v3104
        %3177 = vst [vmem:[%s248 + $0x84] sm:$0xf] %v3105
        %3178 = vst [vmem:[%s248 + $0x88] sm:$0xf] %v3106
        %3179 = vst [vmem:[%s248 + $0x8c] sm:$0xf] %v3107
        %v3180 = vld [vmem:[#allocation7] sm:$0xff]
        %v3181 = vld [vmem:[#allocation7 + $0x8] sm:$0xff]
        %v3182 = vld [vmem:[#allocation7 + $0x10] sm:$0xff]
        %v3183 = vld [vmem:[#allocation7 + $0x18] sm:$0xff]
        %v3184 = vld [vmem:[#allocation7 + $0x20] sm:$0xff]
        %v3185 = vld [vmem:[#allocation7 + $0x28] sm:$0xff]
        %v3186 = vld [vmem:[#allocation7 + $0x30] sm:$0xff]
        %v3187 = vld [vmem:[#allocation7 + $0x38] sm:$0xff]
        %v3188 = vld [vmem:[#allocation7 + $0x40] sm:$0xff]
        %v3189 = vld [vmem:[#allocation7 + $0x48] sm:$0xff]
        %v3190 = vld [vmem:[#allocation7 + $0x50] sm:$0xff]
        %v3191 = vld [vmem:[#allocation7 + $0x58] sm:$0xff]
        %v3192 = vld [vmem:[#allocation7 + $0x60] sm:$0xff]
        %v3193 = vld [vmem:[#allocation7 + $0x68] sm:$0xff]
        %v3194 = vld [vmem:[#allocation7 + $0x70] sm:$0xff]
        %v3195 = vld [vmem:[#allocation7 + $0x78] sm:$0xff]
        %v3196 = vld [vmem:[#allocation7 + $0x80] sm:$0xff]
        %v3197 = vld [vmem:[#allocation7 + $0x88] sm:$0xff]
        %v3198 = vld [vmem:[#allocation7 + $0x90] sm:$0xff]
        %v3199 = vld [vmem:[#allocation7 + $0x98] sm:$0xff]
        %v3200 = vld [vmem:[#allocation7 + $0xa0] sm:$0xff]
        %v3201 = vld [vmem:[#allocation7 + $0xa8] sm:$0xff]
        %v3202 = vld [vmem:[#allocation7 + $0xb0] sm:$0xff]
        %v3203 = vld [vmem:[#allocation7 + $0xb8] sm:$0xff]
        %v3204 = vld [vmem:[#allocation7 + $0xc0] sm:$0xff]
        %v3205 = vld [vmem:[#allocation7 + $0xc8] sm:$0xff]
        %v3206 = vld [vmem:[#allocation7 + $0xd0] sm:$0xff]
        %v3207 = vld [vmem:[#allocation7 + $0xd8] sm:$0xff]
        %v3208 = vld [vmem:[#allocation7 + $0xe0] sm:$0xff]
        %v3209 = vld [vmem:[#allocation7 + $0xe8] sm:$0xff]
        %v3210 = vld [vmem:[#allocation7 + $0xf0] sm:$0xff]
        %v3211 = vld [vmem:[#allocation7 + $0xf8] sm:$0xff]
        %v3212 = vld [vmem:[#allocation7 + $0x100] sm:$0xff]
        %v3213 = vld [vmem:[#allocation7 + $0x108] sm:$0xff]
        %v3214 = vld [vmem:[#allocation7 + $0x110] sm:$0xff]
        %v3215 = vld [vmem:[#allocation7 + $0x118] sm:$0xff]
        %3217 = vset.pattern.permute.xlu0 0
        %3218 = vperm.xlu0 %3217, %v3180
        %v3219 = vpop.permute.xlu0 %3218
        %3222 = vset.pattern.permute.xlu0 0
        %3223 = vperm.xlu0 %3222, %v3181
        %v3224 = vpop.permute.xlu0 %3223
        %3227 = vset.pattern.permute.xlu0 0
        %3228 = vperm.xlu0 %3227, %v3182
        %v3229 = vpop.permute.xlu0 %3228
        %3232 = vset.pattern.permute.xlu0 0
        %3233 = vperm.xlu0 %3232, %v3183
        %v3234 = vpop.permute.xlu0 %3233
        %3237 = vset.pattern.permute.xlu0 0
        %3238 = vperm.xlu0 %3237, %v3184
        %v3239 = vpop.permute.xlu0 %3238
        %3242 = vset.pattern.permute.xlu0 0
        %3243 = vperm.xlu0 %3242, %v3185
        %v3244 = vpop.permute.xlu0 %3243
        %3247 = vset.pattern.permute.xlu0 0
        %3248 = vperm.xlu0 %3247, %v3186
        %v3249 = vpop.permute.xlu0 %3248
        %3252 = vset.pattern.permute.xlu0 0
        %3253 = vperm.xlu0 %3252, %v3187
        %v3254 = vpop.permute.xlu0 %3253
        %3257 = vset.pattern.permute.xlu0 0
        %3258 = vperm.xlu0 %3257, %v3188
        %v3259 = vpop.permute.xlu0 %3258
        %3262 = vset.pattern.permute.xlu0 0
        %3263 = vperm.xlu0 %3262, %v3189
        %v3264 = vpop.permute.xlu0 %3263
        %3267 = vset.pattern.permute.xlu0 0
        %3268 = vperm.xlu0 %3267, %v3190
        %v3269 = vpop.permute.xlu0 %3268
        %3272 = vset.pattern.permute.xlu0 0
        %3273 = vperm.xlu0 %3272, %v3191
        %v3274 = vpop.permute.xlu0 %3273
        %3277 = vset.pattern.permute.xlu0 0
        %3278 = vperm.xlu0 %3277, %v3192
        %v3279 = vpop.permute.xlu0 %3278
        %3282 = vset.pattern.permute.xlu0 0
        %3283 = vperm.xlu0 %3282, %v3193
        %v3284 = vpop.permute.xlu0 %3283
        %3287 = vset.pattern.permute.xlu0 0
        %3288 = vperm.xlu0 %3287, %v3194
        %v3289 = vpop.permute.xlu0 %3288
        %3292 = vset.pattern.permute.xlu0 0
        %3293 = vperm.xlu0 %3292, %v3195
        %v3294 = vpop.permute.xlu0 %3293
        %3297 = vset.pattern.permute.xlu0 0
        %3298 = vperm.xlu0 %3297, %v3196
        %v3299 = vpop.permute.xlu0 %3298
        %3302 = vset.pattern.permute.xlu0 0
        %3303 = vperm.xlu0 %3302, %v3197
        %v3304 = vpop.permute.xlu0 %3303
        %3307 = vset.pattern.permute.xlu0 0
        %3308 = vperm.xlu0 %3307, %v3198
        %v3309 = vpop.permute.xlu0 %3308
        %3312 = vset.pattern.permute.xlu0 0
        %3313 = vperm.xlu0 %3312, %v3199
        %v3314 = vpop.permute.xlu0 %3313
        %3317 = vset.pattern.permute.xlu0 0
        %3318 = vperm.xlu0 %3317, %v3200
        %v3319 = vpop.permute.xlu0 %3318
        %3322 = vset.pattern.permute.xlu0 0
        %3323 = vperm.xlu0 %3322, %v3201
        %v3324 = vpop.permute.xlu0 %3323
        %3327 = vset.pattern.permute.xlu0 0
        %3328 = vperm.xlu0 %3327, %v3202
        %v3329 = vpop.permute.xlu0 %3328
        %3332 = vset.pattern.permute.xlu0 0
        %3333 = vperm.xlu0 %3332, %v3203
        %v3334 = vpop.permute.xlu0 %3333
        %3337 = vset.pattern.permute.xlu0 0
        %3338 = vperm.xlu0 %3337, %v3204
        %v3339 = vpop.permute.xlu0 %3338
        %3342 = vset.pattern.permute.xlu0 0
        %3343 = vperm.xlu0 %3342, %v3205
        %v3344 = vpop.permute.xlu0 %3343
        %3347 = vset.pattern.permute.xlu0 0
        %3348 = vperm.xlu0 %3347, %v3206
        %v3349 = vpop.permute.xlu0 %3348
        %3352 = vset.pattern.permute.xlu0 0
        %3353 = vperm.xlu0 %3352, %v3207
        %v3354 = vpop.permute.xlu0 %3353
        %3357 = vset.pattern.permute.xlu0 0
        %3358 = vperm.xlu0 %3357, %v3208
        %v3359 = vpop.permute.xlu0 %3358
        %3362 = vset.pattern.permute.xlu0 0
        %3363 = vperm.xlu0 %3362, %v3209
        %v3364 = vpop.permute.xlu0 %3363
        %3367 = vset.pattern.permute.xlu0 0
        %3368 = vperm.xlu0 %3367, %v3210
        %v3369 = vpop.permute.xlu0 %3368
        %3372 = vset.pattern.permute.xlu0 0
        %3373 = vperm.xlu0 %3372, %v3211
        %v3374 = vpop.permute.xlu0 %3373
        %3377 = vset.pattern.permute.xlu0 0
        %3378 = vperm.xlu0 %3377, %v3212
        %v3379 = vpop.permute.xlu0 %3378
        %3382 = vset.pattern.permute.xlu0 0
        %3383 = vperm.xlu0 %3382, %v3213
        %v3384 = vpop.permute.xlu0 %3383
        %3387 = vset.pattern.permute.xlu0 0
        %3388 = vperm.xlu0 %3387, %v3214
        %v3389 = vpop.permute.xlu0 %3388
        %3392 = vset.pattern.permute.xlu0 0
        %3393 = vperm.xlu0 %3392, %v3215
        %v3394 = vpop.permute.xlu0 %3393
        %v3396 = vmul.f32 %v2964, %v3219
        %v3397 = vmul.f32 %v2965, %v3224
        %v3398 = vmul.f32 %v2966, %v3229
        %v3399 = vmul.f32 %v2967, %v3234
        %v3400 = vmul.f32 %v2968, %v3239
        %v3401 = vmul.f32 %v2969, %v3244
        %v3402 = vmul.f32 %v2970, %v3249
        %v3403 = vmul.f32 %v2971, %v3254
        %v3404 = vmul.f32 %v2972, %v3259
        %v3405 = vmul.f32 %v2973, %v3264
        %v3406 = vmul.f32 %v2974, %v3269
        %v3407 = vmul.f32 %v2975, %v3274
        %v3408 = vmul.f32 %v2976, %v3279
        %v3409 = vmul.f32 %v2977, %v3284
        %v3410 = vmul.f32 %v2978, %v3289
        %v3411 = vmul.f32 %v2979, %v3294
        %v3412 = vmul.f32 %v2980, %v3299
        %v3413 = vmul.f32 %v2981, %v3304
        %v3414 = vmul.f32 %v2982, %v3309
        %v3415 = vmul.f32 %v2983, %v3314
        %v3416 = vmul.f32 %v2984, %v3319
        %v3417 = vmul.f32 %v2985, %v3324
        %v3418 = vmul.f32 %v2986, %v3329
        %v3419 = vmul.f32 %v2987, %v3334
        %v3420 = vmul.f32 %v2988, %v3339
        %v3421 = vmul.f32 %v2989, %v3344
        %v3422 = vmul.f32 %v2990, %v3349
        %v3423 = vmul.f32 %v2991, %v3354
        %v3424 = vmul.f32 %v2992, %v3359
        %v3425 = vmul.f32 %v2993, %v3364
        %v3426 = vmul.f32 %v2994, %v3369
        %v3427 = vmul.f32 %v2995, %v3374
        %v3428 = vmul.f32 %v2996, %v3379
        %v3429 = vmul.f32 %v2997, %v3384
        %v3430 = vmul.f32 %v2998, %v3389
        %v3431 = vmul.f32 %v2999, %v3394
        %v3432 = vadd.f32 %v3396, %v3397
        %v3433 = vadd.f32 %v3432, %v3398
        %v3434 = vadd.f32 %v3433, %v3399
        %v3435 = vadd.f32 %v3434, %v3400
        %v3436 = vadd.f32 %v3435, %v3401
        %v3437 = vadd.f32 %v3436, %v3402
        %v3438 = vadd.f32 %v3437, %v3403
        %v3439 = vadd.f32 %v3438, %v3404
        %v3440 = vadd.f32 %v3439, %v3405
        %v3441 = vadd.f32 %v3440, %v3406
        %v3442 = vadd.f32 %v3441, %v3407
        %v3443 = vadd.f32 %v3442, %v3408
        %v3444 = vadd.f32 %v3443, %v3409
        %v3445 = vadd.f32 %v3444, %v3410
        %v3446 = vadd.f32 %v3445, %v3411
        %v3447 = vadd.f32 %v3446, %v3412
        %v3448 = vadd.f32 %v3447, %v3413
        %v3449 = vadd.f32 %v3448, %v3414
        %v3450 = vadd.f32 %v3449, %v3415
        %v3451 = vadd.f32 %v3450, %v3416
        %v3452 = vadd.f32 %v3451, %v3417
        %v3453 = vadd.f32 %v3452, %v3418
        %v3454 = vadd.f32 %v3453, %v3419
        %v3455 = vadd.f32 %v3454, %v3420
        %v3456 = vadd.f32 %v3455, %v3421
        %v3457 = vadd.f32 %v3456, %v3422
        %v3458 = vadd.f32 %v3457, %v3423
        %v3459 = vadd.f32 %v3458, %v3424
        %v3460 = vadd.f32 %v3459, %v3425
        %v3461 = vadd.f32 %v3460, %v3426
        %v3462 = vadd.f32 %v3461, %v3427
        %v3463 = vadd.f32 %v3462, %v3428
        %v3464 = vadd.f32 %v3463, %v3429
        %v3465 = vadd.f32 %v3464, %v3430
        %v3466 = vadd.f32 %v3465, %v3431
        %v3467 = vrot.slane %v3466, 4
        %v3468 = vadd.f32 %v3466, %v3467
        %v3469 = vrot.slane %v3468, 2
        %v3470 = vadd.f32 %v3468, %v3469
        %v3471 = vrot.slane %v3470, 1
        %v3472 = vadd.f32 %v3470, %v3471
        %3473 = vst [vmem:[%s255] sm:$0x1] %v3472
        %v3474 = vmul.f32 %v3396, %v2964
        %v3475 = vmul.f32 %v3397, %v2965
        %v3476 = vmul.f32 %v3398, %v2966
        %v3477 = vmul.f32 %v3399, %v2967
        %v3478 = vmul.f32 %v3400, %v2968
        %v3479 = vmul.f32 %v3401, %v2969
        %v3480 = vmul.f32 %v3402, %v2970
        %v3481 = vmul.f32 %v3403, %v2971
        %v3482 = vmul.f32 %v3404, %v2972
        %v3483 = vmul.f32 %v3405, %v2973
        %v3484 = vmul.f32 %v3406, %v2974
        %v3485 = vmul.f32 %v3407, %v2975
        %v3486 = vmul.f32 %v3408, %v2976
        %v3487 = vmul.f32 %v3409, %v2977
        %v3488 = vmul.f32 %v3410, %v2978
        %v3489 = vmul.f32 %v3411, %v2979
        %v3490 = vmul.f32 %v3412, %v2980
        %v3491 = vmul.f32 %v3413, %v2981
        %v3492 = vmul.f32 %v3414, %v2982
        %v3493 = vmul.f32 %v3415, %v2983
        %v3494 = vmul.f32 %v3416, %v2984
        %v3495 = vmul.f32 %v3417, %v2985
        %v3496 = vmul.f32 %v3418, %v2986
        %v3497 = vmul.f32 %v3419, %v2987
        %v3498 = vmul.f32 %v3420, %v2988
        %v3499 = vmul.f32 %v3421, %v2989
        %v3500 = vmul.f32 %v3422, %v2990
        %v3501 = vmul.f32 %v3423, %v2991
        %v3502 = vmul.f32 %v3424, %v2992
        %v3503 = vmul.f32 %v3425, %v2993
        %v3504 = vmul.f32 %v3426, %v2994
        %v3505 = vmul.f32 %v3427, %v2995
        %v3506 = vmul.f32 %v3428, %v2996
        %v3507 = vmul.f32 %v3429, %v2997
        %v3508 = vmul.f32 %v3430, %v2998
        %v3509 = vmul.f32 %v3431, %v2999
        %v3510 = vadd.f32 %v3474, %v3475
        %v3511 = vadd.f32 %v3510, %v3476
        %v3512 = vadd.f32 %v3511, %v3477
        %v3513 = vadd.f32 %v3512, %v3478
        %v3514 = vadd.f32 %v3513, %v3479
        %v3515 = vadd.f32 %v3514, %v3480
        %v3516 = vadd.f32 %v3515, %v3481
        %v3517 = vadd.f32 %v3516, %v3482
        %v3518 = vadd.f32 %v3517, %v3483
        %v3519 = vadd.f32 %v3518, %v3484
        %v3520 = vadd.f32 %v3519, %v3485
        %v3521 = vadd.f32 %v3520, %v3486
        %v3522 = vadd.f32 %v3521, %v3487
        %v3523 = vadd.f32 %v3522, %v3488
        %v3524 = vadd.f32 %v3523, %v3489
        %v3525 = vadd.f32 %v3524, %v3490
        %v3526 = vadd.f32 %v3525, %v3491
        %v3527 = vadd.f32 %v3526, %v3492
        %v3528 = vadd.f32 %v3527, %v3493
        %v3529 = vadd.f32 %v3528, %v3494
        %v3530 = vadd.f32 %v3529, %v3495
        %v3531 = vadd.f32 %v3530, %v3496
        %v3532 = vadd.f32 %v3531, %v3497
        %v3533 = vadd.f32 %v3532, %v3498
        %v3534 = vadd.f32 %v3533, %v3499
        %v3535 = vadd.f32 %v3534, %v3500
        %v3536 = vadd.f32 %v3535, %v3501
        %v3537 = vadd.f32 %v3536, %v3502
        %v3538 = vadd.f32 %v3537, %v3503
        %v3539 = vadd.f32 %v3538, %v3504
        %v3540 = vadd.f32 %v3539, %v3505
        %v3541 = vadd.f32 %v3540, %v3506
        %v3542 = vadd.f32 %v3541, %v3507
        %v3543 = vadd.f32 %v3542, %v3508
        %v3544 = vadd.f32 %v3543, %v3509
        %v3545 = vrot.slane %v3544, 4
        %v3546 = vadd.f32 %v3544, %v3545
        %v3547 = vrot.slane %v3546, 2
        %v3548 = vadd.f32 %v3546, %v3547
        %v3549 = vrot.slane %v3548, 1
        %v3550 = vadd.f32 %v3548, %v3549
        %3551 = vst [vmem:[%s255 + $0x1] sm:$0x1] %v3550
        %s3552 = sand.u32 %s102, 1
        %s3553 = scalar_lea.sflag [#allocation4], %s3552
        %s3554 = sand.u32 %s102, 1
        %s3555 = smul.addr %s3554, 144
        %s3556 = scalar_lea.vmem [#allocation8], %s3555
        %s3557 = sand.u32 %s128, 1
        %s3558 = scalar_lea.sflag [#allocation10], %s3557
        %s3559 = sand.u32 %s128, 1
        %s3560 = smul.addr %s3559, 2
        %s3561 = scalar_lea.vmem [#allocation9], %s3560
        // Predicated region
        $region45: #{base_block_forward.3} parent=31 // pred_check
          %p3562 = pneg %p112
        $region46: #{base_block_forward.3} parent=31 // pred_check_branch
          %3564 = sbr.rel (%p3562) target = $region48
        $region47: #{base_block_forward.3} parent=31 // pred_region
          %s3566 = ssub.s32 2304, 2304
          %3567 = vsyncadd %s3553, %s3566
          %s3568 = smul.addr %s26, 36
          %s3569 = smul.addr %s3568, 64
          %s3570 = scalar_lea.hbm %s3, %s3569
          %s3571 = sshll.u32 %s3556, 4
          %s3572 = int_to_ptr.vmem [resolvable:$true] %s3571
          %3577 = dma.vmem_to_hbm [thread:$0]  %s3572, 2304, %s3570, %s3553, 64, 64, 4
        $region48: #{base_block_forward.3} parent=31 // pred_fallthru
          _
        // Predicated region
        $region49: #{base_block_forward.3} parent=31 // pred_check
          %p3578 = pneg %p138
        $region50: #{base_block_forward.3} parent=31 // pred_check_branch
          %3580 = sbr.rel (%p3578) target = $region52
        $region51: #{base_block_forward.3} parent=31 // pred_region
          %s3582 = ssub.s32 32, 32
          %3583 = vsyncadd %s3558, %s3582
          %s3584 = smul.addr %s26, 32
          %s3585 = scalar_lea.hbm %s4, %s3584
          %s3587 = sshll.u32 %s3561, 4
          %s3588 = int_to_ptr.vmem [resolvable:$true] %s3587
          %3590 = dma.vmem_to_hbm [thread:$0]  %s3588, 32, %s3585, %s3558
        $region52: #{base_block_forward.3} parent=31 // pred_fallthru
          _
      $region32: #{base_block_forward.3} parent=5 // pred_fallthru
        _
      %p3591 = scmp.le.s32.totalorder 2, %s21
      // Predicated region
      $region53: #{base_block_forward.3} parent=5 // pred_check
        %p3592 = pneg %p3591
      $region54: #{base_block_forward.3} parent=5 // pred_check_branch
        %3594 = sbr.rel (%p3592) target = $region56
      $region55: #{base_block_forward.3} parent=5 // pred_region
        %s3595 = ssub.s32 %s21, 2
        // Predicated region
        $region57: #{base_block_forward.3} parent=55 // pred_check
          %p3596 = pneg %p118
        $region58: #{base_block_forward.3} parent=55 // pred_check_branch
          %3598 = sbr.rel (%p3596) target = $region60
        $region59: #{base_block_forward.3} parent=55 // pred_region
          %s3599 = sand.u32 %s103, 1
          %s3600 = scalar_lea.sflag [#allocation4], %s3599
          %s3601 = sand.u32 %s103, 1
          %s3602 = smul.addr %s3601, 144
          %s3603 = scalar_lea.vmem [#allocation8], %s3602
          %3604 = dma.done %s3600, 2304
        $region60: #{base_block_forward.3} parent=55 // pred_fallthru
          _
        // Predicated region
        $region61: #{base_block_forward.3} parent=55 // pred_check
          %p3605 = pneg %p144
        $region62: #{base_block_forward.3} parent=55 // pred_check_branch
          %3607 = sbr.rel (%p3605) target = $region64
        $region63: #{base_block_forward.3} parent=55 // pred_region
          %s3608 = sand.u32 %s129, 1
          %s3609 = scalar_lea.sflag [#allocation10], %s3608
          %s3610 = sand.u32 %s129, 1
          %s3611 = smul.addr %s3610, 2
          %s3612 = scalar_lea.vmem [#allocation9], %s3611
          %3613 = dma.done %s3609, 32
        $region64: #{base_block_forward.3} parent=55 // pred_fallthru
          _
      $region56: #{base_block_forward.3} parent=5 // pred_fallthru
        _
    $region6: #{base_block_forward.3} parent=1 // loop_footer
      %s25 = sadd.s32 1, %s21
    $region7: #{base_block_forward.3} parent=1 // loop_footer_branch
      %20 = sbr.rel target = $region3
    $region8: #{base_block_forward.3} parent=1 // loop_exit
      _
    %3614 = vsyncpa [#allocation3], 1
    %s3615 = scalar_lea.sflag [#allocation3], 1
    %3616 = vsyncpa %s3615, 1
    %3617 = vsyncpa [#allocation6], 1
    %3618 = vsyncpa [#allocation4], 1
    %s3619 = scalar_lea.sflag [#allocation4], 1
    %3620 = vsyncpa %s3619, 1
    %3621 = vsyncpa [#allocation10], 1
    %s3622 = scalar_lea.sflag [#allocation10], 1
    %3623 = vsyncpa %s3622, 1

// kernel: base_block_forward.4
$region0: #{base_block_forward.4}
  #allocation0 [shape = 'u32[]', space=smem, size = 0x4, offset = 0x4, fixed_abs, tag = 'smem constant byte address 0x4 - core index']
  #allocation1 [shape = 'u32[144,128]{1,0:T(1,128)}', space=vmem, size = 0x12000, scoped, tag = 'internal scratch']
  #allocation2 [shape = 'bf16[355,128]{1,0:T(8,128)(2,1)}', space=vmem, size = 0x16800, scoped, tag = 'scratch operand']
  %s0 = inlined_call_operand.hbm [shape: bf16[2,288,128], index: 0, kind: input, shape index: {}]
  %s1 = inlined_call_operand.hbm [shape: f32[1,128], index: 1, kind: input, shape index: {}]
  %s2 = inlined_call_operand.hbm [shape: f32[1,128], index: 2, kind: input, shape index: {}]
  %s3 = inlined_call_operand.hbm [shape: bf16[1152,128], index: 3, kind: input, shape index: {}]
  %s4 = inlined_call_operand.hbm [shape: f32[288,1], index: 4, kind: input, shape index: {}]
  %s5 = inlined_call_operand.hbm [shape: bf16[2,288,128], index: 5, kind: output, shape index: {0}]
  %s6 = inlined_call_operand.hbm [shape: f32[2,2,128], index: 6, kind: output, shape index: {1}]
  %7 = xla_tuple %s5, %s6
  %s8 = sld [smem:[#allocation0]]
  $region81: #{base_block_forward.4} parent=0
    _
  %s10 = ssub.s32 1, %s8
  %s11 = scalar_select 0, %s10, %s8
  $region1: #{base_block_forward.4} parent=0
    #allocation3 [shape = 'u8[147456]{0}', space=vmem, size = 0x24000, scoped, tag = 'input window, operand 0']
    #allocation4 [shape = 's32[2]{0}', space=sflag, size = 0x8, scoped, tag = 'scoped memory for base_block_forward.4']
    #allocation5 [shape = 's32[2]{0}', space=sflag, size = 0x8, scoped, tag = 'scoped memory for base_block_forward.4']
    #allocation6 [shape = 'u8[512]{0}', space=vmem, size = 0x400, scoped, tag = 'input window, operand 1, single buffered']
    #allocation7 [shape = 's32[1]{0}', space=sflag, size = 0x4, scoped, tag = 'scoped memory for base_block_forward.4']
    #allocation8 [shape = 'u8[512]{0}', space=vmem, size = 0x400, scoped, tag = 'input window, operand 2, single buffered']
    #allocation9 [shape = 'u8[294912]{0}', space=vmem, size = 0x48000, scoped, tag = 'input window, operand 3, single buffered']
    #allocation10 [shape = 's32[1]{0}', space=sflag, size = 0x4, scoped, tag = 'scoped memory for base_block_forward.4']
    #allocation11 [shape = 'u8[147456]{0}', space=vmem, size = 0x24000, scoped, tag = 'input window, operand 4, single buffered']
    #allocation12 [shape = 'u8[147456]{0}', space=vmem, size = 0x24000, scoped, tag = 'output window, operand 0']
    #allocation13 [shape = 'u8[2048]{0}', space=vmem, size = 0x800, scoped, tag = 'output window, operand 1']
    #allocation14 [shape = 's32[2]{0}', space=sflag, size = 0x8, scoped, tag = 'scoped memory for base_block_forward.4']
    %12 = vsyncpa [#allocation4], 0
    %s13 = scalar_lea.sflag [#allocation4], 1
    %14 = vsyncpa %s13, 0
    %15 = vsyncpa [#allocation7], 0
    %16 = vsyncpa [#allocation10], 0
    %17 = vsyncpa [#allocation5], 0
    %s18 = scalar_lea.sflag [#allocation5], 1
    %19 = vsyncpa %s18, 0
    %20 = vsyncpa [#allocation14], 0
    %s21 = scalar_lea.sflag [#allocation14], 1
    %22 = vsyncpa %s21, 0
    loop: start=0, step=1, limit=4
    $region2: #{base_block_forward.4} parent=1 // loop_pre_header
      _
    $region3: #{base_block_forward.4} parent=1 // loop_header
      %s24 = sphi 0, %s28
      %p25 = scmp.ge.s32.totalorder %s24, 4
      %s34 = sphi 0, %s36
      %s37 = sphi 0, %s34
      %s38 = sphi 0, %s37
      %s54 = sphi 0, %s38
      %s58 = sphi 0, %s58
      %s60 = sphi 0, %s58
      %s61 = sphi 0, %s60
      %s75 = sphi 0, %s61
      %s79 = sphi 0, %s79
      %s81 = sphi 0, %s79
      %s82 = sphi 0, %s81
      %s96 = sphi 0, %s82
      %s100 = sphi 0, %s100
      %s102 = sphi 0, %s100
      %s103 = sphi 0, %s102
      %s117 = sphi 0, %s103
      %s121 = sphi 0, %s121
      %s123 = sphi 0, %s121
      %s124 = sphi 0, %s123
      %s138 = sphi 0, %s124
      %s144 = sphi 0, %s146
      %s147 = sphi 0, %s144
      %s148 = sphi 0, %s147
      %s164 = sphi 0, %s148
      %s170 = sphi 0, %s172
      %s173 = sphi 0, %s170
      %s174 = sphi 0, %s173
      %s190 = sphi 0, %s174
    $region4: #{base_block_forward.4} parent=1 // loop_header_branch
      %27 = sbr.rel (%p25) target = $region8
    $region5: #{base_block_forward.4} parent=1 // loop_body
      %s29 = ssub.s32 %s24, 1
      %s30 = ssub.s32 %s24, 2
      %s31 = sadd.s32 %s24, 1
      %s32 = ssub.s32 %s24, %s31
      %p33 = scmp.eq.s32.totalorder %s32, 0
      %s35 = sadd.s32 %s34, 1
      %s36 = scalar_select %p33, %s34, %s35
      %p39 = pneg %p33
      %p40 = scmp.eq.s32.totalorder %s24, 1
      %p41 = por %p39, %p40
      %p42 = scmp.ne.s32.totalorder %s34, %s37
      %p43 = scmp.eq.s32.totalorder %s24, 0
      %p44 = por %p42, %p43
      %p45 = scmp.ne.s32.totalorder %s34, %s37
      %p46 = scmp.eq.s32.totalorder %s29, 1
      %p47 = por %p45, %p46
      %p48 = scmp.ne.s32.totalorder %s37, %s38
      %p49 = scmp.eq.s32.totalorder %s29, 0
      %p50 = por %p48, %p49
      %p51 = scmp.ne.s32.totalorder %s37, %s38
      %p52 = scmp.eq.s32.totalorder %s30, 1
      %p53 = por %p51, %p52
      %p55 = scmp.ne.s32.totalorder %s38, %s54
      %p56 = scmp.eq.s32.totalorder %s30, 0
      %p57 = por %p55, %p56
      %s59 = sadd.s32 %s58, 1
      %p62 = scmp.eq.s32.totalorder %s24, 1
      %p63 = scmp.ne.s32.totalorder %s58, %s60
      %p64 = scmp.eq.s32.totalorder %s24, 0
      %p65 = por %p63, %p64
      %p66 = scmp.ne.s32.totalorder %s58, %s60
      %p67 = scmp.eq.s32.totalorder %s29, 1
      %p68 = por %p66, %p67
      %p69 = scmp.ne.s32.totalorder %s60, %s61
      %p70 = scmp.eq.s32.totalorder %s29, 0
      %p71 = por %p69, %p70
      %p72 = scmp.ne.s32.totalorder %s60, %s61
      %p73 = scmp.eq.s32.totalorder %s30, 1
      %p74 = por %p72, %p73
      %p76 = scmp.ne.s32.totalorder %s61, %s75
      %p77 = scmp.eq.s32.totalorder %s30, 0
      %p78 = por %p76, %p77
      %s80 = sadd.s32 %s79, 1
      %p83 = scmp.eq.s32.totalorder %s24, 1
      %p84 = scmp.ne.s32.totalorder %s79, %s81
      %p85 = scmp.eq.s32.totalorder %s24, 0
      %p86 = por %p84, %p85
      %p87 = scmp.ne.s32.totalorder %s79, %s81
      %p88 = scmp.eq.s32.totalorder %s29, 1
      %p89 = por %p87, %p88
      %p90 = scmp.ne.s32.totalorder %s81, %s82
      %p91 = scmp.eq.s32.totalorder %s29, 0
      %p92 = por %p90, %p91
      %p93 = scmp.ne.s32.totalorder %s81, %s82
      %p94 = scmp.eq.s32.totalorder %s30, 1
      %p95 = por %p93, %p94
      %p97 = scmp.ne.s32.totalorder %s82, %s96
      %p98 = scmp.eq.s32.totalorder %s30, 0
      %p99 = por %p97, %p98
      %s101 = sadd.s32 %s100, 1
      %p104 = scmp.eq.s32.totalorder %s24, 1
      %p105 = scmp.ne.s32.totalorder %s100, %s102
      %p106 = scmp.eq.s32.totalorder %s24, 0
      %p107 = por %p105, %p106
      %p108 = scmp.ne.s32.totalorder %s100, %s102
      %p109 = scmp.eq.s32.totalorder %s29, 1
      %p110 = por %p108, %p109
      %p111 = scmp.ne.s32.totalorder %s102, %s103
      %p112 = scmp.eq.s32.totalorder %s29, 0
      %p113 = por %p111, %p112
      %p114 = scmp.ne.s32.totalorder %s102, %s103
      %p115 = scmp.eq.s32.totalorder %s30, 1
      %p116 = por %p114, %p115
      %p118 = scmp.ne.s32.totalorder %s103, %s117
      %p119 = scmp.eq.s32.totalorder %s30, 0
      %p120 = por %p118, %p119
      %s122 = sadd.s32 %s121, 1
      %p125 = scmp.eq.s32.totalorder %s24, 1
      %p126 = scmp.ne.s32.totalorder %s121, %s123
      %p127 = scmp.eq.s32.totalorder %s24, 0
      %p128 = por %p126, %p127
      %p129 = scmp.ne.s32.totalorder %s121, %s123
      %p130 = scmp.eq.s32.totalorder %s29, 1
      %p131 = por %p129, %p130
      %p132 = scmp.ne.s32.totalorder %s123, %s124
      %p133 = scmp.eq.s32.totalorder %s29, 0
      %p134 = por %p132, %p133
      %p135 = scmp.ne.s32.totalorder %s123, %s124
      %p136 = scmp.eq.s32.totalorder %s30, 1
      %p137 = por %p135, %p136
      %p139 = scmp.ne.s32.totalorder %s124, %s138
      %p140 = scmp.eq.s32.totalorder %s30, 0
      %p141 = por %p139, %p140
      %s142 = ssub.s32 %s24, %s31
      %p143 = scmp.eq.s32.totalorder %s142, 0
      %s145 = sadd.s32 %s144, 1
      %s146 = scalar_select %p143, %s144, %s145
      %p149 = pneg %p143
      %p150 = scmp.eq.s32.totalorder %s24, 1
      %p151 = por %p149, %p150
      %p152 = scmp.ne.s32.totalorder %s144, %s147
      %p153 = scmp.eq.s32.totalorder %s24, 0
      %p154 = por %p152, %p153
      %p155 = scmp.ne.s32.totalorder %s144, %s147
      %p156 = scmp.eq.s32.totalorder %s29, 1
      %p157 = por %p155, %p156
      %p158 = scmp.ne.s32.totalorder %s147, %s148
      %p159 = scmp.eq.s32.totalorder %s29, 0
      %p160 = por %p158, %p159
      %p161 = scmp.ne.s32.totalorder %s147, %s148
      %p162 = scmp.eq.s32.totalorder %s30, 1
      %p163 = por %p161, %p162
      %p165 = scmp.ne.s32.totalorder %s148, %s164
      %p166 = scmp.eq.s32.totalorder %s30, 0
      %p167 = por %p165, %p166
      %s168 = ssub.s32 %s24, %s31
      %p169 = scmp.eq.s32.totalorder %s168, 0
      %s171 = sadd.s32 %s170, 1
      %s172 = scalar_select %p169, %s170, %s171
      %p175 = pneg %p169
      %p176 = scmp.eq.s32.totalorder %s24, 1
      %p177 = por %p175, %p176
      %p178 = scmp.ne.s32.totalorder %s170, %s173
      %p179 = scmp.eq.s32.totalorder %s24, 0
      %p180 = por %p178, %p179
      %p181 = scmp.ne.s32.totalorder %s170, %s173
      %p182 = scmp.eq.s32.totalorder %s29, 1
      %p183 = por %p181, %p182
      %p184 = scmp.ne.s32.totalorder %s173, %s174
      %p185 = scmp.eq.s32.totalorder %s29, 0
      %p186 = por %p184, %p185
      %p187 = scmp.ne.s32.totalorder %s173, %s174
      %p188 = scmp.eq.s32.totalorder %s30, 1
      %p189 = por %p187, %p188
      %p191 = scmp.ne.s32.totalorder %s174, %s190
      %p192 = scmp.eq.s32.totalorder %s30, 0
      %p193 = por %p191, %p192
      %p194 = scmp.le.s32.totalorder 1, %s24
      %p195 = scmp.lt.s32.totalorder %s24, 3
      %p196 = pnand %p194, %p195
      %p197 = pneg %p196
      // Predicated region
      $region9: #{base_block_forward.4} parent=5 // pred_check
        _
      $region10: #{base_block_forward.4} parent=5 // pred_check_branch
        %199 = sbr.rel (%p196) target = $region12
      $region11: #{base_block_forward.4} parent=5 // pred_region
        %s200 = ssub.s32 %s24, 1
        // Predicated region
        $region13: #{base_block_forward.4} parent=11 // pred_check
          %p201 = pneg %p71
        $region14: #{base_block_forward.4} parent=11 // pred_check_branch
          %203 = sbr.rel (%p201) target = $region16
        $region15: #{base_block_forward.4} parent=11 // pred_region
          %s205 = ssub.s32 16, 16
          %206 = vsyncadd [#allocation7], %s205
          %s208 = sshll.u32 [#allocation6], 4
          %s209 = int_to_ptr.vmem [resolvable:$true] %s208
          %211 = dma.hbm_to_vmem [thread:$0]  %s1, 16, %s209, [#allocation7]
        $region16: #{base_block_forward.4} parent=11 // pred_fallthru
          _
        // Predicated region
        $region17: #{base_block_forward.4} parent=11 // pred_check
          %p212 = pneg %p92
        $region18: #{base_block_forward.4} parent=11 // pred_check_branch
          %214 = sbr.rel (%p212) target = $region20
        $region19: #{base_block_forward.4} parent=11 // pred_region
          %s216 = ssub.s32 16, 16
          %217 = vsyncadd [#allocation7], %s216
          %s219 = sshll.u32 [#allocation8], 4
          %s220 = int_to_ptr.vmem [resolvable:$true] %s219
          %222 = dma.hbm_to_vmem [thread:$0]  %s2, 16, %s220, [#allocation7]
        $region20: #{base_block_forward.4} parent=11 // pred_fallthru
          _
        // Predicated region
        $region21: #{base_block_forward.4} parent=11 // pred_check
          %p223 = pneg %p113
        $region22: #{base_block_forward.4} parent=11 // pred_check_branch
          %225 = sbr.rel (%p223) target = $region24
        $region23: #{base_block_forward.4} parent=11 // pred_region
          %s227 = ssub.s32 9216, 9216
          %228 = vsyncadd [#allocation10], %s227
          %s229 = sshll.u32 [#allocation9], 4
          %s230 = int_to_ptr.vmem [resolvable:$true] %s229
          %235 = dma.hbm_to_vmem [thread:$0]  %s3, 9216, %s230, [#allocation10], 64, 64, 4
        $region24: #{base_block_forward.4} parent=11 // pred_fallthru
          _
        // Predicated region
        $region25: #{base_block_forward.4} parent=11 // pred_check
          %p236 = pneg %p134
        $region26: #{base_block_forward.4} parent=11 // pred_check_branch
          %238 = sbr.rel (%p236) target = $region28
        $region27: #{base_block_forward.4} parent=11 // pred_region
          %s240 = ssub.s32 4608, 4608
          %241 = vsyncadd [#allocation10], %s240
          %s242 = sshll.u32 [#allocation11], 4
          %s243 = int_to_ptr.vmem [resolvable:$true] %s242
          %248 = dma.hbm_to_vmem [thread:$0]  %s4, 4608, %s243, [#allocation10], 128, 128, 8
        $region28: #{base_block_forward.4} parent=11 // pred_fallthru
          _
      $region12: #{base_block_forward.4} parent=5 // pred_fallthru
        _
      %p249 = scmp.lt.s32.totalorder %s24, 2
      // Predicated region
      $region29: #{base_block_forward.4} parent=5 // pred_check
        %p250 = pneg %p249
      $region30: #{base_block_forward.4} parent=5 // pred_check_branch
        %252 = sbr.rel (%p250) target = $region32
      $region31: #{base_block_forward.4} parent=5 // pred_region
        // Predicated region
        $region33: #{base_block_forward.4} parent=31 // pred_check
          %p253 = pneg %p44
        $region34: #{base_block_forward.4} parent=31 // pred_check_branch
          %255 = sbr.rel (%p253) target = $region36
        $region35: #{base_block_forward.4} parent=31 // pred_region
          %s256 = sand.u32 %s34, 1
          %s257 = scalar_lea.sflag [#allocation4], %s256
          %s258 = sand.u32 %s34, 1
          %s259 = smul.addr %s258, 144
          %s260 = scalar_lea.vmem [#allocation3], %s259
          %s262 = ssub.s32 2304, 2304
          %263 = vsyncadd %s257, %s262
          %s264 = smul.addr %s24, 36
          %s265 = smul.addr %s264, 64
          %s266 = scalar_lea.hbm %s0, %s265
          %s267 = sshll.u32 %s260, 4
          %s268 = int_to_ptr.vmem [resolvable:$true] %s267
          %273 = dma.hbm_to_vmem [thread:$0]  %s266, 2304, %s268, %s257, 64, 64, 4
        $region36: #{base_block_forward.4} parent=31 // pred_fallthru
          _
      $region32: #{base_block_forward.4} parent=5 // pred_fallthru
        _
      %p274 = scmp.le.s32.totalorder 1, %s24
      %p275 = scmp.lt.s32.totalorder %s24, 3
      %p276 = pnand %p274, %p275
      %p277 = pneg %p276
      // Predicated region
      $region37: #{base_block_forward.4} parent=5 // pred_check
        _
      $region38: #{base_block_forward.4} parent=5 // pred_check_branch
        %279 = sbr.rel (%p276) target = $region40
      $region39: #{base_block_forward.4} parent=5 // pred_region
        %s280 = ssub.s32 %s24, 1
        %s281 = sand.u32 %s37, 1
        %s282 = scalar_lea.sflag [#allocation4], %s281
        %s283 = sand.u32 %s37, 1
        %s284 = smul.addr %s283, 144
        %s285 = scalar_lea.vmem [#allocation3], %s284
        // Predicated region
        $region41: #{base_block_forward.4} parent=39 // pred_check
          %p286 = pneg %p50
        $region42: #{base_block_forward.4} parent=39 // pred_check_branch
          %288 = sbr.rel (%p286) target = $region44
        $region43: #{base_block_forward.4} parent=39 // pred_region
          %289 = dma.done %s282, 2304
        $region44: #{base_block_forward.4} parent=39 // pred_fallthru
          _
        // Predicated region
        $region45: #{base_block_forward.4} parent=39 // pred_check
          %p290 = pneg %p71
        $region46: #{base_block_forward.4} parent=39 // pred_check_branch
          %292 = sbr.rel (%p290) target = $region48
        $region47: #{base_block_forward.4} parent=39 // pred_region
          %293 = dma.done [#allocation7], 16
        $region48: #{base_block_forward.4} parent=39 // pred_fallthru
          _
        // Predicated region
        $region49: #{base_block_forward.4} parent=39 // pred_check
          %p294 = pneg %p92
        $region50: #{base_block_forward.4} parent=39 // pred_check_branch
          %296 = sbr.rel (%p294) target = $region52
        $region51: #{base_block_forward.4} parent=39 // pred_region
          %297 = dma.done [#allocation7], 16
        $region52: #{base_block_forward.4} parent=39 // pred_fallthru
          _
        // Predicated region
        $region53: #{base_block_forward.4} parent=39 // pred_check
          %p298 = pneg %p113
        $region54: #{base_block_forward.4} parent=39 // pred_check_branch
          %300 = sbr.rel (%p298) target = $region56
        $region55: #{base_block_forward.4} parent=39 // pred_region
          %301 = dma.done [#allocation10], 9216
        $region56: #{base_block_forward.4} parent=39 // pred_fallthru
          _
        // Predicated region
        $region57: #{base_block_forward.4} parent=39 // pred_check
          %p302 = pneg %p134
        $region58: #{base_block_forward.4} parent=39 // pred_check_branch
          %304 = sbr.rel (%p302) target = $region60
        $region59: #{base_block_forward.4} parent=39 // pred_region
          %305 = dma.done [#allocation10], 4608
        $region60: #{base_block_forward.4} parent=39 // pred_fallthru
          _
        %s306 = sand.u32 %s37, 1
        %s307 = scalar_lea.sflag [#allocation4], %s306
        %s308 = sand.u32 %s37, 1
        %s309 = smul.addr %s308, 144
        %s310 = scalar_lea.vmem [#allocation3], %s309
        %p311 = pneg %p50
        %p312 = pneg %p47
        %p313 = pneg %p71
        %p314 = pneg %p68
        %p315 = pneg %p92
        %p316 = pneg %p89
        %p317 = pneg %p113
        %p318 = pneg %p110
        %p319 = pneg %p134
        %p320 = pneg %p131
        %p321 = pneg %p160
        %p322 = pneg %p157
        %s323 = sand.u32 %s147, 1
        %s324 = scalar_lea.sflag [#allocation5], %s323
        %s325 = sand.u32 %s147, 1
        %s326 = smul.addr %s325, 144
        %s327 = scalar_lea.vmem [#allocation12], %s326
        %p328 = pneg %p186
        %p329 = pneg %p183
        %s330 = sand.u32 %s173, 1
        %s331 = scalar_lea.sflag [#allocation14], %s330
        %s332 = sand.u32 %s173, 1
        %s333 = smul.addr %s332, 2
        %s334 = scalar_lea.vmem [#allocation13], %s333
        %v336 = vld [vmem:[#allocation11] sm:$0xff]
        %v337 = vld [vmem:[#allocation11 + $0x8] sm:$0xff]
        %v338 = vld [vmem:[#allocation11 + $0x10] sm:$0xff]
        %v339 = vld [vmem:[#allocation11 + $0x18] sm:$0xff]
        %v340 = vld [vmem:[#allocation11 + $0x20] sm:$0xff]
        %v341 = vld [vmem:[#allocation11 + $0x28] sm:$0xff]
        %v342 = vld [vmem:[#allocation11 + $0x30] sm:$0xff]
        %v343 = vld [vmem:[#allocation11 + $0x38] sm:$0xff]
        %v344 = vld [vmem:[#allocation11 + $0x40] sm:$0xff]
        %v345 = vld [vmem:[#allocation11 + $0x48] sm:$0xff]
        %v346 = vld [vmem:[#allocation11 + $0x50] sm:$0xff]
        %v347 = vld [vmem:[#allocation11 + $0x58] sm:$0xff]
        %v348 = vld [vmem:[#allocation11 + $0x60] sm:$0xff]
        %v349 = vld [vmem:[#allocation11 + $0x68] sm:$0xff]
        %v350 = vld [vmem:[#allocation11 + $0x70] sm:$0xff]
        %v351 = vld [vmem:[#allocation11 + $0x78] sm:$0xff]
        %v352 = vld [vmem:[#allocation11 + $0x80] sm:$0xff]
        %v353 = vld [vmem:[#allocation11 + $0x88] sm:$0xff]
        %v354 = vld [vmem:[#allocation11 + $0x90] sm:$0xff]
        %v355 = vld [vmem:[#allocation11 + $0x98] sm:$0xff]
        %v356 = vld [vmem:[#allocation11 + $0xa0] sm:$0xff]
        %v357 = vld [vmem:[#allocation11 + $0xa8] sm:$0xff]
        %v358 = vld [vmem:[#allocation11 + $0xb0] sm:$0xff]
        %v359 = vld [vmem:[#allocation11 + $0xb8] sm:$0xff]
        %v360 = vld [vmem:[#allocation11 + $0xc0] sm:$0xff]
        %v361 = vld [vmem:[#allocation11 + $0xc8] sm:$0xff]
        %v362 = vld [vmem:[#allocation11 + $0xd0] sm:$0xff]
        %v363 = vld [vmem:[#allocation11 + $0xd8] sm:$0xff]
        %v364 = vld [vmem:[#allocation11 + $0xe0] sm:$0xff]
        %v365 = vld [vmem:[#allocation11 + $0xe8] sm:$0xff]
        %v366 = vld [vmem:[#allocation11 + $0xf0] sm:$0xff]
        %v367 = vld [vmem:[#allocation11 + $0xf8] sm:$0xff]
        %v368 = vld [vmem:[#allocation11 + $0x100] sm:$0xff]
        %v369 = vld [vmem:[#allocation11 + $0x108] sm:$0xff]
        %v370 = vld [vmem:[#allocation11 + $0x110] sm:$0xff]
        %v371 = vld [vmem:[#allocation11 + $0x118] sm:$0xff]
        %372 = vst [vmem:[#allocation2] sm:$0xf] 0
        %373 = vst [vmem:[#allocation2 + $0x4] sm:$0xf] 0
        %374 = vst [vmem:[#allocation2 + $0x8] sm:$0xf] 0
        %375 = vst [vmem:[#allocation2 + $0xc] sm:$0xf] 0
        %376 = vst [vmem:[#allocation2 + $0xa0] sm:$0xf] 0
        %377 = vst [vmem:[#allocation2 + $0xa4] sm:$0xf] 0
        %378 = vst [vmem:[#allocation2 + $0xa8] sm:$0xf] 0
        %379 = vst [vmem:[#allocation2 + $0xac] sm:$0xf] 0
        %vm380 = vcmask 1041408
        %vm381 = vsmask.f32 1280
        %vm382 = vmand %vm380, %vm381
        %v383 = vld [vmem:[#allocation2 + $0xb0] sm:$0x3]
        %v384 = vsel %vm382, 0, %v383
        %385 = vst [vmem:[#allocation2 + $0xb0] sm:$0x3] %v384
        %v386 = vld [vmem:[%s285] sm:$0xf]
        %v387 = vld [vmem:[%s285 + $0x4] sm:$0xf]
        %v388 = vld [vmem:[%s285 + $0x8] sm:$0xf]
        %v389 = vld [vmem:[%s285 + $0xc] sm:$0xf]
        %v390 = vld [vmem:[%s285 + $0x10] sm:$0xf]
        %v391 = vld [vmem:[%s285 + $0x14] sm:$0xf]
        %v392 = vld [vmem:[%s285 + $0x18] sm:$0xf]
        %v393 = vld [vmem:[%s285 + $0x1c] sm:$0xf]
        %v394 = vld [vmem:[%s285 + $0x20] sm:$0xf]
        %v395 = vld [vmem:[%s285 + $0x24] sm:$0xf]
        %v396 = vld [vmem:[%s285 + $0x28] sm:$0xf]
        %v397 = vld [vmem:[%s285 + $0x2c] sm:$0xf]
        %v398 = vld [vmem:[%s285 + $0x30] sm:$0xf]
        %v399 = vld [vmem:[%s285 + $0x34] sm:$0xf]
        %v400 = vld [vmem:[%s285 + $0x38] sm:$0xf]
        %v401 = vld [vmem:[%s285 + $0x3c] sm:$0xf]
        %v402 = vld [vmem:[%s285 + $0x40] sm:$0xf]
        %v403 = vld [vmem:[%s285 + $0x44] sm:$0xf]
        %v404 = vld [vmem:[%s285 + $0x48] sm:$0xf]
        %v405 = vld [vmem:[%s285 + $0x4c] sm:$0xf]
        %v406 = vld [vmem:[%s285 + $0x50] sm:$0xf]
        %v407 = vld [vmem:[%s285 + $0x54] sm:$0xf]
        %v408 = vld [vmem:[%s285 + $0x58] sm:$0xf]
        %v409 = vld [vmem:[%s285 + $0x5c] sm:$0xf]
        %v410 = vld [vmem:[%s285 + $0x60] sm:$0xf]
        %v411 = vld [vmem:[%s285 + $0x64] sm:$0xf]
        %v412 = vld [vmem:[%s285 + $0x68] sm:$0xf]
        %v413 = vld [vmem:[%s285 + $0x6c] sm:$0xf]
        %v414 = vld [vmem:[%s285 + $0x70] sm:$0xf]
        %v415 = vld [vmem:[%s285 + $0x74] sm:$0xf]
        %v416 = vld [vmem:[%s285 + $0x78] sm:$0xf]
        %v417 = vld [vmem:[%s285 + $0x7c] sm:$0xf]
        %v418 = vld [vmem:[%s285 + $0x80] sm:$0xf]
        %v419 = vld [vmem:[%s285 + $0x84] sm:$0xf]
        %v420 = vld [vmem:[%s285 + $0x88] sm:$0xf]
        %v421 = vld [vmem:[%s285 + $0x8c] sm:$0xf]
        %v422 = vunpack.c.l.bf16 %v386
        %v423 = vunpack.c.l.bf16 %v387
        %v424 = vunpack.c.l.bf16 %v388
        %v425 = vunpack.c.l.bf16 %v389
        %v426 = vunpack.c.l.bf16 %v390
        %v427 = vunpack.c.l.bf16 %v391
        %v428 = vunpack.c.l.bf16 %v392
        %v429 = vunpack.c.l.bf16 %v393
        %v430 = vunpack.c.l.bf16 %v394
        %v431 = vunpack.c.l.bf16 %v395
        %v432 = vunpack.c.l.bf16 %v396
        %v433 = vunpack.c.l.bf16 %v397
        %v434 = vunpack.c.l.bf16 %v398
        %v435 = vunpack.c.l.bf16 %v399
        %v436 = vunpack.c.l.bf16 %v400
        %v437 = vunpack.c.l.bf16 %v401
        %v438 = vunpack.c.l.bf16 %v402
        %v439 = vunpack.c.l.bf16 %v403
        %v440 = vunpack.c.l.bf16 %v404
        %v441 = vunpack.c.l.bf16 %v405
        %v442 = vunpack.c.l.bf16 %v406
        %v443 = vunpack.c.l.bf16 %v407
        %v444 = vunpack.c.l.bf16 %v408
        %v445 = vunpack.c.l.bf16 %v409
        %v446 = vunpack.c.l.bf16 %v410
        %v447 = vunpack.c.l.bf16 %v411
        %v448 = vunpack.c.l.bf16 %v412
        %v449 = vunpack.c.l.bf16 %v413
        %v450 = vunpack.c.l.bf16 %v414
        %v451 = vunpack.c.l.bf16 %v415
        %v452 = vunpack.c.l.bf16 %v416
        %v453 = vunpack.c.l.bf16 %v417
        %v454 = vunpack.c.l.bf16 %v418
        %v455 = vunpack.c.l.bf16 %v419
        %v456 = vunpack.c.l.bf16 %v420
        %v457 = vunpack.c.l.bf16 %v421
        %v458 = vld [vmem:[#allocation6] sm:$0x1]
        %v460 = vlaneseq
        %v461 = vshrl.u32 %v460, 7
        %v462 = vsub.s32 0, %v461
        %v463 = vrot.slane %v458, %v462
        %v465 = vmul.f32 %v422, %v463
        %v466 = vmul.f32 %v423, %v463
        %v467 = vmul.f32 %v424, %v463
        %v468 = vmul.f32 %v425, %v463
        %v469 = vmul.f32 %v426, %v463
        %v470 = vmul.f32 %v427, %v463
        %v471 = vmul.f32 %v428, %v463
        %v472 = vmul.f32 %v429, %v463
        %v473 = vmul.f32 %v430, %v463
        %v474 = vmul.f32 %v431, %v463
        %v475 = vmul.f32 %v432, %v463
        %v476 = vmul.f32 %v433, %v463
        %v477 = vmul.f32 %v434, %v463
        %v478 = vmul.f32 %v435, %v463
        %v479 = vmul.f32 %v436, %v463
        %v480 = vmul.f32 %v437, %v463
        %v481 = vmul.f32 %v438, %v463
        %v482 = vmul.f32 %v439, %v463
        %v483 = vmul.f32 %v440, %v463
        %v484 = vmul.f32 %v441, %v463
        %v485 = vmul.f32 %v442, %v463
        %v486 = vmul.f32 %v443, %v463
        %v487 = vmul.f32 %v444, %v463
        %v488 = vmul.f32 %v445, %v463
        %v489 = vmul.f32 %v446, %v463
        %v490 = vmul.f32 %v447, %v463
        %v491 = vmul.f32 %v448, %v463
        %v492 = vmul.f32 %v449, %v463
        %v493 = vmul.f32 %v450, %v463
        %v494 = vmul.f32 %v451, %v463
        %v495 = vmul.f32 %v452, %v463
        %v496 = vmul.f32 %v453, %v463
        %v497 = vmul.f32 %v454, %v463
        %v498 = vmul.f32 %v455, %v463
        %v499 = vmul.f32 %v456, %v463
        %v500 = vmul.f32 %v457, %v463
        %v501 = vld [vmem:[#allocation8] sm:$0x1]
        %v503 = vlaneseq
        %v504 = vshrl.u32 %v503, 7
        %v505 = vsub.s32 0, %v504
        %v506 = vrot.slane %v501, %v505
        %v508 = vadd.f32 %v465, %v506
        %v509 = vadd.f32 %v466, %v506
        %v510 = vadd.f32 %v467, %v506
        %v511 = vadd.f32 %v468, %v506
        %v512 = vadd.f32 %v469, %v506
        %v513 = vadd.f32 %v470, %v506
        %v514 = vadd.f32 %v471, %v506
        %v515 = vadd.f32 %v472, %v506
        %v516 = vadd.f32 %v473, %v506
        %v517 = vadd.f32 %v474, %v506
        %v518 = vadd.f32 %v475, %v506
        %v519 = vadd.f32 %v476, %v506
        %v520 = vadd.f32 %v477, %v506
        %v521 = vadd.f32 %v478, %v506
        %v522 = vadd.f32 %v479, %v506
        %v523 = vadd.f32 %v480, %v506
        %v524 = vadd.f32 %v481, %v506
        %v525 = vadd.f32 %v482, %v506
        %v526 = vadd.f32 %v483, %v506
        %v527 = vadd.f32 %v484, %v506
        %v528 = vadd.f32 %v485, %v506
        %v529 = vadd.f32 %v486, %v506
        %v530 = vadd.f32 %v487, %v506
        %v531 = vadd.f32 %v488, %v506
        %v532 = vadd.f32 %v489, %v506
        %v533 = vadd.f32 %v490, %v506
        %v534 = vadd.f32 %v491, %v506
        %v535 = vadd.f32 %v492, %v506
        %v536 = vadd.f32 %v493, %v506
        %v537 = vadd.f32 %v494, %v506
        %v538 = vadd.f32 %v495, %v506
        %v539 = vadd.f32 %v496, %v506
        %v540 = vadd.f32 %v497, %v506
        %v541 = vadd.f32 %v498, %v506
        %v542 = vadd.f32 %v499, %v506
        %v543 = vadd.f32 %v500, %v506
        %v544 = vmax.f32 %v508, 0.0
        %v545 = vmax.f32 %v509, 0.0
        %v546 = vmax.f32 %v510, 0.0
        %v547 = vmax.f32 %v511, 0.0
        %v548 = vmax.f32 %v512, 0.0
        %v549 = vmax.f32 %v513, 0.0
        %v550 = vmax.f32 %v514, 0.0
        %v551 = vmax.f32 %v515, 0.0
        %v552 = vmax.f32 %v516, 0.0
        %v553 = vmax.f32 %v517, 0.0
        %v554 = vmax.f32 %v518, 0.0
        %v555 = vmax.f32 %v519, 0.0
        %v556 = vmax.f32 %v520, 0.0
        %v557 = vmax.f32 %v521, 0.0
        %v558 = vmax.f32 %v522, 0.0
        %v559 = vmax.f32 %v523, 0.0
        %v560 = vmax.f32 %v524, 0.0
        %v561 = vmax.f32 %v525, 0.0
        %v562 = vmax.f32 %v526, 0.0
        %v563 = vmax.f32 %v527, 0.0
        %v564 = vmax.f32 %v528, 0.0
        %v565 = vmax.f32 %v529, 0.0
        %v566 = vmax.f32 %v530, 0.0
        %v567 = vmax.f32 %v531, 0.0
        %v568 = vmax.f32 %v532, 0.0
        %v569 = vmax.f32 %v533, 0.0
        %v570 = vmax.f32 %v534, 0.0
        %v571 = vmax.f32 %v535, 0.0
        %v572 = vmax.f32 %v536, 0.0
        %v573 = vmax.f32 %v537, 0.0
        %v574 = vmax.f32 %v538, 0.0
        %v575 = vmax.f32 %v539, 0.0
        %v576 = vmax.f32 %v540, 0.0
        %v577 = vmax.f32 %v541, 0.0
        %v578 = vmax.f32 %v542, 0.0
        %v579 = vmax.f32 %v543, 0.0
        %581 = vset.pattern.permute.xlu0 0
        %582 = vperm.xlu0 %581, %v336
        %v583 = vpop.permute.xlu0 %582
        %586 = vset.pattern.permute.xlu0 0
        %587 = vperm.xlu0 %586, %v337
        %v588 = vpop.permute.xlu0 %587
        %591 = vset.pattern.permute.xlu0 0
        %592 = vperm.xlu0 %591, %v338
        %v593 = vpop.permute.xlu0 %592
        %596 = vset.pattern.permute.xlu0 0
        %597 = vperm.xlu0 %596, %v339
        %v598 = vpop.permute.xlu0 %597
        %601 = vset.pattern.permute.xlu0 0
        %602 = vperm.xlu0 %601, %v340
        %v603 = vpop.permute.xlu0 %602
        %606 = vset.pattern.permute.xlu0 0
        %607 = vperm.xlu0 %606, %v341
        %v608 = vpop.permute.xlu0 %607
        %611 = vset.pattern.permute.xlu0 0
        %612 = vperm.xlu0 %611, %v342
        %v613 = vpop.permute.xlu0 %612
        %616 = vset.pattern.permute.xlu0 0
        %617 = vperm.xlu0 %616, %v343
        %v618 = vpop.permute.xlu0 %617
        %621 = vset.pattern.permute.xlu0 0
        %622 = vperm.xlu0 %621, %v344
        %v623 = vpop.permute.xlu0 %622
        %626 = vset.pattern.permute.xlu0 0
        %627 = vperm.xlu0 %626, %v345
        %v628 = vpop.permute.xlu0 %627
        %631 = vset.pattern.permute.xlu0 0
        %632 = vperm.xlu0 %631, %v346
        %v633 = vpop.permute.xlu0 %632
        %636 = vset.pattern.permute.xlu0 0
        %637 = vperm.xlu0 %636, %v347
        %v638 = vpop.permute.xlu0 %637
        %641 = vset.pattern.permute.xlu0 0
        %642 = vperm.xlu0 %641, %v348
        %v643 = vpop.permute.xlu0 %642
        %646 = vset.pattern.permute.xlu0 0
        %647 = vperm.xlu0 %646, %v349
        %v648 = vpop.permute.xlu0 %647
        %651 = vset.pattern.permute.xlu0 0
        %652 = vperm.xlu0 %651, %v350
        %v653 = vpop.permute.xlu0 %652
        %656 = vset.pattern.permute.xlu0 0
        %657 = vperm.xlu0 %656, %v351
        %v658 = vpop.permute.xlu0 %657
        %661 = vset.pattern.permute.xlu0 0
        %662 = vperm.xlu0 %661, %v352
        %v663 = vpop.permute.xlu0 %662
        %666 = vset.pattern.permute.xlu0 0
        %667 = vperm.xlu0 %666, %v353
        %v668 = vpop.permute.xlu0 %667
        %671 = vset.pattern.permute.xlu0 0
        %672 = vperm.xlu0 %671, %v354
        %v673 = vpop.permute.xlu0 %672
        %676 = vset.pattern.permute.xlu0 0
        %677 = vperm.xlu0 %676, %v355
        %v678 = vpop.permute.xlu0 %677
        %681 = vset.pattern.permute.xlu0 0
        %682 = vperm.xlu0 %681, %v356
        %v683 = vpop.permute.xlu0 %682
        %686 = vset.pattern.permute.xlu0 0
        %687 = vperm.xlu0 %686, %v357
        %v688 = vpop.permute.xlu0 %687
        %691 = vset.pattern.permute.xlu0 0
        %692 = vperm.xlu0 %691, %v358
        %v693 = vpop.permute.xlu0 %692
        %696 = vset.pattern.permute.xlu0 0
        %697 = vperm.xlu0 %696, %v359
        %v698 = vpop.permute.xlu0 %697
        %701 = vset.pattern.permute.xlu0 0
        %702 = vperm.xlu0 %701, %v360
        %v703 = vpop.permute.xlu0 %702
        %706 = vset.pattern.permute.xlu0 0
        %707 = vperm.xlu0 %706, %v361
        %v708 = vpop.permute.xlu0 %707
        %711 = vset.pattern.permute.xlu0 0
        %712 = vperm.xlu0 %711, %v362
        %v713 = vpop.permute.xlu0 %712
        %716 = vset.pattern.permute.xlu0 0
        %717 = vperm.xlu0 %716, %v363
        %v718 = vpop.permute.xlu0 %717
        %721 = vset.pattern.permute.xlu0 0
        %722 = vperm.xlu0 %721, %v364
        %v723 = vpop.permute.xlu0 %722
        %726 = vset.pattern.permute.xlu0 0
        %727 = vperm.xlu0 %726, %v365
        %v728 = vpop.permute.xlu0 %727
        %731 = vset.pattern.permute.xlu0 0
        %732 = vperm.xlu0 %731, %v366
        %v733 = vpop.permute.xlu0 %732
        %736 = vset.pattern.permute.xlu0 0
        %737 = vperm.xlu0 %736, %v367
        %v738 = vpop.permute.xlu0 %737
        %741 = vset.pattern.permute.xlu0 0
        %742 = vperm.xlu0 %741, %v368
        %v743 = vpop.permute.xlu0 %742
        %746 = vset.pattern.permute.xlu0 0
        %747 = vperm.xlu0 %746, %v369
        %v748 = vpop.permute.xlu0 %747
        %751 = vset.pattern.permute.xlu0 0
        %752 = vperm.xlu0 %751, %v370
        %v753 = vpop.permute.xlu0 %752
        %756 = vset.pattern.permute.xlu0 0
        %757 = vperm.xlu0 %756, %v371
        %v758 = vpop.permute.xlu0 %757
        %v760 = vmul.f32 %v544, %v583
        %v761 = vmul.f32 %v545, %v588
        %v762 = vmul.f32 %v546, %v593
        %v763 = vmul.f32 %v547, %v598
        %v764 = vmul.f32 %v548, %v603
        %v765 = vmul.f32 %v549, %v608
        %v766 = vmul.f32 %v550, %v613
        %v767 = vmul.f32 %v551, %v618
        %v768 = vmul.f32 %v552, %v623
        %v769 = vmul.f32 %v553, %v628
        %v770 = vmul.f32 %v554, %v633
        %v771 = vmul.f32 %v555, %v638
        %v772 = vmul.f32 %v556, %v643
        %v773 = vmul.f32 %v557, %v648
        %v774 = vmul.f32 %v558, %v653
        %v775 = vmul.f32 %v559, %v658
        %v776 = vmul.f32 %v560, %v663
        %v777 = vmul.f32 %v561, %v668
        %v778 = vmul.f32 %v562, %v673
        %v779 = vmul.f32 %v563, %v678
        %v780 = vmul.f32 %v564, %v683
        %v781 = vmul.f32 %v565, %v688
        %v782 = vmul.f32 %v566, %v693
        %v783 = vmul.f32 %v567, %v698
        %v784 = vmul.f32 %v568, %v703
        %v785 = vmul.f32 %v569, %v708
        %v786 = vmul.f32 %v570, %v713
        %v787 = vmul.f32 %v571, %v718
        %v788 = vmul.f32 %v572, %v723
        %v789 = vmul.f32 %v573, %v728
        %v790 = vmul.f32 %v574, %v733
        %v791 = vmul.f32 %v575, %v738
        %v792 = vmul.f32 %v576, %v743
        %v793 = vmul.f32 %v577, %v748
        %v794 = vmul.f32 %v578, %v753
        %v795 = vmul.f32 %v579, %v758
        %v796 = vpack.c.bf16 %v761, %v760
        %v797 = vpack.c.bf16 %v763, %v762
        %v798 = vpack.c.bf16 %v765, %v764
        %v799 = vpack.c.bf16 %v767, %v766
        %v800 = vpack.c.bf16 %v769, %v768
        %v801 = vpack.c.bf16 %v771, %v770
        %v802 = vpack.c.bf16 %v773, %v772
        %v803 = vpack.c.bf16 %v775, %v774
        %v804 = vpack.c.bf16 %v777, %v776
        %v805 = vpack.c.bf16 %v779, %v778
        %v806 = vpack.c.bf16 %v781, %v780
        %v807 = vpack.c.bf16 %v783, %v782
        %v808 = vpack.c.bf16 %v785, %v784
        %v809 = vpack.c.bf16 %v787, %v786
        %v810 = vpack.c.bf16 %v789, %v788
        %v811 = vpack.c.bf16 %v791, %v790
        %v812 = vpack.c.bf16 %v793, %v792
        %v813 = vpack.c.bf16 %v795, %v794
        %v832 = vunpack.c.l.b16 %v796
        %v833 = vunpack.c.h.b16 %v796
        %v834 = vunpack.c.l.b16 %v797
        %v835 = vunpack.c.h.b16 %v797
        %v836 = vunpack.c.l.b16 %v798
        %v837 = vunpack.c.h.b16 %v798
        %v838 = vunpack.c.l.b16 %v799
        %v839 = vunpack.c.h.b16 %v799
        %v840 = vunpack.c.l.b16 %v800
        %v841 = vunpack.c.h.b16 %v800
        %v842 = vunpack.c.l.b16 %v801
        %v843 = vunpack.c.h.b16 %v801
        %v844 = vunpack.c.l.b16 %v802
        %v845 = vunpack.c.h.b16 %v802
        %v846 = vunpack.c.l.b16 %v803
        %v847 = vunpack.c.h.b16 %v803
        %v848 = vunpack.c.l.b16 %v804
        %v849 = vunpack.c.h.b16 %v804
        %v850 = vunpack.c.l.b16 %v805
        %v851 = vunpack.c.h.b16 %v805
        %v852 = vunpack.c.l.b16 %v806
        %v853 = vunpack.c.h.b16 %v806
        %v854 = vunpack.c.l.b16 %v807
        %v855 = vunpack.c.h.b16 %v807
        %v856 = vunpack.c.l.b16 %v808
        %v857 = vunpack.c.h.b16 %v808
        %v858 = vunpack.c.l.b16 %v809
        %v859 = vunpack.c.h.b16 %v809
        %v860 = vunpack.c.l.b16 %v810
        %v861 = vunpack.c.h.b16 %v810
        %v862 = vunpack.c.l.b16 %v811
        %v863 = vunpack.c.h.b16 %v811
        %v864 = vunpack.c.l.b16 %v812
        %v865 = vunpack.c.h.b16 %v812
        %v866 = vunpack.c.l.b16 %v813
        %v867 = vunpack.c.h.b16 %v813
        %v868 = vpack.c.b16 %v832, %v832
        %v869 = vpack.c.b16 %v833, %v833
        %v870 = vpack.c.b16 %v834, %v834
        %v871 = vpack.c.b16 %v835, %v835
        %v872 = vpack.c.b16 %v836, %v836
        %v873 = vpack.c.b16 %v837, %v837
        %v874 = vpack.c.b16 %v838, %v838
        %v875 = vpack.c.b16 %v839, %v839
        %v876 = vpack.c.b16 %v840, %v840
        %v877 = vpack.c.b16 %v841, %v841
        %v878 = vpack.c.b16 %v842, %v842
        %v879 = vpack.c.b16 %v843, %v843
        %v880 = vpack.c.b16 %v844, %v844
        %v881 = vpack.c.b16 %v845, %v845
        %v882 = vpack.c.b16 %v846, %v846
        %v883 = vpack.c.b16 %v847, %v847
        %v884 = vpack.c.b16 %v848, %v848
        %v885 = vpack.c.b16 %v849, %v849
        %v886 = vpack.c.b16 %v850, %v850
        %v887 = vpack.c.b16 %v851, %v851
        %v888 = vpack.c.b16 %v852, %v852
        %v889 = vpack.c.b16 %v853, %v853
        %v890 = vpack.c.b16 %v854, %v854
        %v891 = vpack.c.b16 %v855, %v855
        %v892 = vpack.c.b16 %v856, %v856
        %v893 = vpack.c.b16 %v857, %v857
        %v894 = vpack.c.b16 %v858, %v858
        %v895 = vpack.c.b16 %v859, %v859
        %v896 = vpack.c.b16 %v860, %v860
        %v897 = vpack.c.b16 %v861, %v861
        %v898 = vpack.c.b16 %v862, %v862
        %v899 = vpack.c.b16 %v863, %v863
        %v900 = vpack.c.b16 %v864, %v864
        %v901 = vpack.c.b16 %v865, %v865
        %v902 = vpack.c.b16 %v866, %v866
        %v903 = vpack.c.b16 %v867, %v867
        %940 = vst [vmem:[#allocation2 + $0x10] sm:$0xf] %v868
        %941 = vst [vmem:[#allocation2 + $0x14] sm:$0xf] %v869
        %942 = vst [vmem:[#allocation2 + $0x18] sm:$0xf] %v870
        %943 = vst [vmem:[#allocation2 + $0x1c] sm:$0xf] %v871
        %944 = vst [vmem:[#allocation2 + $0x20] sm:$0xf] %v872
        %945 = vst [vmem:[#allocation2 + $0x24] sm:$0xf] %v873
        %946 = vst [vmem:[#allocation2 + $0x28] sm:$0xf] %v874
        %947 = vst [vmem:[#allocation2 + $0x2c] sm:$0xf] %v875
        %948 = vst [vmem:[#allocation2 + $0x30] sm:$0xf] %v876
        %949 = vst [vmem:[#allocation2 + $0x34] sm:$0xf] %v877
        %950 = vst [vmem:[#allocation2 + $0x38] sm:$0xf] %v878
        %951 = vst [vmem:[#allocation2 + $0x3c] sm:$0xf] %v879
        %952 = vst [vmem:[#allocation2 + $0x40] sm:$0xf] %v880
        %953 = vst [vmem:[#allocation2 + $0x44] sm:$0xf] %v881
        %954 = vst [vmem:[#allocation2 + $0x48] sm:$0xf] %v882
        %955 = vst [vmem:[#allocation2 + $0x4c] sm:$0xf] %v883
        %956 = vst [vmem:[#allocation2 + $0x50] sm:$0xf] %v884
        %957 = vst [vmem:[#allocation2 + $0x54] sm:$0xf] %v885
        %958 = vst [vmem:[#allocation2 + $0x58] sm:$0xf] %v886
        %959 = vst [vmem:[#allocation2 + $0x5c] sm:$0xf] %v887
        %960 = vst [vmem:[#allocation2 + $0x60] sm:$0xf] %v888
        %961 = vst [vmem:[#allocation2 + $0x64] sm:$0xf] %v889
        %962 = vst [vmem:[#allocation2 + $0x68] sm:$0xf] %v890
        %963 = vst [vmem:[#allocation2 + $0x6c] sm:$0xf] %v891
        %964 = vst [vmem:[#allocation2 + $0x70] sm:$0xf] %v892
        %965 = vst [vmem:[#allocation2 + $0x74] sm:$0xf] %v893
        %966 = vst [vmem:[#allocation2 + $0x78] sm:$0xf] %v894
        %967 = vst [vmem:[#allocation2 + $0x7c] sm:$0xf] %v895
        %968 = vst [vmem:[#allocation2 + $0x80] sm:$0xf] %v896
        %969 = vst [vmem:[#allocation2 + $0x84] sm:$0xf] %v897
        %970 = vst [vmem:[#allocation2 + $0x88] sm:$0xf] %v898
        %971 = vst [vmem:[#allocation2 + $0x8c] sm:$0xf] %v899
        %972 = vst [vmem:[#allocation2 + $0x90] sm:$0xf] %v900
        %973 = vst [vmem:[#allocation2 + $0x94] sm:$0xf] %v901
        %974 = vst [vmem:[#allocation2 + $0x98] sm:$0xf] %v902
        %975 = vst [vmem:[#allocation2 + $0x9c] sm:$0xf] %v903
        %v976 = vld [vmem:[#allocation2 + $0x4] sm:$0xc]
        %v977 = vld [vmem:[#allocation2 + $0x8] sm:$0xf]
        %v978 = vld [vmem:[#allocation2 + $0xc] sm:$0xf]
        %v979 = vld [vmem:[#allocation2 + $0x10] sm:$0xf]
        %v980 = vld [vmem:[#allocation2 + $0x14] sm:$0xf]
        %v981 = vld [vmem:[#allocation2 + $0x18] sm:$0xf]
        %v982 = vld [vmem:[#allocation2 + $0x1c] sm:$0xf]
        %v983 = vld [vmem:[#allocation2 + $0x20] sm:$0xf]
        %v984 = vld [vmem:[#allocation2 + $0x24] sm:$0xf]
        %v985 = vld [vmem:[#allocation2 + $0x28] sm:$0xf]
        %v986 = vld [vmem:[#allocation2 + $0x2c] sm:$0xf]
        %v987 = vld [vmem:[#allocation2 + $0x30] sm:$0xf]
        %v988 = vld [vmem:[#allocation2 + $0x34] sm:$0xf]
        %v989 = vld [vmem:[#allocation2 + $0x38] sm:$0xf]
        %v990 = vld [vmem:[#allocation2 + $0x3c] sm:$0xf]
        %v991 = vld [vmem:[#allocation2 + $0x40] sm:$0xf]
        %v992 = vld [vmem:[#allocation2 + $0x44] sm:$0xf]
        %v993 = vld [vmem:[#allocation2 + $0x48] sm:$0xf]
        %v994 = vld [vmem:[#allocation2 + $0x4c] sm:$0xf]
        %v995 = vld [vmem:[#allocation2 + $0x50] sm:$0xf]
        %v996 = vld [vmem:[#allocation2 + $0x54] sm:$0xf]
        %v997 = vld [vmem:[#allocation2 + $0x58] sm:$0xf]
        %v998 = vld [vmem:[#allocation2 + $0x5c] sm:$0xf]
        %v999 = vld [vmem:[#allocation2 + $0x60] sm:$0xf]
        %v1000 = vld [vmem:[#allocation2 + $0x64] sm:$0xf]
        %v1001 = vld [vmem:[#allocation2 + $0x68] sm:$0xf]
        %v1002 = vld [vmem:[#allocation2 + $0x6c] sm:$0xf]
        %v1003 = vld [vmem:[#allocation2 + $0x70] sm:$0xf]
        %v1004 = vld [vmem:[#allocation2 + $0x74] sm:$0xf]
        %v1005 = vld [vmem:[#allocation2 + $0x78] sm:$0xf]
        %v1006 = vld [vmem:[#allocation2 + $0x7c] sm:$0xf]
        %v1007 = vld [vmem:[#allocation2 + $0x80] sm:$0xf]
        %v1008 = vld [vmem:[#allocation2 + $0x84] sm:$0xf]
        %v1009 = vld [vmem:[#allocation2 + $0x88] sm:$0xf]
        %v1010 = vld [vmem:[#allocation2 + $0x8c] sm:$0xf]
        %v1011 = vld [vmem:[#allocation2 + $0x90] sm:$0xf]
        %v1012 = vld [vmem:[#allocation2 + $0x94] sm:$0x7]
        %v1013 = vld [vmem:[#allocation2 + $0x4] sm:$0x8]
        %v1051 = vunpack.c.l.b16 %v976
        %v1052 = vunpack.c.l.b16 %v977
        %v1053 = vunpack.c.l.b16 %v978
        %v1054 = vunpack.c.l.b16 %v979
        %v1055 = vunpack.c.l.b16 %v980
        %v1056 = vunpack.c.l.b16 %v981
        %v1057 = vunpack.c.l.b16 %v982
        %v1058 = vunpack.c.l.b16 %v983
        %v1059 = vunpack.c.l.b16 %v984
        %v1060 = vunpack.c.l.b16 %v985
        %v1061 = vunpack.c.l.b16 %v986
        %v1062 = vunpack.c.l.b16 %v987
        %v1063 = vunpack.c.l.b16 %v988
        %v1064 = vunpack.c.l.b16 %v989
        %v1065 = vunpack.c.l.b16 %v990
        %v1066 = vunpack.c.l.b16 %v991
        %v1067 = vunpack.c.l.b16 %v992
        %v1068 = vunpack.c.l.b16 %v993
        %v1069 = vunpack.c.l.b16 %v994
        %v1070 = vunpack.c.l.b16 %v995
        %v1071 = vunpack.c.l.b16 %v996
        %v1072 = vunpack.c.l.b16 %v997
        %v1073 = vunpack.c.l.b16 %v998
        %v1074 = vunpack.c.l.b16 %v999
        %v1075 = vunpack.c.l.b16 %v1000
        %v1076 = vunpack.c.l.b16 %v1001
        %v1077 = vunpack.c.l.b16 %v1002
        %v1078 = vunpack.c.l.b16 %v1003
        %v1079 = vunpack.c.l.b16 %v1004
        %v1080 = vunpack.c.l.b16 %v1005
        %v1081 = vunpack.c.l.b16 %v1006
        %v1082 = vunpack.c.l.b16 %v1007
        %v1083 = vunpack.c.l.b16 %v1008
        %v1084 = vunpack.c.l.b16 %v1009
        %v1085 = vunpack.c.l.b16 %v1010
        %v1086 = vunpack.c.l.b16 %v1011
        %v1087 = vunpack.c.l.b16 %v1012
        %v1088 = vpack.c.b16 %v1052, %v1051
        %v1089 = vpack.c.b16 %v1054, %v1053
        %v1090 = vpack.c.b16 %v1056, %v1055
        %v1091 = vpack.c.b16 %v1058, %v1057
        %v1092 = vpack.c.b16 %v1060, %v1059
        %v1093 = vpack.c.b16 %v1062, %v1061
        %v1094 = vpack.c.b16 %v1064, %v1063
        %v1095 = vpack.c.b16 %v1066, %v1065
        %v1096 = vpack.c.b16 %v1068, %v1067
        %v1097 = vpack.c.b16 %v1070, %v1069
        %v1098 = vpack.c.b16 %v1072, %v1071
        %v1099 = vpack.c.b16 %v1074, %v1073
        %v1100 = vpack.c.b16 %v1076, %v1075
        %v1101 = vpack.c.b16 %v1078, %v1077
        %v1102 = vpack.c.b16 %v1080, %v1079
        %v1103 = vpack.c.b16 %v1082, %v1081
        %v1104 = vpack.c.b16 %v1084, %v1083
        %v1105 = vpack.c.b16 %v1086, %v1085
        %v1106 = vpack.c.b16 %v1087, %v1087
        %v1108 = vunpack.c.l.b16 %v1013
        %v1109 = vpack.c.b16 %v1052, %v1108
        %vm1110 = vsmask.f32 7424
        %v1112 = vshrl.u32 %v1109, 16
        %v1114 = vshll.u32 %v1109, 16
        %v1116 = vrot.slane %v1114, 1
        %v1117 = vor.u32 %v1112, %v1116
        %v1119 = vshll.u32 %v1089, 16
        %v1121 = vrot.slane %v1119, 1
        %v1122 = vsel %vm1110, %v1117, %v1121
        %v1123 = vshrl.u32 %v1089, 16
        %v1125 = vor.u32 %v1123, %v1121
        %v1127 = vshll.u32 %v1090, 16
        %v1129 = vrot.slane %v1127, 1
        %v1130 = vsel %vm1110, %v1125, %v1129
        %v1131 = vshrl.u32 %v1090, 16
        %v1133 = vor.u32 %v1131, %v1129
        %v1135 = vshll.u32 %v1091, 16
        %v1137 = vrot.slane %v1135, 1
        %v1138 = vsel %vm1110, %v1133, %v1137
        %v1139 = vshrl.u32 %v1091, 16
        %v1141 = vor.u32 %v1139, %v1137
        %v1143 = vshll.u32 %v1092, 16
        %v1145 = vrot.slane %v1143, 1
        %v1146 = vsel %vm1110, %v1141, %v1145
        %v1147 = vshrl.u32 %v1092, 16
        %v1149 = vor.u32 %v1147, %v1145
        %v1151 = vshll.u32 %v1093, 16
        %v1153 = vrot.slane %v1151, 1
        %v1154 = vsel %vm1110, %v1149, %v1153
        %v1155 = vshrl.u32 %v1093, 16
        %v1157 = vor.u32 %v1155, %v1153
        %v1159 = vshll.u32 %v1094, 16
        %v1161 = vrot.slane %v1159, 1
        %v1162 = vsel %vm1110, %v1157, %v1161
        %v1163 = vshrl.u32 %v1094, 16
        %v1165 = vor.u32 %v1163, %v1161
        %v1167 = vshll.u32 %v1095, 16
        %v1169 = vrot.slane %v1167, 1
        %v1170 = vsel %vm1110, %v1165, %v1169
        %v1171 = vshrl.u32 %v1095, 16
        %v1173 = vor.u32 %v1171, %v1169
        %v1175 = vshll.u32 %v1096, 16
        %v1177 = vrot.slane %v1175, 1
        %v1178 = vsel %vm1110, %v1173, %v1177
        %v1179 = vshrl.u32 %v1096, 16
        %v1181 = vor.u32 %v1179, %v1177
        %v1183 = vshll.u32 %v1097, 16
        %v1185 = vrot.slane %v1183, 1
        %v1186 = vsel %vm1110, %v1181, %v1185
        %v1187 = vshrl.u32 %v1097, 16
        %v1189 = vor.u32 %v1187, %v1185
        %v1191 = vshll.u32 %v1098, 16
        %v1193 = vrot.slane %v1191, 1
        %v1194 = vsel %vm1110, %v1189, %v1193
        %v1195 = vshrl.u32 %v1098, 16
        %v1197 = vor.u32 %v1195, %v1193
        %v1199 = vshll.u32 %v1099, 16
        %v1201 = vrot.slane %v1199, 1
        %v1202 = vsel %vm1110, %v1197, %v1201
        %v1203 = vshrl.u32 %v1099, 16
        %v1205 = vor.u32 %v1203, %v1201
        %v1207 = vshll.u32 %v1100, 16
        %v1209 = vrot.slane %v1207, 1
        %v1210 = vsel %vm1110, %v1205, %v1209
        %v1211 = vshrl.u32 %v1100, 16
        %v1213 = vor.u32 %v1211, %v1209
        %v1215 = vshll.u32 %v1101, 16
        %v1217 = vrot.slane %v1215, 1
        %v1218 = vsel %vm1110, %v1213, %v1217
        %v1219 = vshrl.u32 %v1101, 16
        %v1221 = vor.u32 %v1219, %v1217
        %v1223 = vshll.u32 %v1102, 16
        %v1225 = vrot.slane %v1223, 1
        %v1226 = vsel %vm1110, %v1221, %v1225
        %v1227 = vshrl.u32 %v1102, 16
        %v1229 = vor.u32 %v1227, %v1225
        %v1231 = vshll.u32 %v1103, 16
        %v1233 = vrot.slane %v1231, 1
        %v1234 = vsel %vm1110, %v1229, %v1233
        %v1235 = vshrl.u32 %v1103, 16
        %v1237 = vor.u32 %v1235, %v1233
        %v1239 = vshll.u32 %v1104, 16
        %v1241 = vrot.slane %v1239, 1
        %v1242 = vsel %vm1110, %v1237, %v1241
        %v1243 = vshrl.u32 %v1104, 16
        %v1245 = vor.u32 %v1243, %v1241
        %v1247 = vshll.u32 %v1105, 16
        %v1249 = vrot.slane %v1247, 1
        %v1250 = vsel %vm1110, %v1245, %v1249
        %v1251 = vshrl.u32 %v1105, 16
        %v1253 = vor.u32 %v1251, %v1249
        %v1255 = vshll.u32 %v1106, 16
        %v1257 = vrot.slane %v1255, 1
        %v1258 = vsel %vm1110, %v1253, %v1257
        %v1259 = vshrl.u32 %v1106, 16
        %v1261 = vor.u32 %v1259, %v1257
        %v1262 = vld [vmem:[#allocation9] sm:$0xf]
        %v1263 = vld [vmem:[#allocation9 + $0x4] sm:$0xf]
        %v1264 = vld [vmem:[#allocation9 + $0x8] sm:$0xf]
        %v1265 = vld [vmem:[#allocation9 + $0xc] sm:$0xf]
        %v1266 = vld [vmem:[#allocation9 + $0x10] sm:$0xf]
        %v1267 = vld [vmem:[#allocation9 + $0x14] sm:$0xf]
        %v1268 = vld [vmem:[#allocation9 + $0x18] sm:$0xf]
        %v1269 = vld [vmem:[#allocation9 + $0x1c] sm:$0xf]
        %v1270 = vld [vmem:[#allocation9 + $0x20] sm:$0xf]
        %v1271 = vld [vmem:[#allocation9 + $0x24] sm:$0xf]
        %v1272 = vld [vmem:[#allocation9 + $0x28] sm:$0xf]
        %v1273 = vld [vmem:[#allocation9 + $0x2c] sm:$0xf]
        %v1274 = vld [vmem:[#allocation9 + $0x30] sm:$0xf]
        %v1275 = vld [vmem:[#allocation9 + $0x34] sm:$0xf]
        %v1276 = vld [vmem:[#allocation9 + $0x38] sm:$0xf]
        %v1277 = vld [vmem:[#allocation9 + $0x3c] sm:$0xf]
        %v1278 = vld [vmem:[#allocation9 + $0x40] sm:$0xf]
        %v1279 = vld [vmem:[#allocation9 + $0x44] sm:$0xf]
        %v1280 = vld [vmem:[#allocation9 + $0x48] sm:$0xf]
        %v1281 = vld [vmem:[#allocation9 + $0x4c] sm:$0xf]
        %v1282 = vld [vmem:[#allocation9 + $0x50] sm:$0xf]
        %v1283 = vld [vmem:[#allocation9 + $0x54] sm:$0xf]
        %v1284 = vld [vmem:[#allocation9 + $0x58] sm:$0xf]
        %v1285 = vld [vmem:[#allocation9 + $0x5c] sm:$0xf]
        %v1286 = vld [vmem:[#allocation9 + $0x60] sm:$0xf]
        %v1287 = vld [vmem:[#allocation9 + $0x64] sm:$0xf]
        %v1288 = vld [vmem:[#allocation9 + $0x68] sm:$0xf]
        %v1289 = vld [vmem:[#allocation9 + $0x6c] sm:$0xf]
        %v1290 = vld [vmem:[#allocation9 + $0x70] sm:$0xf]
        %v1291 = vld [vmem:[#allocation9 + $0x74] sm:$0xf]
        %v1292 = vld [vmem:[#allocation9 + $0x78] sm:$0xf]
        %v1293 = vld [vmem:[#allocation9 + $0x7c] sm:$0xf]
        %v1294 = vld [vmem:[#allocation2 + $0x94] sm:$0xf]
        %v1295 = vld [vmem:[#allocation2 + $0xc] sm:$0x8]
        %v1296 = vld [vmem:[#allocation2 + $0x98] sm:$0xf]
        %v1297 = vld [vmem:[#allocation2 + $0x9c] sm:$0xf]
        %v1299 = vunpack.c.l.b16 %v1294
        %v1300 = vpack.c.b16 %v1299, %v1299
        %v1304 = vunpack.c.l.b16 %v1295
        %v1305 = vunpack.c.l.b16 %v1296
        %v1306 = vunpack.c.l.b16 %v1297
        %v1307 = vpack.c.b16 %v1054, %v1304
        %v1308 = vpack.c.b16 %v1305, %v1299
        %v1309 = vpack.c.b16 %v1306, %v1306
        %v1310 = vld [vmem:[#allocation9 + $0x80] sm:$0xf]
        %v1311 = vld [vmem:[#allocation9 + $0x84] sm:$0xf]
        %v1312 = vld [vmem:[#allocation9 + $0x88] sm:$0xf]
        %v1313 = vld [vmem:[#allocation9 + $0x8c] sm:$0xf]
        %v1314 = vld [vmem:[#allocation9 + $0x90] sm:$0xf]
        %v1315 = vld [vmem:[#allocation9 + $0x94] sm:$0xf]
        %v1316 = vld [vmem:[#allocation9 + $0x98] sm:$0xf]
        %v1317 = vld [vmem:[#allocation9 + $0x9c] sm:$0xf]
        %v1318 = vld [vmem:[#allocation9 + $0xa0] sm:$0xf]
        %v1319 = vld [vmem:[#allocation9 + $0xa4] sm:$0xf]
        %v1320 = vld [vmem:[#allocation9 + $0xa8] sm:$0xf]
        %v1321 = vld [vmem:[#allocation9 + $0xac] sm:$0xf]
        %v1322 = vld [vmem:[#allocation9 + $0xb0] sm:$0xf]
        %v1323 = vld [vmem:[#allocation9 + $0xb4] sm:$0xf]
        %v1324 = vld [vmem:[#allocation9 + $0xb8] sm:$0xf]
        %v1325 = vld [vmem:[#allocation9 + $0xbc] sm:$0xf]
        %v1326 = vld [vmem:[#allocation9 + $0xc0] sm:$0xf]
        %v1327 = vld [vmem:[#allocation9 + $0xc4] sm:$0xf]
        %v1328 = vld [vmem:[#allocation9 + $0xc8] sm:$0xf]
        %v1329 = vld [vmem:[#allocation9 + $0xcc] sm:$0xf]
        %v1330 = vld [vmem:[#allocation9 + $0xd0] sm:$0xf]
        %v1331 = vld [vmem:[#allocation9 + $0xd4] sm:$0xf]
        %v1332 = vld [vmem:[#allocation9 + $0xd8] sm:$0xf]
        %v1333 = vld [vmem:[#allocation9 + $0xdc] sm:$0xf]
        %v1334 = vld [vmem:[#allocation9 + $0xe0] sm:$0xf]
        %v1335 = vld [vmem:[#allocation9 + $0xe4] sm:$0xf]
        %v1336 = vld [vmem:[#allocation9 + $0xe8] sm:$0xf]
        %v1337 = vld [vmem:[#allocation9 + $0xec] sm:$0xf]
        %v1338 = vld [vmem:[#allocation9 + $0xf0] sm:$0xf]
        %v1339 = vld [vmem:[#allocation9 + $0xf4] sm:$0xf]
        %v1340 = vld [vmem:[#allocation9 + $0xf8] sm:$0xf]
        %v1341 = vld [vmem:[#allocation9 + $0xfc] sm:$0xf]
        %vm1342 = vsmask.f32 4352
        %v1343 = vrot.slane %v1112, 3
        %v1344 = vrot.slane %v1114, 4
        %v1345 = vor.u32 %v1343, %v1344
        %v1346 = vrot.slane %v1123, 3
        %v1347 = vrot.slane %v1119, 4
        %v1348 = vor.u32 %v1346, %v1347
        %v1349 = vsel %vm1342, %v1345, %v1348
        %v1351 = vshrl.u32 %v1307, 16
        %v1353 = vrot.slane %v1351, 3
        %v1354 = vshll.u32 %v1307, 16
        %v1356 = vrot.slane %v1354, 4
        %v1357 = vor.u32 %v1353, %v1356
        %v1358 = vrot.slane %v1131, 3
        %v1359 = vrot.slane %v1127, 4
        %v1360 = vor.u32 %v1358, %v1359
        %v1361 = vsel %vm1342, %v1357, %v1360
        %v1362 = vsel %vm1342, %v1348, %v1360
        %v1363 = vrot.slane %v1139, 3
        %v1364 = vrot.slane %v1135, 4
        %v1365 = vor.u32 %v1363, %v1364
        %v1366 = vsel %vm1342, %v1360, %v1365
        %v1367 = vrot.slane %v1147, 3
        %v1368 = vrot.slane %v1143, 4
        %v1369 = vor.u32 %v1367, %v1368
        %v1370 = vsel %vm1342, %v1365, %v1369
        %v1371 = vrot.slane %v1155, 3
        %v1372 = vrot.slane %v1151, 4
        %v1373 = vor.u32 %v1371, %v1372
        %v1374 = vsel %vm1342, %v1369, %v1373
        %v1375 = vrot.slane %v1163, 3
        %v1376 = vrot.slane %v1159, 4
        %v1377 = vor.u32 %v1375, %v1376
        %v1378 = vsel %vm1342, %v1373, %v1377
        %v1379 = vrot.slane %v1171, 3
        %v1380 = vrot.slane %v1167, 4
        %v1381 = vor.u32 %v1379, %v1380
        %v1382 = vsel %vm1342, %v1377, %v1381
        %v1383 = vrot.slane %v1179, 3
        %v1384 = vrot.slane %v1175, 4
        %v1385 = vor.u32 %v1383, %v1384
        %v1386 = vsel %vm1342, %v1381, %v1385
        %v1387 = vrot.slane %v1187, 3
        %v1388 = vrot.slane %v1183, 4
        %v1389 = vor.u32 %v1387, %v1388
        %v1390 = vsel %vm1342, %v1385, %v1389
        %v1391 = vrot.slane %v1195, 3
        %v1392 = vrot.slane %v1191, 4
        %v1393 = vor.u32 %v1391, %v1392
        %v1394 = vsel %vm1342, %v1389, %v1393
        %v1395 = vrot.slane %v1203, 3
        %v1396 = vrot.slane %v1199, 4
        %v1397 = vor.u32 %v1395, %v1396
        %v1398 = vsel %vm1342, %v1393, %v1397
        %v1399 = vrot.slane %v1211, 3
        %v1400 = vrot.slane %v1207, 4
        %v1401 = vor.u32 %v1399, %v1400
        %v1402 = vsel %vm1342, %v1397, %v1401
        %v1403 = vrot.slane %v1219, 3
        %v1404 = vrot.slane %v1215, 4
        %v1405 = vor.u32 %v1403, %v1404
        %v1406 = vsel %vm1342, %v1401, %v1405
        %v1407 = vrot.slane %v1227, 3
        %v1408 = vrot.slane %v1223, 4
        %v1409 = vor.u32 %v1407, %v1408
        %v1410 = vsel %vm1342, %v1405, %v1409
        %v1411 = vrot.slane %v1235, 3
        %v1412 = vrot.slane %v1231, 4
        %v1413 = vor.u32 %v1411, %v1412
        %v1414 = vsel %vm1342, %v1409, %v1413
        %v1415 = vrot.slane %v1243, 3
        %v1416 = vrot.slane %v1239, 4
        %v1417 = vor.u32 %v1415, %v1416
        %v1418 = vsel %vm1342, %v1413, %v1417
        %v1419 = vrot.slane %v1251, 3
        %v1420 = vrot.slane %v1247, 4
        %v1421 = vor.u32 %v1419, %v1420
        %v1422 = vsel %vm1342, %v1417, %v1421
        %v1424 = vshrl.u32 %v1308, 16
        %v1426 = vrot.slane %v1424, 3
        %v1427 = vshll.u32 %v1308, 16
        %v1429 = vrot.slane %v1427, 4
        %v1430 = vor.u32 %v1426, %v1429
        %v1431 = vsel %vm1342, %v1421, %v1430
        %v1433 = vshrl.u32 %v1300, 16
        %v1435 = vrot.slane %v1433, 3
        %v1436 = vshll.u32 %v1300, 16
        %v1438 = vrot.slane %v1436, 4
        %v1439 = vor.u32 %v1435, %v1438
        %v1440 = vsel %vm1342, %v1421, %v1439
        %v1442 = vshrl.u32 %v1309, 16
        %v1444 = vrot.slane %v1442, 3
        %v1445 = vshll.u32 %v1309, 16
        %v1447 = vrot.slane %v1445, 4
        %v1448 = vor.u32 %v1444, %v1447
        %v1449 = vsel %vm1342, %v1430, %v1448
        %v1503 = vunpack.c.l.b16 %v1310
        %v1504 = vunpack.c.l.b16 %v1311
        %v1505 = vunpack.c.l.b16 %v1312
        %v1506 = vunpack.c.l.b16 %v1313
        %v1507 = vunpack.c.l.b16 %v1314
        %v1508 = vunpack.c.l.b16 %v1315
        %v1509 = vunpack.c.l.b16 %v1316
        %v1510 = vunpack.c.l.b16 %v1317
        %v1511 = vunpack.c.l.b16 %v1318
        %v1512 = vunpack.c.l.b16 %v1319
        %v1513 = vunpack.c.l.b16 %v1320
        %v1514 = vunpack.c.l.b16 %v1321
        %v1515 = vunpack.c.l.b16 %v1322
        %v1516 = vunpack.c.l.b16 %v1323
        %v1517 = vunpack.c.l.b16 %v1324
        %v1518 = vunpack.c.l.b16 %v1325
        %v1519 = vunpack.c.l.b16 %v1326
        %v1520 = vunpack.c.l.b16 %v1327
        %v1521 = vunpack.c.l.b16 %v1328
        %v1522 = vunpack.c.l.b16 %v1329
        %v1523 = vunpack.c.l.b16 %v1330
        %v1524 = vunpack.c.l.b16 %v1331
        %v1525 = vunpack.c.l.b16 %v1332
        %v1526 = vunpack.c.l.b16 %v1333
        %v1527 = vunpack.c.l.b16 %v1334
        %v1528 = vunpack.c.l.b16 %v1335
        %v1529 = vunpack.c.l.b16 %v1336
        %v1530 = vunpack.c.l.b16 %v1337
        %v1531 = vunpack.c.l.b16 %v1338
        %v1532 = vunpack.c.l.b16 %v1339
        %v1533 = vunpack.c.l.b16 %v1340
        %v1534 = vunpack.c.l.b16 %v1341
        %v1535 = vpack.c.b16 %v1504, %v1503
        %v1536 = vpack.c.b16 %v1506, %v1505
        %v1537 = vpack.c.b16 %v1508, %v1507
        %v1538 = vpack.c.b16 %v1510, %v1509
        %v1539 = vpack.c.b16 %v1512, %v1511
        %v1540 = vpack.c.b16 %v1514, %v1513
        %v1541 = vpack.c.b16 %v1516, %v1515
        %v1542 = vpack.c.b16 %v1518, %v1517
        %v1543 = vpack.c.b16 %v1520, %v1519
        %v1544 = vpack.c.b16 %v1522, %v1521
        %v1545 = vpack.c.b16 %v1524, %v1523
        %v1546 = vpack.c.b16 %v1526, %v1525
        %v1547 = vpack.c.b16 %v1528, %v1527
        %v1548 = vpack.c.b16 %v1530, %v1529
        %v1549 = vpack.c.b16 %v1532, %v1531
        %v1550 = vpack.c.b16 %v1534, %v1533
        %1567 = vmatprep.subr.bf16.mxu0 0
        %1568 = vmatpush1.bf16.msra.mxu0 %v1535
        %1569 = vmatprep.subr.bf16.mxu0 0
        %1570 = vmatpush1.bf16.msra.mxu0 %v1536
        %1571 = vmatprep.subr.bf16.mxu0 0
        %1572 = vmatpush1.bf16.msra.mxu0 %v1537
        %1573 = vmatprep.subr.bf16.mxu0 0
        %1574 = vmatpush1.bf16.msra.mxu0 %v1538
        %1575 = vmatprep.subr.bf16.mxu0 0
        %1576 = vmatpush1.bf16.msra.mxu0 %v1539
        %1577 = vmatprep.subr.bf16.mxu0 0
        %1578 = vmatpush1.bf16.msra.mxu0 %v1540
        %1579 = vmatprep.subr.bf16.mxu0 0
        %1580 = vmatpush1.bf16.msra.mxu0 %v1541
        %1581 = vmatprep.subr.bf16.mxu0 0
        %1582 = vmatpush1.bf16.msra.mxu0 %v1542
        %1583 = vmatprep.subr.bf16.mxu0 0
        %1584 = vmatpush1.bf16.msra.mxu0 %v1543
        %1585 = vmatprep.subr.bf16.mxu0 0
        %1586 = vmatpush1.bf16.msra.mxu0 %v1544
        %1587 = vmatprep.subr.bf16.mxu0 0
        %1588 = vmatpush1.bf16.msra.mxu0 %v1545
        %1589 = vmatprep.subr.bf16.mxu0 0
        %1590 = vmatpush1.bf16.msra.mxu0 %v1546
        %1591 = vmatprep.subr.bf16.mxu0 0
        %1592 = vmatpush1.bf16.msra.mxu0 %v1547
        %1593 = vmatprep.subr.bf16.mxu0 0
        %1594 = vmatpush1.bf16.msra.mxu0 %v1548
        %1595 = vmatprep.subr.bf16.mxu0 0
        %1596 = vmatpush1.bf16.msra.mxu0 %v1549
        %1597 = vmatprep.subr.bf16.mxu0 0
        %1598 = vmatpush1.bf16.msra.mxu0 %v1550
        %1599 = vmatprep.mubr.bf16.mxu0 %v1361
        %1600 = vmatmul.mubr.bf16.gmra.mrb[0].mxu0 %v1349
        %v1601 = vpop.f32.mrb[0].mxu0
        %v1602 = vadd.f32 0.0, %v1601
        %v1603 = vpop.f32.mrb[0].mxu0
        %v1604 = vpop.f32.mrb[0].mxu0
        %v1605 = vadd.f32 0.0, %v1604
        %v1606 = vpop.f32.mrb[0].mxu0
        %1607 = vmatprep.mubr.bf16.mxu0 %v1366
        %1608 = vmatmul.mubr.bf16.gmra.mrb[0].mxu0 %v1362
        %v1609 = vpop.f32.mrb[0].mxu0
        %v1610 = vadd.f32 0.0, %v1609
        %v1611 = vpop.f32.mrb[0].mxu0
        %v1612 = vpop.f32.mrb[0].mxu0
        %v1613 = vadd.f32 0.0, %v1612
        %v1614 = vpop.f32.mrb[0].mxu0
        %1615 = vmatprep.mubr.bf16.mxu0 %v1370
        %1616 = vmatmul.mubr.bf16.gmra.mrb[0].mxu0 %v1366
        %v1617 = vpop.f32.mrb[0].mxu0
        %v1618 = vadd.f32 0.0, %v1617
        %v1619 = vpop.f32.mrb[0].mxu0
        %v1620 = vpop.f32.mrb[0].mxu0
        %v1621 = vadd.f32 0.0, %v1620
        %v1622 = vpop.f32.mrb[0].mxu0
        %1623 = vmatprep.mubr.bf16.mxu0 %v1374
        %1624 = vmatmul.mubr.bf16.gmra.mrb[0].mxu0 %v1370
        %v1625 = vpop.f32.mrb[0].mxu0
        %v1626 = vadd.f32 0.0, %v1625
        %v1627 = vpop.f32.mrb[0].mxu0
        %v1628 = vpop.f32.mrb[0].mxu0
        %v1629 = vadd.f32 0.0, %v1628
        %v1630 = vpop.f32.mrb[0].mxu0
        %1631 = vmatprep.mubr.bf16.mxu0 %v1378
        %1632 = vmatmul.mubr.bf16.gmra.mrb[0].mxu0 %v1374
        %v1633 = vpop.f32.mrb[0].mxu0
        %v1634 = vadd.f32 0.0, %v1633
        %v1635 = vpop.f32.mrb[0].mxu0
        %v1636 = vpop.f32.mrb[0].mxu0
        %v1637 = vadd.f32 0.0, %v1636
        %v1638 = vpop.f32.mrb[0].mxu0
        %1639 = vmatprep.mubr.bf16.mxu0 %v1382
        %1640 = vmatmul.mubr.bf16.gmra.mrb[0].mxu0 %v1378
        %v1641 = vpop.f32.mrb[0].mxu0
        %v1642 = vadd.f32 0.0, %v1641
        %v1643 = vpop.f32.mrb[0].mxu0
        %v1644 = vpop.f32.mrb[0].mxu0
        %v1645 = vadd.f32 0.0, %v1644
        %v1646 = vpop.f32.mrb[0].mxu0
        %1647 = vmatprep.mubr.bf16.mxu0 %v1386
        %1648 = vmatmul.mubr.bf16.gmra.mrb[0].mxu0 %v1382
        %v1649 = vpop.f32.mrb[0].mxu0
        %v1650 = vadd.f32 0.0, %v1649
        %v1651 = vpop.f32.mrb[0].mxu0
        %v1652 = vpop.f32.mrb[0].mxu0
        %v1653 = vadd.f32 0.0, %v1652
        %v1654 = vpop.f32.mrb[0].mxu0
        %1655 = vmatprep.mubr.bf16.mxu0 %v1390
        %1656 = vmatmul.mubr.bf16.gmra.mrb[0].mxu0 %v1386
        %v1657 = vpop.f32.mrb[0].mxu0
        %v1658 = vadd.f32 0.0, %v1657
        %v1659 = vpop.f32.mrb[0].mxu0
        %v1660 = vpop.f32.mrb[0].mxu0
        %v1661 = vadd.f32 0.0, %v1660
        %v1662 = vpop.f32.mrb[0].mxu0
        %1663 = vmatprep.mubr.bf16.mxu0 %v1394
        %1664 = vmatmul.mubr.bf16.gmra.mrb[0].mxu0 %v1390
        %v1665 = vpop.f32.mrb[0].mxu0
        %v1666 = vadd.f32 0.0, %v1665
        %v1667 = vpop.f32.mrb[0].mxu0
        %v1668 = vpop.f32.mrb[0].mxu0
        %v1669 = vadd.f32 0.0, %v1668
        %v1670 = vpop.f32.mrb[0].mxu0
        %1671 = vmatprep.mubr.bf16.mxu0 %v1398
        %1672 = vmatmul.mubr.bf16.gmra.mrb[0].mxu0 %v1394
        %v1673 = vpop.f32.mrb[0].mxu0
        %v1674 = vadd.f32 0.0, %v1673
        %v1675 = vpop.f32.mrb[0].mxu0
        %v1676 = vpop.f32.mrb[0].mxu0
        %v1677 = vadd.f32 0.0, %v1676
        %v1678 = vpop.f32.mrb[0].mxu0
        %1679 = vmatprep.mubr.bf16.mxu0 %v1402
        %1680 = vmatmul.mubr.bf16.gmra.mrb[0].mxu0 %v1398
        %v1681 = vpop.f32.mrb[0].mxu0
        %v1682 = vadd.f32 0.0, %v1681
        %v1683 = vpop.f32.mrb[0].mxu0
        %v1684 = vpop.f32.mrb[0].mxu0
        %v1685 = vadd.f32 0.0, %v1684
        %v1686 = vpop.f32.mrb[0].mxu0
        %1687 = vmatprep.mubr.bf16.mxu0 %v1406
        %1688 = vmatmul.mubr.bf16.gmra.mrb[0].mxu0 %v1402
        %v1689 = vpop.f32.mrb[0].mxu0
        %v1690 = vadd.f32 0.0, %v1689
        %v1691 = vpop.f32.mrb[0].mxu0
        %v1692 = vpop.f32.mrb[0].mxu0
        %v1693 = vadd.f32 0.0, %v1692
        %v1694 = vpop.f32.mrb[0].mxu0
        %1695 = vmatprep.mubr.bf16.mxu0 %v1410
        %1696 = vmatmul.mubr.bf16.gmra.mrb[0].mxu0 %v1406
        %v1697 = vpop.f32.mrb[0].mxu0
        %v1698 = vadd.f32 0.0, %v1697
        %v1699 = vpop.f32.mrb[0].mxu0
        %v1700 = vpop.f32.mrb[0].mxu0
        %v1701 = vadd.f32 0.0, %v1700
        %v1702 = vpop.f32.mrb[0].mxu0
        %1703 = vmatprep.mubr.bf16.mxu0 %v1414
        %1704 = vmatmul.mubr.bf16.gmra.mrb[0].mxu0 %v1410
        %v1705 = vpop.f32.mrb[0].mxu0
        %v1706 = vadd.f32 0.0, %v1705
        %v1707 = vpop.f32.mrb[0].mxu0
        %v1708 = vpop.f32.mrb[0].mxu0
        %v1709 = vadd.f32 0.0, %v1708
        %v1710 = vpop.f32.mrb[0].mxu0
        %1711 = vmatprep.mubr.bf16.mxu0 %v1418
        %1712 = vmatmul.mubr.bf16.gmra.mrb[0].mxu0 %v1414
        %v1713 = vpop.f32.mrb[0].mxu0
        %v1714 = vadd.f32 0.0, %v1713
        %v1715 = vpop.f32.mrb[0].mxu0
        %v1716 = vpop.f32.mrb[0].mxu0
        %v1717 = vadd.f32 0.0, %v1716
        %v1718 = vpop.f32.mrb[0].mxu0
        %1719 = vmatprep.mubr.bf16.mxu0 %v1422
        %1720 = vmatmul.mubr.bf16.gmra.mrb[0].mxu0 %v1418
        %v1721 = vpop.f32.mrb[0].mxu0
        %v1722 = vadd.f32 0.0, %v1721
        %v1723 = vpop.f32.mrb[0].mxu0
        %v1724 = vpop.f32.mrb[0].mxu0
        %v1725 = vadd.f32 0.0, %v1724
        %v1726 = vpop.f32.mrb[0].mxu0
        %1727 = vmatprep.mubr.bf16.mxu0 %v1431
        %1728 = vmatmul.mubr.bf16.gmra.mrb[0].mxu0 %v1422
        %v1729 = vpop.f32.mrb[0].mxu0
        %v1730 = vadd.f32 0.0, %v1729
        %v1731 = vpop.f32.mrb[0].mxu0
        %v1732 = vpop.f32.mrb[0].mxu0
        %v1733 = vadd.f32 0.0, %v1732
        %v1734 = vpop.f32.mrb[0].mxu0
        %1735 = vmatprep.mubr.bf16.mxu0 %v1449
        %1736 = vmatmul.mubr.bf16.gmra.mrb[0].mxu0 %v1440
        %v1737 = vpop.f32.mrb[0].mxu0
        %v1738 = vadd.f32 0.0, %v1737
        %v1739 = vpop.f32.mrb[0].mxu0
        %v1740 = vpop.f32.mrb[0].mxu0
        %v1741 = vadd.f32 0.0, %v1740
        %v1742 = vpop.f32.mrb[0].mxu0
        %1743 = vdwg.mxu0
        %vm1744 = vsmask.f32 5376
        %v1746 = vshrl.u32 %v1088, 16
        %v1748 = vrot.slane %v1746, 2
        %v1749 = vshll.u32 %v1088, 16
        %v1751 = vrot.slane %v1749, 3
        %v1752 = vor.u32 %v1748, %v1751
        %v1753 = vrot.slane %v1123, 2
        %v1754 = vrot.slane %v1119, 3
        %v1755 = vor.u32 %v1753, %v1754
        %v1756 = vsel %vm1744, %v1752, %v1755
        %v1758 = vshrl.u32 %v1122, 16
        %v1760 = vrot.slane %v1758, 2
        %v1761 = vshll.u32 %v1122, 16
        %v1763 = vrot.slane %v1761, 3
        %v1764 = vor.u32 %v1760, %v1763
        %v1766 = vshrl.u32 %v1130, 16
        %v1768 = vrot.slane %v1766, 2
        %v1769 = vshll.u32 %v1130, 16
        %v1771 = vrot.slane %v1769, 3
        %v1772 = vor.u32 %v1768, %v1771
        %v1773 = vsel %vm1744, %v1764, %v1772
        %v1774 = vrot.slane %v1131, 2
        %v1775 = vrot.slane %v1127, 3
        %v1776 = vor.u32 %v1774, %v1775
        %v1777 = vsel %vm1744, %v1755, %v1776
        %v1779 = vshrl.u32 %v1138, 16
        %v1781 = vrot.slane %v1779, 2
        %v1782 = vshll.u32 %v1138, 16
        %v1784 = vrot.slane %v1782, 3
        %v1785 = vor.u32 %v1781, %v1784
        %v1786 = vsel %vm1744, %v1772, %v1785
        %v1787 = vrot.slane %v1139, 2
        %v1788 = vrot.slane %v1135, 3
        %v1789 = vor.u32 %v1787, %v1788
        %v1790 = vsel %vm1744, %v1776, %v1789
        %v1792 = vshrl.u32 %v1146, 16
        %v1794 = vrot.slane %v1792, 2
        %v1795 = vshll.u32 %v1146, 16
        %v1797 = vrot.slane %v1795, 3
        %v1798 = vor.u32 %v1794, %v1797
        %v1799 = vsel %vm1744, %v1785, %v1798
        %v1800 = vrot.slane %v1147, 2
        %v1801 = vrot.slane %v1143, 3
        %v1802 = vor.u32 %v1800, %v1801
        %v1803 = vsel %vm1744, %v1789, %v1802
        %v1805 = vshrl.u32 %v1154, 16
        %v1807 = vrot.slane %v1805, 2
        %v1808 = vshll.u32 %v1154, 16
        %v1810 = vrot.slane %v1808, 3
        %v1811 = vor.u32 %v1807, %v1810
        %v1812 = vsel %vm1744, %v1798, %v1811
        %v1813 = vrot.slane %v1155, 2
        %v1814 = vrot.slane %v1151, 3
        %v1815 = vor.u32 %v1813, %v1814
        %v1816 = vsel %vm1744, %v1802, %v1815
        %v1818 = vshrl.u32 %v1162, 16
        %v1820 = vrot.slane %v1818, 2
        %v1821 = vshll.u32 %v1162, 16
        %v1823 = vrot.slane %v1821, 3
        %v1824 = vor.u32 %v1820, %v1823
        %v1825 = vsel %vm1744, %v1811, %v1824
        %v1826 = vrot.slane %v1163, 2
        %v1827 = vrot.slane %v1159, 3
        %v1828 = vor.u32 %v1826, %v1827
        %v1829 = vsel %vm1744, %v1815, %v1828
        %v1831 = vshrl.u32 %v1170, 16
        %v1833 = vrot.slane %v1831, 2
        %v1834 = vshll.u32 %v1170, 16
        %v1836 = vrot.slane %v1834, 3
        %v1837 = vor.u32 %v1833, %v1836
        %v1838 = vsel %vm1744, %v1824, %v1837
        %v1839 = vrot.slane %v1171, 2
        %v1840 = vrot.slane %v1167, 3
        %v1841 = vor.u32 %v1839, %v1840
        %v1842 = vsel %vm1744, %v1828, %v1841
        %v1844 = vshrl.u32 %v1178, 16
        %v1846 = vrot.slane %v1844, 2
        %v1847 = vshll.u32 %v1178, 16
        %v1849 = vrot.slane %v1847, 3
        %v1850 = vor.u32 %v1846, %v1849
        %v1851 = vsel %vm1744, %v1837, %v1850
        %v1852 = vrot.slane %v1179, 2
        %v1853 = vrot.slane %v1175, 3
        %v1854 = vor.u32 %v1852, %v1853
        %v1855 = vsel %vm1744, %v1841, %v1854
        %v1857 = vshrl.u32 %v1186, 16
        %v1859 = vrot.slane %v1857, 2
        %v1860 = vshll.u32 %v1186, 16
        %v1862 = vrot.slane %v1860, 3
        %v1863 = vor.u32 %v1859, %v1862
        %v1864 = vsel %vm1744, %v1850, %v1863
        %v1865 = vrot.slane %v1187, 2
        %v1866 = vrot.slane %v1183, 3
        %v1867 = vor.u32 %v1865, %v1866
        %v1868 = vsel %vm1744, %v1854, %v1867
        %v1870 = vshrl.u32 %v1194, 16
        %v1872 = vrot.slane %v1870, 2
        %v1873 = vshll.u32 %v1194, 16
        %v1875 = vrot.slane %v1873, 3
        %v1876 = vor.u32 %v1872, %v1875
        %v1877 = vsel %vm1744, %v1863, %v1876
        %v1878 = vrot.slane %v1195, 2
        %v1879 = vrot.slane %v1191, 3
        %v1880 = vor.u32 %v1878, %v1879
        %v1881 = vsel %vm1744, %v1867, %v1880
        %v1883 = vshrl.u32 %v1202, 16
        %v1885 = vrot.slane %v1883, 2
        %v1886 = vshll.u32 %v1202, 16
        %v1888 = vrot.slane %v1886, 3
        %v1889 = vor.u32 %v1885, %v1888
        %v1890 = vsel %vm1744, %v1876, %v1889
        %v1891 = vrot.slane %v1203, 2
        %v1892 = vrot.slane %v1199, 3
        %v1893 = vor.u32 %v1891, %v1892
        %v1894 = vsel %vm1744, %v1880, %v1893
        %v1896 = vshrl.u32 %v1210, 16
        %v1898 = vrot.slane %v1896, 2
        %v1899 = vshll.u32 %v1210, 16
        %v1901 = vrot.slane %v1899, 3
        %v1902 = vor.u32 %v1898, %v1901
        %v1903 = vsel %vm1744, %v1889, %v1902
        %v1904 = vrot.slane %v1211, 2
        %v1905 = vrot.slane %v1207, 3
        %v1906 = vor.u32 %v1904, %v1905
        %v1907 = vsel %vm1744, %v1893, %v1906
        %v1909 = vshrl.u32 %v1218, 16
        %v1911 = vrot.slane %v1909, 2
        %v1912 = vshll.u32 %v1218, 16
        %v1914 = vrot.slane %v1912, 3
        %v1915 = vor.u32 %v1911, %v1914
        %v1916 = vsel %vm1744, %v1902, %v1915
        %v1917 = vrot.slane %v1219, 2
        %v1918 = vrot.slane %v1215, 3
        %v1919 = vor.u32 %v1917, %v1918
        %v1920 = vsel %vm1744, %v1906, %v1919
        %v1922 = vshrl.u32 %v1226, 16
        %v1924 = vrot.slane %v1922, 2
        %v1925 = vshll.u32 %v1226, 16
        %v1927 = vrot.slane %v1925, 3
        %v1928 = vor.u32 %v1924, %v1927
        %v1929 = vsel %vm1744, %v1915, %v1928
        %v1930 = vrot.slane %v1227, 2
        %v1931 = vrot.slane %v1223, 3
        %v1932 = vor.u32 %v1930, %v1931
        %v1933 = vsel %vm1744, %v1919, %v1932
        %v1935 = vshrl.u32 %v1234, 16
        %v1937 = vrot.slane %v1935, 2
        %v1938 = vshll.u32 %v1234, 16
        %v1940 = vrot.slane %v1938, 3
        %v1941 = vor.u32 %v1937, %v1940
        %v1942 = vsel %vm1744, %v1928, %v1941
        %v1943 = vrot.slane %v1235, 2
        %v1944 = vrot.slane %v1231, 3
        %v1945 = vor.u32 %v1943, %v1944
        %v1946 = vsel %vm1744, %v1932, %v1945
        %v1948 = vshrl.u32 %v1242, 16
        %v1950 = vrot.slane %v1948, 2
        %v1951 = vshll.u32 %v1242, 16
        %v1953 = vrot.slane %v1951, 3
        %v1954 = vor.u32 %v1950, %v1953
        %v1955 = vsel %vm1744, %v1941, %v1954
        %v1956 = vrot.slane %v1243, 2
        %v1957 = vrot.slane %v1239, 3
        %v1958 = vor.u32 %v1956, %v1957
        %v1959 = vsel %vm1744, %v1945, %v1958
        %v1961 = vshrl.u32 %v1250, 16
        %v1963 = vrot.slane %v1961, 2
        %v1964 = vshll.u32 %v1250, 16
        %v1966 = vrot.slane %v1964, 3
        %v1967 = vor.u32 %v1963, %v1966
        %v1968 = vsel %vm1744, %v1954, %v1967
        %v1969 = vrot.slane %v1251, 2
        %v1970 = vrot.slane %v1247, 3
        %v1971 = vor.u32 %v1969, %v1970
        %v1972 = vsel %vm1744, %v1958, %v1971
        %v1974 = vshrl.u32 %v1258, 16
        %v1976 = vrot.slane %v1974, 2
        %v1977 = vshll.u32 %v1258, 16
        %v1979 = vrot.slane %v1977, 3
        %v1980 = vor.u32 %v1976, %v1979
        %v1981 = vsel %vm1744, %v1967, %v1980
        %v1982 = vrot.slane %v1259, 2
        %v1983 = vrot.slane %v1255, 3
        %v1984 = vor.u32 %v1982, %v1983
        %v1985 = vsel %vm1744, %v1971, %v1984
        %v1987 = vshrl.u32 %v1261, 16
        %v1989 = vrot.slane %v1987, 2
        %v1990 = vshll.u32 %v1261, 16
        %v1992 = vrot.slane %v1990, 3
        %v1993 = vor.u32 %v1989, %v1992
        %v1994 = vsel %vm1744, %v1980, %v1993
        %v2063 = vunpack.c.l.b16 %v1262
        %v2064 = vunpack.c.l.b16 %v1263
        %v2065 = vunpack.c.l.b16 %v1264
        %v2066 = vunpack.c.l.b16 %v1265
        %v2067 = vunpack.c.l.b16 %v1266
        %v2068 = vunpack.c.l.b16 %v1267
        %v2069 = vunpack.c.l.b16 %v1268
        %v2070 = vunpack.c.l.b16 %v1269
        %v2071 = vunpack.c.l.b16 %v1270
        %v2072 = vunpack.c.l.b16 %v1271
        %v2073 = vunpack.c.l.b16 %v1272
        %v2074 = vunpack.c.l.b16 %v1273
        %v2075 = vunpack.c.l.b16 %v1274
        %v2076 = vunpack.c.l.b16 %v1275
        %v2077 = vunpack.c.l.b16 %v1276
        %v2078 = vunpack.c.l.b16 %v1277
        %v2079 = vunpack.c.l.b16 %v1278
        %v2080 = vunpack.c.l.b16 %v1279
        %v2081 = vunpack.c.l.b16 %v1280
        %v2082 = vunpack.c.l.b16 %v1281
        %v2083 = vunpack.c.l.b16 %v1282
        %v2084 = vunpack.c.l.b16 %v1283
        %v2085 = vunpack.c.l.b16 %v1284
        %v2086 = vunpack.c.l.b16 %v1285
        %v2087 = vunpack.c.l.b16 %v1286
        %v2088 = vunpack.c.l.b16 %v1287
        %v2089 = vunpack.c.l.b16 %v1288
        %v2090 = vunpack.c.l.b16 %v1289
        %v2091 = vunpack.c.l.b16 %v1290
        %v2092 = vunpack.c.l.b16 %v1291
        %v2093 = vunpack.c.l.b16 %v1292
        %v2094 = vunpack.c.l.b16 %v1293
        %v2095 = vpack.c.b16 %v2064, %v2063
        %v2096 = vpack.c.b16 %v2066, %v2065
        %v2097 = vpack.c.b16 %v2068, %v2067
        %v2098 = vpack.c.b16 %v2070, %v2069
        %v2099 = vpack.c.b16 %v2072, %v2071
        %v2100 = vpack.c.b16 %v2074, %v2073
        %v2101 = vpack.c.b16 %v2076, %v2075
        %v2102 = vpack.c.b16 %v2078, %v2077
        %v2103 = vpack.c.b16 %v2080, %v2079
        %v2104 = vpack.c.b16 %v2082, %v2081
        %v2105 = vpack.c.b16 %v2084, %v2083
        %v2106 = vpack.c.b16 %v2086, %v2085
        %v2107 = vpack.c.b16 %v2088, %v2087
        %v2108 = vpack.c.b16 %v2090, %v2089
        %v2109 = vpack.c.b16 %v2092, %v2091
        %v2110 = vpack.c.b16 %v2094, %v2093
        %2127 = vmatprep.subr.bf16.mxu0 0
        %2128 = vmatpush1.bf16.msra.mxu0 %v2095
        %2129 = vmatprep.subr.bf16.mxu0 0
        %2130 = vmatpush1.bf16.msra.mxu0 %v2096
        %2131 = vmatprep.subr.bf16.mxu0 0
        %2132 = vmatpush1.bf16.msra.mxu0 %v2097
        %2133 = vmatprep.subr.bf16.mxu0 0
        %2134 = vmatpush1.bf16.msra.mxu0 %v2098
        %2135 = vmatprep.subr.bf16.mxu0 0
        %2136 = vmatpush1.bf16.msra.mxu0 %v2099
        %2137 = vmatprep.subr.bf16.mxu0 0
        %2138 = vmatpush1.bf16.msra.mxu0 %v2100
        %2139 = vmatprep.subr.bf16.mxu0 0
        %2140 = vmatpush1.bf16.msra.mxu0 %v2101
        %2141 = vmatprep.subr.bf16.mxu0 0
        %2142 = vmatpush1.bf16.msra.mxu0 %v2102
        %2143 = vmatprep.subr.bf16.mxu0 0
        %2144 = vmatpush1.bf16.msra.mxu0 %v2103
        %2145 = vmatprep.subr.bf16.mxu0 0
        %2146 = vmatpush1.bf16.msra.mxu0 %v2104
        %2147 = vmatprep.subr.bf16.mxu0 0
        %2148 = vmatpush1.bf16.msra.mxu0 %v2105
        %2149 = vmatprep.subr.bf16.mxu0 0
        %2150 = vmatpush1.bf16.msra.mxu0 %v2106
        %2151 = vmatprep.subr.bf16.mxu0 0
        %2152 = vmatpush1.bf16.msra.mxu0 %v2107
        %2153 = vmatprep.subr.bf16.mxu0 0
        %2154 = vmatpush1.bf16.msra.mxu0 %v2108
        %2155 = vmatprep.subr.bf16.mxu0 0
        %2156 = vmatpush1.bf16.msra.mxu0 %v2109
        %2157 = vmatprep.subr.bf16.mxu0 0
        %2158 = vmatpush1.bf16.msra.mxu0 %v2110
        %2159 = vmatprep.mubr.bf16.mxu0 %v1773
        %2160 = vmatmul.mubr.bf16.gmra.mrb[0].mxu0 %v1756
        %v2161 = vpop.f32.mrb[0].mxu0
        %v2162 = vadd.f32 %v1602, %v2161
        %v2163 = vpop.f32.mrb[0].mxu0
        %v2164 = vpop.f32.mrb[0].mxu0
        %v2165 = vadd.f32 %v1605, %v2164
        %v2166 = vpop.f32.mrb[0].mxu0
        %2167 = vmatprep.mubr.bf16.mxu0 %v1786
        %2168 = vmatmul.mubr.bf16.gmra.mrb[0].mxu0 %v1777
        %v2169 = vpop.f32.mrb[0].mxu0
        %v2170 = vadd.f32 %v1610, %v2169
        %v2171 = vpop.f32.mrb[0].mxu0
        %v2172 = vpop.f32.mrb[0].mxu0
        %v2173 = vadd.f32 %v1613, %v2172
        %v2174 = vpop.f32.mrb[0].mxu0
        %2175 = vmatprep.mubr.bf16.mxu0 %v1799
        %2176 = vmatmul.mubr.bf16.gmra.mrb[0].mxu0 %v1790
        %v2177 = vpop.f32.mrb[0].mxu0
        %v2178 = vadd.f32 %v1618, %v2177
        %v2179 = vpop.f32.mrb[0].mxu0
        %v2180 = vpop.f32.mrb[0].mxu0
        %v2181 = vadd.f32 %v1621, %v2180
        %v2182 = vpop.f32.mrb[0].mxu0
        %2183 = vmatprep.mubr.bf16.mxu0 %v1812
        %2184 = vmatmul.mubr.bf16.gmra.mrb[0].mxu0 %v1803
        %v2185 = vpop.f32.mrb[0].mxu0
        %v2186 = vadd.f32 %v1626, %v2185
        %v2187 = vpop.f32.mrb[0].mxu0
        %v2188 = vpop.f32.mrb[0].mxu0
        %v2189 = vadd.f32 %v1629, %v2188
        %v2190 = vpop.f32.mrb[0].mxu0
        %2191 = vmatprep.mubr.bf16.mxu0 %v1825
        %2192 = vmatmul.mubr.bf16.gmra.mrb[0].mxu0 %v1816
        %v2193 = vpop.f32.mrb[0].mxu0
        %v2194 = vadd.f32 %v1634, %v2193
        %v2195 = vpop.f32.mrb[0].mxu0
        %v2196 = vpop.f32.mrb[0].mxu0
        %v2197 = vadd.f32 %v1637, %v2196
        %v2198 = vpop.f32.mrb[0].mxu0
        %2199 = vmatprep.mubr.bf16.mxu0 %v1838
        %2200 = vmatmul.mubr.bf16.gmra.mrb[0].mxu0 %v1829
        %v2201 = vpop.f32.mrb[0].mxu0
        %v2202 = vadd.f32 %v1642, %v2201
        %v2203 = vpop.f32.mrb[0].mxu0
        %v2204 = vpop.f32.mrb[0].mxu0
        %v2205 = vadd.f32 %v1645, %v2204
        %v2206 = vpop.f32.mrb[0].mxu0
        %2207 = vmatprep.mubr.bf16.mxu0 %v1851
        %2208 = vmatmul.mubr.bf16.gmra.mrb[0].mxu0 %v1842
        %v2209 = vpop.f32.mrb[0].mxu0
        %v2210 = vadd.f32 %v1650, %v2209
        %v2211 = vpop.f32.mrb[0].mxu0
        %v2212 = vpop.f32.mrb[0].mxu0
        %v2213 = vadd.f32 %v1653, %v2212
        %v2214 = vpop.f32.mrb[0].mxu0
        %2215 = vmatprep.mubr.bf16.mxu0 %v1864
        %2216 = vmatmul.mubr.bf16.gmra.mrb[0].mxu0 %v1855
        %v2217 = vpop.f32.mrb[0].mxu0
        %v2218 = vadd.f32 %v1658, %v2217
        %v2219 = vpop.f32.mrb[0].mxu0
        %v2220 = vpop.f32.mrb[0].mxu0
        %v2221 = vadd.f32 %v1661, %v2220
        %v2222 = vpop.f32.mrb[0].mxu0
        %2223 = vmatprep.mubr.bf16.mxu0 %v1877
        %2224 = vmatmul.mubr.bf16.gmra.mrb[0].mxu0 %v1868
        %v2225 = vpop.f32.mrb[0].mxu0
        %v2226 = vadd.f32 %v1666, %v2225
        %v2227 = vpop.f32.mrb[0].mxu0
        %v2228 = vpop.f32.mrb[0].mxu0
        %v2229 = vadd.f32 %v1669, %v2228
        %v2230 = vpop.f32.mrb[0].mxu0
        %2231 = vmatprep.mubr.bf16.mxu0 %v1890
        %2232 = vmatmul.mubr.bf16.gmra.mrb[0].mxu0 %v1881
        %v2233 = vpop.f32.mrb[0].mxu0
        %v2234 = vadd.f32 %v1674, %v2233
        %v2235 = vpop.f32.mrb[0].mxu0
        %v2236 = vpop.f32.mrb[0].mxu0
        %v2237 = vadd.f32 %v1677, %v2236
        %v2238 = vpop.f32.mrb[0].mxu0
        %2239 = vmatprep.mubr.bf16.mxu0 %v1903
        %2240 = vmatmul.mubr.bf16.gmra.mrb[0].mxu0 %v1894
        %v2241 = vpop.f32.mrb[0].mxu0
        %v2242 = vadd.f32 %v1682, %v2241
        %v2243 = vpop.f32.mrb[0].mxu0
        %v2244 = vpop.f32.mrb[0].mxu0
        %v2245 = vadd.f32 %v1685, %v2244
        %v2246 = vpop.f32.mrb[0].mxu0
        %2247 = vmatprep.mubr.bf16.mxu0 %v1916
        %2248 = vmatmul.mubr.bf16.gmra.mrb[0].mxu0 %v1907
        %v2249 = vpop.f32.mrb[0].mxu0
        %v2250 = vadd.f32 %v1690, %v2249
        %v2251 = vpop.f32.mrb[0].mxu0
        %v2252 = vpop.f32.mrb[0].mxu0
        %v2253 = vadd.f32 %v1693, %v2252
        %v2254 = vpop.f32.mrb[0].mxu0
        %2255 = vmatprep.mubr.bf16.mxu0 %v1929
        %2256 = vmatmul.mubr.bf16.gmra.mrb[0].mxu0 %v1920
        %v2257 = vpop.f32.mrb[0].mxu0
        %v2258 = vadd.f32 %v1698, %v2257
        %v2259 = vpop.f32.mrb[0].mxu0
        %v2260 = vpop.f32.mrb[0].mxu0
        %v2261 = vadd.f32 %v1701, %v2260
        %v2262 = vpop.f32.mrb[0].mxu0
        %2263 = vmatprep.mubr.bf16.mxu0 %v1942
        %2264 = vmatmul.mubr.bf16.gmra.mrb[0].mxu0 %v1933
        %v2265 = vpop.f32.mrb[0].mxu0
        %v2266 = vadd.f32 %v1706, %v2265
        %v2267 = vpop.f32.mrb[0].mxu0
        %v2268 = vpop.f32.mrb[0].mxu0
        %v2269 = vadd.f32 %v1709, %v2268
        %v2270 = vpop.f32.mrb[0].mxu0
        %2271 = vmatprep.mubr.bf16.mxu0 %v1955
        %2272 = vmatmul.mubr.bf16.gmra.mrb[0].mxu0 %v1946
        %v2273 = vpop.f32.mrb[0].mxu0
        %v2274 = vadd.f32 %v1714, %v2273
        %v2275 = vpop.f32.mrb[0].mxu0
        %v2276 = vpop.f32.mrb[0].mxu0
        %v2277 = vadd.f32 %v1717, %v2276
        %v2278 = vpop.f32.mrb[0].mxu0
        %2279 = vmatprep.mubr.bf16.mxu0 %v1968
        %2280 = vmatmul.mubr.bf16.gmra.mrb[0].mxu0 %v1959
        %v2281 = vpop.f32.mrb[0].mxu0
        %v2282 = vadd.f32 %v1722, %v2281
        %v2283 = vpop.f32.mrb[0].mxu0
        %v2284 = vpop.f32.mrb[0].mxu0
        %v2285 = vadd.f32 %v1725, %v2284
        %v2286 = vpop.f32.mrb[0].mxu0
        %2287 = vmatprep.mubr.bf16.mxu0 %v1981
        %2288 = vmatmul.mubr.bf16.gmra.mrb[0].mxu0 %v1972
        %v2289 = vpop.f32.mrb[0].mxu0
        %v2290 = vadd.f32 %v1730, %v2289
        %v2291 = vpop.f32.mrb[0].mxu0
        %v2292 = vpop.f32.mrb[0].mxu0
        %v2293 = vadd.f32 %v1733, %v2292
        %v2294 = vpop.f32.mrb[0].mxu0
        %2295 = vmatprep.mubr.bf16.mxu0 %v1994
        %2296 = vmatmul.mubr.bf16.gmra.mrb[0].mxu0 %v1985
        %v2297 = vpop.f32.mrb[0].mxu0
        %v2298 = vadd.f32 %v1738, %v2297
        %v2299 = vpop.f32.mrb[0].mxu0
        %v2300 = vpop.f32.mrb[0].mxu0
        %v2301 = vadd.f32 %v1741, %v2300
        %v2302 = vpop.f32.mrb[0].mxu0
        %2303 = vdwg.mxu0
        %v2304 = vld [vmem:[#allocation2 + $0x10] sm:$0xf]
        %v2305 = vld [vmem:[#allocation2 + $0x14] sm:$0xf]
        %v2306 = vld [vmem:[#allocation2 + $0x18] sm:$0xf]
        %v2307 = vld [vmem:[#allocation2 + $0x1c] sm:$0xf]
        %v2308 = vld [vmem:[#allocation2 + $0x20] sm:$0xf]
        %v2309 = vld [vmem:[#allocation2 + $0x24] sm:$0xf]
        %v2310 = vld [vmem:[#allocation2 + $0x28] sm:$0xf]
        %v2311 = vld [vmem:[#allocation2 + $0x2c] sm:$0xf]
        %v2312 = vld [vmem:[#allocation2 + $0x30] sm:$0xf]
        %v2313 = vld [vmem:[#allocation2 + $0x34] sm:$0xf]
        %v2314 = vld [vmem:[#allocation2 + $0x38] sm:$0xf]
        %v2315 = vld [vmem:[#allocation2 + $0x3c] sm:$0xf]
        %v2316 = vld [vmem:[#allocation2 + $0x40] sm:$0xf]
        %v2317 = vld [vmem:[#allocation2 + $0x44] sm:$0xf]
        %v2318 = vld [vmem:[#allocation2 + $0x48] sm:$0xf]
        %v2319 = vld [vmem:[#allocation2 + $0x4c] sm:$0xf]
        %v2320 = vld [vmem:[#allocation2 + $0x50] sm:$0xf]
        %v2321 = vld [vmem:[#allocation2 + $0x54] sm:$0xf]
        %v2322 = vld [vmem:[#allocation2 + $0x58] sm:$0xf]
        %v2323 = vld [vmem:[#allocation2 + $0x5c] sm:$0xf]
        %v2324 = vld [vmem:[#allocation2 + $0x60] sm:$0xf]
        %v2325 = vld [vmem:[#allocation2 + $0x64] sm:$0xf]
        %v2326 = vld [vmem:[#allocation2 + $0x68] sm:$0xf]
        %v2327 = vld [vmem:[#allocation2 + $0x6c] sm:$0xf]
        %v2328 = vld [vmem:[#allocation2 + $0x70] sm:$0xf]
        %v2329 = vld [vmem:[#allocation2 + $0x74] sm:$0xf]
        %v2330 = vld [vmem:[#allocation2 + $0x78] sm:$0xf]
        %v2331 = vld [vmem:[#allocation2 + $0x7c] sm:$0xf]
        %v2332 = vld [vmem:[#allocation2 + $0x80] sm:$0xf]
        %v2333 = vld [vmem:[#allocation2 + $0x84] sm:$0xf]
        %v2334 = vld [vmem:[#allocation2 + $0x88] sm:$0xf]
        %v2335 = vld [vmem:[#allocation2 + $0x8c] sm:$0xf]
        %v2336 = vld [vmem:[#allocation2 + $0x90] sm:$0xf]
        %v2337 = vld [vmem:[#allocation2 + $0x94] sm:$0xf]
        %v2338 = vld [vmem:[#allocation2 + $0x98] sm:$0xf]
        %v2339 = vld [vmem:[#allocation2 + $0x9c] sm:$0xf]
        %v2340 = vld [vmem:[#allocation2 + $0xa0] sm:$0x1]
        %v2341 = vpack.c.b16 %v1055, %v1054
        %v2342 = vpack.c.b16 %v1057, %v1056
        %v2343 = vpack.c.b16 %v1059, %v1058
        %v2344 = vpack.c.b16 %v1061, %v1060
        %v2345 = vpack.c.b16 %v1063, %v1062
        %v2346 = vpack.c.b16 %v1065, %v1064
        %v2347 = vpack.c.b16 %v1067, %v1066
        %v2348 = vpack.c.b16 %v1069, %v1068
        %v2349 = vpack.c.b16 %v1071, %v1070
        %v2350 = vpack.c.b16 %v1073, %v1072
        %v2351 = vpack.c.b16 %v1075, %v1074
        %v2352 = vpack.c.b16 %v1077, %v1076
        %v2353 = vpack.c.b16 %v1079, %v1078
        %v2354 = vpack.c.b16 %v1081, %v1080
        %v2355 = vpack.c.b16 %v1083, %v1082
        %v2356 = vpack.c.b16 %v1085, %v1084
        %v2357 = vpack.c.b16 %v1299, %v1086
        %v2358 = vpack.c.b16 %v1306, %v1305
        %v2414 = vunpack.c.l.b16 %v2304
        %v2415 = vunpack.c.l.b16 %v2305
        %v2416 = vunpack.c.l.b16 %v2306
        %v2417 = vunpack.c.l.b16 %v2307
        %v2418 = vunpack.c.l.b16 %v2308
        %v2419 = vunpack.c.l.b16 %v2309
        %v2420 = vunpack.c.l.b16 %v2310
        %v2421 = vunpack.c.l.b16 %v2311
        %v2422 = vunpack.c.l.b16 %v2312
        %v2423 = vunpack.c.l.b16 %v2313
        %v2424 = vunpack.c.l.b16 %v2314
        %v2425 = vunpack.c.l.b16 %v2315
        %v2426 = vunpack.c.l.b16 %v2316
        %v2427 = vunpack.c.l.b16 %v2317
        %v2428 = vunpack.c.l.b16 %v2318
        %v2429 = vunpack.c.l.b16 %v2319
        %v2430 = vunpack.c.l.b16 %v2320
        %v2431 = vunpack.c.l.b16 %v2321
        %v2432 = vunpack.c.l.b16 %v2322
        %v2433 = vunpack.c.l.b16 %v2323
        %v2434 = vunpack.c.l.b16 %v2324
        %v2435 = vunpack.c.l.b16 %v2325
        %v2436 = vunpack.c.l.b16 %v2326
        %v2437 = vunpack.c.l.b16 %v2327
        %v2438 = vunpack.c.l.b16 %v2328
        %v2439 = vunpack.c.l.b16 %v2329
        %v2440 = vunpack.c.l.b16 %v2330
        %v2441 = vunpack.c.l.b16 %v2331
        %v2442 = vunpack.c.l.b16 %v2332
        %v2443 = vunpack.c.l.b16 %v2333
        %v2444 = vunpack.c.l.b16 %v2334
        %v2445 = vunpack.c.l.b16 %v2335
        %v2446 = vunpack.c.l.b16 %v2336
        %v2447 = vunpack.c.l.b16 %v2337
        %v2448 = vunpack.c.l.b16 %v2338
        %v2449 = vunpack.c.l.b16 %v2339
        %v2450 = vunpack.c.l.b16 %v2340
        %v2451 = vpack.c.b16 %v2415, %v2414
        %v2452 = vpack.c.b16 %v2417, %v2416
        %v2453 = vpack.c.b16 %v2419, %v2418
        %v2454 = vpack.c.b16 %v2421, %v2420
        %v2455 = vpack.c.b16 %v2423, %v2422
        %v2456 = vpack.c.b16 %v2425, %v2424
        %v2457 = vpack.c.b16 %v2427, %v2426
        %v2458 = vpack.c.b16 %v2429, %v2428
        %v2459 = vpack.c.b16 %v2431, %v2430
        %v2460 = vpack.c.b16 %v2433, %v2432
        %v2461 = vpack.c.b16 %v2435, %v2434
        %v2462 = vpack.c.b16 %v2437, %v2436
        %v2463 = vpack.c.b16 %v2439, %v2438
        %v2464 = vpack.c.b16 %v2441, %v2440
        %v2465 = vpack.c.b16 %v2443, %v2442
        %v2466 = vpack.c.b16 %v2445, %v2444
        %v2467 = vpack.c.b16 %v2447, %v2446
        %v2468 = vpack.c.b16 %v2449, %v2448
        %v2469 = vpack.c.b16 %v2450, %v2450
        %v2471 = vshrl.u32 %v2451, 16
        %v2473 = vshll.u32 %v2451, 16
        %v2475 = vrot.slane %v2473, 1
        %v2476 = vor.u32 %v2471, %v2475
        %v2478 = vshll.u32 %v2452, 16
        %v2480 = vrot.slane %v2478, 1
        %v2481 = vsel %vm1110, %v2476, %v2480
        %v2482 = vshrl.u32 %v2452, 16
        %v2484 = vor.u32 %v2482, %v2480
        %v2486 = vshll.u32 %v2453, 16
        %v2488 = vrot.slane %v2486, 1
        %v2489 = vsel %vm1110, %v2484, %v2488
        %v2490 = vshrl.u32 %v2453, 16
        %v2492 = vor.u32 %v2490, %v2488
        %v2494 = vshll.u32 %v2454, 16
        %v2496 = vrot.slane %v2494, 1
        %v2497 = vsel %vm1110, %v2492, %v2496
        %v2498 = vshrl.u32 %v2454, 16
        %v2500 = vor.u32 %v2498, %v2496
        %v2502 = vshll.u32 %v2455, 16
        %v2504 = vrot.slane %v2502, 1
        %v2505 = vsel %vm1110, %v2500, %v2504
        %v2506 = vshrl.u32 %v2455, 16
        %v2508 = vor.u32 %v2506, %v2504
        %v2510 = vshll.u32 %v2456, 16
        %v2512 = vrot.slane %v2510, 1
        %v2513 = vsel %vm1110, %v2508, %v2512
        %v2514 = vshrl.u32 %v2456, 16
        %v2516 = vor.u32 %v2514, %v2512
        %v2518 = vshll.u32 %v2457, 16
        %v2520 = vrot.slane %v2518, 1
        %v2521 = vsel %vm1110, %v2516, %v2520
        %v2522 = vshrl.u32 %v2457, 16
        %v2524 = vor.u32 %v2522, %v2520
        %v2526 = vshll.u32 %v2458, 16
        %v2528 = vrot.slane %v2526, 1
        %v2529 = vsel %vm1110, %v2524, %v2528
        %v2530 = vshrl.u32 %v2458, 16
        %v2532 = vor.u32 %v2530, %v2528
        %v2534 = vshll.u32 %v2459, 16
        %v2536 = vrot.slane %v2534, 1
        %v2537 = vsel %vm1110, %v2532, %v2536
        %v2538 = vshrl.u32 %v2459, 16
        %v2540 = vor.u32 %v2538, %v2536
        %v2542 = vshll.u32 %v2460, 16
        %v2544 = vrot.slane %v2542, 1
        %v2545 = vsel %vm1110, %v2540, %v2544
        %v2546 = vshrl.u32 %v2460, 16
        %v2548 = vor.u32 %v2546, %v2544
        %v2550 = vshll.u32 %v2461, 16
        %v2552 = vrot.slane %v2550, 1
        %v2553 = vsel %vm1110, %v2548, %v2552
        %v2554 = vshrl.u32 %v2461, 16
        %v2556 = vor.u32 %v2554, %v2552
        %v2558 = vshll.u32 %v2462, 16
        %v2560 = vrot.slane %v2558, 1
        %v2561 = vsel %vm1110, %v2556, %v2560
        %v2562 = vshrl.u32 %v2462, 16
        %v2564 = vor.u32 %v2562, %v2560
        %v2566 = vshll.u32 %v2463, 16
        %v2568 = vrot.slane %v2566, 1
        %v2569 = vsel %vm1110, %v2564, %v2568
        %v2570 = vshrl.u32 %v2463, 16
        %v2572 = vor.u32 %v2570, %v2568
        %v2574 = vshll.u32 %v2464, 16
        %v2576 = vrot.slane %v2574, 1
        %v2577 = vsel %vm1110, %v2572, %v2576
        %v2578 = vshrl.u32 %v2464, 16
        %v2580 = vor.u32 %v2578, %v2576
        %v2582 = vshll.u32 %v2465, 16
        %v2584 = vrot.slane %v2582, 1
        %v2585 = vsel %vm1110, %v2580, %v2584
        %v2586 = vshrl.u32 %v2465, 16
        %v2588 = vor.u32 %v2586, %v2584
        %v2590 = vshll.u32 %v2466, 16
        %v2592 = vrot.slane %v2590, 1
        %v2593 = vsel %vm1110, %v2588, %v2592
        %v2594 = vshrl.u32 %v2466, 16
        %v2596 = vor.u32 %v2594, %v2592
        %v2598 = vshll.u32 %v2467, 16
        %v2600 = vrot.slane %v2598, 1
        %v2601 = vsel %vm1110, %v2596, %v2600
        %v2602 = vshrl.u32 %v2467, 16
        %v2604 = vor.u32 %v2602, %v2600
        %v2606 = vshll.u32 %v2468, 16
        %v2608 = vrot.slane %v2606, 1
        %v2609 = vsel %vm1110, %v2604, %v2608
        %v2610 = vshrl.u32 %v2468, 16
        %v2612 = vor.u32 %v2610, %v2608
        %v2614 = vshll.u32 %v2469, 16
        %v2616 = vrot.slane %v2614, 1
        %v2617 = vsel %vm1110, %v2612, %v2616
        %v2636 = vld [vmem:[#allocation9 + $0x100] sm:$0xf]
        %v2637 = vld [vmem:[#allocation9 + $0x104] sm:$0xf]
        %v2638 = vld [vmem:[#allocation9 + $0x108] sm:$0xf]
        %v2639 = vld [vmem:[#allocation9 + $0x10c] sm:$0xf]
        %v2640 = vld [vmem:[#allocation9 + $0x110] sm:$0xf]
        %v2641 = vld [vmem:[#allocation9 + $0x114] sm:$0xf]
        %v2642 = vld [vmem:[#allocation9 + $0x118] sm:$0xf]
        %v2643 = vld [vmem:[#allocation9 + $0x11c] sm:$0xf]
        %v2644 = vld [vmem:[#allocation9 + $0x120] sm:$0xf]
        %v2645 = vld [vmem:[#allocation9 + $0x124] sm:$0xf]
        %v2646 = vld [vmem:[#allocation9 + $0x128] sm:$0xf]
        %v2647 = vld [vmem:[#allocation9 + $0x12c] sm:$0xf]
        %v2648 = vld [vmem:[#allocation9 + $0x130] sm:$0xf]
        %v2649 = vld [vmem:[#allocation9 + $0x134] sm:$0xf]
        %v2650 = vld [vmem:[#allocation9 + $0x138] sm:$0xf]
        %v2651 = vld [vmem:[#allocation9 + $0x13c] sm:$0xf]
        %v2652 = vld [vmem:[#allocation9 + $0x140] sm:$0xf]
        %v2653 = vld [vmem:[#allocation9 + $0x144] sm:$0xf]
        %v2654 = vld [vmem:[#allocation9 + $0x148] sm:$0xf]
        %v2655 = vld [vmem:[#allocation9 + $0x14c] sm:$0xf]
        %v2656 = vld [vmem:[#allocation9 + $0x150] sm:$0xf]
        %v2657 = vld [vmem:[#allocation9 + $0x154] sm:$0xf]
        %v2658 = vld [vmem:[#allocation9 + $0x158] sm:$0xf]
        %v2659 = vld [vmem:[#allocation9 + $0x15c] sm:$0xf]
        %v2660 = vld [vmem:[#allocation9 + $0x160] sm:$0xf]
        %v2661 = vld [vmem:[#allocation9 + $0x164] sm:$0xf]
        %v2662 = vld [vmem:[#allocation9 + $0x168] sm:$0xf]
        %v2663 = vld [vmem:[#allocation9 + $0x16c] sm:$0xf]
        %v2664 = vld [vmem:[#allocation9 + $0x170] sm:$0xf]
        %v2665 = vld [vmem:[#allocation9 + $0x174] sm:$0xf]
        %v2666 = vld [vmem:[#allocation9 + $0x178] sm:$0xf]
        %v2667 = vld [vmem:[#allocation9 + $0x17c] sm:$0xf]
        %v2700 = vunpack.c.l.b16 %v2636
        %v2701 = vunpack.c.l.b16 %v2637
        %v2702 = vunpack.c.l.b16 %v2638
        %v2703 = vunpack.c.l.b16 %v2639
        %v2704 = vunpack.c.l.b16 %v2640
        %v2705 = vunpack.c.l.b16 %v2641
        %v2706 = vunpack.c.l.b16 %v2642
        %v2707 = vunpack.c.l.b16 %v2643
        %v2708 = vunpack.c.l.b16 %v2644
        %v2709 = vunpack.c.l.b16 %v2645
        %v2710 = vunpack.c.l.b16 %v2646
        %v2711 = vunpack.c.l.b16 %v2647
        %v2712 = vunpack.c.l.b16 %v2648
        %v2713 = vunpack.c.l.b16 %v2649
        %v2714 = vunpack.c.l.b16 %v2650
        %v2715 = vunpack.c.l.b16 %v2651
        %v2716 = vunpack.c.l.b16 %v2652
        %v2717 = vunpack.c.l.b16 %v2653
        %v2718 = vunpack.c.l.b16 %v2654
        %v2719 = vunpack.c.l.b16 %v2655
        %v2720 = vunpack.c.l.b16 %v2656
        %v2721 = vunpack.c.l.b16 %v2657
        %v2722 = vunpack.c.l.b16 %v2658
        %v2723 = vunpack.c.l.b16 %v2659
        %v2724 = vunpack.c.l.b16 %v2660
        %v2725 = vunpack.c.l.b16 %v2661
        %v2726 = vunpack.c.l.b16 %v2662
        %v2727 = vunpack.c.l.b16 %v2663
        %v2728 = vunpack.c.l.b16 %v2664
        %v2729 = vunpack.c.l.b16 %v2665
        %v2730 = vunpack.c.l.b16 %v2666
        %v2731 = vunpack.c.l.b16 %v2667
        %v2732 = vpack.c.b16 %v2701, %v2700
        %v2733 = vpack.c.b16 %v2703, %v2702
        %v2734 = vpack.c.b16 %v2705, %v2704
        %v2735 = vpack.c.b16 %v2707, %v2706
        %v2736 = vpack.c.b16 %v2709, %v2708
        %v2737 = vpack.c.b16 %v2711, %v2710
        %v2738 = vpack.c.b16 %v2713, %v2712
        %v2739 = vpack.c.b16 %v2715, %v2714
        %v2740 = vpack.c.b16 %v2717, %v2716
        %v2741 = vpack.c.b16 %v2719, %v2718
        %v2742 = vpack.c.b16 %v2721, %v2720
        %v2743 = vpack.c.b16 %v2723, %v2722
        %v2744 = vpack.c.b16 %v2725, %v2724
        %v2745 = vpack.c.b16 %v2727, %v2726
        %v2746 = vpack.c.b16 %v2729, %v2728
        %v2747 = vpack.c.b16 %v2731, %v2730
        %2764 = vmatprep.subr.bf16.mxu0 0
        %2765 = vmatpush1.bf16.msra.mxu0 %v2732
        %2766 = vmatprep.subr.bf16.mxu0 0
        %2767 = vmatpush1.bf16.msra.mxu0 %v2733
        %2768 = vmatprep.subr.bf16.mxu0 0
        %2769 = vmatpush1.bf16.msra.mxu0 %v2734
        %2770 = vmatprep.subr.bf16.mxu0 0
        %2771 = vmatpush1.bf16.msra.mxu0 %v2735
        %2772 = vmatprep.subr.bf16.mxu0 0
        %2773 = vmatpush1.bf16.msra.mxu0 %v2736
        %2774 = vmatprep.subr.bf16.mxu0 0
        %2775 = vmatpush1.bf16.msra.mxu0 %v2737
        %2776 = vmatprep.subr.bf16.mxu0 0
        %2777 = vmatpush1.bf16.msra.mxu0 %v2738
        %2778 = vmatprep.subr.bf16.mxu0 0
        %2779 = vmatpush1.bf16.msra.mxu0 %v2739
        %2780 = vmatprep.subr.bf16.mxu0 0
        %2781 = vmatpush1.bf16.msra.mxu0 %v2740
        %2782 = vmatprep.subr.bf16.mxu0 0
        %2783 = vmatpush1.bf16.msra.mxu0 %v2741
        %2784 = vmatprep.subr.bf16.mxu0 0
        %2785 = vmatpush1.bf16.msra.mxu0 %v2742
        %2786 = vmatprep.subr.bf16.mxu0 0
        %2787 = vmatpush1.bf16.msra.mxu0 %v2743
        %2788 = vmatprep.subr.bf16.mxu0 0
        %2789 = vmatpush1.bf16.msra.mxu0 %v2744
        %2790 = vmatprep.subr.bf16.mxu0 0
        %2791 = vmatpush1.bf16.msra.mxu0 %v2745
        %2792 = vmatprep.subr.bf16.mxu0 0
        %2793 = vmatpush1.bf16.msra.mxu0 %v2746
        %2794 = vmatprep.subr.bf16.mxu0 0
        %2795 = vmatpush1.bf16.msra.mxu0 %v2747
        %2796 = vmatprep.mubr.bf16.mxu0 %v2481
        %2797 = vmatmul.mubr.bf16.gmra.mrb[0].mxu0 %v2341
        %v2798 = vpop.f32.mrb[0].mxu0
        %v2799 = vadd.f32 0.0, %v2798
        %v2800 = vpop.f32.mrb[0].mxu0
        %v2801 = vpop.f32.mrb[0].mxu0
        %v2802 = vadd.f32 0.0, %v2801
        %v2803 = vpop.f32.mrb[0].mxu0
        %2804 = vmatprep.mubr.bf16.mxu0 %v2489
        %2805 = vmatmul.mubr.bf16.gmra.mrb[0].mxu0 %v2342
        %v2806 = vpop.f32.mrb[0].mxu0
        %v2807 = vadd.f32 0.0, %v2806
        %v2808 = vpop.f32.mrb[0].mxu0
        %v2809 = vpop.f32.mrb[0].mxu0
        %v2810 = vadd.f32 0.0, %v2809
        %v2811 = vpop.f32.mrb[0].mxu0
        %2812 = vmatprep.mubr.bf16.mxu0 %v2497
        %2813 = vmatmul.mubr.bf16.gmra.mrb[0].mxu0 %v2343
        %v2814 = vpop.f32.mrb[0].mxu0
        %v2815 = vadd.f32 0.0, %v2814
        %v2816 = vpop.f32.mrb[0].mxu0
        %v2817 = vpop.f32.mrb[0].mxu0
        %v2818 = vadd.f32 0.0, %v2817
        %v2819 = vpop.f32.mrb[0].mxu0
        %2820 = vmatprep.mubr.bf16.mxu0 %v2505
        %2821 = vmatmul.mubr.bf16.gmra.mrb[0].mxu0 %v2344
        %v2822 = vpop.f32.mrb[0].mxu0
        %v2823 = vadd.f32 0.0, %v2822
        %v2824 = vpop.f32.mrb[0].mxu0
        %v2825 = vpop.f32.mrb[0].mxu0
        %v2826 = vadd.f32 0.0, %v2825
        %v2827 = vpop.f32.mrb[0].mxu0
        %2828 = vmatprep.mubr.bf16.mxu0 %v2513
        %2829 = vmatmul.mubr.bf16.gmra.mrb[0].mxu0 %v2345
        %v2830 = vpop.f32.mrb[0].mxu0
        %v2831 = vadd.f32 0.0, %v2830
        %v2832 = vpop.f32.mrb[0].mxu0
        %v2833 = vpop.f32.mrb[0].mxu0
        %v2834 = vadd.f32 0.0, %v2833
        %v2835 = vpop.f32.mrb[0].mxu0
        %2836 = vmatprep.mubr.bf16.mxu0 %v2521
        %2837 = vmatmul.mubr.bf16.gmra.mrb[0].mxu0 %v2346
        %v2838 = vpop.f32.mrb[0].mxu0
        %v2839 = vadd.f32 0.0, %v2838
        %v2840 = vpop.f32.mrb[0].mxu0
        %v2841 = vpop.f32.mrb[0].mxu0
        %v2842 = vadd.f32 0.0, %v2841
        %v2843 = vpop.f32.mrb[0].mxu0
        %2844 = vmatprep.mubr.bf16.mxu0 %v2529
        %2845 = vmatmul.mubr.bf16.gmra.mrb[0].mxu0 %v2347
        %v2846 = vpop.f32.mrb[0].mxu0
        %v2847 = vadd.f32 0.0, %v2846
        %v2848 = vpop.f32.mrb[0].mxu0
        %v2849 = vpop.f32.mrb[0].mxu0
        %v2850 = vadd.f32 0.0, %v2849
        %v2851 = vpop.f32.mrb[0].mxu0
        %2852 = vmatprep.mubr.bf16.mxu0 %v2537
        %2853 = vmatmul.mubr.bf16.gmra.mrb[0].mxu0 %v2348
        %v2854 = vpop.f32.mrb[0].mxu0
        %v2855 = vadd.f32 0.0, %v2854
        %v2856 = vpop.f32.mrb[0].mxu0
        %v2857 = vpop.f32.mrb[0].mxu0
        %v2858 = vadd.f32 0.0, %v2857
        %v2859 = vpop.f32.mrb[0].mxu0
        %2860 = vmatprep.mubr.bf16.mxu0 %v2545
        %2861 = vmatmul.mubr.bf16.gmra.mrb[0].mxu0 %v2349
        %v2862 = vpop.f32.mrb[0].mxu0
        %v2863 = vadd.f32 0.0, %v2862
        %v2864 = vpop.f32.mrb[0].mxu0
        %v2865 = vpop.f32.mrb[0].mxu0
        %v2866 = vadd.f32 0.0, %v2865
        %v2867 = vpop.f32.mrb[0].mxu0
        %2868 = vmatprep.mubr.bf16.mxu0 %v2553
        %2869 = vmatmul.mubr.bf16.gmra.mrb[0].mxu0 %v2350
        %v2870 = vpop.f32.mrb[0].mxu0
        %v2871 = vadd.f32 0.0, %v2870
        %v2872 = vpop.f32.mrb[0].mxu0
        %v2873 = vpop.f32.mrb[0].mxu0
        %v2874 = vadd.f32 0.0, %v2873
        %v2875 = vpop.f32.mrb[0].mxu0
        %2876 = vmatprep.mubr.bf16.mxu0 %v2561
        %2877 = vmatmul.mubr.bf16.gmra.mrb[0].mxu0 %v2351
        %v2878 = vpop.f32.mrb[0].mxu0
        %v2879 = vadd.f32 0.0, %v2878
        %v2880 = vpop.f32.mrb[0].mxu0
        %v2881 = vpop.f32.mrb[0].mxu0
        %v2882 = vadd.f32 0.0, %v2881
        %v2883 = vpop.f32.mrb[0].mxu0
        %2884 = vmatprep.mubr.bf16.mxu0 %v2569
        %2885 = vmatmul.mubr.bf16.gmra.mrb[0].mxu0 %v2352
        %v2886 = vpop.f32.mrb[0].mxu0
        %v2887 = vadd.f32 0.0, %v2886
        %v2888 = vpop.f32.mrb[0].mxu0
        %v2889 = vpop.f32.mrb[0].mxu0
        %v2890 = vadd.f32 0.0, %v2889
        %v2891 = vpop.f32.mrb[0].mxu0
        %2892 = vmatprep.mubr.bf16.mxu0 %v2577
        %2893 = vmatmul.mubr.bf16.gmra.mrb[0].mxu0 %v2353
        %v2894 = vpop.f32.mrb[0].mxu0
        %v2895 = vadd.f32 0.0, %v2894
        %v2896 = vpop.f32.mrb[0].mxu0
        %v2897 = vpop.f32.mrb[0].mxu0
        %v2898 = vadd.f32 0.0, %v2897
        %v2899 = vpop.f32.mrb[0].mxu0
        %2900 = vmatprep.mubr.bf16.mxu0 %v2585
        %2901 = vmatmul.mubr.bf16.gmra.mrb[0].mxu0 %v2354
        %v2902 = vpop.f32.mrb[0].mxu0
        %v2903 = vadd.f32 0.0, %v2902
        %v2904 = vpop.f32.mrb[0].mxu0
        %v2905 = vpop.f32.mrb[0].mxu0
        %v2906 = vadd.f32 0.0, %v2905
        %v2907 = vpop.f32.mrb[0].mxu0
        %2908 = vmatprep.mubr.bf16.mxu0 %v2593
        %2909 = vmatmul.mubr.bf16.gmra.mrb[0].mxu0 %v2355
        %v2910 = vpop.f32.mrb[0].mxu0
        %v2911 = vadd.f32 0.0, %v2910
        %v2912 = vpop.f32.mrb[0].mxu0
        %v2913 = vpop.f32.mrb[0].mxu0
        %v2914 = vadd.f32 0.0, %v2913
        %v2915 = vpop.f32.mrb[0].mxu0
        %2916 = vmatprep.mubr.bf16.mxu0 %v2601
        %2917 = vmatmul.mubr.bf16.gmra.mrb[0].mxu0 %v2356
        %v2918 = vpop.f32.mrb[0].mxu0
        %v2919 = vadd.f32 0.0, %v2918
        %v2920 = vpop.f32.mrb[0].mxu0
        %v2921 = vpop.f32.mrb[0].mxu0
        %v2922 = vadd.f32 0.0, %v2921
        %v2923 = vpop.f32.mrb[0].mxu0
        %2924 = vmatprep.mubr.bf16.mxu0 %v2609
        %2925 = vmatmul.mubr.bf16.gmra.mrb[0].mxu0 %v2357
        %v2926 = vpop.f32.mrb[0].mxu0
        %v2927 = vadd.f32 0.0, %v2926
        %v2928 = vpop.f32.mrb[0].mxu0
        %v2929 = vpop.f32.mrb[0].mxu0
        %v2930 = vadd.f32 0.0, %v2929
        %v2931 = vpop.f32.mrb[0].mxu0
        %2932 = vmatprep.mubr.bf16.mxu0 %v2617
        %2933 = vmatmul.mubr.bf16.gmra.mrb[0].mxu0 %v2358
        %v2934 = vpop.f32.mrb[0].mxu0
        %v2935 = vadd.f32 0.0, %v2934
        %v2936 = vpop.f32.mrb[0].mxu0
        %v2937 = vpop.f32.mrb[0].mxu0
        %v2938 = vadd.f32 0.0, %v2937
        %v2939 = vpop.f32.mrb[0].mxu0
        %2940 = vdwg.mxu0
        %v2941 = vadd.f32 %v2162, %v2799
        %v2942 = vadd.f32 %v2165, %v2802
        %v2943 = vadd.f32 %v2170, %v2807
        %v2944 = vadd.f32 %v2173, %v2810
        %v2945 = vadd.f32 %v2178, %v2815
        %v2946 = vadd.f32 %v2181, %v2818
        %v2947 = vadd.f32 %v2186, %v2823
        %v2948 = vadd.f32 %v2189, %v2826
        %v2949 = vadd.f32 %v2194, %v2831
        %v2950 = vadd.f32 %v2197, %v2834
        %v2951 = vadd.f32 %v2202, %v2839
        %v2952 = vadd.f32 %v2205, %v2842
        %v2953 = vadd.f32 %v2210, %v2847
        %v2954 = vadd.f32 %v2213, %v2850
        %v2955 = vadd.f32 %v2218, %v2855
        %v2956 = vadd.f32 %v2221, %v2858
        %v2957 = vadd.f32 %v2226, %v2863
        %v2958 = vadd.f32 %v2229, %v2866
        %v2959 = vadd.f32 %v2234, %v2871
        %v2960 = vadd.f32 %v2237, %v2874
        %v2961 = vadd.f32 %v2242, %v2879
        %v2962 = vadd.f32 %v2245, %v2882
        %v2963 = vadd.f32 %v2250, %v2887
        %v2964 = vadd.f32 %v2253, %v2890
        %v2965 = vadd.f32 %v2258, %v2895
        %v2966 = vadd.f32 %v2261, %v2898
        %v2967 = vadd.f32 %v2266, %v2903
        %v2968 = vadd.f32 %v2269, %v2906
        %v2969 = vadd.f32 %v2274, %v2911
        %v2970 = vadd.f32 %v2277, %v2914
        %v2971 = vadd.f32 %v2282, %v2919
        %v2972 = vadd.f32 %v2285, %v2922
        %v2973 = vadd.f32 %v2290, %v2927
        %v2974 = vadd.f32 %v2293, %v2930
        %v2975 = vadd.f32 %v2298, %v2935
        %v2976 = vadd.f32 %v2301, %v2938
        %v2977 = vld [vmem:[#allocation2 + $0x18] sm:$0xf]
        %v2978 = vld [vmem:[#allocation2 + $0x1c] sm:$0xf]
        %v2979 = vld [vmem:[#allocation2 + $0x20] sm:$0xf]
        %v2980 = vld [vmem:[#allocation2 + $0x24] sm:$0xf]
        %v2981 = vld [vmem:[#allocation2 + $0x28] sm:$0xf]
        %v2982 = vld [vmem:[#allocation2 + $0x2c] sm:$0xf]
        %v2983 = vld [vmem:[#allocation2 + $0x30] sm:$0xf]
        %v2984 = vld [vmem:[#allocation2 + $0x34] sm:$0xf]
        %v2985 = vld [vmem:[#allocation2 + $0x38] sm:$0xf]
        %v2986 = vld [vmem:[#allocation2 + $0x3c] sm:$0xf]
        %v2987 = vld [vmem:[#allocation2 + $0x40] sm:$0xf]
        %v2988 = vld [vmem:[#allocation2 + $0x44] sm:$0xf]
        %v2989 = vld [vmem:[#allocation2 + $0x48] sm:$0xf]
        %v2990 = vld [vmem:[#allocation2 + $0x4c] sm:$0xf]
        %v2991 = vld [vmem:[#allocation2 + $0x50] sm:$0xf]
        %v2992 = vld [vmem:[#allocation2 + $0x54] sm:$0xf]
        %v2993 = vld [vmem:[#allocation2 + $0x58] sm:$0xf]
        %v2994 = vld [vmem:[#allocation2 + $0x5c] sm:$0xf]
        %v2995 = vld [vmem:[#allocation2 + $0x60] sm:$0xf]
        %v2996 = vld [vmem:[#allocation2 + $0x64] sm:$0xf]
        %v2997 = vld [vmem:[#allocation2 + $0x68] sm:$0xf]
        %v2998 = vld [vmem:[#allocation2 + $0x6c] sm:$0xf]
        %v2999 = vld [vmem:[#allocation2 + $0x70] sm:$0xf]
        %v3000 = vld [vmem:[#allocation2 + $0x74] sm:$0xf]
        %v3001 = vld [vmem:[#allocation2 + $0x78] sm:$0xf]
        %v3002 = vld [vmem:[#allocation2 + $0x7c] sm:$0xf]
        %v3003 = vld [vmem:[#allocation2 + $0x80] sm:$0xf]
        %v3004 = vld [vmem:[#allocation2 + $0x84] sm:$0xf]
        %v3005 = vld [vmem:[#allocation2 + $0x88] sm:$0xf]
        %v3006 = vld [vmem:[#allocation2 + $0x8c] sm:$0xf]
        %v3007 = vld [vmem:[#allocation2 + $0x90] sm:$0xf]
        %v3008 = vld [vmem:[#allocation2 + $0x94] sm:$0xf]
        %v3009 = vld [vmem:[#allocation2 + $0x98] sm:$0xf]
        %v3010 = vld [vmem:[#allocation2 + $0x9c] sm:$0xf]
        %v3011 = vld [vmem:[#allocation2 + $0xa0] sm:$0xf]
        %v3012 = vld [vmem:[#allocation2 + $0xa4] sm:$0xf]
        %v3013 = vld [vmem:[#allocation2 + $0xa8] sm:$0x1]
        %v3014 = vld [vmem:[#allocation2 + $0x18] sm:$0xe]
        %v3052 = vunpack.c.l.b16 %v2977
        %v3053 = vunpack.c.l.b16 %v2978
        %v3054 = vunpack.c.l.b16 %v2979
        %v3055 = vunpack.c.l.b16 %v2980
        %v3056 = vunpack.c.l.b16 %v2981
        %v3057 = vunpack.c.l.b16 %v2982
        %v3058 = vunpack.c.l.b16 %v2983
        %v3059 = vunpack.c.l.b16 %v2984
        %v3060 = vunpack.c.l.b16 %v2985
        %v3061 = vunpack.c.l.b16 %v2986
        %v3062 = vunpack.c.l.b16 %v2987
        %v3063 = vunpack.c.l.b16 %v2988
        %v3064 = vunpack.c.l.b16 %v2989
        %v3065 = vunpack.c.l.b16 %v2990
        %v3066 = vunpack.c.l.b16 %v2991
        %v3067 = vunpack.c.l.b16 %v2992
        %v3068 = vunpack.c.l.b16 %v2993
        %v3069 = vunpack.c.l.b16 %v2994
        %v3070 = vunpack.c.l.b16 %v2995
        %v3071 = vunpack.c.l.b16 %v2996
        %v3072 = vunpack.c.l.b16 %v2997
        %v3073 = vunpack.c.l.b16 %v2998
        %v3074 = vunpack.c.l.b16 %v2999
        %v3075 = vunpack.c.l.b16 %v3000
        %v3076 = vunpack.c.l.b16 %v3001
        %v3077 = vunpack.c.l.b16 %v3002
        %v3078 = vunpack.c.l.b16 %v3003
        %v3079 = vunpack.c.l.b16 %v3004
        %v3080 = vunpack.c.l.b16 %v3005
        %v3081 = vunpack.c.l.b16 %v3006
        %v3082 = vunpack.c.l.b16 %v3007
        %v3083 = vunpack.c.l.b16 %v3008
        %v3084 = vunpack.c.l.b16 %v3009
        %v3085 = vunpack.c.l.b16 %v3010
        %v3086 = vunpack.c.l.b16 %v3011
        %v3087 = vunpack.c.l.b16 %v3012
        %v3088 = vunpack.c.l.b16 %v3013
        %v3089 = vpack.c.b16 %v3053, %v3052
        %v3090 = vpack.c.b16 %v3055, %v3054
        %v3091 = vpack.c.b16 %v3057, %v3056
        %v3092 = vpack.c.b16 %v3059, %v3058
        %v3093 = vpack.c.b16 %v3061, %v3060
        %v3094 = vpack.c.b16 %v3063, %v3062
        %v3095 = vpack.c.b16 %v3065, %v3064
        %v3096 = vpack.c.b16 %v3067, %v3066
        %v3097 = vpack.c.b16 %v3069, %v3068
        %v3098 = vpack.c.b16 %v3071, %v3070
        %v3099 = vpack.c.b16 %v3073, %v3072
        %v3100 = vpack.c.b16 %v3075, %v3074
        %v3101 = vpack.c.b16 %v3077, %v3076
        %v3102 = vpack.c.b16 %v3079, %v3078
        %v3103 = vpack.c.b16 %v3081, %v3080
        %v3104 = vpack.c.b16 %v3083, %v3082
        %v3105 = vpack.c.b16 %v3085, %v3084
        %v3106 = vpack.c.b16 %v3087, %v3086
        %v3107 = vpack.c.b16 %v3088, %v3088
        %v3109 = vunpack.c.l.b16 %v3014
        %v3110 = vpack.c.b16 %v3053, %v3109
        %v3112 = vshrl.u32 %v3110, 16
        %v3114 = vshll.u32 %v3110, 16
        %v3116 = vrot.slane %v3114, 1
        %v3117 = vor.u32 %v3112, %v3116
        %v3119 = vshll.u32 %v3090, 16
        %v3121 = vrot.slane %v3119, 1
        %v3122 = vsel %vm1110, %v3117, %v3121
        %v3123 = vshrl.u32 %v3090, 16
        %v3125 = vor.u32 %v3123, %v3121
        %v3127 = vshll.u32 %v3091, 16
        %v3129 = vrot.slane %v3127, 1
        %v3130 = vsel %vm1110, %v3125, %v3129
        %v3131 = vshrl.u32 %v3091, 16
        %v3133 = vor.u32 %v3131, %v3129
        %v3135 = vshll.u32 %v3092, 16
        %v3137 = vrot.slane %v3135, 1
        %v3138 = vsel %vm1110, %v3133, %v3137
        %v3139 = vshrl.u32 %v3092, 16
        %v3141 = vor.u32 %v3139, %v3137
        %v3143 = vshll.u32 %v3093, 16
        %v3145 = vrot.slane %v3143, 1
        %v3146 = vsel %vm1110, %v3141, %v3145
        %v3147 = vshrl.u32 %v3093, 16
        %v3149 = vor.u32 %v3147, %v3145
        %v3151 = vshll.u32 %v3094, 16
        %v3153 = vrot.slane %v3151, 1
        %v3154 = vsel %vm1110, %v3149, %v3153
        %v3155 = vshrl.u32 %v3094, 16
        %v3157 = vor.u32 %v3155, %v3153
        %v3159 = vshll.u32 %v3095, 16
        %v3161 = vrot.slane %v3159, 1
        %v3162 = vsel %vm1110, %v3157, %v3161
        %v3163 = vshrl.u32 %v3095, 16
        %v3165 = vor.u32 %v3163, %v3161
        %v3167 = vshll.u32 %v3096, 16
        %v3169 = vrot.slane %v3167, 1
        %v3170 = vsel %vm1110, %v3165, %v3169
        %v3171 = vshrl.u32 %v3096, 16
        %v3173 = vor.u32 %v3171, %v3169
        %v3175 = vshll.u32 %v3097, 16
        %v3177 = vrot.slane %v3175, 1
        %v3178 = vsel %vm1110, %v3173, %v3177
        %v3179 = vshrl.u32 %v3097, 16
        %v3181 = vor.u32 %v3179, %v3177
        %v3183 = vshll.u32 %v3098, 16
        %v3185 = vrot.slane %v3183, 1
        %v3186 = vsel %vm1110, %v3181, %v3185
        %v3187 = vshrl.u32 %v3098, 16
        %v3189 = vor.u32 %v3187, %v3185
        %v3191 = vshll.u32 %v3099, 16
        %v3193 = vrot.slane %v3191, 1
        %v3194 = vsel %vm1110, %v3189, %v3193
        %v3195 = vshrl.u32 %v3099, 16
        %v3197 = vor.u32 %v3195, %v3193
        %v3199 = vshll.u32 %v3100, 16
        %v3201 = vrot.slane %v3199, 1
        %v3202 = vsel %vm1110, %v3197, %v3201
        %v3203 = vshrl.u32 %v3100, 16
        %v3205 = vor.u32 %v3203, %v3201
        %v3207 = vshll.u32 %v3101, 16
        %v3209 = vrot.slane %v3207, 1
        %v3210 = vsel %vm1110, %v3205, %v3209
        %v3211 = vshrl.u32 %v3101, 16
        %v3213 = vor.u32 %v3211, %v3209
        %v3215 = vshll.u32 %v3102, 16
        %v3217 = vrot.slane %v3215, 1
        %v3218 = vsel %vm1110, %v3213, %v3217
        %v3219 = vshrl.u32 %v3102, 16
        %v3221 = vor.u32 %v3219, %v3217
        %v3223 = vshll.u32 %v3103, 16
        %v3225 = vrot.slane %v3223, 1
        %v3226 = vsel %vm1110, %v3221, %v3225
        %v3227 = vshrl.u32 %v3103, 16
        %v3229 = vor.u32 %v3227, %v3225
        %v3231 = vshll.u32 %v3104, 16
        %v3233 = vrot.slane %v3231, 1
        %v3234 = vsel %vm1110, %v3229, %v3233
        %v3235 = vshrl.u32 %v3104, 16
        %v3237 = vor.u32 %v3235, %v3233
        %v3239 = vshll.u32 %v3105, 16
        %v3241 = vrot.slane %v3239, 1
        %v3242 = vsel %vm1110, %v3237, %v3241
        %v3243 = vshrl.u32 %v3105, 16
        %v3245 = vor.u32 %v3243, %v3241
        %v3247 = vshll.u32 %v3106, 16
        %v3249 = vrot.slane %v3247, 1
        %v3250 = vsel %vm1110, %v3245, %v3249
        %v3251 = vshrl.u32 %v3106, 16
        %v3253 = vor.u32 %v3251, %v3249
        %v3255 = vshll.u32 %v3107, 16
        %v3257 = vrot.slane %v3255, 1
        %v3258 = vsel %vm1110, %v3253, %v3257
        %v3259 = vshrl.u32 %v3107, 16
        %v3261 = vld [vmem:[#allocation9 + $0x180] sm:$0xf]
        %v3262 = vld [vmem:[#allocation9 + $0x184] sm:$0xf]
        %v3263 = vld [vmem:[#allocation9 + $0x188] sm:$0xf]
        %v3264 = vld [vmem:[#allocation9 + $0x18c] sm:$0xf]
        %v3265 = vld [vmem:[#allocation9 + $0x190] sm:$0xf]
        %v3266 = vld [vmem:[#allocation9 + $0x194] sm:$0xf]
        %v3267 = vld [vmem:[#allocation9 + $0x198] sm:$0xf]
        %v3268 = vld [vmem:[#allocation9 + $0x19c] sm:$0xf]
        %v3269 = vld [vmem:[#allocation9 + $0x1a0] sm:$0xf]
        %v3270 = vld [vmem:[#allocation9 + $0x1a4] sm:$0xf]
        %v3271 = vld [vmem:[#allocation9 + $0x1a8] sm:$0xf]
        %v3272 = vld [vmem:[#allocation9 + $0x1ac] sm:$0xf]
        %v3273 = vld [vmem:[#allocation9 + $0x1b0] sm:$0xf]
        %v3274 = vld [vmem:[#allocation9 + $0x1b4] sm:$0xf]
        %v3275 = vld [vmem:[#allocation9 + $0x1b8] sm:$0xf]
        %v3276 = vld [vmem:[#allocation9 + $0x1bc] sm:$0xf]
        %v3277 = vld [vmem:[#allocation9 + $0x1c0] sm:$0xf]
        %v3278 = vld [vmem:[#allocation9 + $0x1c4] sm:$0xf]
        %v3279 = vld [vmem:[#allocation9 + $0x1c8] sm:$0xf]
        %v3280 = vld [vmem:[#allocation9 + $0x1cc] sm:$0xf]
        %v3281 = vld [vmem:[#allocation9 + $0x1d0] sm:$0xf]
        %v3282 = vld [vmem:[#allocation9 + $0x1d4] sm:$0xf]
        %v3283 = vld [vmem:[#allocation9 + $0x1d8] sm:$0xf]
        %v3284 = vld [vmem:[#allocation9 + $0x1dc] sm:$0xf]
        %v3285 = vld [vmem:[#allocation9 + $0x1e0] sm:$0xf]
        %v3286 = vld [vmem:[#allocation9 + $0x1e4] sm:$0xf]
        %v3287 = vld [vmem:[#allocation9 + $0x1e8] sm:$0xf]
        %v3288 = vld [vmem:[#allocation9 + $0x1ec] sm:$0xf]
        %v3289 = vld [vmem:[#allocation9 + $0x1f0] sm:$0xf]
        %v3290 = vld [vmem:[#allocation9 + $0x1f4] sm:$0xf]
        %v3291 = vld [vmem:[#allocation9 + $0x1f8] sm:$0xf]
        %v3292 = vld [vmem:[#allocation9 + $0x1fc] sm:$0xf]
        %v3294 = vshrl.u32 %v3089, 16
        %v3296 = vshll.u32 %v3089, 16
        %v3298 = vrot.slane %v3296, 1
        %v3299 = vor.u32 %v3294, %v3298
        %v3300 = vsel %vm1110, %v3299, %v3121
        %v3302 = vshrl.u32 %v3122, 16
        %v3304 = vshll.u32 %v3122, 16
        %v3306 = vrot.slane %v3304, 1
        %v3307 = vor.u32 %v3302, %v3306
        %v3309 = vshll.u32 %v3130, 16
        %v3311 = vrot.slane %v3309, 1
        %v3312 = vsel %vm1110, %v3307, %v3311
        %v3313 = vshrl.u32 %v3130, 16
        %v3315 = vor.u32 %v3313, %v3311
        %v3317 = vshll.u32 %v3138, 16
        %v3319 = vrot.slane %v3317, 1
        %v3320 = vsel %vm1110, %v3315, %v3319
        %v3321 = vshrl.u32 %v3138, 16
        %v3323 = vor.u32 %v3321, %v3319
        %v3325 = vshll.u32 %v3146, 16
        %v3327 = vrot.slane %v3325, 1
        %v3328 = vsel %vm1110, %v3323, %v3327
        %v3329 = vshrl.u32 %v3146, 16
        %v3331 = vor.u32 %v3329, %v3327
        %v3333 = vshll.u32 %v3154, 16
        %v3335 = vrot.slane %v3333, 1
        %v3336 = vsel %vm1110, %v3331, %v3335
        %v3337 = vshrl.u32 %v3154, 16
        %v3339 = vor.u32 %v3337, %v3335
        %v3341 = vshll.u32 %v3162, 16
        %v3343 = vrot.slane %v3341, 1
        %v3344 = vsel %vm1110, %v3339, %v3343
        %v3345 = vshrl.u32 %v3162, 16
        %v3347 = vor.u32 %v3345, %v3343
        %v3349 = vshll.u32 %v3170, 16
        %v3351 = vrot.slane %v3349, 1
        %v3352 = vsel %vm1110, %v3347, %v3351
        %v3353 = vshrl.u32 %v3170, 16
        %v3355 = vor.u32 %v3353, %v3351
        %v3357 = vshll.u32 %v3178, 16
        %v3359 = vrot.slane %v3357, 1
        %v3360 = vsel %vm1110, %v3355, %v3359
        %v3361 = vshrl.u32 %v3178, 16
        %v3363 = vor.u32 %v3361, %v3359
        %v3365 = vshll.u32 %v3186, 16
        %v3367 = vrot.slane %v3365, 1
        %v3368 = vsel %vm1110, %v3363, %v3367
        %v3369 = vshrl.u32 %v3186, 16
        %v3371 = vor.u32 %v3369, %v3367
        %v3373 = vshll.u32 %v3194, 16
        %v3375 = vrot.slane %v3373, 1
        %v3376 = vsel %vm1110, %v3371, %v3375
        %v3377 = vshrl.u32 %v3194, 16
        %v3379 = vor.u32 %v3377, %v3375
        %v3381 = vshll.u32 %v3202, 16
        %v3383 = vrot.slane %v3381, 1
        %v3384 = vsel %vm1110, %v3379, %v3383
        %v3385 = vshrl.u32 %v3202, 16
        %v3387 = vor.u32 %v3385, %v3383
        %v3389 = vshll.u32 %v3210, 16
        %v3391 = vrot.slane %v3389, 1
        %v3392 = vsel %vm1110, %v3387, %v3391
        %v3393 = vshrl.u32 %v3210, 16
        %v3395 = vor.u32 %v3393, %v3391
        %v3397 = vshll.u32 %v3218, 16
        %v3399 = vrot.slane %v3397, 1
        %v3400 = vsel %vm1110, %v3395, %v3399
        %v3401 = vshrl.u32 %v3218, 16
        %v3403 = vor.u32 %v3401, %v3399
        %v3405 = vshll.u32 %v3226, 16
        %v3407 = vrot.slane %v3405, 1
        %v3408 = vsel %vm1110, %v3403, %v3407
        %v3409 = vshrl.u32 %v3226, 16
        %v3411 = vor.u32 %v3409, %v3407
        %v3413 = vshll.u32 %v3234, 16
        %v3415 = vrot.slane %v3413, 1
        %v3416 = vsel %vm1110, %v3411, %v3415
        %v3417 = vshrl.u32 %v3234, 16
        %v3419 = vor.u32 %v3417, %v3415
        %v3421 = vshll.u32 %v3242, 16
        %v3423 = vrot.slane %v3421, 1
        %v3424 = vsel %vm1110, %v3419, %v3423
        %v3425 = vshrl.u32 %v3242, 16
        %v3427 = vor.u32 %v3425, %v3423
        %v3429 = vshll.u32 %v3250, 16
        %v3431 = vrot.slane %v3429, 1
        %v3432 = vsel %vm1110, %v3427, %v3431
        %v3433 = vshrl.u32 %v3250, 16
        %v3435 = vor.u32 %v3433, %v3431
        %v3437 = vshll.u32 %v3258, 16
        %v3439 = vrot.slane %v3437, 1
        %v3440 = vsel %vm1110, %v3435, %v3439
        %v3441 = vshrl.u32 %v3258, 16
        %v3443 = vor.u32 %v3441, %v3439
        %v3445 = vshll.u32 %v3259, 16
        %v3447 = vrot.slane %v3445, 1
        %v3448 = vsel %vm1110, %v3443, %v3447
        %v3517 = vunpack.c.l.b16 %v3261
        %v3518 = vunpack.c.l.b16 %v3262
        %v3519 = vunpack.c.l.b16 %v3263
        %v3520 = vunpack.c.l.b16 %v3264
        %v3521 = vunpack.c.l.b16 %v3265
        %v3522 = vunpack.c.l.b16 %v3266
        %v3523 = vunpack.c.l.b16 %v3267
        %v3524 = vunpack.c.l.b16 %v3268
        %v3525 = vunpack.c.l.b16 %v3269
        %v3526 = vunpack.c.l.b16 %v3270
        %v3527 = vunpack.c.l.b16 %v3271
        %v3528 = vunpack.c.l.b16 %v3272
        %v3529 = vunpack.c.l.b16 %v3273
        %v3530 = vunpack.c.l.b16 %v3274
        %v3531 = vunpack.c.l.b16 %v3275
        %v3532 = vunpack.c.l.b16 %v3276
        %v3533 = vunpack.c.l.b16 %v3277
        %v3534 = vunpack.c.l.b16 %v3278
        %v3535 = vunpack.c.l.b16 %v3279
        %v3536 = vunpack.c.l.b16 %v3280
        %v3537 = vunpack.c.l.b16 %v3281
        %v3538 = vunpack.c.l.b16 %v3282
        %v3539 = vunpack.c.l.b16 %v3283
        %v3540 = vunpack.c.l.b16 %v3284
        %v3541 = vunpack.c.l.b16 %v3285
        %v3542 = vunpack.c.l.b16 %v3286
        %v3543 = vunpack.c.l.b16 %v3287
        %v3544 = vunpack.c.l.b16 %v3288
        %v3545 = vunpack.c.l.b16 %v3289
        %v3546 = vunpack.c.l.b16 %v3290
        %v3547 = vunpack.c.l.b16 %v3291
        %v3548 = vunpack.c.l.b16 %v3292
        %v3549 = vpack.c.b16 %v3518, %v3517
        %v3550 = vpack.c.b16 %v3520, %v3519
        %v3551 = vpack.c.b16 %v3522, %v3521
        %v3552 = vpack.c.b16 %v3524, %v3523
        %v3553 = vpack.c.b16 %v3526, %v3525
        %v3554 = vpack.c.b16 %v3528, %v3527
        %v3555 = vpack.c.b16 %v3530, %v3529
        %v3556 = vpack.c.b16 %v3532, %v3531
        %v3557 = vpack.c.b16 %v3534, %v3533
        %v3558 = vpack.c.b16 %v3536, %v3535
        %v3559 = vpack.c.b16 %v3538, %v3537
        %v3560 = vpack.c.b16 %v3540, %v3539
        %v3561 = vpack.c.b16 %v3542, %v3541
        %v3562 = vpack.c.b16 %v3544, %v3543
        %v3563 = vpack.c.b16 %v3546, %v3545
        %v3564 = vpack.c.b16 %v3548, %v3547
        %3581 = vmatprep.subr.bf16.mxu0 0
        %3582 = vmatpush1.bf16.msra.mxu0 %v3549
        %3583 = vmatprep.subr.bf16.mxu0 0
        %3584 = vmatpush1.bf16.msra.mxu0 %v3550
        %3585 = vmatprep.subr.bf16.mxu0 0
        %3586 = vmatpush1.bf16.msra.mxu0 %v3551
        %3587 = vmatprep.subr.bf16.mxu0 0
        %3588 = vmatpush1.bf16.msra.mxu0 %v3552
        %3589 = vmatprep.subr.bf16.mxu0 0
        %3590 = vmatpush1.bf16.msra.mxu0 %v3553
        %3591 = vmatprep.subr.bf16.mxu0 0
        %3592 = vmatpush1.bf16.msra.mxu0 %v3554
        %3593 = vmatprep.subr.bf16.mxu0 0
        %3594 = vmatpush1.bf16.msra.mxu0 %v3555
        %3595 = vmatprep.subr.bf16.mxu0 0
        %3596 = vmatpush1.bf16.msra.mxu0 %v3556
        %3597 = vmatprep.subr.bf16.mxu0 0
        %3598 = vmatpush1.bf16.msra.mxu0 %v3557
        %3599 = vmatprep.subr.bf16.mxu0 0
        %3600 = vmatpush1.bf16.msra.mxu0 %v3558
        %3601 = vmatprep.subr.bf16.mxu0 0
        %3602 = vmatpush1.bf16.msra.mxu0 %v3559
        %3603 = vmatprep.subr.bf16.mxu0 0
        %3604 = vmatpush1.bf16.msra.mxu0 %v3560
        %3605 = vmatprep.subr.bf16.mxu0 0
        %3606 = vmatpush1.bf16.msra.mxu0 %v3561
        %3607 = vmatprep.subr.bf16.mxu0 0
        %3608 = vmatpush1.bf16.msra.mxu0 %v3562
        %3609 = vmatprep.subr.bf16.mxu0 0
        %3610 = vmatpush1.bf16.msra.mxu0 %v3563
        %3611 = vmatprep.subr.bf16.mxu0 0
        %3612 = vmatpush1.bf16.msra.mxu0 %v3564
        %3613 = vmatprep.mubr.bf16.mxu0 %v3312
        %3614 = vmatmul.mubr.bf16.gmra.mrb[0].mxu0 %v3300
        %v3615 = vpop.f32.mrb[0].mxu0
        %v3616 = vadd.f32 0.0, %v3615
        %v3617 = vpop.f32.mrb[0].mxu0
        %v3618 = vpop.f32.mrb[0].mxu0
        %v3619 = vadd.f32 0.0, %v3618
        %v3620 = vpop.f32.mrb[0].mxu0
        %3621 = vmatprep.mubr.bf16.mxu0 %v3320
        %3622 = vmatmul.mubr.bf16.gmra.mrb[0].mxu0 %v3130
        %v3623 = vpop.f32.mrb[0].mxu0
        %v3624 = vadd.f32 0.0, %v3623
        %v3625 = vpop.f32.mrb[0].mxu0
        %v3626 = vpop.f32.mrb[0].mxu0
        %v3627 = vadd.f32 0.0, %v3626
        %v3628 = vpop.f32.mrb[0].mxu0
        %3629 = vmatprep.mubr.bf16.mxu0 %v3328
        %3630 = vmatmul.mubr.bf16.gmra.mrb[0].mxu0 %v3138
        %v3631 = vpop.f32.mrb[0].mxu0
        %v3632 = vadd.f32 0.0, %v3631
        %v3633 = vpop.f32.mrb[0].mxu0
        %v3634 = vpop.f32.mrb[0].mxu0
        %v3635 = vadd.f32 0.0, %v3634
        %v3636 = vpop.f32.mrb[0].mxu0
        %3637 = vmatprep.mubr.bf16.mxu0 %v3336
        %3638 = vmatmul.mubr.bf16.gmra.mrb[0].mxu0 %v3146
        %v3639 = vpop.f32.mrb[0].mxu0
        %v3640 = vadd.f32 0.0, %v3639
        %v3641 = vpop.f32.mrb[0].mxu0
        %v3642 = vpop.f32.mrb[0].mxu0
        %v3643 = vadd.f32 0.0, %v3642
        %v3644 = vpop.f32.mrb[0].mxu0
        %3645 = vmatprep.mubr.bf16.mxu0 %v3344
        %3646 = vmatmul.mubr.bf16.gmra.mrb[0].mxu0 %v3154
        %v3647 = vpop.f32.mrb[0].mxu0
        %v3648 = vadd.f32 0.0, %v3647
        %v3649 = vpop.f32.mrb[0].mxu0
        %v3650 = vpop.f32.mrb[0].mxu0
        %v3651 = vadd.f32 0.0, %v3650
        %v3652 = vpop.f32.mrb[0].mxu0
        %3653 = vmatprep.mubr.bf16.mxu0 %v3352
        %3654 = vmatmul.mubr.bf16.gmra.mrb[0].mxu0 %v3162
        %v3655 = vpop.f32.mrb[0].mxu0
        %v3656 = vadd.f32 0.0, %v3655
        %v3657 = vpop.f32.mrb[0].mxu0
        %v3658 = vpop.f32.mrb[0].mxu0
        %v3659 = vadd.f32 0.0, %v3658
        %v3660 = vpop.f32.mrb[0].mxu0
        %3661 = vmatprep.mubr.bf16.mxu0 %v3360
        %3662 = vmatmul.mubr.bf16.gmra.mrb[0].mxu0 %v3170
        %v3663 = vpop.f32.mrb[0].mxu0
        %v3664 = vadd.f32 0.0, %v3663
        %v3665 = vpop.f32.mrb[0].mxu0
        %v3666 = vpop.f32.mrb[0].mxu0
        %v3667 = vadd.f32 0.0, %v3666
        %v3668 = vpop.f32.mrb[0].mxu0
        %3669 = vmatprep.mubr.bf16.mxu0 %v3368
        %3670 = vmatmul.mubr.bf16.gmra.mrb[0].mxu0 %v3178
        %v3671 = vpop.f32.mrb[0].mxu0
        %v3672 = vadd.f32 0.0, %v3671
        %v3673 = vpop.f32.mrb[0].mxu0
        %v3674 = vpop.f32.mrb[0].mxu0
        %v3675 = vadd.f32 0.0, %v3674
        %v3676 = vpop.f32.mrb[0].mxu0
        %3677 = vmatprep.mubr.bf16.mxu0 %v3376
        %3678 = vmatmul.mubr.bf16.gmra.mrb[0].mxu0 %v3186
        %v3679 = vpop.f32.mrb[0].mxu0
        %v3680 = vadd.f32 0.0, %v3679
        %v3681 = vpop.f32.mrb[0].mxu0
        %v3682 = vpop.f32.mrb[0].mxu0
        %v3683 = vadd.f32 0.0, %v3682
        %v3684 = vpop.f32.mrb[0].mxu0
        %3685 = vmatprep.mubr.bf16.mxu0 %v3384
        %3686 = vmatmul.mubr.bf16.gmra.mrb[0].mxu0 %v3194
        %v3687 = vpop.f32.mrb[0].mxu0
        %v3688 = vadd.f32 0.0, %v3687
        %v3689 = vpop.f32.mrb[0].mxu0
        %v3690 = vpop.f32.mrb[0].mxu0
        %v3691 = vadd.f32 0.0, %v3690
        %v3692 = vpop.f32.mrb[0].mxu0
        %3693 = vmatprep.mubr.bf16.mxu0 %v3392
        %3694 = vmatmul.mubr.bf16.gmra.mrb[0].mxu0 %v3202
        %v3695 = vpop.f32.mrb[0].mxu0
        %v3696 = vadd.f32 0.0, %v3695
        %v3697 = vpop.f32.mrb[0].mxu0
        %v3698 = vpop.f32.mrb[0].mxu0
        %v3699 = vadd.f32 0.0, %v3698
        %v3700 = vpop.f32.mrb[0].mxu0
        %3701 = vmatprep.mubr.bf16.mxu0 %v3400
        %3702 = vmatmul.mubr.bf16.gmra.mrb[0].mxu0 %v3210
        %v3703 = vpop.f32.mrb[0].mxu0
        %v3704 = vadd.f32 0.0, %v3703
        %v3705 = vpop.f32.mrb[0].mxu0
        %v3706 = vpop.f32.mrb[0].mxu0
        %v3707 = vadd.f32 0.0, %v3706
        %v3708 = vpop.f32.mrb[0].mxu0
        %3709 = vmatprep.mubr.bf16.mxu0 %v3408
        %3710 = vmatmul.mubr.bf16.gmra.mrb[0].mxu0 %v3218
        %v3711 = vpop.f32.mrb[0].mxu0
        %v3712 = vadd.f32 0.0, %v3711
        %v3713 = vpop.f32.mrb[0].mxu0
        %v3714 = vpop.f32.mrb[0].mxu0
        %v3715 = vadd.f32 0.0, %v3714
        %v3716 = vpop.f32.mrb[0].mxu0
        %3717 = vmatprep.mubr.bf16.mxu0 %v3416
        %3718 = vmatmul.mubr.bf16.gmra.mrb[0].mxu0 %v3226
        %v3719 = vpop.f32.mrb[0].mxu0
        %v3720 = vadd.f32 0.0, %v3719
        %v3721 = vpop.f32.mrb[0].mxu0
        %v3722 = vpop.f32.mrb[0].mxu0
        %v3723 = vadd.f32 0.0, %v3722
        %v3724 = vpop.f32.mrb[0].mxu0
        %3725 = vmatprep.mubr.bf16.mxu0 %v3424
        %3726 = vmatmul.mubr.bf16.gmra.mrb[0].mxu0 %v3234
        %v3727 = vpop.f32.mrb[0].mxu0
        %v3728 = vadd.f32 0.0, %v3727
        %v3729 = vpop.f32.mrb[0].mxu0
        %v3730 = vpop.f32.mrb[0].mxu0
        %v3731 = vadd.f32 0.0, %v3730
        %v3732 = vpop.f32.mrb[0].mxu0
        %3733 = vmatprep.mubr.bf16.mxu0 %v3432
        %3734 = vmatmul.mubr.bf16.gmra.mrb[0].mxu0 %v3242
        %v3735 = vpop.f32.mrb[0].mxu0
        %v3736 = vadd.f32 0.0, %v3735
        %v3737 = vpop.f32.mrb[0].mxu0
        %v3738 = vpop.f32.mrb[0].mxu0
        %v3739 = vadd.f32 0.0, %v3738
        %v3740 = vpop.f32.mrb[0].mxu0
        %3741 = vmatprep.mubr.bf16.mxu0 %v3440
        %3742 = vmatmul.mubr.bf16.gmra.mrb[0].mxu0 %v3250
        %v3743 = vpop.f32.mrb[0].mxu0
        %v3744 = vadd.f32 0.0, %v3743
        %v3745 = vpop.f32.mrb[0].mxu0
        %v3746 = vpop.f32.mrb[0].mxu0
        %v3747 = vadd.f32 0.0, %v3746
        %v3748 = vpop.f32.mrb[0].mxu0
        %3749 = vmatprep.mubr.bf16.mxu0 %v3448
        %3750 = vmatmul.mubr.bf16.gmra.mrb[0].mxu0 %v3258
        %v3751 = vpop.f32.mrb[0].mxu0
        %v3752 = vadd.f32 0.0, %v3751
        %v3753 = vpop.f32.mrb[0].mxu0
        %v3754 = vpop.f32.mrb[0].mxu0
        %v3755 = vadd.f32 0.0, %v3754
        %v3756 = vpop.f32.mrb[0].mxu0
        %3757 = vdwg.mxu0
        %v3758 = vadd.f32 %v2941, %v3616
        %v3759 = vadd.f32 %v2942, %v3619
        %v3760 = vadd.f32 %v2943, %v3624
        %v3761 = vadd.f32 %v2944, %v3627
        %v3762 = vadd.f32 %v2945, %v3632
        %v3763 = vadd.f32 %v2946, %v3635
        %v3764 = vadd.f32 %v2947, %v3640
        %v3765 = vadd.f32 %v2948, %v3643
        %v3766 = vadd.f32 %v2949, %v3648
        %v3767 = vadd.f32 %v2950, %v3651
        %v3768 = vadd.f32 %v2951, %v3656
        %v3769 = vadd.f32 %v2952, %v3659
        %v3770 = vadd.f32 %v2953, %v3664
        %v3771 = vadd.f32 %v2954, %v3667
        %v3772 = vadd.f32 %v2955, %v3672
        %v3773 = vadd.f32 %v2956, %v3675
        %v3774 = vadd.f32 %v2957, %v3680
        %v3775 = vadd.f32 %v2958, %v3683
        %v3776 = vadd.f32 %v2959, %v3688
        %v3777 = vadd.f32 %v2960, %v3691
        %v3778 = vadd.f32 %v2961, %v3696
        %v3779 = vadd.f32 %v2962, %v3699
        %v3780 = vadd.f32 %v2963, %v3704
        %v3781 = vadd.f32 %v2964, %v3707
        %v3782 = vadd.f32 %v2965, %v3712
        %v3783 = vadd.f32 %v2966, %v3715
        %v3784 = vadd.f32 %v2967, %v3720
        %v3785 = vadd.f32 %v2968, %v3723
        %v3786 = vadd.f32 %v2969, %v3728
        %v3787 = vadd.f32 %v2970, %v3731
        %v3788 = vadd.f32 %v2971, %v3736
        %v3789 = vadd.f32 %v2972, %v3739
        %v3790 = vadd.f32 %v2973, %v3744
        %v3791 = vadd.f32 %v2974, %v3747
        %v3792 = vadd.f32 %v2975, %v3752
        %v3793 = vadd.f32 %v2976, %v3755
        %v3794 = vld [vmem:[#allocation2 + $0xa8] sm:$0x3]
        %v3795 = vld [vmem:[#allocation9 + $0x200] sm:$0xf]
        %v3796 = vld [vmem:[#allocation9 + $0x204] sm:$0xf]
        %v3797 = vld [vmem:[#allocation9 + $0x208] sm:$0xf]
        %v3798 = vld [vmem:[#allocation9 + $0x20c] sm:$0xf]
        %v3799 = vld [vmem:[#allocation9 + $0x210] sm:$0xf]
        %v3800 = vld [vmem:[#allocation9 + $0x214] sm:$0xf]
        %v3801 = vld [vmem:[#allocation9 + $0x218] sm:$0xf]
        %v3802 = vld [vmem:[#allocation9 + $0x21c] sm:$0xf]
        %v3803 = vld [vmem:[#allocation9 + $0x220] sm:$0xf]
        %v3804 = vld [vmem:[#allocation9 + $0x224] sm:$0xf]
        %v3805 = vld [vmem:[#allocation9 + $0x228] sm:$0xf]
        %v3806 = vld [vmem:[#allocation9 + $0x22c] sm:$0xf]
        %v3807 = vld [vmem:[#allocation9 + $0x230] sm:$0xf]
        %v3808 = vld [vmem:[#allocation9 + $0x234] sm:$0xf]
        %v3809 = vld [vmem:[#allocation9 + $0x238] sm:$0xf]
        %v3810 = vld [vmem:[#allocation9 + $0x23c] sm:$0xf]
        %v3812 = vunpack.c.l.b16 %v3794
        %v3813 = vpack.c.b16 %v3812, %v3812
        %vm3814 = vsmask.f32 6400
        %v3815 = vrot.slane %v3112, 1
        %v3816 = vrot.slane %v3114, 2
        %v3817 = vor.u32 %v3815, %v3816
        %v3818 = vrot.slane %v3123, 1
        %v3819 = vrot.slane %v3119, 2
        %v3820 = vor.u32 %v3818, %v3819
        %v3821 = vsel %vm3814, %v3817, %v3820
        %v3822 = vrot.slane %v3131, 1
        %v3823 = vrot.slane %v3127, 2
        %v3824 = vor.u32 %v3822, %v3823
        %v3825 = vsel %vm3814, %v3820, %v3824
        %v3826 = vrot.slane %v3139, 1
        %v3827 = vrot.slane %v3135, 2
        %v3828 = vor.u32 %v3826, %v3827
        %v3829 = vsel %vm3814, %v3824, %v3828
        %v3830 = vrot.slane %v3147, 1
        %v3831 = vrot.slane %v3143, 2
        %v3832 = vor.u32 %v3830, %v3831
        %v3833 = vsel %vm3814, %v3828, %v3832
        %v3834 = vrot.slane %v3155, 1
        %v3835 = vrot.slane %v3151, 2
        %v3836 = vor.u32 %v3834, %v3835
        %v3837 = vsel %vm3814, %v3832, %v3836
        %v3838 = vrot.slane %v3163, 1
        %v3839 = vrot.slane %v3159, 2
        %v3840 = vor.u32 %v3838, %v3839
        %v3841 = vsel %vm3814, %v3836, %v3840
        %v3842 = vrot.slane %v3171, 1
        %v3843 = vrot.slane %v3167, 2
        %v3844 = vor.u32 %v3842, %v3843
        %v3845 = vsel %vm3814, %v3840, %v3844
        %v3846 = vrot.slane %v3179, 1
        %v3847 = vrot.slane %v3175, 2
        %v3848 = vor.u32 %v3846, %v3847
        %v3849 = vsel %vm3814, %v3844, %v3848
        %v3850 = vrot.slane %v3187, 1
        %v3851 = vrot.slane %v3183, 2
        %v3852 = vor.u32 %v3850, %v3851
        %v3853 = vsel %vm3814, %v3848, %v3852
        %v3854 = vrot.slane %v3195, 1
        %v3855 = vrot.slane %v3191, 2
        %v3856 = vor.u32 %v3854, %v3855
        %v3857 = vsel %vm3814, %v3852, %v3856
        %v3858 = vrot.slane %v3203, 1
        %v3859 = vrot.slane %v3199, 2
        %v3860 = vor.u32 %v3858, %v3859
        %v3861 = vsel %vm3814, %v3856, %v3860
        %v3862 = vrot.slane %v3211, 1
        %v3863 = vrot.slane %v3207, 2
        %v3864 = vor.u32 %v3862, %v3863
        %v3865 = vsel %vm3814, %v3860, %v3864
        %v3866 = vrot.slane %v3219, 1
        %v3867 = vrot.slane %v3215, 2
        %v3868 = vor.u32 %v3866, %v3867
        %v3869 = vsel %vm3814, %v3864, %v3868
        %v3870 = vrot.slane %v3227, 1
        %v3871 = vrot.slane %v3223, 2
        %v3872 = vor.u32 %v3870, %v3871
        %v3873 = vsel %vm3814, %v3868, %v3872
        %v3874 = vrot.slane %v3235, 1
        %v3875 = vrot.slane %v3231, 2
        %v3876 = vor.u32 %v3874, %v3875
        %v3877 = vsel %vm3814, %v3872, %v3876
        %v3878 = vrot.slane %v3243, 1
        %v3879 = vrot.slane %v3239, 2
        %v3880 = vor.u32 %v3878, %v3879
        %v3881 = vsel %vm3814, %v3876, %v3880
        %v3882 = vrot.slane %v3251, 1
        %v3883 = vrot.slane %v3247, 2
        %v3884 = vor.u32 %v3882, %v3883
        %v3885 = vsel %vm3814, %v3880, %v3884
        %v3887 = vshrl.u32 %v3813, 16
        %v3889 = vrot.slane %v3887, 1
        %v3890 = vshll.u32 %v3813, 16
        %v3892 = vrot.slane %v3890, 2
        %v3893 = vor.u32 %v3889, %v3892
        %v3894 = vsel %vm3814, %v3884, %v3893
        %v3929 = vunpack.c.l.b16 %v3795
        %v3930 = vunpack.c.l.b16 %v3796
        %v3931 = vunpack.c.l.b16 %v3797
        %v3932 = vunpack.c.l.b16 %v3798
        %v3933 = vunpack.c.l.b16 %v3799
        %v3934 = vunpack.c.l.b16 %v3800
        %v3935 = vunpack.c.l.b16 %v3801
        %v3936 = vunpack.c.l.b16 %v3802
        %v3937 = vunpack.c.l.b16 %v3803
        %v3938 = vunpack.c.l.b16 %v3804
        %v3939 = vunpack.c.l.b16 %v3805
        %v3940 = vunpack.c.l.b16 %v3806
        %v3941 = vunpack.c.l.b16 %v3807
        %v3942 = vunpack.c.l.b16 %v3808
        %v3943 = vunpack.c.l.b16 %v3809
        %v3944 = vunpack.c.l.b16 %v3810
        %v3945 = vpack.c.b16 %v3930, %v3929
        %v3946 = vpack.c.b16 %v3932, %v3931
        %v3947 = vpack.c.b16 %v3934, %v3933
        %v3948 = vpack.c.b16 %v3936, %v3935
        %v3949 = vpack.c.b16 %v3938, %v3937
        %v3950 = vpack.c.b16 %v3940, %v3939
        %v3951 = vpack.c.b16 %v3942, %v3941
        %v3952 = vpack.c.b16 %v3944, %v3943
        %3961 = vmatprep.subr.bf16.mxu0 0
        %3962 = vmatpush1.bf16.msra.mxu0 %v3945
        %3963 = vmatprep.subr.bf16.mxu0 0
        %3964 = vmatpush1.bf16.msra.mxu0 %v3946
        %3965 = vmatprep.subr.bf16.mxu0 0
        %3966 = vmatpush1.bf16.msra.mxu0 %v3947
        %3967 = vmatprep.subr.bf16.mxu0 0
        %3968 = vmatpush1.bf16.msra.mxu0 %v3948
        %3969 = vmatprep.subr.bf16.mxu0 0
        %3970 = vmatpush1.bf16.msra.mxu0 %v3949
        %3971 = vmatprep.subr.bf16.mxu0 0
        %3972 = vmatpush1.bf16.msra.mxu0 %v3950
        %3973 = vmatprep.subr.bf16.mxu0 0
        %3974 = vmatpush1.bf16.msra.mxu0 %v3951
        %3975 = vmatprep.subr.bf16.mxu0 0
        %3976 = vmatpush1.bf16.msra.mxu0 %v3952
        %3977 = vmatprep.subr.bf16.mxu0 0
        %3978 = vmatpush1.bf16.msra.mxu0 0
        %3979 = vmatprep.subr.bf16.mxu0 0
        %3980 = vmatpush1.bf16.msra.mxu0 0
        %3981 = vmatprep.subr.bf16.mxu0 0
        %3982 = vmatpush1.bf16.msra.mxu0 0
        %3983 = vmatprep.subr.bf16.mxu0 0
        %3984 = vmatpush1.bf16.msra.mxu0 0
        %3985 = vmatprep.subr.bf16.mxu0 0
        %3986 = vmatpush1.bf16.msra.mxu0 0
        %3987 = vmatprep.subr.bf16.mxu0 0
        %3988 = vmatpush1.bf16.msra.mxu0 0
        %3989 = vmatprep.subr.bf16.mxu0 0
        %3990 = vmatpush1.bf16.msra.mxu0 0
        %3991 = vmatprep.subr.bf16.mxu0 0
        %3992 = vmatpush1.bf16.msra.mxu0 0
        %3993 = vmatprep.mubr.bf16.mxu0 0
        %3994 = vmatmul.mubr.bf16.gmra.mrb[0].mxu0 %v3821
        %v3995 = vpop.f32.mrb[0].mxu0
        %v3996 = vadd.f32 0.0, %v3995
        %v3997 = vpop.f32.mrb[0].mxu0
        %v3998 = vpop.f32.mrb[0].mxu0
        %v3999 = vadd.f32 0.0, %v3998
        %v4000 = vpop.f32.mrb[0].mxu0
        %4001 = vmatprep.mubr.bf16.mxu0 0
        %4002 = vmatmul.mubr.bf16.gmra.mrb[0].mxu0 %v3825
        %v4003 = vpop.f32.mrb[0].mxu0
        %v4004 = vadd.f32 0.0, %v4003
        %v4005 = vpop.f32.mrb[0].mxu0
        %v4006 = vpop.f32.mrb[0].mxu0
        %v4007 = vadd.f32 0.0, %v4006
        %v4008 = vpop.f32.mrb[0].mxu0
        %4009 = vmatprep.mubr.bf16.mxu0 0
        %4010 = vmatmul.mubr.bf16.gmra.mrb[0].mxu0 %v3829
        %v4011 = vpop.f32.mrb[0].mxu0
        %v4012 = vadd.f32 0.0, %v4011
        %v4013 = vpop.f32.mrb[0].mxu0
        %v4014 = vpop.f32.mrb[0].mxu0
        %v4015 = vadd.f32 0.0, %v4014
        %v4016 = vpop.f32.mrb[0].mxu0
        %4017 = vmatprep.mubr.bf16.mxu0 0
        %4018 = vmatmul.mubr.bf16.gmra.mrb[0].mxu0 %v3833
        %v4019 = vpop.f32.mrb[0].mxu0
        %v4020 = vadd.f32 0.0, %v4019
        %v4021 = vpop.f32.mrb[0].mxu0
        %v4022 = vpop.f32.mrb[0].mxu0
        %v4023 = vadd.f32 0.0, %v4022
        %v4024 = vpop.f32.mrb[0].mxu0
        %4025 = vmatprep.mubr.bf16.mxu0 0
        %4026 = vmatmul.mubr.bf16.gmra.mrb[0].mxu0 %v3837
        %v4027 = vpop.f32.mrb[0].mxu0
        %v4028 = vadd.f32 0.0, %v4027
        %v4029 = vpop.f32.mrb[0].mxu0
        %v4030 = vpop.f32.mrb[0].mxu0
        %v4031 = vadd.f32 0.0, %v4030
        %v4032 = vpop.f32.mrb[0].mxu0
        %4033 = vmatprep.mubr.bf16.mxu0 0
        %4034 = vmatmul.mubr.bf16.gmra.mrb[0].mxu0 %v3841
        %v4035 = vpop.f32.mrb[0].mxu0
        %v4036 = vadd.f32 0.0, %v4035
        %v4037 = vpop.f32.mrb[0].mxu0
        %v4038 = vpop.f32.mrb[0].mxu0
        %v4039 = vadd.f32 0.0, %v4038
        %v4040 = vpop.f32.mrb[0].mxu0
        %4041 = vmatprep.mubr.bf16.mxu0 0
        %4042 = vmatmul.mubr.bf16.gmra.mrb[0].mxu0 %v3845
        %v4043 = vpop.f32.mrb[0].mxu0
        %v4044 = vadd.f32 0.0, %v4043
        %v4045 = vpop.f32.mrb[0].mxu0
        %v4046 = vpop.f32.mrb[0].mxu0
        %v4047 = vadd.f32 0.0, %v4046
        %v4048 = vpop.f32.mrb[0].mxu0
        %4049 = vmatprep.mubr.bf16.mxu0 0
        %4050 = vmatmul.mubr.bf16.gmra.mrb[0].mxu0 %v3849
        %v4051 = vpop.f32.mrb[0].mxu0
        %v4052 = vadd.f32 0.0, %v4051
        %v4053 = vpop.f32.mrb[0].mxu0
        %v4054 = vpop.f32.mrb[0].mxu0
        %v4055 = vadd.f32 0.0, %v4054
        %v4056 = vpop.f32.mrb[0].mxu0
        %4057 = vmatprep.mubr.bf16.mxu0 0
        %4058 = vmatmul.mubr.bf16.gmra.mrb[0].mxu0 %v3853
        %v4059 = vpop.f32.mrb[0].mxu0
        %v4060 = vadd.f32 0.0, %v4059
        %v4061 = vpop.f32.mrb[0].mxu0
        %v4062 = vpop.f32.mrb[0].mxu0
        %v4063 = vadd.f32 0.0, %v4062
        %v4064 = vpop.f32.mrb[0].mxu0
        %4065 = vmatprep.mubr.bf16.mxu0 0
        %4066 = vmatmul.mubr.bf16.gmra.mrb[0].mxu0 %v3857
        %v4067 = vpop.f32.mrb[0].mxu0
        %v4068 = vadd.f32 0.0, %v4067
        %v4069 = vpop.f32.mrb[0].mxu0
        %v4070 = vpop.f32.mrb[0].mxu0
        %v4071 = vadd.f32 0.0, %v4070
        %v4072 = vpop.f32.mrb[0].mxu0
        %4073 = vmatprep.mubr.bf16.mxu0 0
        %4074 = vmatmul.mubr.bf16.gmra.mrb[0].mxu0 %v3861
        %v4075 = vpop.f32.mrb[0].mxu0
        %v4076 = vadd.f32 0.0, %v4075
        %v4077 = vpop.f32.mrb[0].mxu0
        %v4078 = vpop.f32.mrb[0].mxu0
        %v4079 = vadd.f32 0.0, %v4078
        %v4080 = vpop.f32.mrb[0].mxu0
        %4081 = vmatprep.mubr.bf16.mxu0 0
        %4082 = vmatmul.mubr.bf16.gmra.mrb[0].mxu0 %v3865
        %v4083 = vpop.f32.mrb[0].mxu0
        %v4084 = vadd.f32 0.0, %v4083
        %v4085 = vpop.f32.mrb[0].mxu0
        %v4086 = vpop.f32.mrb[0].mxu0
        %v4087 = vadd.f32 0.0, %v4086
        %v4088 = vpop.f32.mrb[0].mxu0
        %4089 = vmatprep.mubr.bf16.mxu0 0
        %4090 = vmatmul.mubr.bf16.gmra.mrb[0].mxu0 %v3869
        %v4091 = vpop.f32.mrb[0].mxu0
        %v4092 = vadd.f32 0.0, %v4091
        %v4093 = vpop.f32.mrb[0].mxu0
        %v4094 = vpop.f32.mrb[0].mxu0
        %v4095 = vadd.f32 0.0, %v4094
        %v4096 = vpop.f32.mrb[0].mxu0
        %4097 = vmatprep.mubr.bf16.mxu0 0
        %4098 = vmatmul.mubr.bf16.gmra.mrb[0].mxu0 %v3873
        %v4099 = vpop.f32.mrb[0].mxu0
        %v4100 = vadd.f32 0.0, %v4099
        %v4101 = vpop.f32.mrb[0].mxu0
        %v4102 = vpop.f32.mrb[0].mxu0
        %v4103 = vadd.f32 0.0, %v4102
        %v4104 = vpop.f32.mrb[0].mxu0
        %4105 = vmatprep.mubr.bf16.mxu0 0
        %4106 = vmatmul.mubr.bf16.gmra.mrb[0].mxu0 %v3877
        %v4107 = vpop.f32.mrb[0].mxu0
        %v4108 = vadd.f32 0.0, %v4107
        %v4109 = vpop.f32.mrb[0].mxu0
        %v4110 = vpop.f32.mrb[0].mxu0
        %v4111 = vadd.f32 0.0, %v4110
        %v4112 = vpop.f32.mrb[0].mxu0
        %4113 = vmatprep.mubr.bf16.mxu0 0
        %4114 = vmatmul.mubr.bf16.gmra.mrb[0].mxu0 %v3881
        %v4115 = vpop.f32.mrb[0].mxu0
        %v4116 = vadd.f32 0.0, %v4115
        %v4117 = vpop.f32.mrb[0].mxu0
        %v4118 = vpop.f32.mrb[0].mxu0
        %v4119 = vadd.f32 0.0, %v4118
        %v4120 = vpop.f32.mrb[0].mxu0
        %4121 = vmatprep.mubr.bf16.mxu0 0
        %4122 = vmatmul.mubr.bf16.gmra.mrb[0].mxu0 %v3885
        %v4123 = vpop.f32.mrb[0].mxu0
        %v4124 = vadd.f32 0.0, %v4123
        %v4125 = vpop.f32.mrb[0].mxu0
        %v4126 = vpop.f32.mrb[0].mxu0
        %v4127 = vadd.f32 0.0, %v4126
        %v4128 = vpop.f32.mrb[0].mxu0
        %4129 = vmatprep.mubr.bf16.mxu0 0
        %4130 = vmatmul.mubr.bf16.gmra.mrb[0].mxu0 %v3894
        %v4131 = vpop.f32.mrb[0].mxu0
        %v4132 = vadd.f32 0.0, %v4131
        %v4133 = vpop.f32.mrb[0].mxu0
        %v4134 = vpop.f32.mrb[0].mxu0
        %v4135 = vadd.f32 0.0, %v4134
        %v4136 = vpop.f32.mrb[0].mxu0
        %4137 = vdwg.mxu0
        %v4138 = vadd.f32 %v3758, %v3996
        %v4139 = vadd.f32 %v3759, %v3999
        %v4140 = vadd.f32 %v3760, %v4004
        %v4141 = vadd.f32 %v3761, %v4007
        %v4142 = vadd.f32 %v3762, %v4012
        %v4143 = vadd.f32 %v3763, %v4015
        %v4144 = vadd.f32 %v3764, %v4020
        %v4145 = vadd.f32 %v3765, %v4023
        %v4146 = vadd.f32 %v3766, %v4028
        %v4147 = vadd.f32 %v3767, %v4031
        %v4148 = vadd.f32 %v3768, %v4036
        %v4149 = vadd.f32 %v3769, %v4039
        %v4150 = vadd.f32 %v3770, %v4044
        %v4151 = vadd.f32 %v3771, %v4047
        %v4152 = vadd.f32 %v3772, %v4052
        %v4153 = vadd.f32 %v3773, %v4055
        %v4154 = vadd.f32 %v3774, %v4060
        %v4155 = vadd.f32 %v3775, %v4063
        %v4156 = vadd.f32 %v3776, %v4068
        %v4157 = vadd.f32 %v3777, %v4071
        %v4158 = vadd.f32 %v3778, %v4076
        %v4159 = vadd.f32 %v3779, %v4079
        %v4160 = vadd.f32 %v3780, %v4084
        %v4161 = vadd.f32 %v3781, %v4087
        %v4162 = vadd.f32 %v3782, %v4092
        %v4163 = vadd.f32 %v3783, %v4095
        %v4164 = vadd.f32 %v3784, %v4100
        %v4165 = vadd.f32 %v3785, %v4103
        %v4166 = vadd.f32 %v3786, %v4108
        %v4167 = vadd.f32 %v3787, %v4111
        %v4168 = vadd.f32 %v3788, %v4116
        %v4169 = vadd.f32 %v3789, %v4119
        %v4170 = vadd.f32 %v3790, %v4124
        %v4171 = vadd.f32 %v3791, %v4127
        %v4172 = vadd.f32 %v3792, %v4132
        %v4173 = vadd.f32 %v3793, %v4135
        %v4174 = vpack.c.bf16 %v4139, %v4138
        %v4175 = vpack.c.bf16 %v4141, %v4140
        %v4176 = vpack.c.bf16 %v4143, %v4142
        %v4177 = vpack.c.bf16 %v4145, %v4144
        %v4178 = vpack.c.bf16 %v4147, %v4146
        %v4179 = vpack.c.bf16 %v4149, %v4148
        %v4180 = vpack.c.bf16 %v4151, %v4150
        %v4181 = vpack.c.bf16 %v4153, %v4152
        %v4182 = vpack.c.bf16 %v4155, %v4154
        %v4183 = vpack.c.bf16 %v4157, %v4156
        %v4184 = vpack.c.bf16 %v4159, %v4158
        %v4185 = vpack.c.bf16 %v4161, %v4160
        %v4186 = vpack.c.bf16 %v4163, %v4162
        %v4187 = vpack.c.bf16 %v4165, %v4164
        %v4188 = vpack.c.bf16 %v4167, %v4166
        %v4189 = vpack.c.bf16 %v4169, %v4168
        %v4190 = vpack.c.bf16 %v4171, %v4170
        %v4191 = vpack.c.bf16 %v4173, %v4172
        %v4210 = vunpack.c.l.b16 %v4174
        %v4211 = vunpack.c.h.b16 %v4174
        %v4212 = vunpack.c.l.b16 %v4175
        %v4213 = vunpack.c.h.b16 %v4175
        %v4214 = vunpack.c.l.b16 %v4176
        %v4215 = vunpack.c.h.b16 %v4176
        %v4216 = vunpack.c.l.b16 %v4177
        %v4217 = vunpack.c.h.b16 %v4177
        %v4218 = vunpack.c.l.b16 %v4178
        %v4219 = vunpack.c.h.b16 %v4178
        %v4220 = vunpack.c.l.b16 %v4179
        %v4221 = vunpack.c.h.b16 %v4179
        %v4222 = vunpack.c.l.b16 %v4180
        %v4223 = vunpack.c.h.b16 %v4180
        %v4224 = vunpack.c.l.b16 %v4181
        %v4225 = vunpack.c.h.b16 %v4181
        %v4226 = vunpack.c.l.b16 %v4182
        %v4227 = vunpack.c.h.b16 %v4182
        %v4228 = vunpack.c.l.b16 %v4183
        %v4229 = vunpack.c.h.b16 %v4183
        %v4230 = vunpack.c.l.b16 %v4184
        %v4231 = vunpack.c.h.b16 %v4184
        %v4232 = vunpack.c.l.b16 %v4185
        %v4233 = vunpack.c.h.b16 %v4185
        %v4234 = vunpack.c.l.b16 %v4186
        %v4235 = vunpack.c.h.b16 %v4186
        %v4236 = vunpack.c.l.b16 %v4187
        %v4237 = vunpack.c.h.b16 %v4187
        %v4238 = vunpack.c.l.b16 %v4188
        %v4239 = vunpack.c.h.b16 %v4188
        %v4240 = vunpack.c.l.b16 %v4189
        %v4241 = vunpack.c.h.b16 %v4189
        %v4242 = vunpack.c.l.b16 %v4190
        %v4243 = vunpack.c.h.b16 %v4190
        %v4244 = vunpack.c.l.b16 %v4191
        %v4245 = vunpack.c.h.b16 %v4191
        %v4246 = vpack.c.b16 %v4210, %v4210
        %v4247 = vpack.c.b16 %v4211, %v4211
        %v4248 = vpack.c.b16 %v4212, %v4212
        %v4249 = vpack.c.b16 %v4213, %v4213
        %v4250 = vpack.c.b16 %v4214, %v4214
        %v4251 = vpack.c.b16 %v4215, %v4215
        %v4252 = vpack.c.b16 %v4216, %v4216
        %v4253 = vpack.c.b16 %v4217, %v4217
        %v4254 = vpack.c.b16 %v4218, %v4218
        %v4255 = vpack.c.b16 %v4219, %v4219
        %v4256 = vpack.c.b16 %v4220, %v4220
        %v4257 = vpack.c.b16 %v4221, %v4221
        %v4258 = vpack.c.b16 %v4222, %v4222
        %v4259 = vpack.c.b16 %v4223, %v4223
        %v4260 = vpack.c.b16 %v4224, %v4224
        %v4261 = vpack.c.b16 %v4225, %v4225
        %v4262 = vpack.c.b16 %v4226, %v4226
        %v4263 = vpack.c.b16 %v4227, %v4227
        %v4264 = vpack.c.b16 %v4228, %v4228
        %v4265 = vpack.c.b16 %v4229, %v4229
        %v4266 = vpack.c.b16 %v4230, %v4230
        %v4267 = vpack.c.b16 %v4231, %v4231
        %v4268 = vpack.c.b16 %v4232, %v4232
        %v4269 = vpack.c.b16 %v4233, %v4233
        %v4270 = vpack.c.b16 %v4234, %v4234
        %v4271 = vpack.c.b16 %v4235, %v4235
        %v4272 = vpack.c.b16 %v4236, %v4236
        %v4273 = vpack.c.b16 %v4237, %v4237
        %v4274 = vpack.c.b16 %v4238, %v4238
        %v4275 = vpack.c.b16 %v4239, %v4239
        %v4276 = vpack.c.b16 %v4240, %v4240
        %v4277 = vpack.c.b16 %v4241, %v4241
        %v4278 = vpack.c.b16 %v4242, %v4242
        %v4279 = vpack.c.b16 %v4243, %v4243
        %v4280 = vpack.c.b16 %v4244, %v4244
        %v4281 = vpack.c.b16 %v4245, %v4245
        %4318 = vst [vmem:[%s327] sm:$0xf] %v4246
        %4319 = vst [vmem:[%s327 + $0x4] sm:$0xf] %v4247
        %4320 = vst [vmem:[%s327 + $0x8] sm:$0xf] %v4248
        %4321 = vst [vmem:[%s327 + $0xc] sm:$0xf] %v4249
        %4322 = vst [vmem:[%s327 + $0x10] sm:$0xf] %v4250
        %4323 = vst [vmem:[%s327 + $0x14] sm:$0xf] %v4251
        %4324 = vst [vmem:[%s327 + $0x18] sm:$0xf] %v4252
        %4325 = vst [vmem:[%s327 + $0x1c] sm:$0xf] %v4253
        %4326 = vst [vmem:[%s327 + $0x20] sm:$0xf] %v4254
        %4327 = vst [vmem:[%s327 + $0x24] sm:$0xf] %v4255
        %4328 = vst [vmem:[%s327 + $0x28] sm:$0xf] %v4256
        %4329 = vst [vmem:[%s327 + $0x2c] sm:$0xf] %v4257
        %4330 = vst [vmem:[%s327 + $0x30] sm:$0xf] %v4258
        %4331 = vst [vmem:[%s327 + $0x34] sm:$0xf] %v4259
        %4332 = vst [vmem:[%s327 + $0x38] sm:$0xf] %v4260
        %4333 = vst [vmem:[%s327 + $0x3c] sm:$0xf] %v4261
        %4334 = vst [vmem:[%s327 + $0x40] sm:$0xf] %v4262
        %4335 = vst [vmem:[%s327 + $0x44] sm:$0xf] %v4263
        %4336 = vst [vmem:[%s327 + $0x48] sm:$0xf] %v4264
        %4337 = vst [vmem:[%s327 + $0x4c] sm:$0xf] %v4265
        %4338 = vst [vmem:[%s327 + $0x50] sm:$0xf] %v4266
        %4339 = vst [vmem:[%s327 + $0x54] sm:$0xf] %v4267
        %4340 = vst [vmem:[%s327 + $0x58] sm:$0xf] %v4268
        %4341 = vst [vmem:[%s327 + $0x5c] sm:$0xf] %v4269
        %4342 = vst [vmem:[%s327 + $0x60] sm:$0xf] %v4270
        %4343 = vst [vmem:[%s327 + $0x64] sm:$0xf] %v4271
        %4344 = vst [vmem:[%s327 + $0x68] sm:$0xf] %v4272
        %4345 = vst [vmem:[%s327 + $0x6c] sm:$0xf] %v4273
        %4346 = vst [vmem:[%s327 + $0x70] sm:$0xf] %v4274
        %4347 = vst [vmem:[%s327 + $0x74] sm:$0xf] %v4275
        %4348 = vst [vmem:[%s327 + $0x78] sm:$0xf] %v4276
        %4349 = vst [vmem:[%s327 + $0x7c] sm:$0xf] %v4277
        %4350 = vst [vmem:[%s327 + $0x80] sm:$0xf] %v4278
        %4351 = vst [vmem:[%s327 + $0x84] sm:$0xf] %v4279
        %4352 = vst [vmem:[%s327 + $0x88] sm:$0xf] %v4280
        %4353 = vst [vmem:[%s327 + $0x8c] sm:$0xf] %v4281
        %v4354 = vmul.f32 %v4138, %v583
        %v4355 = vmul.f32 %v4139, %v588
        %v4356 = vmul.f32 %v4140, %v593
        %v4357 = vmul.f32 %v4141, %v598
        %v4358 = vmul.f32 %v4142, %v603
        %v4359 = vmul.f32 %v4143, %v608
        %v4360 = vmul.f32 %v4144, %v613
        %v4361 = vmul.f32 %v4145, %v618
        %v4362 = vmul.f32 %v4146, %v623
        %v4363 = vmul.f32 %v4147, %v628
        %v4364 = vmul.f32 %v4148, %v633
        %v4365 = vmul.f32 %v4149, %v638
        %v4366 = vmul.f32 %v4150, %v643
        %v4367 = vmul.f32 %v4151, %v648
        %v4368 = vmul.f32 %v4152, %v653
        %v4369 = vmul.f32 %v4153, %v658
        %v4370 = vmul.f32 %v4154, %v663
        %v4371 = vmul.f32 %v4155, %v668
        %v4372 = vmul.f32 %v4156, %v673
        %v4373 = vmul.f32 %v4157, %v678
        %v4374 = vmul.f32 %v4158, %v683
        %v4375 = vmul.f32 %v4159, %v688
        %v4376 = vmul.f32 %v4160, %v693
        %v4377 = vmul.f32 %v4161, %v698
        %v4378 = vmul.f32 %v4162, %v703
        %v4379 = vmul.f32 %v4163, %v708
        %v4380 = vmul.f32 %v4164, %v713
        %v4381 = vmul.f32 %v4165, %v718
        %v4382 = vmul.f32 %v4166, %v723
        %v4383 = vmul.f32 %v4167, %v728
        %v4384 = vmul.f32 %v4168, %v733
        %v4385 = vmul.f32 %v4169, %v738
        %v4386 = vmul.f32 %v4170, %v743
        %v4387 = vmul.f32 %v4171, %v748
        %v4388 = vmul.f32 %v4172, %v753
        %v4389 = vmul.f32 %v4173, %v758
        %v4390 = vadd.f32 %v4354, %v4355
        %v4391 = vadd.f32 %v4390, %v4356
        %v4392 = vadd.f32 %v4391, %v4357
        %v4393 = vadd.f32 %v4392, %v4358
        %v4394 = vadd.f32 %v4393, %v4359
        %v4395 = vadd.f32 %v4394, %v4360
        %v4396 = vadd.f32 %v4395, %v4361
        %v4397 = vadd.f32 %v4396, %v4362
        %v4398 = vadd.f32 %v4397, %v4363
        %v4399 = vadd.f32 %v4398, %v4364
        %v4400 = vadd.f32 %v4399, %v4365
        %v4401 = vadd.f32 %v4400, %v4366
        %v4402 = vadd.f32 %v4401, %v4367
        %v4403 = vadd.f32 %v4402, %v4368
        %v4404 = vadd.f32 %v4403, %v4369
        %v4405 = vadd.f32 %v4404, %v4370
        %v4406 = vadd.f32 %v4405, %v4371
        %v4407 = vadd.f32 %v4406, %v4372
        %v4408 = vadd.f32 %v4407, %v4373
        %v4409 = vadd.f32 %v4408, %v4374
        %v4410 = vadd.f32 %v4409, %v4375
        %v4411 = vadd.f32 %v4410, %v4376
        %v4412 = vadd.f32 %v4411, %v4377
        %v4413 = vadd.f32 %v4412, %v4378
        %v4414 = vadd.f32 %v4413, %v4379
        %v4415 = vadd.f32 %v4414, %v4380
        %v4416 = vadd.f32 %v4415, %v4381
        %v4417 = vadd.f32 %v4416, %v4382
        %v4418 = vadd.f32 %v4417, %v4383
        %v4419 = vadd.f32 %v4418, %v4384
        %v4420 = vadd.f32 %v4419, %v4385
        %v4421 = vadd.f32 %v4420, %v4386
        %v4422 = vadd.f32 %v4421, %v4387
        %v4423 = vadd.f32 %v4422, %v4388
        %v4424 = vadd.f32 %v4423, %v4389
        %v4425 = vrot.slane %v4424, 4
        %v4426 = vadd.f32 %v4424, %v4425
        %v4427 = vrot.slane %v4426, 2
        %v4428 = vadd.f32 %v4426, %v4427
        %v4429 = vrot.slane %v4428, 1
        %v4430 = vadd.f32 %v4428, %v4429
        %4431 = vst [vmem:[%s334] sm:$0x1] %v4430
        %v4432 = vmul.f32 %v4354, %v4138
        %v4433 = vmul.f32 %v4355, %v4139
        %v4434 = vmul.f32 %v4356, %v4140
        %v4435 = vmul.f32 %v4357, %v4141
        %v4436 = vmul.f32 %v4358, %v4142
        %v4437 = vmul.f32 %v4359, %v4143
        %v4438 = vmul.f32 %v4360, %v4144
        %v4439 = vmul.f32 %v4361, %v4145
        %v4440 = vmul.f32 %v4362, %v4146
        %v4441 = vmul.f32 %v4363, %v4147
        %v4442 = vmul.f32 %v4364, %v4148
        %v4443 = vmul.f32 %v4365, %v4149
        %v4444 = vmul.f32 %v4366, %v4150
        %v4445 = vmul.f32 %v4367, %v4151
        %v4446 = vmul.f32 %v4368, %v4152
        %v4447 = vmul.f32 %v4369, %v4153
        %v4448 = vmul.f32 %v4370, %v4154
        %v4449 = vmul.f32 %v4371, %v4155
        %v4450 = vmul.f32 %v4372, %v4156
        %v4451 = vmul.f32 %v4373, %v4157
        %v4452 = vmul.f32 %v4374, %v4158
        %v4453 = vmul.f32 %v4375, %v4159
        %v4454 = vmul.f32 %v4376, %v4160
        %v4455 = vmul.f32 %v4377, %v4161
        %v4456 = vmul.f32 %v4378, %v4162
        %v4457 = vmul.f32 %v4379, %v4163
        %v4458 = vmul.f32 %v4380, %v4164
        %v4459 = vmul.f32 %v4381, %v4165
        %v4460 = vmul.f32 %v4382, %v4166
        %v4461 = vmul.f32 %v4383, %v4167
        %v4462 = vmul.f32 %v4384, %v4168
        %v4463 = vmul.f32 %v4385, %v4169
        %v4464 = vmul.f32 %v4386, %v4170
        %v4465 = vmul.f32 %v4387, %v4171
        %v4466 = vmul.f32 %v4388, %v4172
        %v4467 = vmul.f32 %v4389, %v4173
        %v4468 = vadd.f32 %v4432, %v4433
        %v4469 = vadd.f32 %v4468, %v4434
        %v4470 = vadd.f32 %v4469, %v4435
        %v4471 = vadd.f32 %v4470, %v4436
        %v4472 = vadd.f32 %v4471, %v4437
        %v4473 = vadd.f32 %v4472, %v4438
        %v4474 = vadd.f32 %v4473, %v4439
        %v4475 = vadd.f32 %v4474, %v4440
        %v4476 = vadd.f32 %v4475, %v4441
        %v4477 = vadd.f32 %v4476, %v4442
        %v4478 = vadd.f32 %v4477, %v4443
        %v4479 = vadd.f32 %v4478, %v4444
        %v4480 = vadd.f32 %v4479, %v4445
        %v4481 = vadd.f32 %v4480, %v4446
        %v4482 = vadd.f32 %v4481, %v4447
        %v4483 = vadd.f32 %v4482, %v4448
        %v4484 = vadd.f32 %v4483, %v4449
        %v4485 = vadd.f32 %v4484, %v4450
        %v4486 = vadd.f32 %v4485, %v4451
        %v4487 = vadd.f32 %v4486, %v4452
        %v4488 = vadd.f32 %v4487, %v4453
        %v4489 = vadd.f32 %v4488, %v4454
        %v4490 = vadd.f32 %v4489, %v4455
        %v4491 = vadd.f32 %v4490, %v4456
        %v4492 = vadd.f32 %v4491, %v4457
        %v4493 = vadd.f32 %v4492, %v4458
        %v4494 = vadd.f32 %v4493, %v4459
        %v4495 = vadd.f32 %v4494, %v4460
        %v4496 = vadd.f32 %v4495, %v4461
        %v4497 = vadd.f32 %v4496, %v4462
        %v4498 = vadd.f32 %v4497, %v4463
        %v4499 = vadd.f32 %v4498, %v4464
        %v4500 = vadd.f32 %v4499, %v4465
        %v4501 = vadd.f32 %v4500, %v4466
        %v4502 = vadd.f32 %v4501, %v4467
        %v4503 = vrot.slane %v4502, 4
        %v4504 = vadd.f32 %v4502, %v4503
        %v4505 = vrot.slane %v4504, 2
        %v4506 = vadd.f32 %v4504, %v4505
        %v4507 = vrot.slane %v4506, 1
        %v4508 = vadd.f32 %v4506, %v4507
        %4509 = vst [vmem:[%s334 + $0x1] sm:$0x1] %v4508
        %s4510 = sand.u32 %s147, 1
        %s4511 = scalar_lea.sflag [#allocation5], %s4510
        %s4512 = sand.u32 %s147, 1
        %s4513 = smul.addr %s4512, 144
        %s4514 = scalar_lea.vmem [#allocation12], %s4513
        %s4515 = sand.u32 %s173, 1
        %s4516 = scalar_lea.sflag [#allocation14], %s4515
        %s4517 = sand.u32 %s173, 1
        %s4518 = smul.addr %s4517, 2
        %s4519 = scalar_lea.vmem [#allocation13], %s4518
        // Predicated region
        $region61: #{base_block_forward.4} parent=39 // pred_check
          %p4520 = pneg %p157
        $region62: #{base_block_forward.4} parent=39 // pred_check_branch
          %4522 = sbr.rel (%p4520) target = $region64
        $region63: #{base_block_forward.4} parent=39 // pred_region
          %s4524 = ssub.s32 2304, 2304
          %4525 = vsyncadd %s4511, %s4524
          %s4526 = smul.addr %s29, 36
          %s4527 = smul.addr %s4526, 64
          %s4528 = scalar_lea.hbm %s5, %s4527
          %s4529 = sshll.u32 %s4514, 4
          %s4530 = int_to_ptr.vmem [resolvable:$true] %s4529
          %4535 = dma.vmem_to_hbm [thread:$0]  %s4530, 2304, %s4528, %s4511, 64, 64, 4
        $region64: #{base_block_forward.4} parent=39 // pred_fallthru
          _
        // Predicated region
        $region65: #{base_block_forward.4} parent=39 // pred_check
          %p4536 = pneg %p183
        $region66: #{base_block_forward.4} parent=39 // pred_check_branch
          %4538 = sbr.rel (%p4536) target = $region68
        $region67: #{base_block_forward.4} parent=39 // pred_region
          %s4540 = ssub.s32 32, 32
          %4541 = vsyncadd %s4516, %s4540
          %s4542 = smul.addr %s29, 32
          %s4543 = scalar_lea.hbm %s6, %s4542
          %s4545 = sshll.u32 %s4519, 4
          %s4546 = int_to_ptr.vmem [resolvable:$true] %s4545
          %4548 = dma.vmem_to_hbm [thread:$0]  %s4546, 32, %s4543, %s4516
        $region68: #{base_block_forward.4} parent=39 // pred_fallthru
          _
      $region40: #{base_block_forward.4} parent=5 // pred_fallthru
        _
      %p4549 = scmp.le.s32.totalorder 2, %s24
      // Predicated region
      $region69: #{base_block_forward.4} parent=5 // pred_check
        %p4550 = pneg %p4549
      $region70: #{base_block_forward.4} parent=5 // pred_check_branch
        %4552 = sbr.rel (%p4550) target = $region72
      $region71: #{base_block_forward.4} parent=5 // pred_region
        %s4553 = ssub.s32 %s24, 2
        // Predicated region
        $region73: #{base_block_forward.4} parent=71 // pred_check
          %p4554 = pneg %p163
        $region74: #{base_block_forward.4} parent=71 // pred_check_branch
          %4556 = sbr.rel (%p4554) target = $region76
        $region75: #{base_block_forward.4} parent=71 // pred_region
          %s4557 = sand.u32 %s148, 1
          %s4558 = scalar_lea.sflag [#allocation5], %s4557
          %s4559 = sand.u32 %s148, 1
          %s4560 = smul.addr %s4559, 144
          %s4561 = scalar_lea.vmem [#allocation12], %s4560
          %4562 = dma.done %s4558, 2304
        $region76: #{base_block_forward.4} parent=71 // pred_fallthru
          _
        // Predicated region
        $region77: #{base_block_forward.4} parent=71 // pred_check
          %p4563 = pneg %p189
        $region78: #{base_block_forward.4} parent=71 // pred_check_branch
          %4565 = sbr.rel (%p4563) target = $region80
        $region79: #{base_block_forward.4} parent=71 // pred_region
          %s4566 = sand.u32 %s174, 1
          %s4567 = scalar_lea.sflag [#allocation14], %s4566
          %s4568 = sand.u32 %s174, 1
          %s4569 = smul.addr %s4568, 2
          %s4570 = scalar_lea.vmem [#allocation13], %s4569
          %4571 = dma.done %s4567, 32
        $region80: #{base_block_forward.4} parent=71 // pred_fallthru
          _
      $region72: #{base_block_forward.4} parent=5 // pred_fallthru
        _
    $region6: #{base_block_forward.4} parent=1 // loop_footer
      %s28 = sadd.s32 1, %s24
    $region7: #{base_block_forward.4} parent=1 // loop_footer_branch
      %23 = sbr.rel target = $region3
    $region8: #{base_block_forward.4} parent=1 // loop_exit
      _
    %4572 = vsyncpa [#allocation4], 1
    %s4573 = scalar_lea.sflag [#allocation4], 1
    %4574 = vsyncpa %s4573, 1
    %4575 = vsyncpa [#allocation7], 1
    %4576 = vsyncpa [#allocation10], 1
    %4577 = vsyncpa [#allocation5], 1
    %s4578 = scalar_lea.sflag [#allocation5], 1
    %4579 = vsyncpa %s4578, 1
    %4580 = vsyncpa [#allocation14], 1
    %s4581 = scalar_lea.sflag [#allocation14], 1
    %4582 = vsyncpa %s4581, 1

</llo_original>
